<compile_context>
chip_gen: v6e
topology: v6e:2x2x1
jax: 0.10.0
libtpu: 0.0.40
codegen_flags: <defaults>
</compile_context>

<pallas_src>
import math

import numpy as np

import jax
import jax.numpy as jnp
from jax.experimental import pallas as pl
from jax.experimental.pallas import tpu as pltpu


_LANE = 128
_NEG_INF = -1e30
_BT_MAX = 512        # max images per grid step (fits comfortably in 32 MiB VMEM)

_CPARAMS = pltpu.CompilerParams(
    dimension_semantics=("parallel",),      # image tiles are independent -> megacore
    vmem_limit_bytes=32 * 1024 * 1024,      # safe on v5e/v6e (128 MiB) and v7x (64 MiB)
)

# Fixed CNNCifar geometry (32x32x3 input, 5x5 convs, 2x2/2 max-pools).
_H1W = 32                 # conv1 input height/width
_P1 = 14                  # conv1 pooled output height/width
_C1_IN, _C1_OUT = 3, 6
_P2 = 5                   # conv2 pooled output height/width
_C2_IN, _C2_OUT = 6, 16
_KH = _KW = 5


def _round_up(x, m):
    return -(-x // m) * m


def _batch_tile(b):
    """Images per grid step: >=2 steps when possible (v7x megacore), VMEM-capped."""
    if b <= 8:
        return b
    return min(_BT_MAX, _round_up(pl.cdiv(b, 2), 8))


def _pad_last(a, n):
    pad = n - a.shape[-1]
    if pad <= 0:
        return a
    return jnp.pad(a, [(0, 0)] * (a.ndim - 1) + [(0, pad)])


def _pad2(a, rows, cols):
    return jnp.pad(a, ((0, rows - a.shape[0]), (0, cols - a.shape[1])))


# ------------------------- trace-time weight tables ------------------------- #

def _conv1_tables(w_oihw):
    """(6,3,5,5) conv1 weight -> (3, 192, 336) bf16 block-Toeplitz tables.

    LHS rows are pair-packed input rows: row = s*96 + x*3 + ic (s = row within
    the pair, x = input column, ic = channel).  Columns pack the 4 pool offsets
    side by side: col = (2*dy+dx)*84 + px*6 + oc.  Table kp multiplies input
    row-pair (py + kp); summing kp = 0..2 yields conv1(2py+dy, 2px+dx, oc) - b.
    """
    kp = np.arange(3)[:, None, None]
    row = np.arange(2 * _H1W * _C1_IN)[None, :, None]           # 192
    col = np.arange(4 * _P1 * _C1_OUT)[None, None, :]           # 336
    s = row // (_H1W * _C1_IN)
    x = (row % (_H1W * _C1_IN)) // _C1_IN
    ic = row % _C1_IN
    o = col // (_P1 * _C1_OUT)
    px = (col % (_P1 * _C1_OUT)) // _C1_OUT
    oc = col % _C1_OUT
    dy, dx = o // 2, o % 2
    ki = 2 * kp + s - dy
    kj = x - 2 * px - dx
    valid = (ki >= 0) & (ki < _KH) & (kj >= 0) & (kj < _KW)
    gathered = w_oihw[oc, ic, np.clip(ki, 0, _KH - 1), np.clip(kj, 0, _KW - 1)]
    return jnp.where(valid, gathered, 0.0).astype(jnp.bfloat16)


def _conv2_tables(w_oihw):
    """(16,6,5,5) conv2 weight -> (6, 84, 320) bf16 block-Toeplitz tables.

    LHS rows are pooled-conv1 rows: row = x*6 + ic.  col = (2*dy+dx)*80 +
    px*16 + oc.  Table j multiplies pooled-conv1 row (2*py + j); summing
    j = 0..5 yields conv2(2py+dy, 2px+dx, oc) - b.
    """
    j = np.arange(6)[:, None, None]
    row = np.arange(_P1 * _C2_IN)[None, :, None]                # 84
    col = np.arange(4 * _P2 * _C2_OUT)[None, None, :]           # 320
    x = row // _C2_IN
    ic = row % _C2_IN
    o = col // (_P2 * _C2_OUT)
    px = (col % (_P2 * _C2_OUT)) // _C2_OUT
    oc = col % _C2_OUT
    dy, dx = o // 2, o % 2
    ki = j - dy
    kj = x - 2 * px - dx
    valid = (ki >= 0) & (ki < _KH) & (kj >= 0) & (kj < _KW)
    gathered = w_oihw[oc, ic, np.clip(ki, 0, _KH - 1), np.clip(kj, 0, _KW - 1)]
    return jnp.where(valid, gathered, 0.0).astype(jnp.bfloat16)


def _fc1_table(fc1_w):
    """(400,120) fc1 weight (in,out), rows in torch (C,H,W) flatten order, ->
    (5, 80, 128) bf16 with rows permuted to the kernel's (py, px, oc) layout."""
    r = np.arange(_P2 * _P2 * _C2_OUT)                          # 400
    py, rem = r // (_P2 * _C2_OUT), r % (_P2 * _C2_OUT)
    px, oc = rem // _C2_OUT, rem % _C2_OUT
    perm = oc * (_P2 * _P2) + py * _P2 + px                     # torch flat index
    w = _pad_last(fc1_w[perm, :], _LANE)
    return w.reshape(_P2, _P2 * _C2_OUT, _LANE).astype(jnp.bfloat16)


# --------------------------------- kernel ----------------------------------- #

def _cnn_fused_kernel(x_ref, w1_ref, b1_ref, w2_ref, b2_ref,
                      wf1_ref, bf1_ref, wf2_ref, bf2_ref, wf3_ref, bf3_ref,
                      o_ref):
    """Whole CNNCifar forward for one tile of images, entirely in VMEM."""

    def pool4(acc, width):
        # max over the 4 pool offsets packed side by side along the lane dim
        return jnp.maximum(
            jnp.maximum(acc[:, 0:width], acc[:, width:2 * width]),
            jnp.maximum(acc[:, 2 * width:3 * width], acc[:, 3 * width:4 * width]))

    # ---- conv1 + ReLU + 2x2 max-pool: 14 pooled rows, each (bt, 84) bf16 ----
    p1 = []
    for py in range(_P1):
        acc = jnp.dot(x_ref[:, py, :], w1_ref[0], preferred_element_type=jnp.float32)
        for kp in range(1, 3):
            acc += jnp.dot(x_ref[:, py + kp, :], w1_ref[kp],
                           preferred_element_type=jnp.float32)
        m = pool4(acc, _P1 * _C1_OUT)
        p1.append(jnp.maximum(m + b1_ref[...], 0.0).astype(jnp.bfloat16))

    # ---- conv2 + ReLU + pool, feeding fc1 as 5 partial matmuls -------------
    h1 = None
    for py in range(_P2):
        acc = jnp.dot(p1[2 * py], w2_ref[0], preferred_element_type=jnp.float32)
        for j in range(1, 6):
            acc += jnp.dot(p1[2 * py + j], w2_ref[j],
                           preferred_element_type=jnp.float32)
        m = pool4(acc, _P2 * _C2_OUT)
        p2 = jnp.maximum(m + b2_ref[...], 0.0).astype(jnp.bfloat16)
        part = jnp.dot(p2, wf1_ref[py], preferred_element_type=jnp.float32)
        h1 = part if h1 is None else h1 + part

    # ---- fc1 -> fc2 -> fc3 -> log_softmax (f32 epilogue, bf16 MXU ops) -----
    h1 = jnp.maximum(h1 + bf1_ref[...], 0.0).astype(jnp.bfloat16)
    h2 = jnp.dot(h1, wf2_ref[...], preferred_element_type=jnp.float32) + bf2_ref[...]
    h2 = jnp.maximum(h2, 0.0).astype(jnp.bfloat16)
    y = jnp.dot(h2, wf3_ref[...], preferred_element_type=jnp.float32) + bf3_ref[...]
    z = y - jnp.max(y, axis=-1, keepdims=True)
    o_ref[...] = z - jnp.log(jnp.sum(jnp.exp(z), axis=-1, keepdims=True))


# ------------------------------ model forward ------------------------------- #

def cnn_cifar_forward(x_nchw, params):
    """Matches CNNCifar.forward: returns log_softmax logits, shape (B, num_classes)."""
    B = x_nchw.shape[0]
    num_classes = params["fc3_b"].shape[0]

    # NCHW -> NHWC, then pack adjacent image-row pairs onto lanes: (B, 16, 192).
    # TODO(synk): this transpose is the only extra HBM pass left; it could be
    # removed by splitting the conv1 tables per input channel.
    x = jnp.transpose(x_nchw, (0, 2, 3, 1)).reshape(B, _H1W // 2, 2 * _H1W * _C1_IN)
    x = x.astype(jnp.bfloat16)

    w1 = _conv1_tables(params["conv1_w"])
    b1 = jnp.tile(params["conv1_b"].astype(jnp.float32), _P1).reshape(1, _P1 * _C1_OUT)
    w2 = _conv2_tables(params["conv2_w"])
    b2 = jnp.tile(params["conv2_b"].astype(jnp.float32), _P2).reshape(1, _P2 * _C2_OUT)
    wf1 = _fc1_table(params["fc1_w"])
    bf1 = _pad_last(params["fc1_b"].reshape(1, -1), _LANE).astype(jnp.float32)
    wf2 = _pad2(params["fc2_w"], _LANE, _LANE).astype(jnp.bfloat16)
    bf2 = _pad_last(params["fc2_b"].reshape(1, -1), _LANE).astype(jnp.float32)
    wf3 = _pad2(params["fc3_w"], _LANE, _LANE).astype(jnp.bfloat16)
    # padded logit columns get -1e30 so exp() underflows to 0 in the softmax (f32!)
    bf3 = jnp.concatenate(
        [params["fc3_b"].astype(jnp.float32),
         jnp.full((_LANE - num_classes,), _NEG_INF, jnp.float32)]).reshape(1, _LANE)

    bt = _batch_tile(B)
    grid = (pl.cdiv(B, bt),)

    def rep(nd):
        return lambda i: (0,) * nd

    cost = pl.CostEstimate(
        flops=int(2 * B * (3 * 192 * 336 * _P1 + 6 * 84 * 320 * _P2
                           + 400 * _LANE + 2 * _LANE * _LANE)),
        transcendentals=int(B * (_LANE + 1)),
        bytes_accessed=int(B * (16 * 192 * 2 + _LANE * 4)
                           + 2 * (w1.size + w2.size + wf1.size + wf2.size + wf3.size)),
    )

    out = pl.pallas_call(
        _cnn_fused_kernel,
        out_shape=jax.ShapeDtypeStruct((B, _LANE), jnp.float32),
        grid=grid,
        in_specs=[
            # TODO(synk): add pipeline_mode=pl.Buffered(3) here once the deployed
            # JAX version supports it everywhere (small DMA-jitter win).
            pl.BlockSpec((bt, _H1W // 2, 2 * _H1W * _C1_IN), lambda i: (i, 0, 0)),
            pl.BlockSpec(w1.shape, rep(3)),
            pl.BlockSpec(b1.shape, rep(2)),
            pl.BlockSpec(w2.shape, rep(3)),
            pl.BlockSpec(b2.shape, rep(2)),
            pl.BlockSpec(wf1.shape, rep(3)),
            pl.BlockSpec(bf1.shape, rep(2)),
            pl.BlockSpec(wf2.shape, rep(2)),
            pl.BlockSpec(bf2.shape, rep(2)),
            pl.BlockSpec(wf3.shape, rep(2)),
            pl.BlockSpec(bf3.shape, rep(2)),
        ],
        out_specs=pl.BlockSpec((bt, _LANE), lambda i: (i, 0)),
        compiler_params=_CPARAMS,
        cost_estimate=cost,
    )(x, w1, b1, w2, b2, wf1, bf1, wf2, bf2, wf3, bf3)
    return out[:, :num_classes]


def init_params(key, num_classes=10):
    """Deterministic PyTorch-style uniform(-1/sqrt(fan_in), 1/sqrt(fan_in)) init."""
    ks = jax.random.split(key, 10)

    def u(k, shape, fan_in):
        bound = 1.0 / math.sqrt(fan_in)
        return jax.random.uniform(k, shape, jnp.float32, -bound, bound)

    return {
        # conv weights kept in PyTorch (OC, IC, KH, KW) layout
        "conv1_w": u(ks[0], (6, 3, 5, 5), 3 * 5 * 5),
        "conv1_b": u(ks[1], (6,), 3 * 5 * 5),
        "conv2_w": u(ks[2], (16, 6, 5, 5), 6 * 5 * 5),
        "conv2_b": u(ks[3], (16,), 6 * 5 * 5),
        # fc weights stored transposed relative to PyTorch: (in, out)
        "fc1_w": u(ks[4], (16 * 5 * 5, 120), 16 * 5 * 5),
        "fc1_b": u(ks[5], (120,), 16 * 5 * 5),
        "fc2_w": u(ks[6], (120, 100), 120),
        "fc2_b": u(ks[7], (100,), 120),
        "fc3_w": u(ks[8], (100, num_classes), 100),
        "fc3_b": u(ks[9], (num_classes,), 100),
    }


if __name__ == "__main__":
    key = jax.random.PRNGKey(0)
    k_x, k_p = jax.random.split(key)

    # CIFAR-shaped input: the flatten to 16*5*5 requires 32x32 spatial input.
    batch, num_classes = 2, 10
    x = jax.random.normal(k_x, (batch, 3, 32, 32), dtype=jnp.float32)
    params = init_params(k_p, num_classes=num_classes)

    fwd = jax.jit(cnn_cifar_forward)
    out = fwd(x, params)
    out = jax.block_until_ready(out)

    assert out.shape == (batch, num_classes)
    assert out.dtype == jnp.float32
    # log_softmax rows must exp-sum to ~1
    assert bool(jnp.allclose(jnp.sum(jnp.exp(out), axis=1), 1.0, atol=1e-4))

    print("KERNEL_OK")
</pallas_src>

<mosaic_0001>
module attributes {stable_mosaic.version = 11 : i64} {
  func.func @_cnn_fused_kernel(%arg0: i32, %arg1: memref<2x16x192xbf16, #tpu.memory_space<vmem>>, %arg2: memref<3x192x336xbf16, #tpu.memory_space<vmem>>, %arg3: memref<1x84xf32, #tpu.memory_space<vmem>>, %arg4: memref<6x84x320xbf16, #tpu.memory_space<vmem>>, %arg5: memref<1x80xf32, #tpu.memory_space<vmem>>, %arg6: memref<5x80x128xbf16, #tpu.memory_space<vmem>>, %arg7: memref<1x128xf32, #tpu.memory_space<vmem>>, %arg8: memref<128x128xbf16, #tpu.memory_space<vmem>>, %arg9: memref<1x128xf32, #tpu.memory_space<vmem>>, %arg10: memref<128x128xbf16, #tpu.memory_space<vmem>>, %arg11: memref<1x128xf32, #tpu.memory_space<vmem>>, %arg12: memref<2x128xf32, #tpu.memory_space<vmem>>) attributes {dimension_semantics = [#tpu.dimension_semantics<parallel>], iteration_bounds = array<i64: 1>, scalar_prefetch = 0 : i64, scratch_operands = 0 : i64, tpu.core_type = #tpu.core_type<tc>, window_params = [{transform_indices = @transform_0, window_bounds = array<i64: 2, 16, 192>}, {pipeline_mode = #tpu.pipeline_mode<synchronous>, transform_indices = @transform_1, window_bounds = array<i64: 3, 192, 336>}, {pipeline_mode = #tpu.pipeline_mode<synchronous>, transform_indices = @transform_2, window_bounds = array<i64: 1, 84>}, {pipeline_mode = #tpu.pipeline_mode<synchronous>, transform_indices = @transform_3, window_bounds = array<i64: 6, 84, 320>}, {pipeline_mode = #tpu.pipeline_mode<synchronous>, transform_indices = @transform_4, window_bounds = array<i64: 1, 80>}, {pipeline_mode = #tpu.pipeline_mode<synchronous>, transform_indices = @transform_5, window_bounds = array<i64: 5, 80, 128>}, {pipeline_mode = #tpu.pipeline_mode<synchronous>, transform_indices = @transform_6, window_bounds = array<i64: 1, 128>}, {pipeline_mode = #tpu.pipeline_mode<synchronous>, transform_indices = @transform_7, window_bounds = array<i64: 128, 128>}, {pipeline_mode = #tpu.pipeline_mode<synchronous>, transform_indices = @transform_8, window_bounds = array<i64: 1, 128>}, {pipeline_mode = #tpu.pipeline_mode<synchronous>, transform_indices = @transform_9, window_bounds = array<i64: 128, 128>}, {pipeline_mode = #tpu.pipeline_mode<synchronous>, transform_indices = @transform_10, window_bounds = array<i64: 1, 128>}, {transform_indices = @transform_11, window_bounds = array<i64: 2, 128>}]} {
    %c0 = arith.constant 0 : index
    %c0_0 = arith.constant 0 : index
    %c0_1 = arith.constant 0 : index
    %0 = vector.load %arg1[%c0, %c0_0, %c0_1] : memref<2x16x192xbf16, #tpu.memory_space<vmem>>, vector<2x1x192xbf16>
    %1 = vector.shape_cast %0 : vector<2x1x192xbf16> to vector<2x192xbf16>
    %c0_2 = arith.constant 0 : index
    %c0_3 = arith.constant 0 : index
    %c0_4 = arith.constant 0 : index
    %2 = vector.load %arg2[%c0_2, %c0_3, %c0_4] : memref<3x192x336xbf16, #tpu.memory_space<vmem>>, vector<1x192x336xbf16>
    %3 = vector.shape_cast %2 : vector<1x192x336xbf16> to vector<192x336xbf16>
    %cst = arith.constant dense<0.000000e+00> : vector<2x336xf32>
    %4 = tpu.matmul %1, %3, %cst {dimension_numbers = #tpu.dot_dimension_numbers<[1], [0], [0], [1], [0, 0, 1, 1], [], []>} : vector<2x192xbf16>, vector<192x336xbf16>, vector<2x336xf32> -> vector<2x336xf32>
    %c0_5 = arith.constant 0 : index
    %c1 = arith.constant 1 : index
    %c0_6 = arith.constant 0 : index
    %5 = vector.load %arg1[%c0_5, %c1, %c0_6] : memref<2x16x192xbf16, #tpu.memory_space<vmem>>, vector<2x1x192xbf16>
    %6 = vector.shape_cast %5 : vector<2x1x192xbf16> to vector<2x192xbf16>
    %c1_7 = arith.constant 1 : index
    %c0_8 = arith.constant 0 : index
    %c0_9 = arith.constant 0 : index
    %7 = vector.load %arg2[%c1_7, %c0_8, %c0_9] : memref<3x192x336xbf16, #tpu.memory_space<vmem>>, vector<1x192x336xbf16>
    %8 = vector.shape_cast %7 : vector<1x192x336xbf16> to vector<192x336xbf16>
    %cst_10 = arith.constant dense<0.000000e+00> : vector<2x336xf32>
    %9 = tpu.matmul %6, %8, %cst_10 {dimension_numbers = #tpu.dot_dimension_numbers<[1], [0], [0], [1], [0, 0, 1, 1], [], []>} : vector<2x192xbf16>, vector<192x336xbf16>, vector<2x336xf32> -> vector<2x336xf32>
    %10 = arith.addf %4, %9 : vector<2x336xf32>
    %c0_11 = arith.constant 0 : index
    %c2 = arith.constant 2 : index
    %c0_12 = arith.constant 0 : index
    %11 = vector.load %arg1[%c0_11, %c2, %c0_12] : memref<2x16x192xbf16, #tpu.memory_space<vmem>>, vector<2x1x192xbf16>
    %12 = vector.shape_cast %11 : vector<2x1x192xbf16> to vector<2x192xbf16>
    %c2_13 = arith.constant 2 : index
    %c0_14 = arith.constant 0 : index
    %c0_15 = arith.constant 0 : index
    %13 = vector.load %arg2[%c2_13, %c0_14, %c0_15] : memref<3x192x336xbf16, #tpu.memory_space<vmem>>, vector<1x192x336xbf16>
    %14 = vector.shape_cast %13 : vector<1x192x336xbf16> to vector<192x336xbf16>
    %cst_16 = arith.constant dense<0.000000e+00> : vector<2x336xf32>
    %15 = tpu.matmul %12, %14, %cst_16 {dimension_numbers = #tpu.dot_dimension_numbers<[1], [0], [0], [1], [0, 0, 1, 1], [], []>} : vector<2x192xbf16>, vector<192x336xbf16>, vector<2x336xf32> -> vector<2x336xf32>
    %16 = arith.addf %10, %15 : vector<2x336xf32>
    %17 = vector.extract_strided_slice %16 {offsets = [0, 0], sizes = [2, 84], strides = [1, 1]} : vector<2x336xf32> to vector<2x84xf32>
    %18 = vector.extract_strided_slice %16 {offsets = [0, 84], sizes = [2, 84], strides = [1, 1]} : vector<2x336xf32> to vector<2x84xf32>
    %19 = arith.maximumf %17, %18 : vector<2x84xf32>
    %20 = vector.extract_strided_slice %16 {offsets = [0, 168], sizes = [2, 84], strides = [1, 1]} : vector<2x336xf32> to vector<2x84xf32>
    %21 = vector.extract_strided_slice %16 {offsets = [0, 252], sizes = [2, 84], strides = [1, 1]} : vector<2x336xf32> to vector<2x84xf32>
    %22 = arith.maximumf %20, %21 : vector<2x84xf32>
    %23 = arith.maximumf %19, %22 : vector<2x84xf32>
    %c0_17 = arith.constant 0 : index
    %c0_18 = arith.constant 0 : index
    %24 = vector.load %arg3[%c0_17, %c0_18] : memref<1x84xf32, #tpu.memory_space<vmem>>, vector<1x84xf32>
    %25 = vector.broadcast %24 : vector<1x84xf32> to vector<2x84xf32>
    %26 = arith.addf %23, %25 : vector<2x84xf32>
    %cst_19 = arith.constant 0.000000e+00 : f32
    %27 = vector.broadcast %cst_19 : f32 to vector<2x84xf32>
    %28 = arith.maximumf %26, %27 : vector<2x84xf32>
    %29 = arith.truncf %28 : vector<2x84xf32> to vector<2x84xbf16>
    %c0_20 = arith.constant 0 : index
    %c1_21 = arith.constant 1 : index
    %c0_22 = arith.constant 0 : index
    %30 = vector.load %arg1[%c0_20, %c1_21, %c0_22] : memref<2x16x192xbf16, #tpu.memory_space<vmem>>, vector<2x1x192xbf16>
    %31 = vector.shape_cast %30 : vector<2x1x192xbf16> to vector<2x192xbf16>
    %c0_23 = arith.constant 0 : index
    %c0_24 = arith.constant 0 : index
    %c0_25 = arith.constant 0 : index
    %32 = vector.load %arg2[%c0_23, %c0_24, %c0_25] : memref<3x192x336xbf16, #tpu.memory_space<vmem>>, vector<1x192x336xbf16>
    %33 = vector.shape_cast %32 : vector<1x192x336xbf16> to vector<192x336xbf16>
    %cst_26 = arith.constant dense<0.000000e+00> : vector<2x336xf32>
    %34 = tpu.matmul %31, %33, %cst_26 {dimension_numbers = #tpu.dot_dimension_numbers<[1], [0], [0], [1], [0, 0, 1, 1], [], []>} : vector<2x192xbf16>, vector<192x336xbf16>, vector<2x336xf32> -> vector<2x336xf32>
    %c0_27 = arith.constant 0 : index
    %c2_28 = arith.constant 2 : index
    %c0_29 = arith.constant 0 : index
    %35 = vector.load %arg1[%c0_27, %c2_28, %c0_29] : memref<2x16x192xbf16, #tpu.memory_space<vmem>>, vector<2x1x192xbf16>
    %36 = vector.shape_cast %35 : vector<2x1x192xbf16> to vector<2x192xbf16>
    %c1_30 = arith.constant 1 : index
    %c0_31 = arith.constant 0 : index
    %c0_32 = arith.constant 0 : index
    %37 = vector.load %arg2[%c1_30, %c0_31, %c0_32] : memref<3x192x336xbf16, #tpu.memory_space<vmem>>, vector<1x192x336xbf16>
    %38 = vector.shape_cast %37 : vector<1x192x336xbf16> to vector<192x336xbf16>
    %cst_33 = arith.constant dense<0.000000e+00> : vector<2x336xf32>
    %39 = tpu.matmul %36, %38, %cst_33 {dimension_numbers = #tpu.dot_dimension_numbers<[1], [0], [0], [1], [0, 0, 1, 1], [], []>} : vector<2x192xbf16>, vector<192x336xbf16>, vector<2x336xf32> -> vector<2x336xf32>
    %40 = arith.addf %34, %39 : vector<2x336xf32>
    %c0_34 = arith.constant 0 : index
    %c3 = arith.constant 3 : index
    %c0_35 = arith.constant 0 : index
    %41 = vector.load %arg1[%c0_34, %c3, %c0_35] : memref<2x16x192xbf16, #tpu.memory_space<vmem>>, vector<2x1x192xbf16>
    %42 = vector.shape_cast %41 : vector<2x1x192xbf16> to vector<2x192xbf16>
    %c2_36 = arith.constant 2 : index
    %c0_37 = arith.constant 0 : index
    %c0_38 = arith.constant 0 : index
    %43 = vector.load %arg2[%c2_36, %c0_37, %c0_38] : memref<3x192x336xbf16, #tpu.memory_space<vmem>>, vector<1x192x336xbf16>
    %44 = vector.shape_cast %43 : vector<1x192x336xbf16> to vector<192x336xbf16>
    %cst_39 = arith.constant dense<0.000000e+00> : vector<2x336xf32>
    %45 = tpu.matmul %42, %44, %cst_39 {dimension_numbers = #tpu.dot_dimension_numbers<[1], [0], [0], [1], [0, 0, 1, 1], [], []>} : vector<2x192xbf16>, vector<192x336xbf16>, vector<2x336xf32> -> vector<2x336xf32>
    %46 = arith.addf %40, %45 : vector<2x336xf32>
    %47 = vector.extract_strided_slice %46 {offsets = [0, 0], sizes = [2, 84], strides = [1, 1]} : vector<2x336xf32> to vector<2x84xf32>
    %48 = vector.extract_strided_slice %46 {offsets = [0, 84], sizes = [2, 84], strides = [1, 1]} : vector<2x336xf32> to vector<2x84xf32>
    %49 = arith.maximumf %47, %48 : vector<2x84xf32>
    %50 = vector.extract_strided_slice %46 {offsets = [0, 168], sizes = [2, 84], strides = [1, 1]} : vector<2x336xf32> to vector<2x84xf32>
    %51 = vector.extract_strided_slice %46 {offsets = [0, 252], sizes = [2, 84], strides = [1, 1]} : vector<2x336xf32> to vector<2x84xf32>
    %52 = arith.maximumf %50, %51 : vector<2x84xf32>
    %53 = arith.maximumf %49, %52 : vector<2x84xf32>
    %c0_40 = arith.constant 0 : index
    %c0_41 = arith.constant 0 : index
    %54 = vector.load %arg3[%c0_40, %c0_41] : memref<1x84xf32, #tpu.memory_space<vmem>>, vector<1x84xf32>
    %55 = vector.broadcast %54 : vector<1x84xf32> to vector<2x84xf32>
    %56 = arith.addf %53, %55 : vector<2x84xf32>
    %cst_42 = arith.constant 0.000000e+00 : f32
    %57 = vector.broadcast %cst_42 : f32 to vector<2x84xf32>
    %58 = arith.maximumf %56, %57 : vector<2x84xf32>
    %59 = arith.truncf %58 : vector<2x84xf32> to vector<2x84xbf16>
    %c0_43 = arith.constant 0 : index
    %c2_44 = arith.constant 2 : index
    %c0_45 = arith.constant 0 : index
    %60 = vector.load %arg1[%c0_43, %c2_44, %c0_45] : memref<2x16x192xbf16, #tpu.memory_space<vmem>>, vector<2x1x192xbf16>
    %61 = vector.shape_cast %60 : vector<2x1x192xbf16> to vector<2x192xbf16>
    %c0_46 = arith.constant 0 : index
    %c0_47 = arith.constant 0 : index
    %c0_48 = arith.constant 0 : index
    %62 = vector.load %arg2[%c0_46, %c0_47, %c0_48] : memref<3x192x336xbf16, #tpu.memory_space<vmem>>, vector<1x192x336xbf16>
    %63 = vector.shape_cast %62 : vector<1x192x336xbf16> to vector<192x336xbf16>
    %cst_49 = arith.constant dense<0.000000e+00> : vector<2x336xf32>
    %64 = tpu.matmul %61, %63, %cst_49 {dimension_numbers = #tpu.dot_dimension_numbers<[1], [0], [0], [1], [0, 0, 1, 1], [], []>} : vector<2x192xbf16>, vector<192x336xbf16>, vector<2x336xf32> -> vector<2x336xf32>
    %c0_50 = arith.constant 0 : index
    %c3_51 = arith.constant 3 : index
    %c0_52 = arith.constant 0 : index
    %65 = vector.load %arg1[%c0_50, %c3_51, %c0_52] : memref<2x16x192xbf16, #tpu.memory_space<vmem>>, vector<2x1x192xbf16>
    %66 = vector.shape_cast %65 : vector<2x1x192xbf16> to vector<2x192xbf16>
    %c1_53 = arith.constant 1 : index
    %c0_54 = arith.constant 0 : index
    %c0_55 = arith.constant 0 : index
    %67 = vector.load %arg2[%c1_53, %c0_54, %c0_55] : memref<3x192x336xbf16, #tpu.memory_space<vmem>>, vector<1x192x336xbf16>
    %68 = vector.shape_cast %67 : vector<1x192x336xbf16> to vector<192x336xbf16>
    %cst_56 = arith.constant dense<0.000000e+00> : vector<2x336xf32>
    %69 = tpu.matmul %66, %68, %cst_56 {dimension_numbers = #tpu.dot_dimension_numbers<[1], [0], [0], [1], [0, 0, 1, 1], [], []>} : vector<2x192xbf16>, vector<192x336xbf16>, vector<2x336xf32> -> vector<2x336xf32>
    %70 = arith.addf %64, %69 : vector<2x336xf32>
    %c0_57 = arith.constant 0 : index
    %c4 = arith.constant 4 : index
    %c0_58 = arith.constant 0 : index
    %71 = vector.load %arg1[%c0_57, %c4, %c0_58] : memref<2x16x192xbf16, #tpu.memory_space<vmem>>, vector<2x1x192xbf16>
    %72 = vector.shape_cast %71 : vector<2x1x192xbf16> to vector<2x192xbf16>
    %c2_59 = arith.constant 2 : index
    %c0_60 = arith.constant 0 : index
    %c0_61 = arith.constant 0 : index
    %73 = vector.load %arg2[%c2_59, %c0_60, %c0_61] : memref<3x192x336xbf16, #tpu.memory_space<vmem>>, vector<1x192x336xbf16>
    %74 = vector.shape_cast %73 : vector<1x192x336xbf16> to vector<192x336xbf16>
    %cst_62 = arith.constant dense<0.000000e+00> : vector<2x336xf32>
    %75 = tpu.matmul %72, %74, %cst_62 {dimension_numbers = #tpu.dot_dimension_numbers<[1], [0], [0], [1], [0, 0, 1, 1], [], []>} : vector<2x192xbf16>, vector<192x336xbf16>, vector<2x336xf32> -> vector<2x336xf32>
    %76 = arith.addf %70, %75 : vector<2x336xf32>
    %77 = vector.extract_strided_slice %76 {offsets = [0, 0], sizes = [2, 84], strides = [1, 1]} : vector<2x336xf32> to vector<2x84xf32>
    %78 = vector.extract_strided_slice %76 {offsets = [0, 84], sizes = [2, 84], strides = [1, 1]} : vector<2x336xf32> to vector<2x84xf32>
    %79 = arith.maximumf %77, %78 : vector<2x84xf32>
    %80 = vector.extract_strided_slice %76 {offsets = [0, 168], sizes = [2, 84], strides = [1, 1]} : vector<2x336xf32> to vector<2x84xf32>
    %81 = vector.extract_strided_slice %76 {offsets = [0, 252], sizes = [2, 84], strides = [1, 1]} : vector<2x336xf32> to vector<2x84xf32>
    %82 = arith.maximumf %80, %81 : vector<2x84xf32>
    %83 = arith.maximumf %79, %82 : vector<2x84xf32>
    %c0_63 = arith.constant 0 : index
    %c0_64 = arith.constant 0 : index
    %84 = vector.load %arg3[%c0_63, %c0_64] : memref<1x84xf32, #tpu.memory_space<vmem>>, vector<1x84xf32>
    %85 = vector.broadcast %84 : vector<1x84xf32> to vector<2x84xf32>
    %86 = arith.addf %83, %85 : vector<2x84xf32>
    %cst_65 = arith.constant 0.000000e+00 : f32
    %87 = vector.broadcast %cst_65 : f32 to vector<2x84xf32>
    %88 = arith.maximumf %86, %87 : vector<2x84xf32>
    %89 = arith.truncf %88 : vector<2x84xf32> to vector<2x84xbf16>
    %c0_66 = arith.constant 0 : index
    %c3_67 = arith.constant 3 : index
    %c0_68 = arith.constant 0 : index
    %90 = vector.load %arg1[%c0_66, %c3_67, %c0_68] : memref<2x16x192xbf16, #tpu.memory_space<vmem>>, vector<2x1x192xbf16>
    %91 = vector.shape_cast %90 : vector<2x1x192xbf16> to vector<2x192xbf16>
    %c0_69 = arith.constant 0 : index
    %c0_70 = arith.constant 0 : index
    %c0_71 = arith.constant 0 : index
    %92 = vector.load %arg2[%c0_69, %c0_70, %c0_71] : memref<3x192x336xbf16, #tpu.memory_space<vmem>>, vector<1x192x336xbf16>
    %93 = vector.shape_cast %92 : vector<1x192x336xbf16> to vector<192x336xbf16>
    %cst_72 = arith.constant dense<0.000000e+00> : vector<2x336xf32>
    %94 = tpu.matmul %91, %93, %cst_72 {dimension_numbers = #tpu.dot_dimension_numbers<[1], [0], [0], [1], [0, 0, 1, 1], [], []>} : vector<2x192xbf16>, vector<192x336xbf16>, vector<2x336xf32> -> vector<2x336xf32>
    %c0_73 = arith.constant 0 : index
    %c4_74 = arith.constant 4 : index
    %c0_75 = arith.constant 0 : index
    %95 = vector.load %arg1[%c0_73, %c4_74, %c0_75] : memref<2x16x192xbf16, #tpu.memory_space<vmem>>, vector<2x1x192xbf16>
    %96 = vector.shape_cast %95 : vector<2x1x192xbf16> to vector<2x192xbf16>
    %c1_76 = arith.constant 1 : index
    %c0_77 = arith.constant 0 : index
    %c0_78 = arith.constant 0 : index
    %97 = vector.load %arg2[%c1_76, %c0_77, %c0_78] : memref<3x192x336xbf16, #tpu.memory_space<vmem>>, vector<1x192x336xbf16>
    %98 = vector.shape_cast %97 : vector<1x192x336xbf16> to vector<192x336xbf16>
    %cst_79 = arith.constant dense<0.000000e+00> : vector<2x336xf32>
    %99 = tpu.matmul %96, %98, %cst_79 {dimension_numbers = #tpu.dot_dimension_numbers<[1], [0], [0], [1], [0, 0, 1, 1], [], []>} : vector<2x192xbf16>, vector<192x336xbf16>, vector<2x336xf32> -> vector<2x336xf32>
    %100 = arith.addf %94, %99 : vector<2x336xf32>
    %c0_80 = arith.constant 0 : index
    %c5 = arith.constant 5 : index
    %c0_81 = arith.constant 0 : index
    %101 = vector.load %arg1[%c0_80, %c5, %c0_81] : memref<2x16x192xbf16, #tpu.memory_space<vmem>>, vector<2x1x192xbf16>
    %102 = vector.shape_cast %101 : vector<2x1x192xbf16> to vector<2x192xbf16>
    %c2_82 = arith.constant 2 : index
    %c0_83 = arith.constant 0 : index
    %c0_84 = arith.constant 0 : index
    %103 = vector.load %arg2[%c2_82, %c0_83, %c0_84] : memref<3x192x336xbf16, #tpu.memory_space<vmem>>, vector<1x192x336xbf16>
    %104 = vector.shape_cast %103 : vector<1x192x336xbf16> to vector<192x336xbf16>
    %cst_85 = arith.constant dense<0.000000e+00> : vector<2x336xf32>
    %105 = tpu.matmul %102, %104, %cst_85 {dimension_numbers = #tpu.dot_dimension_numbers<[1], [0], [0], [1], [0, 0, 1, 1], [], []>} : vector<2x192xbf16>, vector<192x336xbf16>, vector<2x336xf32> -> vector<2x336xf32>
    %106 = arith.addf %100, %105 : vector<2x336xf32>
    %107 = vector.extract_strided_slice %106 {offsets = [0, 0], sizes = [2, 84], strides = [1, 1]} : vector<2x336xf32> to vector<2x84xf32>
    %108 = vector.extract_strided_slice %106 {offsets = [0, 84], sizes = [2, 84], strides = [1, 1]} : vector<2x336xf32> to vector<2x84xf32>
    %109 = arith.maximumf %107, %108 : vector<2x84xf32>
    %110 = vector.extract_strided_slice %106 {offsets = [0, 168], sizes = [2, 84], strides = [1, 1]} : vector<2x336xf32> to vector<2x84xf32>
    %111 = vector.extract_strided_slice %106 {offsets = [0, 252], sizes = [2, 84], strides = [1, 1]} : vector<2x336xf32> to vector<2x84xf32>
    %112 = arith.maximumf %110, %111 : vector<2x84xf32>
    %113 = arith.maximumf %109, %112 : vector<2x84xf32>
    %c0_86 = arith.constant 0 : index
    %c0_87 = arith.constant 0 : index
    %114 = vector.load %arg3[%c0_86, %c0_87] : memref<1x84xf32, #tpu.memory_space<vmem>>, vector<1x84xf32>
    %115 = vector.broadcast %114 : vector<1x84xf32> to vector<2x84xf32>
    %116 = arith.addf %113, %115 : vector<2x84xf32>
    %cst_88 = arith.constant 0.000000e+00 : f32
    %117 = vector.broadcast %cst_88 : f32 to vector<2x84xf32>
    %118 = arith.maximumf %116, %117 : vector<2x84xf32>
    %119 = arith.truncf %118 : vector<2x84xf32> to vector<2x84xbf16>
    %c0_89 = arith.constant 0 : index
    %c4_90 = arith.constant 4 : index
    %c0_91 = arith.constant 0 : index
    %120 = vector.load %arg1[%c0_89, %c4_90, %c0_91] : memref<2x16x192xbf16, #tpu.memory_space<vmem>>, vector<2x1x192xbf16>
    %121 = vector.shape_cast %120 : vector<2x1x192xbf16> to vector<2x192xbf16>
    %c0_92 = arith.constant 0 : index
    %c0_93 = arith.constant 0 : index
    %c0_94 = arith.constant 0 : index
    %122 = vector.load %arg2[%c0_92, %c0_93, %c0_94] : memref<3x192x336xbf16, #tpu.memory_space<vmem>>, vector<1x192x336xbf16>
    %123 = vector.shape_cast %122 : vector<1x192x336xbf16> to vector<192x336xbf16>
    %cst_95 = arith.constant dense<0.000000e+00> : vector<2x336xf32>
    %124 = tpu.matmul %121, %123, %cst_95 {dimension_numbers = #tpu.dot_dimension_numbers<[1], [0], [0], [1], [0, 0, 1, 1], [], []>} : vector<2x192xbf16>, vector<192x336xbf16>, vector<2x336xf32> -> vector<2x336xf32>
    %c0_96 = arith.constant 0 : index
    %c5_97 = arith.constant 5 : index
    %c0_98 = arith.constant 0 : index
    %125 = vector.load %arg1[%c0_96, %c5_97, %c0_98] : memref<2x16x192xbf16, #tpu.memory_space<vmem>>, vector<2x1x192xbf16>
    %126 = vector.shape_cast %125 : vector<2x1x192xbf16> to vector<2x192xbf16>
    %c1_99 = arith.constant 1 : index
    %c0_100 = arith.constant 0 : index
    %c0_101 = arith.constant 0 : index
    %127 = vector.load %arg2[%c1_99, %c0_100, %c0_101] : memref<3x192x336xbf16, #tpu.memory_space<vmem>>, vector<1x192x336xbf16>
    %128 = vector.shape_cast %127 : vector<1x192x336xbf16> to vector<192x336xbf16>
    %cst_102 = arith.constant dense<0.000000e+00> : vector<2x336xf32>
    %129 = tpu.matmul %126, %128, %cst_102 {dimension_numbers = #tpu.dot_dimension_numbers<[1], [0], [0], [1], [0, 0, 1, 1], [], []>} : vector<2x192xbf16>, vector<192x336xbf16>, vector<2x336xf32> -> vector<2x336xf32>
    %130 = arith.addf %124, %129 : vector<2x336xf32>
    %c0_103 = arith.constant 0 : index
    %c6 = arith.constant 6 : index
    %c0_104 = arith.constant 0 : index
    %131 = vector.load %arg1[%c0_103, %c6, %c0_104] : memref<2x16x192xbf16, #tpu.memory_space<vmem>>, vector<2x1x192xbf16>
    %132 = vector.shape_cast %131 : vector<2x1x192xbf16> to vector<2x192xbf16>
    %c2_105 = arith.constant 2 : index
    %c0_106 = arith.constant 0 : index
    %c0_107 = arith.constant 0 : index
    %133 = vector.load %arg2[%c2_105, %c0_106, %c0_107] : memref<3x192x336xbf16, #tpu.memory_space<vmem>>, vector<1x192x336xbf16>
    %134 = vector.shape_cast %133 : vector<1x192x336xbf16> to vector<192x336xbf16>
    %cst_108 = arith.constant dense<0.000000e+00> : vector<2x336xf32>
    %135 = tpu.matmul %132, %134, %cst_108 {dimension_numbers = #tpu.dot_dimension_numbers<[1], [0], [0], [1], [0, 0, 1, 1], [], []>} : vector<2x192xbf16>, vector<192x336xbf16>, vector<2x336xf32> -> vector<2x336xf32>
    %136 = arith.addf %130, %135 : vector<2x336xf32>
    %137 = vector.extract_strided_slice %136 {offsets = [0, 0], sizes = [2, 84], strides = [1, 1]} : vector<2x336xf32> to vector<2x84xf32>
    %138 = vector.extract_strided_slice %136 {offsets = [0, 84], sizes = [2, 84], strides = [1, 1]} : vector<2x336xf32> to vector<2x84xf32>
    %139 = arith.maximumf %137, %138 : vector<2x84xf32>
    %140 = vector.extract_strided_slice %136 {offsets = [0, 168], sizes = [2, 84], strides = [1, 1]} : vector<2x336xf32> to vector<2x84xf32>
    %141 = vector.extract_strided_slice %136 {offsets = [0, 252], sizes = [2, 84], strides = [1, 1]} : vector<2x336xf32> to vector<2x84xf32>
    %142 = arith.maximumf %140, %141 : vector<2x84xf32>
    %143 = arith.maximumf %139, %142 : vector<2x84xf32>
    %c0_109 = arith.constant 0 : index
    %c0_110 = arith.constant 0 : index
    %144 = vector.load %arg3[%c0_109, %c0_110] : memref<1x84xf32, #tpu.memory_space<vmem>>, vector<1x84xf32>
    %145 = vector.broadcast %144 : vector<1x84xf32> to vector<2x84xf32>
    %146 = arith.addf %143, %145 : vector<2x84xf32>
    %cst_111 = arith.constant 0.000000e+00 : f32
    %147 = vector.broadcast %cst_111 : f32 to vector<2x84xf32>
    %148 = arith.maximumf %146, %147 : vector<2x84xf32>
    %149 = arith.truncf %148 : vector<2x84xf32> to vector<2x84xbf16>
    %c0_112 = arith.constant 0 : index
    %c5_113 = arith.constant 5 : index
    %c0_114 = arith.constant 0 : index
    %150 = vector.load %arg1[%c0_112, %c5_113, %c0_114] : memref<2x16x192xbf16, #tpu.memory_space<vmem>>, vector<2x1x192xbf16>
    %151 = vector.shape_cast %150 : vector<2x1x192xbf16> to vector<2x192xbf16>
    %c0_115 = arith.constant 0 : index
    %c0_116 = arith.constant 0 : index
    %c0_117 = arith.constant 0 : index
    %152 = vector.load %arg2[%c0_115, %c0_116, %c0_117] : memref<3x192x336xbf16, #tpu.memory_space<vmem>>, vector<1x192x336xbf16>
    %153 = vector.shape_cast %152 : vector<1x192x336xbf16> to vector<192x336xbf16>
    %cst_118 = arith.constant dense<0.000000e+00> : vector<2x336xf32>
    %154 = tpu.matmul %151, %153, %cst_118 {dimension_numbers = #tpu.dot_dimension_numbers<[1], [0], [0], [1], [0, 0, 1, 1], [], []>} : vector<2x192xbf16>, vector<192x336xbf16>, vector<2x336xf32> -> vector<2x336xf32>
    %c0_119 = arith.constant 0 : index
    %c6_120 = arith.constant 6 : index
    %c0_121 = arith.constant 0 : index
    %155 = vector.load %arg1[%c0_119, %c6_120, %c0_121] : memref<2x16x192xbf16, #tpu.memory_space<vmem>>, vector<2x1x192xbf16>
    %156 = vector.shape_cast %155 : vector<2x1x192xbf16> to vector<2x192xbf16>
    %c1_122 = arith.constant 1 : index
    %c0_123 = arith.constant 0 : index
    %c0_124 = arith.constant 0 : index
    %157 = vector.load %arg2[%c1_122, %c0_123, %c0_124] : memref<3x192x336xbf16, #tpu.memory_space<vmem>>, vector<1x192x336xbf16>
    %158 = vector.shape_cast %157 : vector<1x192x336xbf16> to vector<192x336xbf16>
    %cst_125 = arith.constant dense<0.000000e+00> : vector<2x336xf32>
    %159 = tpu.matmul %156, %158, %cst_125 {dimension_numbers = #tpu.dot_dimension_numbers<[1], [0], [0], [1], [0, 0, 1, 1], [], []>} : vector<2x192xbf16>, vector<192x336xbf16>, vector<2x336xf32> -> vector<2x336xf32>
    %160 = arith.addf %154, %159 : vector<2x336xf32>
    %c0_126 = arith.constant 0 : index
    %c7 = arith.constant 7 : index
    %c0_127 = arith.constant 0 : index
    %161 = vector.load %arg1[%c0_126, %c7, %c0_127] : memref<2x16x192xbf16, #tpu.memory_space<vmem>>, vector<2x1x192xbf16>
    %162 = vector.shape_cast %161 : vector<2x1x192xbf16> to vector<2x192xbf16>
    %c2_128 = arith.constant 2 : index
    %c0_129 = arith.constant 0 : index
    %c0_130 = arith.constant 0 : index
    %163 = vector.load %arg2[%c2_128, %c0_129, %c0_130] : memref<3x192x336xbf16, #tpu.memory_space<vmem>>, vector<1x192x336xbf16>
    %164 = vector.shape_cast %163 : vector<1x192x336xbf16> to vector<192x336xbf16>
    %cst_131 = arith.constant dense<0.000000e+00> : vector<2x336xf32>
    %165 = tpu.matmul %162, %164, %cst_131 {dimension_numbers = #tpu.dot_dimension_numbers<[1], [0], [0], [1], [0, 0, 1, 1], [], []>} : vector<2x192xbf16>, vector<192x336xbf16>, vector<2x336xf32> -> vector<2x336xf32>
    %166 = arith.addf %160, %165 : vector<2x336xf32>
    %167 = vector.extract_strided_slice %166 {offsets = [0, 0], sizes = [2, 84], strides = [1, 1]} : vector<2x336xf32> to vector<2x84xf32>
    %168 = vector.extract_strided_slice %166 {offsets = [0, 84], sizes = [2, 84], strides = [1, 1]} : vector<2x336xf32> to vector<2x84xf32>
    %169 = arith.maximumf %167, %168 : vector<2x84xf32>
    %170 = vector.extract_strided_slice %166 {offsets = [0, 168], sizes = [2, 84], strides = [1, 1]} : vector<2x336xf32> to vector<2x84xf32>
    %171 = vector.extract_strided_slice %166 {offsets = [0, 252], sizes = [2, 84], strides = [1, 1]} : vector<2x336xf32> to vector<2x84xf32>
    %172 = arith.maximumf %170, %171 : vector<2x84xf32>
    %173 = arith.maximumf %169, %172 : vector<2x84xf32>
    %c0_132 = arith.constant 0 : index
    %c0_133 = arith.constant 0 : index
    %174 = vector.load %arg3[%c0_132, %c0_133] : memref<1x84xf32, #tpu.memory_space<vmem>>, vector<1x84xf32>
    %175 = vector.broadcast %174 : vector<1x84xf32> to vector<2x84xf32>
    %176 = arith.addf %173, %175 : vector<2x84xf32>
    %cst_134 = arith.constant 0.000000e+00 : f32
    %177 = vector.broadcast %cst_134 : f32 to vector<2x84xf32>
    %178 = arith.maximumf %176, %177 : vector<2x84xf32>
    %179 = arith.truncf %178 : vector<2x84xf32> to vector<2x84xbf16>
    %c0_135 = arith.constant 0 : index
    %c6_136 = arith.constant 6 : index
    %c0_137 = arith.constant 0 : index
    %180 = vector.load %arg1[%c0_135, %c6_136, %c0_137] : memref<2x16x192xbf16, #tpu.memory_space<vmem>>, vector<2x1x192xbf16>
    %181 = vector.shape_cast %180 : vector<2x1x192xbf16> to vector<2x192xbf16>
    %c0_138 = arith.constant 0 : index
    %c0_139 = arith.constant 0 : index
    %c0_140 = arith.constant 0 : index
    %182 = vector.load %arg2[%c0_138, %c0_139, %c0_140] : memref<3x192x336xbf16, #tpu.memory_space<vmem>>, vector<1x192x336xbf16>
    %183 = vector.shape_cast %182 : vector<1x192x336xbf16> to vector<192x336xbf16>
    %cst_141 = arith.constant dense<0.000000e+00> : vector<2x336xf32>
    %184 = tpu.matmul %181, %183, %cst_141 {dimension_numbers = #tpu.dot_dimension_numbers<[1], [0], [0], [1], [0, 0, 1, 1], [], []>} : vector<2x192xbf16>, vector<192x336xbf16>, vector<2x336xf32> -> vector<2x336xf32>
    %c0_142 = arith.constant 0 : index
    %c7_143 = arith.constant 7 : index
    %c0_144 = arith.constant 0 : index
    %185 = vector.load %arg1[%c0_142, %c7_143, %c0_144] : memref<2x16x192xbf16, #tpu.memory_space<vmem>>, vector<2x1x192xbf16>
    %186 = vector.shape_cast %185 : vector<2x1x192xbf16> to vector<2x192xbf16>
    %c1_145 = arith.constant 1 : index
    %c0_146 = arith.constant 0 : index
    %c0_147 = arith.constant 0 : index
    %187 = vector.load %arg2[%c1_145, %c0_146, %c0_147] : memref<3x192x336xbf16, #tpu.memory_space<vmem>>, vector<1x192x336xbf16>
    %188 = vector.shape_cast %187 : vector<1x192x336xbf16> to vector<192x336xbf16>
    %cst_148 = arith.constant dense<0.000000e+00> : vector<2x336xf32>
    %189 = tpu.matmul %186, %188, %cst_148 {dimension_numbers = #tpu.dot_dimension_numbers<[1], [0], [0], [1], [0, 0, 1, 1], [], []>} : vector<2x192xbf16>, vector<192x336xbf16>, vector<2x336xf32> -> vector<2x336xf32>
    %190 = arith.addf %184, %189 : vector<2x336xf32>
    %c0_149 = arith.constant 0 : index
    %c8 = arith.constant 8 : index
    %c0_150 = arith.constant 0 : index
    %191 = vector.load %arg1[%c0_149, %c8, %c0_150] : memref<2x16x192xbf16, #tpu.memory_space<vmem>>, vector<2x1x192xbf16>
    %192 = vector.shape_cast %191 : vector<2x1x192xbf16> to vector<2x192xbf16>
    %c2_151 = arith.constant 2 : index
    %c0_152 = arith.constant 0 : index
    %c0_153 = arith.constant 0 : index
    %193 = vector.load %arg2[%c2_151, %c0_152, %c0_153] : memref<3x192x336xbf16, #tpu.memory_space<vmem>>, vector<1x192x336xbf16>
    %194 = vector.shape_cast %193 : vector<1x192x336xbf16> to vector<192x336xbf16>
    %cst_154 = arith.constant dense<0.000000e+00> : vector<2x336xf32>
    %195 = tpu.matmul %192, %194, %cst_154 {dimension_numbers = #tpu.dot_dimension_numbers<[1], [0], [0], [1], [0, 0, 1, 1], [], []>} : vector<2x192xbf16>, vector<192x336xbf16>, vector<2x336xf32> -> vector<2x336xf32>
    %196 = arith.addf %190, %195 : vector<2x336xf32>
    %197 = vector.extract_strided_slice %196 {offsets = [0, 0], sizes = [2, 84], strides = [1, 1]} : vector<2x336xf32> to vector<2x84xf32>
    %198 = vector.extract_strided_slice %196 {offsets = [0, 84], sizes = [2, 84], strides = [1, 1]} : vector<2x336xf32> to vector<2x84xf32>
    %199 = arith.maximumf %197, %198 : vector<2x84xf32>
    %200 = vector.extract_strided_slice %196 {offsets = [0, 168], sizes = [2, 84], strides = [1, 1]} : vector<2x336xf32> to vector<2x84xf32>
    %201 = vector.extract_strided_slice %196 {offsets = [0, 252], sizes = [2, 84], strides = [1, 1]} : vector<2x336xf32> to vector<2x84xf32>
    %202 = arith.maximumf %200, %201 : vector<2x84xf32>
    %203 = arith.maximumf %199, %202 : vector<2x84xf32>
    %c0_155 = arith.constant 0 : index
    %c0_156 = arith.constant 0 : index
    %204 = vector.load %arg3[%c0_155, %c0_156] : memref<1x84xf32, #tpu.memory_space<vmem>>, vector<1x84xf32>
    %205 = vector.broadcast %204 : vector<1x84xf32> to vector<2x84xf32>
    %206 = arith.addf %203, %205 : vector<2x84xf32>
    %cst_157 = arith.constant 0.000000e+00 : f32
    %207 = vector.broadcast %cst_157 : f32 to vector<2x84xf32>
    %208 = arith.maximumf %206, %207 : vector<2x84xf32>
    %209 = arith.truncf %208 : vector<2x84xf32> to vector<2x84xbf16>
    %c0_158 = arith.constant 0 : index
    %c7_159 = arith.constant 7 : index
    %c0_160 = arith.constant 0 : index
    %210 = vector.load %arg1[%c0_158, %c7_159, %c0_160] : memref<2x16x192xbf16, #tpu.memory_space<vmem>>, vector<2x1x192xbf16>
    %211 = vector.shape_cast %210 : vector<2x1x192xbf16> to vector<2x192xbf16>
    %c0_161 = arith.constant 0 : index
    %c0_162 = arith.constant 0 : index
    %c0_163 = arith.constant 0 : index
    %212 = vector.load %arg2[%c0_161, %c0_162, %c0_163] : memref<3x192x336xbf16, #tpu.memory_space<vmem>>, vector<1x192x336xbf16>
    %213 = vector.shape_cast %212 : vector<1x192x336xbf16> to vector<192x336xbf16>
    %cst_164 = arith.constant dense<0.000000e+00> : vector<2x336xf32>
    %214 = tpu.matmul %211, %213, %cst_164 {dimension_numbers = #tpu.dot_dimension_numbers<[1], [0], [0], [1], [0, 0, 1, 1], [], []>} : vector<2x192xbf16>, vector<192x336xbf16>, vector<2x336xf32> -> vector<2x336xf32>
    %c0_165 = arith.constant 0 : index
    %c8_166 = arith.constant 8 : index
    %c0_167 = arith.constant 0 : index
    %215 = vector.load %arg1[%c0_165, %c8_166, %c0_167] : memref<2x16x192xbf16, #tpu.memory_space<vmem>>, vector<2x1x192xbf16>
    %216 = vector.shape_cast %215 : vector<2x1x192xbf16> to vector<2x192xbf16>
    %c1_168 = arith.constant 1 : index
    %c0_169 = arith.constant 0 : index
    %c0_170 = arith.constant 0 : index
    %217 = vector.load %arg2[%c1_168, %c0_169, %c0_170] : memref<3x192x336xbf16, #tpu.memory_space<vmem>>, vector<1x192x336xbf16>
    %218 = vector.shape_cast %217 : vector<1x192x336xbf16> to vector<192x336xbf16>
    %cst_171 = arith.constant dense<0.000000e+00> : vector<2x336xf32>
    %219 = tpu.matmul %216, %218, %cst_171 {dimension_numbers = #tpu.dot_dimension_numbers<[1], [0], [0], [1], [0, 0, 1, 1], [], []>} : vector<2x192xbf16>, vector<192x336xbf16>, vector<2x336xf32> -> vector<2x336xf32>
    %220 = arith.addf %214, %219 : vector<2x336xf32>
    %c0_172 = arith.constant 0 : index
    %c9 = arith.constant 9 : index
    %c0_173 = arith.constant 0 : index
    %221 = vector.load %arg1[%c0_172, %c9, %c0_173] : memref<2x16x192xbf16, #tpu.memory_space<vmem>>, vector<2x1x192xbf16>
    %222 = vector.shape_cast %221 : vector<2x1x192xbf16> to vector<2x192xbf16>
    %c2_174 = arith.constant 2 : index
    %c0_175 = arith.constant 0 : index
    %c0_176 = arith.constant 0 : index
    %223 = vector.load %arg2[%c2_174, %c0_175, %c0_176] : memref<3x192x336xbf16, #tpu.memory_space<vmem>>, vector<1x192x336xbf16>
    %224 = vector.shape_cast %223 : vector<1x192x336xbf16> to vector<192x336xbf16>
    %cst_177 = arith.constant dense<0.000000e+00> : vector<2x336xf32>
    %225 = tpu.matmul %222, %224, %cst_177 {dimension_numbers = #tpu.dot_dimension_numbers<[1], [0], [0], [1], [0, 0, 1, 1], [], []>} : vector<2x192xbf16>, vector<192x336xbf16>, vector<2x336xf32> -> vector<2x336xf32>
    %226 = arith.addf %220, %225 : vector<2x336xf32>
    %227 = vector.extract_strided_slice %226 {offsets = [0, 0], sizes = [2, 84], strides = [1, 1]} : vector<2x336xf32> to vector<2x84xf32>
    %228 = vector.extract_strided_slice %226 {offsets = [0, 84], sizes = [2, 84], strides = [1, 1]} : vector<2x336xf32> to vector<2x84xf32>
    %229 = arith.maximumf %227, %228 : vector<2x84xf32>
    %230 = vector.extract_strided_slice %226 {offsets = [0, 168], sizes = [2, 84], strides = [1, 1]} : vector<2x336xf32> to vector<2x84xf32>
    %231 = vector.extract_strided_slice %226 {offsets = [0, 252], sizes = [2, 84], strides = [1, 1]} : vector<2x336xf32> to vector<2x84xf32>
    %232 = arith.maximumf %230, %231 : vector<2x84xf32>
    %233 = arith.maximumf %229, %232 : vector<2x84xf32>
    %c0_178 = arith.constant 0 : index
    %c0_179 = arith.constant 0 : index
    %234 = vector.load %arg3[%c0_178, %c0_179] : memref<1x84xf32, #tpu.memory_space<vmem>>, vector<1x84xf32>
    %235 = vector.broadcast %234 : vector<1x84xf32> to vector<2x84xf32>
    %236 = arith.addf %233, %235 : vector<2x84xf32>
    %cst_180 = arith.constant 0.000000e+00 : f32
    %237 = vector.broadcast %cst_180 : f32 to vector<2x84xf32>
    %238 = arith.maximumf %236, %237 : vector<2x84xf32>
    %239 = arith.truncf %238 : vector<2x84xf32> to vector<2x84xbf16>
    %c0_181 = arith.constant 0 : index
    %c8_182 = arith.constant 8 : index
    %c0_183 = arith.constant 0 : index
    %240 = vector.load %arg1[%c0_181, %c8_182, %c0_183] : memref<2x16x192xbf16, #tpu.memory_space<vmem>>, vector<2x1x192xbf16>
    %241 = vector.shape_cast %240 : vector<2x1x192xbf16> to vector<2x192xbf16>
    %c0_184 = arith.constant 0 : index
    %c0_185 = arith.constant 0 : index
    %c0_186 = arith.constant 0 : index
    %242 = vector.load %arg2[%c0_184, %c0_185, %c0_186] : memref<3x192x336xbf16, #tpu.memory_space<vmem>>, vector<1x192x336xbf16>
    %243 = vector.shape_cast %242 : vector<1x192x336xbf16> to vector<192x336xbf16>
    %cst_187 = arith.constant dense<0.000000e+00> : vector<2x336xf32>
    %244 = tpu.matmul %241, %243, %cst_187 {dimension_numbers = #tpu.dot_dimension_numbers<[1], [0], [0], [1], [0, 0, 1, 1], [], []>} : vector<2x192xbf16>, vector<192x336xbf16>, vector<2x336xf32> -> vector<2x336xf32>
    %c0_188 = arith.constant 0 : index
    %c9_189 = arith.constant 9 : index
    %c0_190 = arith.constant 0 : index
    %245 = vector.load %arg1[%c0_188, %c9_189, %c0_190] : memref<2x16x192xbf16, #tpu.memory_space<vmem>>, vector<2x1x192xbf16>
    %246 = vector.shape_cast %245 : vector<2x1x192xbf16> to vector<2x192xbf16>
    %c1_191 = arith.constant 1 : index
    %c0_192 = arith.constant 0 : index
    %c0_193 = arith.constant 0 : index
    %247 = vector.load %arg2[%c1_191, %c0_192, %c0_193] : memref<3x192x336xbf16, #tpu.memory_space<vmem>>, vector<1x192x336xbf16>
    %248 = vector.shape_cast %247 : vector<1x192x336xbf16> to vector<192x336xbf16>
    %cst_194 = arith.constant dense<0.000000e+00> : vector<2x336xf32>
    %249 = tpu.matmul %246, %248, %cst_194 {dimension_numbers = #tpu.dot_dimension_numbers<[1], [0], [0], [1], [0, 0, 1, 1], [], []>} : vector<2x192xbf16>, vector<192x336xbf16>, vector<2x336xf32> -> vector<2x336xf32>
    %250 = arith.addf %244, %249 : vector<2x336xf32>
    %c0_195 = arith.constant 0 : index
    %c10 = arith.constant 10 : index
    %c0_196 = arith.constant 0 : index
    %251 = vector.load %arg1[%c0_195, %c10, %c0_196] : memref<2x16x192xbf16, #tpu.memory_space<vmem>>, vector<2x1x192xbf16>
    %252 = vector.shape_cast %251 : vector<2x1x192xbf16> to vector<2x192xbf16>
    %c2_197 = arith.constant 2 : index
    %c0_198 = arith.constant 0 : index
    %c0_199 = arith.constant 0 : index
    %253 = vector.load %arg2[%c2_197, %c0_198, %c0_199] : memref<3x192x336xbf16, #tpu.memory_space<vmem>>, vector<1x192x336xbf16>
    %254 = vector.shape_cast %253 : vector<1x192x336xbf16> to vector<192x336xbf16>
    %cst_200 = arith.constant dense<0.000000e+00> : vector<2x336xf32>
    %255 = tpu.matmul %252, %254, %cst_200 {dimension_numbers = #tpu.dot_dimension_numbers<[1], [0], [0], [1], [0, 0, 1, 1], [], []>} : vector<2x192xbf16>, vector<192x336xbf16>, vector<2x336xf32> -> vector<2x336xf32>
    %256 = arith.addf %250, %255 : vector<2x336xf32>
    %257 = vector.extract_strided_slice %256 {offsets = [0, 0], sizes = [2, 84], strides = [1, 1]} : vector<2x336xf32> to vector<2x84xf32>
    %258 = vector.extract_strided_slice %256 {offsets = [0, 84], sizes = [2, 84], strides = [1, 1]} : vector<2x336xf32> to vector<2x84xf32>
    %259 = arith.maximumf %257, %258 : vector<2x84xf32>
    %260 = vector.extract_strided_slice %256 {offsets = [0, 168], sizes = [2, 84], strides = [1, 1]} : vector<2x336xf32> to vector<2x84xf32>
    %261 = vector.extract_strided_slice %256 {offsets = [0, 252], sizes = [2, 84], strides = [1, 1]} : vector<2x336xf32> to vector<2x84xf32>
    %262 = arith.maximumf %260, %261 : vector<2x84xf32>
    %263 = arith.maximumf %259, %262 : vector<2x84xf32>
    %c0_201 = arith.constant 0 : index
    %c0_202 = arith.constant 0 : index
    %264 = vector.load %arg3[%c0_201, %c0_202] : memref<1x84xf32, #tpu.memory_space<vmem>>, vector<1x84xf32>
    %265 = vector.broadcast %264 : vector<1x84xf32> to vector<2x84xf32>
    %266 = arith.addf %263, %265 : vector<2x84xf32>
    %cst_203 = arith.constant 0.000000e+00 : f32
    %267 = vector.broadcast %cst_203 : f32 to vector<2x84xf32>
    %268 = arith.maximumf %266, %267 : vector<2x84xf32>
    %269 = arith.truncf %268 : vector<2x84xf32> to vector<2x84xbf16>
    %c0_204 = arith.constant 0 : index
    %c9_205 = arith.constant 9 : index
    %c0_206 = arith.constant 0 : index
    %270 = vector.load %arg1[%c0_204, %c9_205, %c0_206] : memref<2x16x192xbf16, #tpu.memory_space<vmem>>, vector<2x1x192xbf16>
    %271 = vector.shape_cast %270 : vector<2x1x192xbf16> to vector<2x192xbf16>
    %c0_207 = arith.constant 0 : index
    %c0_208 = arith.constant 0 : index
    %c0_209 = arith.constant 0 : index
    %272 = vector.load %arg2[%c0_207, %c0_208, %c0_209] : memref<3x192x336xbf16, #tpu.memory_space<vmem>>, vector<1x192x336xbf16>
    %273 = vector.shape_cast %272 : vector<1x192x336xbf16> to vector<192x336xbf16>
    %cst_210 = arith.constant dense<0.000000e+00> : vector<2x336xf32>
    %274 = tpu.matmul %271, %273, %cst_210 {dimension_numbers = #tpu.dot_dimension_numbers<[1], [0], [0], [1], [0, 0, 1, 1], [], []>} : vector<2x192xbf16>, vector<192x336xbf16>, vector<2x336xf32> -> vector<2x336xf32>
    %c0_211 = arith.constant 0 : index
    %c10_212 = arith.constant 10 : index
    %c0_213 = arith.constant 0 : index
    %275 = vector.load %arg1[%c0_211, %c10_212, %c0_213] : memref<2x16x192xbf16, #tpu.memory_space<vmem>>, vector<2x1x192xbf16>
    %276 = vector.shape_cast %275 : vector<2x1x192xbf16> to vector<2x192xbf16>
    %c1_214 = arith.constant 1 : index
    %c0_215 = arith.constant 0 : index
    %c0_216 = arith.constant 0 : index
    %277 = vector.load %arg2[%c1_214, %c0_215, %c0_216] : memref<3x192x336xbf16, #tpu.memory_space<vmem>>, vector<1x192x336xbf16>
    %278 = vector.shape_cast %277 : vector<1x192x336xbf16> to vector<192x336xbf16>
    %cst_217 = arith.constant dense<0.000000e+00> : vector<2x336xf32>
    %279 = tpu.matmul %276, %278, %cst_217 {dimension_numbers = #tpu.dot_dimension_numbers<[1], [0], [0], [1], [0, 0, 1, 1], [], []>} : vector<2x192xbf16>, vector<192x336xbf16>, vector<2x336xf32> -> vector<2x336xf32>
    %280 = arith.addf %274, %279 : vector<2x336xf32>
    %c0_218 = arith.constant 0 : index
    %c11 = arith.constant 11 : index
    %c0_219 = arith.constant 0 : index
    %281 = vector.load %arg1[%c0_218, %c11, %c0_219] : memref<2x16x192xbf16, #tpu.memory_space<vmem>>, vector<2x1x192xbf16>
    %282 = vector.shape_cast %281 : vector<2x1x192xbf16> to vector<2x192xbf16>
    %c2_220 = arith.constant 2 : index
    %c0_221 = arith.constant 0 : index
    %c0_222 = arith.constant 0 : index
    %283 = vector.load %arg2[%c2_220, %c0_221, %c0_222] : memref<3x192x336xbf16, #tpu.memory_space<vmem>>, vector<1x192x336xbf16>
    %284 = vector.shape_cast %283 : vector<1x192x336xbf16> to vector<192x336xbf16>
    %cst_223 = arith.constant dense<0.000000e+00> : vector<2x336xf32>
    %285 = tpu.matmul %282, %284, %cst_223 {dimension_numbers = #tpu.dot_dimension_numbers<[1], [0], [0], [1], [0, 0, 1, 1], [], []>} : vector<2x192xbf16>, vector<192x336xbf16>, vector<2x336xf32> -> vector<2x336xf32>
    %286 = arith.addf %280, %285 : vector<2x336xf32>
    %287 = vector.extract_strided_slice %286 {offsets = [0, 0], sizes = [2, 84], strides = [1, 1]} : vector<2x336xf32> to vector<2x84xf32>
    %288 = vector.extract_strided_slice %286 {offsets = [0, 84], sizes = [2, 84], strides = [1, 1]} : vector<2x336xf32> to vector<2x84xf32>
    %289 = arith.maximumf %287, %288 : vector<2x84xf32>
    %290 = vector.extract_strided_slice %286 {offsets = [0, 168], sizes = [2, 84], strides = [1, 1]} : vector<2x336xf32> to vector<2x84xf32>
    %291 = vector.extract_strided_slice %286 {offsets = [0, 252], sizes = [2, 84], strides = [1, 1]} : vector<2x336xf32> to vector<2x84xf32>
    %292 = arith.maximumf %290, %291 : vector<2x84xf32>
    %293 = arith.maximumf %289, %292 : vector<2x84xf32>
    %c0_224 = arith.constant 0 : index
    %c0_225 = arith.constant 0 : index
    %294 = vector.load %arg3[%c0_224, %c0_225] : memref<1x84xf32, #tpu.memory_space<vmem>>, vector<1x84xf32>
    %295 = vector.broadcast %294 : vector<1x84xf32> to vector<2x84xf32>
    %296 = arith.addf %293, %295 : vector<2x84xf32>
    %cst_226 = arith.constant 0.000000e+00 : f32
    %297 = vector.broadcast %cst_226 : f32 to vector<2x84xf32>
    %298 = arith.maximumf %296, %297 : vector<2x84xf32>
    %299 = arith.truncf %298 : vector<2x84xf32> to vector<2x84xbf16>
    %c0_227 = arith.constant 0 : index
    %c10_228 = arith.constant 10 : index
    %c0_229 = arith.constant 0 : index
    %300 = vector.load %arg1[%c0_227, %c10_228, %c0_229] : memref<2x16x192xbf16, #tpu.memory_space<vmem>>, vector<2x1x192xbf16>
    %301 = vector.shape_cast %300 : vector<2x1x192xbf16> to vector<2x192xbf16>
    %c0_230 = arith.constant 0 : index
    %c0_231 = arith.constant 0 : index
    %c0_232 = arith.constant 0 : index
    %302 = vector.load %arg2[%c0_230, %c0_231, %c0_232] : memref<3x192x336xbf16, #tpu.memory_space<vmem>>, vector<1x192x336xbf16>
    %303 = vector.shape_cast %302 : vector<1x192x336xbf16> to vector<192x336xbf16>
    %cst_233 = arith.constant dense<0.000000e+00> : vector<2x336xf32>
    %304 = tpu.matmul %301, %303, %cst_233 {dimension_numbers = #tpu.dot_dimension_numbers<[1], [0], [0], [1], [0, 0, 1, 1], [], []>} : vector<2x192xbf16>, vector<192x336xbf16>, vector<2x336xf32> -> vector<2x336xf32>
    %c0_234 = arith.constant 0 : index
    %c11_235 = arith.constant 11 : index
    %c0_236 = arith.constant 0 : index
    %305 = vector.load %arg1[%c0_234, %c11_235, %c0_236] : memref<2x16x192xbf16, #tpu.memory_space<vmem>>, vector<2x1x192xbf16>
    %306 = vector.shape_cast %305 : vector<2x1x192xbf16> to vector<2x192xbf16>
    %c1_237 = arith.constant 1 : index
    %c0_238 = arith.constant 0 : index
    %c0_239 = arith.constant 0 : index
    %307 = vector.load %arg2[%c1_237, %c0_238, %c0_239] : memref<3x192x336xbf16, #tpu.memory_space<vmem>>, vector<1x192x336xbf16>
    %308 = vector.shape_cast %307 : vector<1x192x336xbf16> to vector<192x336xbf16>
    %cst_240 = arith.constant dense<0.000000e+00> : vector<2x336xf32>
    %309 = tpu.matmul %306, %308, %cst_240 {dimension_numbers = #tpu.dot_dimension_numbers<[1], [0], [0], [1], [0, 0, 1, 1], [], []>} : vector<2x192xbf16>, vector<192x336xbf16>, vector<2x336xf32> -> vector<2x336xf32>
    %310 = arith.addf %304, %309 : vector<2x336xf32>
    %c0_241 = arith.constant 0 : index
    %c12 = arith.constant 12 : index
    %c0_242 = arith.constant 0 : index
    %311 = vector.load %arg1[%c0_241, %c12, %c0_242] : memref<2x16x192xbf16, #tpu.memory_space<vmem>>, vector<2x1x192xbf16>
    %312 = vector.shape_cast %311 : vector<2x1x192xbf16> to vector<2x192xbf16>
    %c2_243 = arith.constant 2 : index
    %c0_244 = arith.constant 0 : index
    %c0_245 = arith.constant 0 : index
    %313 = vector.load %arg2[%c2_243, %c0_244, %c0_245] : memref<3x192x336xbf16, #tpu.memory_space<vmem>>, vector<1x192x336xbf16>
    %314 = vector.shape_cast %313 : vector<1x192x336xbf16> to vector<192x336xbf16>
    %cst_246 = arith.constant dense<0.000000e+00> : vector<2x336xf32>
    %315 = tpu.matmul %312, %314, %cst_246 {dimension_numbers = #tpu.dot_dimension_numbers<[1], [0], [0], [1], [0, 0, 1, 1], [], []>} : vector<2x192xbf16>, vector<192x336xbf16>, vector<2x336xf32> -> vector<2x336xf32>
    %316 = arith.addf %310, %315 : vector<2x336xf32>
    %317 = vector.extract_strided_slice %316 {offsets = [0, 0], sizes = [2, 84], strides = [1, 1]} : vector<2x336xf32> to vector<2x84xf32>
    %318 = vector.extract_strided_slice %316 {offsets = [0, 84], sizes = [2, 84], strides = [1, 1]} : vector<2x336xf32> to vector<2x84xf32>
    %319 = arith.maximumf %317, %318 : vector<2x84xf32>
    %320 = vector.extract_strided_slice %316 {offsets = [0, 168], sizes = [2, 84], strides = [1, 1]} : vector<2x336xf32> to vector<2x84xf32>
    %321 = vector.extract_strided_slice %316 {offsets = [0, 252], sizes = [2, 84], strides = [1, 1]} : vector<2x336xf32> to vector<2x84xf32>
    %322 = arith.maximumf %320, %321 : vector<2x84xf32>
    %323 = arith.maximumf %319, %322 : vector<2x84xf32>
    %c0_247 = arith.constant 0 : index
    %c0_248 = arith.constant 0 : index
    %324 = vector.load %arg3[%c0_247, %c0_248] : memref<1x84xf32, #tpu.memory_space<vmem>>, vector<1x84xf32>
    %325 = vector.broadcast %324 : vector<1x84xf32> to vector<2x84xf32>
    %326 = arith.addf %323, %325 : vector<2x84xf32>
    %cst_249 = arith.constant 0.000000e+00 : f32
    %327 = vector.broadcast %cst_249 : f32 to vector<2x84xf32>
    %328 = arith.maximumf %326, %327 : vector<2x84xf32>
    %329 = arith.truncf %328 : vector<2x84xf32> to vector<2x84xbf16>
    %c0_250 = arith.constant 0 : index
    %c11_251 = arith.constant 11 : index
    %c0_252 = arith.constant 0 : index
    %330 = vector.load %arg1[%c0_250, %c11_251, %c0_252] : memref<2x16x192xbf16, #tpu.memory_space<vmem>>, vector<2x1x192xbf16>
    %331 = vector.shape_cast %330 : vector<2x1x192xbf16> to vector<2x192xbf16>
    %c0_253 = arith.constant 0 : index
    %c0_254 = arith.constant 0 : index
    %c0_255 = arith.constant 0 : index
    %332 = vector.load %arg2[%c0_253, %c0_254, %c0_255] : memref<3x192x336xbf16, #tpu.memory_space<vmem>>, vector<1x192x336xbf16>
    %333 = vector.shape_cast %332 : vector<1x192x336xbf16> to vector<192x336xbf16>
    %cst_256 = arith.constant dense<0.000000e+00> : vector<2x336xf32>
    %334 = tpu.matmul %331, %333, %cst_256 {dimension_numbers = #tpu.dot_dimension_numbers<[1], [0], [0], [1], [0, 0, 1, 1], [], []>} : vector<2x192xbf16>, vector<192x336xbf16>, vector<2x336xf32> -> vector<2x336xf32>
    %c0_257 = arith.constant 0 : index
    %c12_258 = arith.constant 12 : index
    %c0_259 = arith.constant 0 : index
    %335 = vector.load %arg1[%c0_257, %c12_258, %c0_259] : memref<2x16x192xbf16, #tpu.memory_space<vmem>>, vector<2x1x192xbf16>
    %336 = vector.shape_cast %335 : vector<2x1x192xbf16> to vector<2x192xbf16>
    %c1_260 = arith.constant 1 : index
    %c0_261 = arith.constant 0 : index
    %c0_262 = arith.constant 0 : index
    %337 = vector.load %arg2[%c1_260, %c0_261, %c0_262] : memref<3x192x336xbf16, #tpu.memory_space<vmem>>, vector<1x192x336xbf16>
    %338 = vector.shape_cast %337 : vector<1x192x336xbf16> to vector<192x336xbf16>
    %cst_263 = arith.constant dense<0.000000e+00> : vector<2x336xf32>
    %339 = tpu.matmul %336, %338, %cst_263 {dimension_numbers = #tpu.dot_dimension_numbers<[1], [0], [0], [1], [0, 0, 1, 1], [], []>} : vector<2x192xbf16>, vector<192x336xbf16>, vector<2x336xf32> -> vector<2x336xf32>
    %340 = arith.addf %334, %339 : vector<2x336xf32>
    %c0_264 = arith.constant 0 : index
    %c13 = arith.constant 13 : index
    %c0_265 = arith.constant 0 : index
    %341 = vector.load %arg1[%c0_264, %c13, %c0_265] : memref<2x16x192xbf16, #tpu.memory_space<vmem>>, vector<2x1x192xbf16>
    %342 = vector.shape_cast %341 : vector<2x1x192xbf16> to vector<2x192xbf16>
    %c2_266 = arith.constant 2 : index
    %c0_267 = arith.constant 0 : index
    %c0_268 = arith.constant 0 : index
    %343 = vector.load %arg2[%c2_266, %c0_267, %c0_268] : memref<3x192x336xbf16, #tpu.memory_space<vmem>>, vector<1x192x336xbf16>
    %344 = vector.shape_cast %343 : vector<1x192x336xbf16> to vector<192x336xbf16>
    %cst_269 = arith.constant dense<0.000000e+00> : vector<2x336xf32>
    %345 = tpu.matmul %342, %344, %cst_269 {dimension_numbers = #tpu.dot_dimension_numbers<[1], [0], [0], [1], [0, 0, 1, 1], [], []>} : vector<2x192xbf16>, vector<192x336xbf16>, vector<2x336xf32> -> vector<2x336xf32>
    %346 = arith.addf %340, %345 : vector<2x336xf32>
    %347 = vector.extract_strided_slice %346 {offsets = [0, 0], sizes = [2, 84], strides = [1, 1]} : vector<2x336xf32> to vector<2x84xf32>
    %348 = vector.extract_strided_slice %346 {offsets = [0, 84], sizes = [2, 84], strides = [1, 1]} : vector<2x336xf32> to vector<2x84xf32>
    %349 = arith.maximumf %347, %348 : vector<2x84xf32>
    %350 = vector.extract_strided_slice %346 {offsets = [0, 168], sizes = [2, 84], strides = [1, 1]} : vector<2x336xf32> to vector<2x84xf32>
    %351 = vector.extract_strided_slice %346 {offsets = [0, 252], sizes = [2, 84], strides = [1, 1]} : vector<2x336xf32> to vector<2x84xf32>
    %352 = arith.maximumf %350, %351 : vector<2x84xf32>
    %353 = arith.maximumf %349, %352 : vector<2x84xf32>
    %c0_270 = arith.constant 0 : index
    %c0_271 = arith.constant 0 : index
    %354 = vector.load %arg3[%c0_270, %c0_271] : memref<1x84xf32, #tpu.memory_space<vmem>>, vector<1x84xf32>
    %355 = vector.broadcast %354 : vector<1x84xf32> to vector<2x84xf32>
    %356 = arith.addf %353, %355 : vector<2x84xf32>
    %cst_272 = arith.constant 0.000000e+00 : f32
    %357 = vector.broadcast %cst_272 : f32 to vector<2x84xf32>
    %358 = arith.maximumf %356, %357 : vector<2x84xf32>
    %359 = arith.truncf %358 : vector<2x84xf32> to vector<2x84xbf16>
    %c0_273 = arith.constant 0 : index
    %c12_274 = arith.constant 12 : index
    %c0_275 = arith.constant 0 : index
    %360 = vector.load %arg1[%c0_273, %c12_274, %c0_275] : memref<2x16x192xbf16, #tpu.memory_space<vmem>>, vector<2x1x192xbf16>
    %361 = vector.shape_cast %360 : vector<2x1x192xbf16> to vector<2x192xbf16>
    %c0_276 = arith.constant 0 : index
    %c0_277 = arith.constant 0 : index
    %c0_278 = arith.constant 0 : index
    %362 = vector.load %arg2[%c0_276, %c0_277, %c0_278] : memref<3x192x336xbf16, #tpu.memory_space<vmem>>, vector<1x192x336xbf16>
    %363 = vector.shape_cast %362 : vector<1x192x336xbf16> to vector<192x336xbf16>
    %cst_279 = arith.constant dense<0.000000e+00> : vector<2x336xf32>
    %364 = tpu.matmul %361, %363, %cst_279 {dimension_numbers = #tpu.dot_dimension_numbers<[1], [0], [0], [1], [0, 0, 1, 1], [], []>} : vector<2x192xbf16>, vector<192x336xbf16>, vector<2x336xf32> -> vector<2x336xf32>
    %c0_280 = arith.constant 0 : index
    %c13_281 = arith.constant 13 : index
    %c0_282 = arith.constant 0 : index
    %365 = vector.load %arg1[%c0_280, %c13_281, %c0_282] : memref<2x16x192xbf16, #tpu.memory_space<vmem>>, vector<2x1x192xbf16>
    %366 = vector.shape_cast %365 : vector<2x1x192xbf16> to vector<2x192xbf16>
    %c1_283 = arith.constant 1 : index
    %c0_284 = arith.constant 0 : index
    %c0_285 = arith.constant 0 : index
    %367 = vector.load %arg2[%c1_283, %c0_284, %c0_285] : memref<3x192x336xbf16, #tpu.memory_space<vmem>>, vector<1x192x336xbf16>
    %368 = vector.shape_cast %367 : vector<1x192x336xbf16> to vector<192x336xbf16>
    %cst_286 = arith.constant dense<0.000000e+00> : vector<2x336xf32>
    %369 = tpu.matmul %366, %368, %cst_286 {dimension_numbers = #tpu.dot_dimension_numbers<[1], [0], [0], [1], [0, 0, 1, 1], [], []>} : vector<2x192xbf16>, vector<192x336xbf16>, vector<2x336xf32> -> vector<2x336xf32>
    %370 = arith.addf %364, %369 : vector<2x336xf32>
    %c0_287 = arith.constant 0 : index
    %c14 = arith.constant 14 : index
    %c0_288 = arith.constant 0 : index
    %371 = vector.load %arg1[%c0_287, %c14, %c0_288] : memref<2x16x192xbf16, #tpu.memory_space<vmem>>, vector<2x1x192xbf16>
    %372 = vector.shape_cast %371 : vector<2x1x192xbf16> to vector<2x192xbf16>
    %c2_289 = arith.constant 2 : index
    %c0_290 = arith.constant 0 : index
    %c0_291 = arith.constant 0 : index
    %373 = vector.load %arg2[%c2_289, %c0_290, %c0_291] : memref<3x192x336xbf16, #tpu.memory_space<vmem>>, vector<1x192x336xbf16>
    %374 = vector.shape_cast %373 : vector<1x192x336xbf16> to vector<192x336xbf16>
    %cst_292 = arith.constant dense<0.000000e+00> : vector<2x336xf32>
    %375 = tpu.matmul %372, %374, %cst_292 {dimension_numbers = #tpu.dot_dimension_numbers<[1], [0], [0], [1], [0, 0, 1, 1], [], []>} : vector<2x192xbf16>, vector<192x336xbf16>, vector<2x336xf32> -> vector<2x336xf32>
    %376 = arith.addf %370, %375 : vector<2x336xf32>
    %377 = vector.extract_strided_slice %376 {offsets = [0, 0], sizes = [2, 84], strides = [1, 1]} : vector<2x336xf32> to vector<2x84xf32>
    %378 = vector.extract_strided_slice %376 {offsets = [0, 84], sizes = [2, 84], strides = [1, 1]} : vector<2x336xf32> to vector<2x84xf32>
    %379 = arith.maximumf %377, %378 : vector<2x84xf32>
    %380 = vector.extract_strided_slice %376 {offsets = [0, 168], sizes = [2, 84], strides = [1, 1]} : vector<2x336xf32> to vector<2x84xf32>
    %381 = vector.extract_strided_slice %376 {offsets = [0, 252], sizes = [2, 84], strides = [1, 1]} : vector<2x336xf32> to vector<2x84xf32>
    %382 = arith.maximumf %380, %381 : vector<2x84xf32>
    %383 = arith.maximumf %379, %382 : vector<2x84xf32>
    %c0_293 = arith.constant 0 : index
    %c0_294 = arith.constant 0 : index
    %384 = vector.load %arg3[%c0_293, %c0_294] : memref<1x84xf32, #tpu.memory_space<vmem>>, vector<1x84xf32>
    %385 = vector.broadcast %384 : vector<1x84xf32> to vector<2x84xf32>
    %386 = arith.addf %383, %385 : vector<2x84xf32>
    %cst_295 = arith.constant 0.000000e+00 : f32
    %387 = vector.broadcast %cst_295 : f32 to vector<2x84xf32>
    %388 = arith.maximumf %386, %387 : vector<2x84xf32>
    %389 = arith.truncf %388 : vector<2x84xf32> to vector<2x84xbf16>
    %c0_296 = arith.constant 0 : index
    %c13_297 = arith.constant 13 : index
    %c0_298 = arith.constant 0 : index
    %390 = vector.load %arg1[%c0_296, %c13_297, %c0_298] : memref<2x16x192xbf16, #tpu.memory_space<vmem>>, vector<2x1x192xbf16>
    %391 = vector.shape_cast %390 : vector<2x1x192xbf16> to vector<2x192xbf16>
    %c0_299 = arith.constant 0 : index
    %c0_300 = arith.constant 0 : index
    %c0_301 = arith.constant 0 : index
    %392 = vector.load %arg2[%c0_299, %c0_300, %c0_301] : memref<3x192x336xbf16, #tpu.memory_space<vmem>>, vector<1x192x336xbf16>
    %393 = vector.shape_cast %392 : vector<1x192x336xbf16> to vector<192x336xbf16>
    %cst_302 = arith.constant dense<0.000000e+00> : vector<2x336xf32>
    %394 = tpu.matmul %391, %393, %cst_302 {dimension_numbers = #tpu.dot_dimension_numbers<[1], [0], [0], [1], [0, 0, 1, 1], [], []>} : vector<2x192xbf16>, vector<192x336xbf16>, vector<2x336xf32> -> vector<2x336xf32>
    %c0_303 = arith.constant 0 : index
    %c14_304 = arith.constant 14 : index
    %c0_305 = arith.constant 0 : index
    %395 = vector.load %arg1[%c0_303, %c14_304, %c0_305] : memref<2x16x192xbf16, #tpu.memory_space<vmem>>, vector<2x1x192xbf16>
    %396 = vector.shape_cast %395 : vector<2x1x192xbf16> to vector<2x192xbf16>
    %c1_306 = arith.constant 1 : index
    %c0_307 = arith.constant 0 : index
    %c0_308 = arith.constant 0 : index
    %397 = vector.load %arg2[%c1_306, %c0_307, %c0_308] : memref<3x192x336xbf16, #tpu.memory_space<vmem>>, vector<1x192x336xbf16>
    %398 = vector.shape_cast %397 : vector<1x192x336xbf16> to vector<192x336xbf16>
    %cst_309 = arith.constant dense<0.000000e+00> : vector<2x336xf32>
    %399 = tpu.matmul %396, %398, %cst_309 {dimension_numbers = #tpu.dot_dimension_numbers<[1], [0], [0], [1], [0, 0, 1, 1], [], []>} : vector<2x192xbf16>, vector<192x336xbf16>, vector<2x336xf32> -> vector<2x336xf32>
    %400 = arith.addf %394, %399 : vector<2x336xf32>
    %c0_310 = arith.constant 0 : index
    %c15 = arith.constant 15 : index
    %c0_311 = arith.constant 0 : index
    %401 = vector.load %arg1[%c0_310, %c15, %c0_311] : memref<2x16x192xbf16, #tpu.memory_space<vmem>>, vector<2x1x192xbf16>
    %402 = vector.shape_cast %401 : vector<2x1x192xbf16> to vector<2x192xbf16>
    %c2_312 = arith.constant 2 : index
    %c0_313 = arith.constant 0 : index
    %c0_314 = arith.constant 0 : index
    %403 = vector.load %arg2[%c2_312, %c0_313, %c0_314] : memref<3x192x336xbf16, #tpu.memory_space<vmem>>, vector<1x192x336xbf16>
    %404 = vector.shape_cast %403 : vector<1x192x336xbf16> to vector<192x336xbf16>
    %cst_315 = arith.constant dense<0.000000e+00> : vector<2x336xf32>
    %405 = tpu.matmul %402, %404, %cst_315 {dimension_numbers = #tpu.dot_dimension_numbers<[1], [0], [0], [1], [0, 0, 1, 1], [], []>} : vector<2x192xbf16>, vector<192x336xbf16>, vector<2x336xf32> -> vector<2x336xf32>
    %406 = arith.addf %400, %405 : vector<2x336xf32>
    %407 = vector.extract_strided_slice %406 {offsets = [0, 0], sizes = [2, 84], strides = [1, 1]} : vector<2x336xf32> to vector<2x84xf32>
    %408 = vector.extract_strided_slice %406 {offsets = [0, 84], sizes = [2, 84], strides = [1, 1]} : vector<2x336xf32> to vector<2x84xf32>
    %409 = arith.maximumf %407, %408 : vector<2x84xf32>
    %410 = vector.extract_strided_slice %406 {offsets = [0, 168], sizes = [2, 84], strides = [1, 1]} : vector<2x336xf32> to vector<2x84xf32>
    %411 = vector.extract_strided_slice %406 {offsets = [0, 252], sizes = [2, 84], strides = [1, 1]} : vector<2x336xf32> to vector<2x84xf32>
    %412 = arith.maximumf %410, %411 : vector<2x84xf32>
    %413 = arith.maximumf %409, %412 : vector<2x84xf32>
    %c0_316 = arith.constant 0 : index
    %c0_317 = arith.constant 0 : index
    %414 = vector.load %arg3[%c0_316, %c0_317] : memref<1x84xf32, #tpu.memory_space<vmem>>, vector<1x84xf32>
    %415 = vector.broadcast %414 : vector<1x84xf32> to vector<2x84xf32>
    %416 = arith.addf %413, %415 : vector<2x84xf32>
    %cst_318 = arith.constant 0.000000e+00 : f32
    %417 = vector.broadcast %cst_318 : f32 to vector<2x84xf32>
    %418 = arith.maximumf %416, %417 : vector<2x84xf32>
    %419 = arith.truncf %418 : vector<2x84xf32> to vector<2x84xbf16>
    %c0_319 = arith.constant 0 : index
    %c0_320 = arith.constant 0 : index
    %c0_321 = arith.constant 0 : index
    %420 = vector.load %arg4[%c0_319, %c0_320, %c0_321] : memref<6x84x320xbf16, #tpu.memory_space<vmem>>, vector<1x84x320xbf16>
    %421 = vector.shape_cast %420 : vector<1x84x320xbf16> to vector<84x320xbf16>
    %cst_322 = arith.constant dense<0.000000e+00> : vector<2x320xf32>
    %422 = tpu.matmul %29, %421, %cst_322 {dimension_numbers = #tpu.dot_dimension_numbers<[1], [0], [0], [1], [0, 0, 1, 1], [], []>} : vector<2x84xbf16>, vector<84x320xbf16>, vector<2x320xf32> -> vector<2x320xf32>
    %c1_323 = arith.constant 1 : index
    %c0_324 = arith.constant 0 : index
    %c0_325 = arith.constant 0 : index
    %423 = vector.load %arg4[%c1_323, %c0_324, %c0_325] : memref<6x84x320xbf16, #tpu.memory_space<vmem>>, vector<1x84x320xbf16>
    %424 = vector.shape_cast %423 : vector<1x84x320xbf16> to vector<84x320xbf16>
    %cst_326 = arith.constant dense<0.000000e+00> : vector<2x320xf32>
    %425 = tpu.matmul %59, %424, %cst_326 {dimension_numbers = #tpu.dot_dimension_numbers<[1], [0], [0], [1], [0, 0, 1, 1], [], []>} : vector<2x84xbf16>, vector<84x320xbf16>, vector<2x320xf32> -> vector<2x320xf32>
    %426 = arith.addf %422, %425 : vector<2x320xf32>
    %c2_327 = arith.constant 2 : index
    %c0_328 = arith.constant 0 : index
    %c0_329 = arith.constant 0 : index
    %427 = vector.load %arg4[%c2_327, %c0_328, %c0_329] : memref<6x84x320xbf16, #tpu.memory_space<vmem>>, vector<1x84x320xbf16>
    %428 = vector.shape_cast %427 : vector<1x84x320xbf16> to vector<84x320xbf16>
    %cst_330 = arith.constant dense<0.000000e+00> : vector<2x320xf32>
    %429 = tpu.matmul %89, %428, %cst_330 {dimension_numbers = #tpu.dot_dimension_numbers<[1], [0], [0], [1], [0, 0, 1, 1], [], []>} : vector<2x84xbf16>, vector<84x320xbf16>, vector<2x320xf32> -> vector<2x320xf32>
    %430 = arith.addf %426, %429 : vector<2x320xf32>
    %c3_331 = arith.constant 3 : index
    %c0_332 = arith.constant 0 : index
    %c0_333 = arith.constant 0 : index
    %431 = vector.load %arg4[%c3_331, %c0_332, %c0_333] : memref<6x84x320xbf16, #tpu.memory_space<vmem>>, vector<1x84x320xbf16>
    %432 = vector.shape_cast %431 : vector<1x84x320xbf16> to vector<84x320xbf16>
    %cst_334 = arith.constant dense<0.000000e+00> : vector<2x320xf32>
    %433 = tpu.matmul %119, %432, %cst_334 {dimension_numbers = #tpu.dot_dimension_numbers<[1], [0], [0], [1], [0, 0, 1, 1], [], []>} : vector<2x84xbf16>, vector<84x320xbf16>, vector<2x320xf32> -> vector<2x320xf32>
    %434 = arith.addf %430, %433 : vector<2x320xf32>
    %c4_335 = arith.constant 4 : index
    %c0_336 = arith.constant 0 : index
    %c0_337 = arith.constant 0 : index
    %435 = vector.load %arg4[%c4_335, %c0_336, %c0_337] : memref<6x84x320xbf16, #tpu.memory_space<vmem>>, vector<1x84x320xbf16>
    %436 = vector.shape_cast %435 : vector<1x84x320xbf16> to vector<84x320xbf16>
    %cst_338 = arith.constant dense<0.000000e+00> : vector<2x320xf32>
    %437 = tpu.matmul %149, %436, %cst_338 {dimension_numbers = #tpu.dot_dimension_numbers<[1], [0], [0], [1], [0, 0, 1, 1], [], []>} : vector<2x84xbf16>, vector<84x320xbf16>, vector<2x320xf32> -> vector<2x320xf32>
    %438 = arith.addf %434, %437 : vector<2x320xf32>
    %c5_339 = arith.constant 5 : index
    %c0_340 = arith.constant 0 : index
    %c0_341 = arith.constant 0 : index
    %439 = vector.load %arg4[%c5_339, %c0_340, %c0_341] : memref<6x84x320xbf16, #tpu.memory_space<vmem>>, vector<1x84x320xbf16>
    %440 = vector.shape_cast %439 : vector<1x84x320xbf16> to vector<84x320xbf16>
    %cst_342 = arith.constant dense<0.000000e+00> : vector<2x320xf32>
    %441 = tpu.matmul %179, %440, %cst_342 {dimension_numbers = #tpu.dot_dimension_numbers<[1], [0], [0], [1], [0, 0, 1, 1], [], []>} : vector<2x84xbf16>, vector<84x320xbf16>, vector<2x320xf32> -> vector<2x320xf32>
    %442 = arith.addf %438, %441 : vector<2x320xf32>
    %443 = vector.extract_strided_slice %442 {offsets = [0, 0], sizes = [2, 80], strides = [1, 1]} : vector<2x320xf32> to vector<2x80xf32>
    %444 = vector.extract_strided_slice %442 {offsets = [0, 80], sizes = [2, 80], strides = [1, 1]} : vector<2x320xf32> to vector<2x80xf32>
    %445 = arith.maximumf %443, %444 : vector<2x80xf32>
    %446 = vector.extract_strided_slice %442 {offsets = [0, 160], sizes = [2, 80], strides = [1, 1]} : vector<2x320xf32> to vector<2x80xf32>
    %447 = vector.extract_strided_slice %442 {offsets = [0, 240], sizes = [2, 80], strides = [1, 1]} : vector<2x320xf32> to vector<2x80xf32>
    %448 = arith.maximumf %446, %447 : vector<2x80xf32>
    %449 = arith.maximumf %445, %448 : vector<2x80xf32>
    %c0_343 = arith.constant 0 : index
    %c0_344 = arith.constant 0 : index
    %450 = vector.load %arg5[%c0_343, %c0_344] : memref<1x80xf32, #tpu.memory_space<vmem>>, vector<1x80xf32>
    %451 = vector.broadcast %450 : vector<1x80xf32> to vector<2x80xf32>
    %452 = arith.addf %449, %451 : vector<2x80xf32>
    %cst_345 = arith.constant 0.000000e+00 : f32
    %453 = vector.broadcast %cst_345 : f32 to vector<2x80xf32>
    %454 = arith.maximumf %452, %453 : vector<2x80xf32>
    %455 = arith.truncf %454 : vector<2x80xf32> to vector<2x80xbf16>
    %c0_346 = arith.constant 0 : index
    %c0_347 = arith.constant 0 : index
    %c0_348 = arith.constant 0 : index
    %456 = vector.load %arg6[%c0_346, %c0_347, %c0_348] : memref<5x80x128xbf16, #tpu.memory_space<vmem>>, vector<1x80x128xbf16>
    %457 = vector.shape_cast %456 : vector<1x80x128xbf16> to vector<80x128xbf16>
    %cst_349 = arith.constant dense<0.000000e+00> : vector<2x128xf32>
    %458 = tpu.matmul %455, %457, %cst_349 {dimension_numbers = #tpu.dot_dimension_numbers<[1], [0], [0], [1], [0, 0, 1, 1], [], []>} : vector<2x80xbf16>, vector<80x128xbf16>, vector<2x128xf32> -> vector<2x128xf32>
    %c0_350 = arith.constant 0 : index
    %c0_351 = arith.constant 0 : index
    %c0_352 = arith.constant 0 : index
    %459 = vector.load %arg4[%c0_350, %c0_351, %c0_352] : memref<6x84x320xbf16, #tpu.memory_space<vmem>>, vector<1x84x320xbf16>
    %460 = vector.shape_cast %459 : vector<1x84x320xbf16> to vector<84x320xbf16>
    %cst_353 = arith.constant dense<0.000000e+00> : vector<2x320xf32>
    %461 = tpu.matmul %89, %460, %cst_353 {dimension_numbers = #tpu.dot_dimension_numbers<[1], [0], [0], [1], [0, 0, 1, 1], [], []>} : vector<2x84xbf16>, vector<84x320xbf16>, vector<2x320xf32> -> vector<2x320xf32>
    %c1_354 = arith.constant 1 : index
    %c0_355 = arith.constant 0 : index
    %c0_356 = arith.constant 0 : index
    %462 = vector.load %arg4[%c1_354, %c0_355, %c0_356] : memref<6x84x320xbf16, #tpu.memory_space<vmem>>, vector<1x84x320xbf16>
    %463 = vector.shape_cast %462 : vector<1x84x320xbf16> to vector<84x320xbf16>
    %cst_357 = arith.constant dense<0.000000e+00> : vector<2x320xf32>
    %464 = tpu.matmul %119, %463, %cst_357 {dimension_numbers = #tpu.dot_dimension_numbers<[1], [0], [0], [1], [0, 0, 1, 1], [], []>} : vector<2x84xbf16>, vector<84x320xbf16>, vector<2x320xf32> -> vector<2x320xf32>
    %465 = arith.addf %461, %464 : vector<2x320xf32>
    %c2_358 = arith.constant 2 : index
    %c0_359 = arith.constant 0 : index
    %c0_360 = arith.constant 0 : index
    %466 = vector.load %arg4[%c2_358, %c0_359, %c0_360] : memref<6x84x320xbf16, #tpu.memory_space<vmem>>, vector<1x84x320xbf16>
    %467 = vector.shape_cast %466 : vector<1x84x320xbf16> to vector<84x320xbf16>
    %cst_361 = arith.constant dense<0.000000e+00> : vector<2x320xf32>
    %468 = tpu.matmul %149, %467, %cst_361 {dimension_numbers = #tpu.dot_dimension_numbers<[1], [0], [0], [1], [0, 0, 1, 1], [], []>} : vector<2x84xbf16>, vector<84x320xbf16>, vector<2x320xf32> -> vector<2x320xf32>
    %469 = arith.addf %465, %468 : vector<2x320xf32>
    %c3_362 = arith.constant 3 : index
    %c0_363 = arith.constant 0 : index
    %c0_364 = arith.constant 0 : index
    %470 = vector.load %arg4[%c3_362, %c0_363, %c0_364] : memref<6x84x320xbf16, #tpu.memory_space<vmem>>, vector<1x84x320xbf16>
    %471 = vector.shape_cast %470 : vector<1x84x320xbf16> to vector<84x320xbf16>
    %cst_365 = arith.constant dense<0.000000e+00> : vector<2x320xf32>
    %472 = tpu.matmul %179, %471, %cst_365 {dimension_numbers = #tpu.dot_dimension_numbers<[1], [0], [0], [1], [0, 0, 1, 1], [], []>} : vector<2x84xbf16>, vector<84x320xbf16>, vector<2x320xf32> -> vector<2x320xf32>
    %473 = arith.addf %469, %472 : vector<2x320xf32>
    %c4_366 = arith.constant 4 : index
    %c0_367 = arith.constant 0 : index
    %c0_368 = arith.constant 0 : index
    %474 = vector.load %arg4[%c4_366, %c0_367, %c0_368] : memref<6x84x320xbf16, #tpu.memory_space<vmem>>, vector<1x84x320xbf16>
    %475 = vector.shape_cast %474 : vector<1x84x320xbf16> to vector<84x320xbf16>
    %cst_369 = arith.constant dense<0.000000e+00> : vector<2x320xf32>
    %476 = tpu.matmul %209, %475, %cst_369 {dimension_numbers = #tpu.dot_dimension_numbers<[1], [0], [0], [1], [0, 0, 1, 1], [], []>} : vector<2x84xbf16>, vector<84x320xbf16>, vector<2x320xf32> -> vector<2x320xf32>
    %477 = arith.addf %473, %476 : vector<2x320xf32>
    %c5_370 = arith.constant 5 : index
    %c0_371 = arith.constant 0 : index
    %c0_372 = arith.constant 0 : index
    %478 = vector.load %arg4[%c5_370, %c0_371, %c0_372] : memref<6x84x320xbf16, #tpu.memory_space<vmem>>, vector<1x84x320xbf16>
    %479 = vector.shape_cast %478 : vector<1x84x320xbf16> to vector<84x320xbf16>
    %cst_373 = arith.constant dense<0.000000e+00> : vector<2x320xf32>
    %480 = tpu.matmul %239, %479, %cst_373 {dimension_numbers = #tpu.dot_dimension_numbers<[1], [0], [0], [1], [0, 0, 1, 1], [], []>} : vector<2x84xbf16>, vector<84x320xbf16>, vector<2x320xf32> -> vector<2x320xf32>
    %481 = arith.addf %477, %480 : vector<2x320xf32>
    %482 = vector.extract_strided_slice %481 {offsets = [0, 0], sizes = [2, 80], strides = [1, 1]} : vector<2x320xf32> to vector<2x80xf32>
    %483 = vector.extract_strided_slice %481 {offsets = [0, 80], sizes = [2, 80], strides = [1, 1]} : vector<2x320xf32> to vector<2x80xf32>
    %484 = arith.maximumf %482, %483 : vector<2x80xf32>
    %485 = vector.extract_strided_slice %481 {offsets = [0, 160], sizes = [2, 80], strides = [1, 1]} : vector<2x320xf32> to vector<2x80xf32>
    %486 = vector.extract_strided_slice %481 {offsets = [0, 240], sizes = [2, 80], strides = [1, 1]} : vector<2x320xf32> to vector<2x80xf32>
    %487 = arith.maximumf %485, %486 : vector<2x80xf32>
    %488 = arith.maximumf %484, %487 : vector<2x80xf32>
    %c0_374 = arith.constant 0 : index
    %c0_375 = arith.constant 0 : index
    %489 = vector.load %arg5[%c0_374, %c0_375] : memref<1x80xf32, #tpu.memory_space<vmem>>, vector<1x80xf32>
    %490 = vector.broadcast %489 : vector<1x80xf32> to vector<2x80xf32>
    %491 = arith.addf %488, %490 : vector<2x80xf32>
    %cst_376 = arith.constant 0.000000e+00 : f32
    %492 = vector.broadcast %cst_376 : f32 to vector<2x80xf32>
    %493 = arith.maximumf %491, %492 : vector<2x80xf32>
    %494 = arith.truncf %493 : vector<2x80xf32> to vector<2x80xbf16>
    %c1_377 = arith.constant 1 : index
    %c0_378 = arith.constant 0 : index
    %c0_379 = arith.constant 0 : index
    %495 = vector.load %arg6[%c1_377, %c0_378, %c0_379] : memref<5x80x128xbf16, #tpu.memory_space<vmem>>, vector<1x80x128xbf16>
    %496 = vector.shape_cast %495 : vector<1x80x128xbf16> to vector<80x128xbf16>
    %cst_380 = arith.constant dense<0.000000e+00> : vector<2x128xf32>
    %497 = tpu.matmul %494, %496, %cst_380 {dimension_numbers = #tpu.dot_dimension_numbers<[1], [0], [0], [1], [0, 0, 1, 1], [], []>} : vector<2x80xbf16>, vector<80x128xbf16>, vector<2x128xf32> -> vector<2x128xf32>
    %498 = arith.addf %458, %497 : vector<2x128xf32>
    %c0_381 = arith.constant 0 : index
    %c0_382 = arith.constant 0 : index
    %c0_383 = arith.constant 0 : index
    %499 = vector.load %arg4[%c0_381, %c0_382, %c0_383] : memref<6x84x320xbf16, #tpu.memory_space<vmem>>, vector<1x84x320xbf16>
    %500 = vector.shape_cast %499 : vector<1x84x320xbf16> to vector<84x320xbf16>
    %cst_384 = arith.constant dense<0.000000e+00> : vector<2x320xf32>
    %501 = tpu.matmul %149, %500, %cst_384 {dimension_numbers = #tpu.dot_dimension_numbers<[1], [0], [0], [1], [0, 0, 1, 1], [], []>} : vector<2x84xbf16>, vector<84x320xbf16>, vector<2x320xf32> -> vector<2x320xf32>
    %c1_385 = arith.constant 1 : index
    %c0_386 = arith.constant 0 : index
    %c0_387 = arith.constant 0 : index
    %502 = vector.load %arg4[%c1_385, %c0_386, %c0_387] : memref<6x84x320xbf16, #tpu.memory_space<vmem>>, vector<1x84x320xbf16>
    %503 = vector.shape_cast %502 : vector<1x84x320xbf16> to vector<84x320xbf16>
    %cst_388 = arith.constant dense<0.000000e+00> : vector<2x320xf32>
    %504 = tpu.matmul %179, %503, %cst_388 {dimension_numbers = #tpu.dot_dimension_numbers<[1], [0], [0], [1], [0, 0, 1, 1], [], []>} : vector<2x84xbf16>, vector<84x320xbf16>, vector<2x320xf32> -> vector<2x320xf32>
    %505 = arith.addf %501, %504 : vector<2x320xf32>
    %c2_389 = arith.constant 2 : index
    %c0_390 = arith.constant 0 : index
    %c0_391 = arith.constant 0 : index
    %506 = vector.load %arg4[%c2_389, %c0_390, %c0_391] : memref<6x84x320xbf16, #tpu.memory_space<vmem>>, vector<1x84x320xbf16>
    %507 = vector.shape_cast %506 : vector<1x84x320xbf16> to vector<84x320xbf16>
    %cst_392 = arith.constant dense<0.000000e+00> : vector<2x320xf32>
    %508 = tpu.matmul %209, %507, %cst_392 {dimension_numbers = #tpu.dot_dimension_numbers<[1], [0], [0], [1], [0, 0, 1, 1], [], []>} : vector<2x84xbf16>, vector<84x320xbf16>, vector<2x320xf32> -> vector<2x320xf32>
    %509 = arith.addf %505, %508 : vector<2x320xf32>
    %c3_393 = arith.constant 3 : index
    %c0_394 = arith.constant 0 : index
    %c0_395 = arith.constant 0 : index
    %510 = vector.load %arg4[%c3_393, %c0_394, %c0_395] : memref<6x84x320xbf16, #tpu.memory_space<vmem>>, vector<1x84x320xbf16>
    %511 = vector.shape_cast %510 : vector<1x84x320xbf16> to vector<84x320xbf16>
    %cst_396 = arith.constant dense<0.000000e+00> : vector<2x320xf32>
    %512 = tpu.matmul %239, %511, %cst_396 {dimension_numbers = #tpu.dot_dimension_numbers<[1], [0], [0], [1], [0, 0, 1, 1], [], []>} : vector<2x84xbf16>, vector<84x320xbf16>, vector<2x320xf32> -> vector<2x320xf32>
    %513 = arith.addf %509, %512 : vector<2x320xf32>
    %c4_397 = arith.constant 4 : index
    %c0_398 = arith.constant 0 : index
    %c0_399 = arith.constant 0 : index
    %514 = vector.load %arg4[%c4_397, %c0_398, %c0_399] : memref<6x84x320xbf16, #tpu.memory_space<vmem>>, vector<1x84x320xbf16>
    %515 = vector.shape_cast %514 : vector<1x84x320xbf16> to vector<84x320xbf16>
    %cst_400 = arith.constant dense<0.000000e+00> : vector<2x320xf32>
    %516 = tpu.matmul %269, %515, %cst_400 {dimension_numbers = #tpu.dot_dimension_numbers<[1], [0], [0], [1], [0, 0, 1, 1], [], []>} : vector<2x84xbf16>, vector<84x320xbf16>, vector<2x320xf32> -> vector<2x320xf32>
    %517 = arith.addf %513, %516 : vector<2x320xf32>
    %c5_401 = arith.constant 5 : index
    %c0_402 = arith.constant 0 : index
    %c0_403 = arith.constant 0 : index
    %518 = vector.load %arg4[%c5_401, %c0_402, %c0_403] : memref<6x84x320xbf16, #tpu.memory_space<vmem>>, vector<1x84x320xbf16>
    %519 = vector.shape_cast %518 : vector<1x84x320xbf16> to vector<84x320xbf16>
    %cst_404 = arith.constant dense<0.000000e+00> : vector<2x320xf32>
    %520 = tpu.matmul %299, %519, %cst_404 {dimension_numbers = #tpu.dot_dimension_numbers<[1], [0], [0], [1], [0, 0, 1, 1], [], []>} : vector<2x84xbf16>, vector<84x320xbf16>, vector<2x320xf32> -> vector<2x320xf32>
    %521 = arith.addf %517, %520 : vector<2x320xf32>
    %522 = vector.extract_strided_slice %521 {offsets = [0, 0], sizes = [2, 80], strides = [1, 1]} : vector<2x320xf32> to vector<2x80xf32>
    %523 = vector.extract_strided_slice %521 {offsets = [0, 80], sizes = [2, 80], strides = [1, 1]} : vector<2x320xf32> to vector<2x80xf32>
    %524 = arith.maximumf %522, %523 : vector<2x80xf32>
    %525 = vector.extract_strided_slice %521 {offsets = [0, 160], sizes = [2, 80], strides = [1, 1]} : vector<2x320xf32> to vector<2x80xf32>
    %526 = vector.extract_strided_slice %521 {offsets = [0, 240], sizes = [2, 80], strides = [1, 1]} : vector<2x320xf32> to vector<2x80xf32>
    %527 = arith.maximumf %525, %526 : vector<2x80xf32>
    %528 = arith.maximumf %524, %527 : vector<2x80xf32>
    %c0_405 = arith.constant 0 : index
    %c0_406 = arith.constant 0 : index
    %529 = vector.load %arg5[%c0_405, %c0_406] : memref<1x80xf32, #tpu.memory_space<vmem>>, vector<1x80xf32>
    %530 = vector.broadcast %529 : vector<1x80xf32> to vector<2x80xf32>
    %531 = arith.addf %528, %530 : vector<2x80xf32>
    %cst_407 = arith.constant 0.000000e+00 : f32
    %532 = vector.broadcast %cst_407 : f32 to vector<2x80xf32>
    %533 = arith.maximumf %531, %532 : vector<2x80xf32>
    %534 = arith.truncf %533 : vector<2x80xf32> to vector<2x80xbf16>
    %c2_408 = arith.constant 2 : index
    %c0_409 = arith.constant 0 : index
    %c0_410 = arith.constant 0 : index
    %535 = vector.load %arg6[%c2_408, %c0_409, %c0_410] : memref<5x80x128xbf16, #tpu.memory_space<vmem>>, vector<1x80x128xbf16>
    %536 = vector.shape_cast %535 : vector<1x80x128xbf16> to vector<80x128xbf16>
    %cst_411 = arith.constant dense<0.000000e+00> : vector<2x128xf32>
    %537 = tpu.matmul %534, %536, %cst_411 {dimension_numbers = #tpu.dot_dimension_numbers<[1], [0], [0], [1], [0, 0, 1, 1], [], []>} : vector<2x80xbf16>, vector<80x128xbf16>, vector<2x128xf32> -> vector<2x128xf32>
    %538 = arith.addf %498, %537 : vector<2x128xf32>
    %c0_412 = arith.constant 0 : index
    %c0_413 = arith.constant 0 : index
    %c0_414 = arith.constant 0 : index
    %539 = vector.load %arg4[%c0_412, %c0_413, %c0_414] : memref<6x84x320xbf16, #tpu.memory_space<vmem>>, vector<1x84x320xbf16>
    %540 = vector.shape_cast %539 : vector<1x84x320xbf16> to vector<84x320xbf16>
    %cst_415 = arith.constant dense<0.000000e+00> : vector<2x320xf32>
    %541 = tpu.matmul %209, %540, %cst_415 {dimension_numbers = #tpu.dot_dimension_numbers<[1], [0], [0], [1], [0, 0, 1, 1], [], []>} : vector<2x84xbf16>, vector<84x320xbf16>, vector<2x320xf32> -> vector<2x320xf32>
    %c1_416 = arith.constant 1 : index
    %c0_417 = arith.constant 0 : index
    %c0_418 = arith.constant 0 : index
    %542 = vector.load %arg4[%c1_416, %c0_417, %c0_418] : memref<6x84x320xbf16, #tpu.memory_space<vmem>>, vector<1x84x320xbf16>
    %543 = vector.shape_cast %542 : vector<1x84x320xbf16> to vector<84x320xbf16>
    %cst_419 = arith.constant dense<0.000000e+00> : vector<2x320xf32>
    %544 = tpu.matmul %239, %543, %cst_419 {dimension_numbers = #tpu.dot_dimension_numbers<[1], [0], [0], [1], [0, 0, 1, 1], [], []>} : vector<2x84xbf16>, vector<84x320xbf16>, vector<2x320xf32> -> vector<2x320xf32>
    %545 = arith.addf %541, %544 : vector<2x320xf32>
    %c2_420 = arith.constant 2 : index
    %c0_421 = arith.constant 0 : index
    %c0_422 = arith.constant 0 : index
    %546 = vector.load %arg4[%c2_420, %c0_421, %c0_422] : memref<6x84x320xbf16, #tpu.memory_space<vmem>>, vector<1x84x320xbf16>
    %547 = vector.shape_cast %546 : vector<1x84x320xbf16> to vector<84x320xbf16>
    %cst_423 = arith.constant dense<0.000000e+00> : vector<2x320xf32>
    %548 = tpu.matmul %269, %547, %cst_423 {dimension_numbers = #tpu.dot_dimension_numbers<[1], [0], [0], [1], [0, 0, 1, 1], [], []>} : vector<2x84xbf16>, vector<84x320xbf16>, vector<2x320xf32> -> vector<2x320xf32>
    %549 = arith.addf %545, %548 : vector<2x320xf32>
    %c3_424 = arith.constant 3 : index
    %c0_425 = arith.constant 0 : index
    %c0_426 = arith.constant 0 : index
    %550 = vector.load %arg4[%c3_424, %c0_425, %c0_426] : memref<6x84x320xbf16, #tpu.memory_space<vmem>>, vector<1x84x320xbf16>
    %551 = vector.shape_cast %550 : vector<1x84x320xbf16> to vector<84x320xbf16>
    %cst_427 = arith.constant dense<0.000000e+00> : vector<2x320xf32>
    %552 = tpu.matmul %299, %551, %cst_427 {dimension_numbers = #tpu.dot_dimension_numbers<[1], [0], [0], [1], [0, 0, 1, 1], [], []>} : vector<2x84xbf16>, vector<84x320xbf16>, vector<2x320xf32> -> vector<2x320xf32>
    %553 = arith.addf %549, %552 : vector<2x320xf32>
    %c4_428 = arith.constant 4 : index
    %c0_429 = arith.constant 0 : index
    %c0_430 = arith.constant 0 : index
    %554 = vector.load %arg4[%c4_428, %c0_429, %c0_430] : memref<6x84x320xbf16, #tpu.memory_space<vmem>>, vector<1x84x320xbf16>
    %555 = vector.shape_cast %554 : vector<1x84x320xbf16> to vector<84x320xbf16>
    %cst_431 = arith.constant dense<0.000000e+00> : vector<2x320xf32>
    %556 = tpu.matmul %329, %555, %cst_431 {dimension_numbers = #tpu.dot_dimension_numbers<[1], [0], [0], [1], [0, 0, 1, 1], [], []>} : vector<2x84xbf16>, vector<84x320xbf16>, vector<2x320xf32> -> vector<2x320xf32>
    %557 = arith.addf %553, %556 : vector<2x320xf32>
    %c5_432 = arith.constant 5 : index
    %c0_433 = arith.constant 0 : index
    %c0_434 = arith.constant 0 : index
    %558 = vector.load %arg4[%c5_432, %c0_433, %c0_434] : memref<6x84x320xbf16, #tpu.memory_space<vmem>>, vector<1x84x320xbf16>
    %559 = vector.shape_cast %558 : vector<1x84x320xbf16> to vector<84x320xbf16>
    %cst_435 = arith.constant dense<0.000000e+00> : vector<2x320xf32>
    %560 = tpu.matmul %359, %559, %cst_435 {dimension_numbers = #tpu.dot_dimension_numbers<[1], [0], [0], [1], [0, 0, 1, 1], [], []>} : vector<2x84xbf16>, vector<84x320xbf16>, vector<2x320xf32> -> vector<2x320xf32>
    %561 = arith.addf %557, %560 : vector<2x320xf32>
    %562 = vector.extract_strided_slice %561 {offsets = [0, 0], sizes = [2, 80], strides = [1, 1]} : vector<2x320xf32> to vector<2x80xf32>
    %563 = vector.extract_strided_slice %561 {offsets = [0, 80], sizes = [2, 80], strides = [1, 1]} : vector<2x320xf32> to vector<2x80xf32>
    %564 = arith.maximumf %562, %563 : vector<2x80xf32>
    %565 = vector.extract_strided_slice %561 {offsets = [0, 160], sizes = [2, 80], strides = [1, 1]} : vector<2x320xf32> to vector<2x80xf32>
    %566 = vector.extract_strided_slice %561 {offsets = [0, 240], sizes = [2, 80], strides = [1, 1]} : vector<2x320xf32> to vector<2x80xf32>
    %567 = arith.maximumf %565, %566 : vector<2x80xf32>
    %568 = arith.maximumf %564, %567 : vector<2x80xf32>
    %c0_436 = arith.constant 0 : index
    %c0_437 = arith.constant 0 : index
    %569 = vector.load %arg5[%c0_436, %c0_437] : memref<1x80xf32, #tpu.memory_space<vmem>>, vector<1x80xf32>
    %570 = vector.broadcast %569 : vector<1x80xf32> to vector<2x80xf32>
    %571 = arith.addf %568, %570 : vector<2x80xf32>
    %cst_438 = arith.constant 0.000000e+00 : f32
    %572 = vector.broadcast %cst_438 : f32 to vector<2x80xf32>
    %573 = arith.maximumf %571, %572 : vector<2x80xf32>
    %574 = arith.truncf %573 : vector<2x80xf32> to vector<2x80xbf16>
    %c3_439 = arith.constant 3 : index
    %c0_440 = arith.constant 0 : index
    %c0_441 = arith.constant 0 : index
    %575 = vector.load %arg6[%c3_439, %c0_440, %c0_441] : memref<5x80x128xbf16, #tpu.memory_space<vmem>>, vector<1x80x128xbf16>
    %576 = vector.shape_cast %575 : vector<1x80x128xbf16> to vector<80x128xbf16>
    %cst_442 = arith.constant dense<0.000000e+00> : vector<2x128xf32>
    %577 = tpu.matmul %574, %576, %cst_442 {dimension_numbers = #tpu.dot_dimension_numbers<[1], [0], [0], [1], [0, 0, 1, 1], [], []>} : vector<2x80xbf16>, vector<80x128xbf16>, vector<2x128xf32> -> vector<2x128xf32>
    %578 = arith.addf %538, %577 : vector<2x128xf32>
    %c0_443 = arith.constant 0 : index
    %c0_444 = arith.constant 0 : index
    %c0_445 = arith.constant 0 : index
    %579 = vector.load %arg4[%c0_443, %c0_444, %c0_445] : memref<6x84x320xbf16, #tpu.memory_space<vmem>>, vector<1x84x320xbf16>
    %580 = vector.shape_cast %579 : vector<1x84x320xbf16> to vector<84x320xbf16>
    %cst_446 = arith.constant dense<0.000000e+00> : vector<2x320xf32>
    %581 = tpu.matmul %269, %580, %cst_446 {dimension_numbers = #tpu.dot_dimension_numbers<[1], [0], [0], [1], [0, 0, 1, 1], [], []>} : vector<2x84xbf16>, vector<84x320xbf16>, vector<2x320xf32> -> vector<2x320xf32>
    %c1_447 = arith.constant 1 : index
    %c0_448 = arith.constant 0 : index
    %c0_449 = arith.constant 0 : index
    %582 = vector.load %arg4[%c1_447, %c0_448, %c0_449] : memref<6x84x320xbf16, #tpu.memory_space<vmem>>, vector<1x84x320xbf16>
    %583 = vector.shape_cast %582 : vector<1x84x320xbf16> to vector<84x320xbf16>
    %cst_450 = arith.constant dense<0.000000e+00> : vector<2x320xf32>
    %584 = tpu.matmul %299, %583, %cst_450 {dimension_numbers = #tpu.dot_dimension_numbers<[1], [0], [0], [1], [0, 0, 1, 1], [], []>} : vector<2x84xbf16>, vector<84x320xbf16>, vector<2x320xf32> -> vector<2x320xf32>
    %585 = arith.addf %581, %584 : vector<2x320xf32>
    %c2_451 = arith.constant 2 : index
    %c0_452 = arith.constant 0 : index
    %c0_453 = arith.constant 0 : index
    %586 = vector.load %arg4[%c2_451, %c0_452, %c0_453] : memref<6x84x320xbf16, #tpu.memory_space<vmem>>, vector<1x84x320xbf16>
    %587 = vector.shape_cast %586 : vector<1x84x320xbf16> to vector<84x320xbf16>
    %cst_454 = arith.constant dense<0.000000e+00> : vector<2x320xf32>
    %588 = tpu.matmul %329, %587, %cst_454 {dimension_numbers = #tpu.dot_dimension_numbers<[1], [0], [0], [1], [0, 0, 1, 1], [], []>} : vector<2x84xbf16>, vector<84x320xbf16>, vector<2x320xf32> -> vector<2x320xf32>
    %589 = arith.addf %585, %588 : vector<2x320xf32>
    %c3_455 = arith.constant 3 : index
    %c0_456 = arith.constant 0 : index
    %c0_457 = arith.constant 0 : index
    %590 = vector.load %arg4[%c3_455, %c0_456, %c0_457] : memref<6x84x320xbf16, #tpu.memory_space<vmem>>, vector<1x84x320xbf16>
    %591 = vector.shape_cast %590 : vector<1x84x320xbf16> to vector<84x320xbf16>
    %cst_458 = arith.constant dense<0.000000e+00> : vector<2x320xf32>
    %592 = tpu.matmul %359, %591, %cst_458 {dimension_numbers = #tpu.dot_dimension_numbers<[1], [0], [0], [1], [0, 0, 1, 1], [], []>} : vector<2x84xbf16>, vector<84x320xbf16>, vector<2x320xf32> -> vector<2x320xf32>
    %593 = arith.addf %589, %592 : vector<2x320xf32>
    %c4_459 = arith.constant 4 : index
    %c0_460 = arith.constant 0 : index
    %c0_461 = arith.constant 0 : index
    %594 = vector.load %arg4[%c4_459, %c0_460, %c0_461] : memref<6x84x320xbf16, #tpu.memory_space<vmem>>, vector<1x84x320xbf16>
    %595 = vector.shape_cast %594 : vector<1x84x320xbf16> to vector<84x320xbf16>
    %cst_462 = arith.constant dense<0.000000e+00> : vector<2x320xf32>
    %596 = tpu.matmul %389, %595, %cst_462 {dimension_numbers = #tpu.dot_dimension_numbers<[1], [0], [0], [1], [0, 0, 1, 1], [], []>} : vector<2x84xbf16>, vector<84x320xbf16>, vector<2x320xf32> -> vector<2x320xf32>
    %597 = arith.addf %593, %596 : vector<2x320xf32>
    %c5_463 = arith.constant 5 : index
    %c0_464 = arith.constant 0 : index
    %c0_465 = arith.constant 0 : index
    %598 = vector.load %arg4[%c5_463, %c0_464, %c0_465] : memref<6x84x320xbf16, #tpu.memory_space<vmem>>, vector<1x84x320xbf16>
    %599 = vector.shape_cast %598 : vector<1x84x320xbf16> to vector<84x320xbf16>
    %cst_466 = arith.constant dense<0.000000e+00> : vector<2x320xf32>
    %600 = tpu.matmul %419, %599, %cst_466 {dimension_numbers = #tpu.dot_dimension_numbers<[1], [0], [0], [1], [0, 0, 1, 1], [], []>} : vector<2x84xbf16>, vector<84x320xbf16>, vector<2x320xf32> -> vector<2x320xf32>
    %601 = arith.addf %597, %600 : vector<2x320xf32>
    %602 = vector.extract_strided_slice %601 {offsets = [0, 0], sizes = [2, 80], strides = [1, 1]} : vector<2x320xf32> to vector<2x80xf32>
    %603 = vector.extract_strided_slice %601 {offsets = [0, 80], sizes = [2, 80], strides = [1, 1]} : vector<2x320xf32> to vector<2x80xf32>
    %604 = arith.maximumf %602, %603 : vector<2x80xf32>
    %605 = vector.extract_strided_slice %601 {offsets = [0, 160], sizes = [2, 80], strides = [1, 1]} : vector<2x320xf32> to vector<2x80xf32>
    %606 = vector.extract_strided_slice %601 {offsets = [0, 240], sizes = [2, 80], strides = [1, 1]} : vector<2x320xf32> to vector<2x80xf32>
    %607 = arith.maximumf %605, %606 : vector<2x80xf32>
    %608 = arith.maximumf %604, %607 : vector<2x80xf32>
    %c0_467 = arith.constant 0 : index
    %c0_468 = arith.constant 0 : index
    %609 = vector.load %arg5[%c0_467, %c0_468] : memref<1x80xf32, #tpu.memory_space<vmem>>, vector<1x80xf32>
    %610 = vector.broadcast %609 : vector<1x80xf32> to vector<2x80xf32>
    %611 = arith.addf %608, %610 : vector<2x80xf32>
    %cst_469 = arith.constant 0.000000e+00 : f32
    %612 = vector.broadcast %cst_469 : f32 to vector<2x80xf32>
    %613 = arith.maximumf %611, %612 : vector<2x80xf32>
    %614 = arith.truncf %613 : vector<2x80xf32> to vector<2x80xbf16>
    %c4_470 = arith.constant 4 : index
    %c0_471 = arith.constant 0 : index
    %c0_472 = arith.constant 0 : index
    %615 = vector.load %arg6[%c4_470, %c0_471, %c0_472] : memref<5x80x128xbf16, #tpu.memory_space<vmem>>, vector<1x80x128xbf16>
    %616 = vector.shape_cast %615 : vector<1x80x128xbf16> to vector<80x128xbf16>
    %cst_473 = arith.constant dense<0.000000e+00> : vector<2x128xf32>
    %617 = tpu.matmul %614, %616, %cst_473 {dimension_numbers = #tpu.dot_dimension_numbers<[1], [0], [0], [1], [0, 0, 1, 1], [], []>} : vector<2x80xbf16>, vector<80x128xbf16>, vector<2x128xf32> -> vector<2x128xf32>
    %618 = arith.addf %578, %617 : vector<2x128xf32>
    %c0_474 = arith.constant 0 : index
    %c0_475 = arith.constant 0 : index
    %619 = vector.load %arg7[%c0_474, %c0_475] : memref<1x128xf32, #tpu.memory_space<vmem>>, vector<1x128xf32>
    %620 = vector.broadcast %619 : vector<1x128xf32> to vector<2x128xf32>
    %621 = arith.addf %618, %620 : vector<2x128xf32>
    %cst_476 = arith.constant 0.000000e+00 : f32
    %622 = vector.broadcast %cst_476 : f32 to vector<2x128xf32>
    %623 = arith.maximumf %621, %622 : vector<2x128xf32>
    %624 = arith.truncf %623 : vector<2x128xf32> to vector<2x128xbf16>
    %c0_477 = arith.constant 0 : index
    %c0_478 = arith.constant 0 : index
    %625 = vector.load %arg8[%c0_477, %c0_478] : memref<128x128xbf16, #tpu.memory_space<vmem>>, vector<128x128xbf16>
    %cst_479 = arith.constant dense<0.000000e+00> : vector<2x128xf32>
    %626 = tpu.matmul %624, %625, %cst_479 {dimension_numbers = #tpu.dot_dimension_numbers<[1], [0], [0], [1], [0, 0, 1, 1], [], []>} : vector<2x128xbf16>, vector<128x128xbf16>, vector<2x128xf32> -> vector<2x128xf32>
    %c0_480 = arith.constant 0 : index
    %c0_481 = arith.constant 0 : index
    %627 = vector.load %arg9[%c0_480, %c0_481] : memref<1x128xf32, #tpu.memory_space<vmem>>, vector<1x128xf32>
    %628 = vector.broadcast %627 : vector<1x128xf32> to vector<2x128xf32>
    %629 = arith.addf %626, %628 : vector<2x128xf32>
    %cst_482 = arith.constant 0.000000e+00 : f32
    %630 = vector.broadcast %cst_482 : f32 to vector<2x128xf32>
    %631 = arith.maximumf %629, %630 : vector<2x128xf32>
    %632 = arith.truncf %631 : vector<2x128xf32> to vector<2x128xbf16>
    %c0_483 = arith.constant 0 : index
    %c0_484 = arith.constant 0 : index
    %633 = vector.load %arg10[%c0_483, %c0_484] : memref<128x128xbf16, #tpu.memory_space<vmem>>, vector<128x128xbf16>
    %cst_485 = arith.constant dense<0.000000e+00> : vector<2x128xf32>
    %634 = tpu.matmul %632, %633, %cst_485 {dimension_numbers = #tpu.dot_dimension_numbers<[1], [0], [0], [1], [0, 0, 1, 1], [], []>} : vector<2x128xbf16>, vector<128x128xbf16>, vector<2x128xf32> -> vector<2x128xf32>
    %c0_486 = arith.constant 0 : index
    %c0_487 = arith.constant 0 : index
    %635 = vector.load %arg11[%c0_486, %c0_487] : memref<1x128xf32, #tpu.memory_space<vmem>>, vector<1x128xf32>
    %636 = vector.broadcast %635 : vector<1x128xf32> to vector<2x128xf32>
    %637 = arith.addf %634, %636 : vector<2x128xf32>
    %cst_488 = arith.constant dense<0xFF800000> : vector<2xf32>
    %638 = vector.multi_reduction <maximumf>, %637, %cst_488 [1] : vector<2x128xf32> to vector<2xf32>
    %639 = vector.shape_cast %638 : vector<2xf32> to vector<2x1xf32>
    %640 = vector.broadcast %639 : vector<2x1xf32> to vector<2x128xf32>
    %641 = arith.subf %637, %640 : vector<2x128xf32>
    %642 = math.exp %641 : vector<2x128xf32>
    %cst_489 = arith.constant dense<0.000000e+00> : vector<2xf32>
    %643 = vector.multi_reduction <add>, %642, %cst_489 [1] : vector<2x128xf32> to vector<2xf32>
    %644 = vector.shape_cast %643 : vector<2xf32> to vector<2x1xf32>
    %645 = math.log %644 : vector<2x1xf32>
    %646 = vector.broadcast %645 : vector<2x1xf32> to vector<2x128xf32>
    %647 = arith.subf %641, %646 : vector<2x128xf32>
    %c0_490 = arith.constant 0 : index
    %c0_491 = arith.constant 0 : index
    %648 = vector.load %arg12[%c0_490, %c0_491] : memref<2x128xf32, #tpu.memory_space<vmem>>, vector<2x128xf32>
    tpu.vector_store %arg12[%c0_490, %c0_491], %647 {strides = array<i32>} : memref<2x128xf32, #tpu.memory_space<vmem>>, vector<2x128xf32>,
    return
  }
  func.func @transform_0(%arg0: i32) -> (i32, i32, i32) {
    %c0_i32 = arith.constant 0 : i32
    %c0_i32_0 = arith.constant 0 : i32
    %c0_i32_1 = arith.constant 0 : i32
    return %arg0, %c0_i32, %c0_i32_0 : i32, i32, i32
  }
  func.func @transform_1(%arg0: i32) -> (i32, i32, i32) {
    %c0_i32 = arith.constant 0 : i32
    %c0_i32_0 = arith.constant 0 : i32
    %c0_i32_1 = arith.constant 0 : i32
    %c0_i32_2 = arith.constant 0 : i32
    return %c0_i32, %c0_i32_0, %c0_i32_1 : i32, i32, i32
  }
  func.func @transform_2(%arg0: i32) -> (i32, i32) {
    %c0_i32 = arith.constant 0 : i32
    %c0_i32_0 = arith.constant 0 : i32
    %c0_i32_1 = arith.constant 0 : i32
    return %c0_i32, %c0_i32_0 : i32, i32
  }
  func.func @transform_3(%arg0: i32) -> (i32, i32, i32) {
    %c0_i32 = arith.constant 0 : i32
    %c0_i32_0 = arith.constant 0 : i32
    %c0_i32_1 = arith.constant 0 : i32
    %c0_i32_2 = arith.constant 0 : i32
    return %c0_i32, %c0_i32_0, %c0_i32_1 : i32, i32, i32
  }
  func.func @transform_4(%arg0: i32) -> (i32, i32) {
    %c0_i32 = arith.constant 0 : i32
    %c0_i32_0 = arith.constant 0 : i32
    %c0_i32_1 = arith.constant 0 : i32
    return %c0_i32, %c0_i32_0 : i32, i32
  }
  func.func @transform_5(%arg0: i32) -> (i32, i32, i32) {
    %c0_i32 = arith.constant 0 : i32
    %c0_i32_0 = arith.constant 0 : i32
    %c0_i32_1 = arith.constant 0 : i32
    %c0_i32_2 = arith.constant 0 : i32
    return %c0_i32, %c0_i32_0, %c0_i32_1 : i32, i32, i32
  }
  func.func @transform_6(%arg0: i32) -> (i32, i32) {
    %c0_i32 = arith.constant 0 : i32
    %c0_i32_0 = arith.constant 0 : i32
    %c0_i32_1 = arith.constant 0 : i32
    return %c0_i32, %c0_i32_0 : i32, i32
  }
  func.func @transform_7(%arg0: i32) -> (i32, i32) {
    %c0_i32 = arith.constant 0 : i32
    %c0_i32_0 = arith.constant 0 : i32
    %c0_i32_1 = arith.constant 0 : i32
    return %c0_i32, %c0_i32_0 : i32, i32
  }
  func.func @transform_8(%arg0: i32) -> (i32, i32) {
    %c0_i32 = arith.constant 0 : i32
    %c0_i32_0 = arith.constant 0 : i32
    %c0_i32_1 = arith.constant 0 : i32
    return %c0_i32, %c0_i32_0 : i32, i32
  }
  func.func @transform_9(%arg0: i32) -> (i32, i32) {
    %c0_i32 = arith.constant 0 : i32
    %c0_i32_0 = arith.constant 0 : i32
    %c0_i32_1 = arith.constant 0 : i32
    return %c0_i32, %c0_i32_0 : i32, i32
  }
  func.func @transform_10(%arg0: i32) -> (i32, i32) {
    %c0_i32 = arith.constant 0 : i32
    %c0_i32_0 = arith.constant 0 : i32
    %c0_i32_1 = arith.constant 0 : i32
    return %c0_i32, %c0_i32_0 : i32, i32
  }
  func.func @transform_11(%arg0: i32) -> (i32, i32) {
    %c0_i32 = arith.constant 0 : i32
    %c0_i32_0 = arith.constant 0 : i32
    return %arg0, %c0_i32 : i32, i32
  }
}

</mosaic_0001>

<llo_original>
// kernel: tile.13
$region0: #{tile.13}
  #allocation0 [shape = 's32[1]{0}', space=sflag, size = 0x4, scoped, tag = 'scoped memory for tile.13']
  %s0 = inlined_call_operand.vmem [shape: f32[6], index: 0, kind: input, shape index: {}]
  %s1 = inlined_call_operand.vmem [shape: f32[14,6], index: 1, kind: output, shape index: {}]
  // Predicated region
  $region2: #{tile.13} parent=0 // pred_check
    _
  $region3: #{tile.13} parent=0 // pred_check_branch
    %3 = sbr.rel (0) target = $region5
  $region4: #{tile.13} parent=0 // pred_region
    _
  $region5: #{tile.13} parent=0 // pred_fallthru
    _
  %v4 = vld [vmem:[%s0] ss:$0 sm:$0xff]
  %5 = vst [vmem:[%s1] sm:$0xff] %v4
  %s6 = scalar_lea.vmem %s1, 8
  %7 = vst [vmem:[%s6] sm:$0xff] %v4

// kernel: tile.14
$region0: #{tile.14}
  %s0 = inlined_call_operand.vmem [shape: f32[14,6], index: 0, kind: input, shape index: {}]
  %s1 = inlined_call_operand.vmem [shape: f32[1,84], index: 1, kind: output, shape index: {}]
  $region1: #{tile.14} parent=0
    #allocation0 [shape = 'u8[4096]{0}', space=vmem, size = 0x1000, scoped, tag = 'scoped mem for output reshape']
    %v2 = vld [vmem:[%s0] sm:$0x1]
    %vm3 = vcmask 48128
    %4 = vst.msk [vmem:[#allocation0] sm:$0x1] %vm3, %v2
    %s5 = scalar_lea.vmem %s0, 13
    %v6 = vld [vmem:[%s5] sm:$0x1]
    %7 = vrot.lane.b32.xlu0 %v6, 78
    %v8 = vpop.permute.xlu0 %7
    %vm9 = vcmask 687728
    %10 = vst.msk [vmem:[#allocation0] sm:$0x1] %vm9, %v8
    %s11 = scalar_lea.vmem %s0, 12
    %v12 = vld [vmem:[%s11] sm:$0x1]
    %13 = vrot.lane.b32.xlu0 %v12, 72
    %v14 = vpop.permute.xlu0 %13
    %vm15 = vcmask 638528
    %16 = vst.msk [vmem:[#allocation0] sm:$0x1] %vm15, %v14
    %s17 = scalar_lea.vmem %s0, 11
    %v18 = vld [vmem:[%s17] sm:$0x1]
    %19 = vrot.lane.b32.xlu0 %v18, 66
    %v20 = vpop.permute.xlu0 %19
    %vm21 = vcmask 589328
    %22 = vst.msk [vmem:[#allocation0] sm:$0x1] %vm21, %v20
    %s23 = scalar_lea.vmem %s0, 10
    %v24 = vld [vmem:[%s23] sm:$0x1]
    %25 = vrot.lane.b32.xlu0 %v24, 60
    %v26 = vpop.permute.xlu0 %25
    %vm27 = vcmask 540128
    %28 = vst.msk [vmem:[#allocation0] sm:$0x1] %vm27, %v26
    %s29 = scalar_lea.vmem %s0, 9
    %v30 = vld [vmem:[%s29] sm:$0x1]
    %31 = vrot.lane.b32.xlu0 %v30, 54
    %v32 = vpop.permute.xlu0 %31
    %vm33 = vcmask 490928
    %34 = vst.msk [vmem:[#allocation0] sm:$0x1] %vm33, %v32
    %s35 = scalar_lea.vmem %s0, 8
    %v36 = vld [vmem:[%s35] sm:$0x1]
    %37 = vrot.lane.b32.xlu0 %v36, 48
    %v38 = vpop.permute.xlu0 %37
    %vm39 = vcmask 441728
    %40 = vst.msk [vmem:[#allocation0] sm:$0x1] %vm39, %v38
    %s41 = scalar_lea.vmem %s0, 7
    %v42 = vld [vmem:[%s41] sm:$0x1]
    %43 = vrot.lane.b32.xlu0 %v42, 42
    %v44 = vpop.permute.xlu0 %43
    %vm45 = vcmask 392528
    %46 = vst.msk [vmem:[#allocation0] sm:$0x1] %vm45, %v44
    %s47 = scalar_lea.vmem %s0, 6
    %v48 = vld [vmem:[%s47] sm:$0x1]
    %49 = vrot.lane.b32.xlu0 %v48, 36
    %v50 = vpop.permute.xlu0 %49
    %vm51 = vcmask 343328
    %52 = vst.msk [vmem:[#allocation0] sm:$0x1] %vm51, %v50
    %s53 = scalar_lea.vmem %s0, 5
    %v54 = vld [vmem:[%s53] sm:$0x1]
    %55 = vrot.lane.b32.xlu0 %v54, 30
    %v56 = vpop.permute.xlu0 %55
    %vm57 = vcmask 294128
    %58 = vst.msk [vmem:[#allocation0] sm:$0x1] %vm57, %v56
    %s59 = scalar_lea.vmem %s0, 4
    %v60 = vld [vmem:[%s59] sm:$0x1]
    %61 = vrot.lane.b32.xlu0 %v60, 24
    %v62 = vpop.permute.xlu0 %61
    %vm63 = vcmask 244928
    %64 = vst.msk [vmem:[#allocation0] sm:$0x1] %vm63, %v62
    %s65 = scalar_lea.vmem %s0, 3
    %v66 = vld [vmem:[%s65] sm:$0x1]
    %67 = vrot.lane.b32.xlu0 %v66, 18
    %v68 = vpop.permute.xlu0 %67
    %vm69 = vcmask 195728
    %70 = vst.msk [vmem:[#allocation0] sm:$0x1] %vm69, %v68
    %s71 = scalar_lea.vmem %s0, 2
    %v72 = vld [vmem:[%s71] sm:$0x1]
    %73 = vrot.lane.b32.xlu0 %v72, 12
    %v74 = vpop.permute.xlu0 %73
    %vm75 = vcmask 146528
    %76 = vst.msk [vmem:[#allocation0] sm:$0x1] %vm75, %v74
    %s77 = scalar_lea.vmem %s0, 1
    %v78 = vld [vmem:[%s77] sm:$0x1]
    %79 = vrot.lane.b32.xlu0 %v78, 6
    %v80 = vpop.permute.xlu0 %79
    %vm81 = vcmask 97328
    %82 = vst.msk [vmem:[#allocation0] sm:$0x1] %vm81, %v80
    %s84 = sshll.u32 1, 1
    %s85 = ssub.s32 %s84, 1
    %v87 = vld [vmem:[#allocation0] sm:%s85]
    %s88 = sshll.u32 1, 1
    %s89 = ssub.s32 %s88, 1
    %90 = vst [vmem:[%s1] sm:%s89] %v87

// kernel: tile.18
$region0: #{tile.18}
  #allocation0 [shape = 's32[1]{0}', space=sflag, size = 0x4, scoped, tag = 'scoped memory for tile.18']
  %s0 = inlined_call_operand.vmem [shape: f32[16], index: 0, kind: input, shape index: {}]
  %s1 = inlined_call_operand.vmem [shape: f32[5,16], index: 1, kind: output, shape index: {}]
  // Predicated region
  $region2: #{tile.18} parent=0 // pred_check
    _
  $region3: #{tile.18} parent=0 // pred_check_branch
    %3 = sbr.rel (0) target = $region5
  $region4: #{tile.18} parent=0 // pred_region
    _
  $region5: #{tile.18} parent=0 // pred_fallthru
    _
  %v4 = vld [vmem:[%s0] ss:$0 sm:$0xff]
  %5 = vst [vmem:[%s1] sm:$0xff] %v4

// kernel: tile.19
$region0: #{tile.19}
  %s0 = inlined_call_operand.vmem [shape: f32[5,16], index: 0, kind: input, shape index: {}]
  %s1 = inlined_call_operand.vmem [shape: f32[1,80], index: 1, kind: output, shape index: {}]
  $region1: #{tile.19} parent=0
    #allocation0 [shape = 'u8[4096]{0}', space=vmem, size = 0x1000, scoped, tag = 'scoped mem for output reshape']
    %v2 = vld [vmem:[%s0] sm:$0x1]
    %vm3 = vcmask 130048
    %4 = vst.msk [vmem:[#allocation0] sm:$0x1] %vm3, %v2
    %s5 = scalar_lea.vmem %s0, 4
    %v6 = vld [vmem:[%s5] sm:$0x1]
    %7 = vrot.lane.b32.xlu0 %v6, 64
    %v8 = vpop.permute.xlu0 %7
    %vm9 = vcmask 654848
    %10 = vst.msk [vmem:[#allocation0] sm:$0x1] %vm9, %v8
    %s11 = scalar_lea.vmem %s0, 3
    %v12 = vld [vmem:[%s11] sm:$0x1]
    %13 = vrot.lane.b32.xlu0 %v12, 48
    %v14 = vpop.permute.xlu0 %13
    %vm15 = vcmask 523648
    %16 = vst.msk [vmem:[#allocation0] sm:$0x1] %vm15, %v14
    %s17 = scalar_lea.vmem %s0, 2
    %v18 = vld [vmem:[%s17] sm:$0x1]
    %19 = vrot.lane.b32.xlu0 %v18, 32
    %v20 = vpop.permute.xlu0 %19
    %vm21 = vcmask 392448
    %22 = vst.msk [vmem:[#allocation0] sm:$0x1] %vm21, %v20
    %s23 = scalar_lea.vmem %s0, 1
    %v24 = vld [vmem:[%s23] sm:$0x1]
    %25 = vrot.lane.b32.xlu0 %v24, 16
    %v26 = vpop.permute.xlu0 %25
    %vm27 = vcmask 261248
    %28 = vst.msk [vmem:[#allocation0] sm:$0x1] %vm27, %v26
    %s30 = sshll.u32 1, 1
    %s31 = ssub.s32 %s30, 1
    %v33 = vld [vmem:[#allocation0] sm:%s31]
    %s34 = sshll.u32 1, 1
    %s35 = ssub.s32 %s34, 1
    %36 = vst [vmem:[%s1] sm:%s35] %v33

// kernel: cnn_cifar_forward.1
$region0: #{cnn_cifar_forward.1}
  #allocation0 [shape = 'u32[]', space=smem, size = 0x4, offset = 0x4, fixed_abs, tag = 'smem constant byte address 0x4 - core index']
  #allocation1 [shape = 'u32[144,128]{1,0:T(1,128)}', space=vmem, size = 0x12000, scoped, tag = 'internal scratch']
  %s0 = inlined_call_operand.vmem [shape: bf16[2,16,192], index: 0, kind: input, shape index: {}]
  %s1 = inlined_call_operand.vmem [shape: bf16[3,192,336], index: 1, kind: input, shape index: {}]
  %s2 = inlined_call_operand.vmem [shape: f32[1,84], index: 2, kind: input, shape index: {}]
  %s3 = inlined_call_operand.vmem [shape: bf16[6,84,320], index: 3, kind: input, shape index: {}]
  %s4 = inlined_call_operand.vmem [shape: f32[1,80], index: 4, kind: input, shape index: {}]
  %s5 = inlined_call_operand.vmem [shape: bf16[5,80,128], index: 5, kind: input, shape index: {}]
  %s6 = inlined_call_operand.vmem [shape: f32[1,128], index: 6, kind: input, shape index: {}]
  %s7 = inlined_call_operand.vmem [shape: bf16[128,128], index: 7, kind: input, shape index: {}]
  %s8 = inlined_call_operand.vmem [shape: f32[1,128], index: 8, kind: input, shape index: {}]
  %s9 = inlined_call_operand.vmem [shape: bf16[128,128], index: 9, kind: input, shape index: {}]
  %s10 = inlined_call_operand.vmem [shape: f32[1,128], index: 10, kind: input, shape index: {}]
  %s11 = inlined_call_operand.hbm [shape: f32[2,128], index: 11, kind: output, shape index: {}]
  %s12 = sld [smem:[#allocation0]]
  $region54: #{cnn_cifar_forward.1} parent=0
    _
  %s14 = ssub.s32 1, %s12
  %s15 = scalar_select 0, %s14, %s12
  $region1: #{cnn_cifar_forward.1} parent=0
    #allocation2 [shape = 'u8[1024]{0}', space=vmem, size = 0x400, scoped, tag = 'output window, operand 0, single buffered']
    #allocation3 [shape = 's32[1]{0}', space=sflag, size = 0x4, scoped, tag = 'scoped memory for cnn_cifar_forward.1']
    %16 = vsyncpa [#allocation3], 0
    // Predicated region
    $region2: #{cnn_cifar_forward.1} parent=1 // pred_check
      _
    $region3: #{cnn_cifar_forward.1} parent=1 // pred_check_branch
      %18 = sbr.rel (0) target = $region5
    $region4: #{cnn_cifar_forward.1} parent=1 // pred_region
      _
    $region5: #{cnn_cifar_forward.1} parent=1 // pred_fallthru
      _
    // Predicated region
    $region6: #{cnn_cifar_forward.1} parent=1 // pred_check
      _
    $region7: #{cnn_cifar_forward.1} parent=1 // pred_check_branch
      %20 = sbr.rel (0) target = $region9
    $region8: #{cnn_cifar_forward.1} parent=1 // pred_region
      _
    $region9: #{cnn_cifar_forward.1} parent=1 // pred_fallthru
      _
    // Predicated region
    $region10: #{cnn_cifar_forward.1} parent=1 // pred_check
      _
    $region11: #{cnn_cifar_forward.1} parent=1 // pred_check_branch
      %22 = sbr.rel (0) target = $region13
    $region12: #{cnn_cifar_forward.1} parent=1 // pred_region
      _
    $region13: #{cnn_cifar_forward.1} parent=1 // pred_fallthru
      _
    // Predicated region
    $region14: #{cnn_cifar_forward.1} parent=1 // pred_check
      _
    $region15: #{cnn_cifar_forward.1} parent=1 // pred_check_branch
      %24 = sbr.rel (0) target = $region17
    $region16: #{cnn_cifar_forward.1} parent=1 // pred_region
      _
    $region17: #{cnn_cifar_forward.1} parent=1 // pred_fallthru
      _
    // Predicated region
    $region18: #{cnn_cifar_forward.1} parent=1 // pred_check
      _
    $region19: #{cnn_cifar_forward.1} parent=1 // pred_check_branch
      %26 = sbr.rel (0) target = $region21
    $region20: #{cnn_cifar_forward.1} parent=1 // pred_region
      _
    $region21: #{cnn_cifar_forward.1} parent=1 // pred_fallthru
      _
    // Predicated region
    $region22: #{cnn_cifar_forward.1} parent=1 // pred_check
      _
    $region23: #{cnn_cifar_forward.1} parent=1 // pred_check_branch
      %28 = sbr.rel (0) target = $region25
    $region24: #{cnn_cifar_forward.1} parent=1 // pred_region
      _
    $region25: #{cnn_cifar_forward.1} parent=1 // pred_fallthru
      _
    // Predicated region
    $region26: #{cnn_cifar_forward.1} parent=1 // pred_check
      _
    $region27: #{cnn_cifar_forward.1} parent=1 // pred_check_branch
      %30 = sbr.rel (0) target = $region29
    $region28: #{cnn_cifar_forward.1} parent=1 // pred_region
      _
    $region29: #{cnn_cifar_forward.1} parent=1 // pred_fallthru
      _
    // Predicated region
    $region30: #{cnn_cifar_forward.1} parent=1 // pred_check
      _
    $region31: #{cnn_cifar_forward.1} parent=1 // pred_check_branch
      %32 = sbr.rel (0) target = $region33
    $region32: #{cnn_cifar_forward.1} parent=1 // pred_region
      _
    $region33: #{cnn_cifar_forward.1} parent=1 // pred_fallthru
      _
    // Predicated region
    $region34: #{cnn_cifar_forward.1} parent=1 // pred_check
      _
    $region35: #{cnn_cifar_forward.1} parent=1 // pred_check_branch
      %34 = sbr.rel (0) target = $region37
    $region36: #{cnn_cifar_forward.1} parent=1 // pred_region
      _
    $region37: #{cnn_cifar_forward.1} parent=1 // pred_fallthru
      _
    // Predicated region
    $region38: #{cnn_cifar_forward.1} parent=1 // pred_check
      _
    $region39: #{cnn_cifar_forward.1} parent=1 // pred_check_branch
      %36 = sbr.rel (0) target = $region41
    $region40: #{cnn_cifar_forward.1} parent=1 // pred_region
      _
    $region41: #{cnn_cifar_forward.1} parent=1 // pred_fallthru
      _
    // Predicated region
    $region42: #{cnn_cifar_forward.1} parent=1 // pred_check
      _
    $region43: #{cnn_cifar_forward.1} parent=1 // pred_check_branch
      %38 = sbr.rel (0) target = $region45
    $region44: #{cnn_cifar_forward.1} parent=1 // pred_region
      _
    $region45: #{cnn_cifar_forward.1} parent=1 // pred_fallthru
      _
    %v40 = vld [vmem:[%s0] sm:$0x11]
    %v41 = vld [vmem:[%s0 + $0x10] sm:$0x11]
    %v42 = vld [vmem:[%s1] sm:$0xff]
    %v43 = vld [vmem:[%s1 + $0x8] sm:$0xf]
    %v44 = vld [vmem:[%s1 + $0xc] sm:$0xff]
    %v45 = vld [vmem:[%s1 + $0x14] sm:$0xf]
    %v46 = vld [vmem:[%s1 + $0x18] sm:$0xff]
    %v47 = vld [vmem:[%s1 + $0x20] sm:$0xf]
    %v48 = vld [vmem:[%s1 + $0x24] sm:$0xff]
    %v49 = vld [vmem:[%s1 + $0x2c] sm:$0xf]
    %v50 = vld [vmem:[%s1 + $0x30] sm:$0xff]
    %v51 = vld [vmem:[%s1 + $0x38] sm:$0xf]
    %v52 = vld [vmem:[%s1 + $0x3c] sm:$0xff]
    %v53 = vld [vmem:[%s1 + $0x44] sm:$0xf]
    %v54 = vld [vmem:[%s1 + $0x48] sm:$0xff]
    %v55 = vld [vmem:[%s1 + $0x50] sm:$0xf]
    %v56 = vld [vmem:[%s1 + $0x54] sm:$0xff]
    %v57 = vld [vmem:[%s1 + $0x5c] sm:$0xf]
    %v58 = vld [vmem:[%s1 + $0x60] sm:$0xff]
    %v59 = vld [vmem:[%s1 + $0x68] sm:$0xf]
    %v60 = vld [vmem:[%s1 + $0x6c] sm:$0xff]
    %v61 = vld [vmem:[%s1 + $0x74] sm:$0xf]
    %v62 = vld [vmem:[%s1 + $0x78] sm:$0xff]
    %v63 = vld [vmem:[%s1 + $0x80] sm:$0xf]
    %v64 = vld [vmem:[%s1 + $0x84] sm:$0xff]
    %v65 = vld [vmem:[%s1 + $0x8c] sm:$0xf]
    %v66 = vld [vmem:[%s1 + $0x90] sm:$0xff]
    %v67 = vld [vmem:[%s1 + $0x98] sm:$0xf]
    %v68 = vld [vmem:[%s1 + $0x9c] sm:$0xff]
    %v69 = vld [vmem:[%s1 + $0xa4] sm:$0xf]
    %v70 = vld [vmem:[%s1 + $0xa8] sm:$0xff]
    %v71 = vld [vmem:[%s1 + $0xb0] sm:$0xf]
    %v72 = vld [vmem:[%s1 + $0xb4] sm:$0xff]
    %v73 = vld [vmem:[%s1 + $0xbc] sm:$0xf]
    %v74 = vld [vmem:[%s1 + $0xc0] sm:$0xff]
    %v75 = vld [vmem:[%s1 + $0xc8] sm:$0xf]
    %v76 = vld [vmem:[%s1 + $0xcc] sm:$0xff]
    %v77 = vld [vmem:[%s1 + $0xd4] sm:$0xf]
    %v78 = vld [vmem:[%s1 + $0xd8] sm:$0xff]
    %v79 = vld [vmem:[%s1 + $0xe0] sm:$0xf]
    %v80 = vld [vmem:[%s1 + $0xe4] sm:$0xff]
    %v81 = vld [vmem:[%s1 + $0xec] sm:$0xf]
    %v82 = vld [vmem:[%s1 + $0xf0] sm:$0xff]
    %v83 = vld [vmem:[%s1 + $0xf8] sm:$0xf]
    %v84 = vld [vmem:[%s1 + $0xfc] sm:$0xff]
    %v85 = vld [vmem:[%s1 + $0x104] sm:$0xf]
    %v86 = vld [vmem:[%s1 + $0x108] sm:$0xff]
    %v87 = vld [vmem:[%s1 + $0x110] sm:$0xf]
    %v88 = vld [vmem:[%s1 + $0x114] sm:$0xff]
    %v89 = vld [vmem:[%s1 + $0x11c] sm:$0xf]
    %s90 = scalar_lea.vmem %s1, 288
    %v91 = vld [vmem:[%s90] sm:$0xff]
    %v92 = vld [vmem:[%s90 + $0x8] sm:$0xf]
    %v93 = vld [vmem:[%s90 + $0xc] sm:$0xff]
    %v94 = vld [vmem:[%s90 + $0x14] sm:$0xf]
    %v95 = vld [vmem:[%s90 + $0x18] sm:$0xff]
    %v96 = vld [vmem:[%s90 + $0x20] sm:$0xf]
    %v97 = vld [vmem:[%s90 + $0x24] sm:$0xff]
    %v98 = vld [vmem:[%s90 + $0x2c] sm:$0xf]
    %v99 = vld [vmem:[%s90 + $0x30] sm:$0xff]
    %v100 = vld [vmem:[%s90 + $0x38] sm:$0xf]
    %v101 = vld [vmem:[%s90 + $0x3c] sm:$0xff]
    %v102 = vld [vmem:[%s90 + $0x44] sm:$0xf]
    %v103 = vld [vmem:[%s90 + $0x48] sm:$0xff]
    %v104 = vld [vmem:[%s90 + $0x50] sm:$0xf]
    %v105 = vld [vmem:[%s90 + $0x54] sm:$0xff]
    %v106 = vld [vmem:[%s90 + $0x5c] sm:$0xf]
    %v107 = vld [vmem:[%s90 + $0x60] sm:$0xff]
    %v108 = vld [vmem:[%s90 + $0x68] sm:$0xf]
    %v109 = vld [vmem:[%s90 + $0x6c] sm:$0xff]
    %v110 = vld [vmem:[%s90 + $0x74] sm:$0xf]
    %v111 = vld [vmem:[%s90 + $0x78] sm:$0xff]
    %v112 = vld [vmem:[%s90 + $0x80] sm:$0xf]
    %v113 = vld [vmem:[%s90 + $0x84] sm:$0xff]
    %v114 = vld [vmem:[%s90 + $0x8c] sm:$0xf]
    %v115 = vld [vmem:[%s90 + $0x90] sm:$0xff]
    %v116 = vld [vmem:[%s90 + $0x98] sm:$0xf]
    %v117 = vld [vmem:[%s90 + $0x9c] sm:$0xff]
    %v118 = vld [vmem:[%s90 + $0xa4] sm:$0xf]
    %v119 = vld [vmem:[%s90 + $0xa8] sm:$0xff]
    %v120 = vld [vmem:[%s90 + $0xb0] sm:$0xf]
    %v121 = vld [vmem:[%s90 + $0xb4] sm:$0xff]
    %v122 = vld [vmem:[%s90 + $0xbc] sm:$0xf]
    %v123 = vld [vmem:[%s90 + $0xc0] sm:$0xff]
    %v124 = vld [vmem:[%s90 + $0xc8] sm:$0xf]
    %v125 = vld [vmem:[%s90 + $0xcc] sm:$0xff]
    %v126 = vld [vmem:[%s90 + $0xd4] sm:$0xf]
    %v127 = vld [vmem:[%s90 + $0xd8] sm:$0xff]
    %v128 = vld [vmem:[%s90 + $0xe0] sm:$0xf]
    %v129 = vld [vmem:[%s90 + $0xe4] sm:$0xff]
    %v130 = vld [vmem:[%s90 + $0xec] sm:$0xf]
    %v131 = vld [vmem:[%s90 + $0xf0] sm:$0xff]
    %v132 = vld [vmem:[%s90 + $0xf8] sm:$0xf]
    %v133 = vld [vmem:[%s90 + $0xfc] sm:$0xff]
    %v134 = vld [vmem:[%s90 + $0x104] sm:$0xf]
    %v135 = vld [vmem:[%s90 + $0x108] sm:$0xff]
    %v136 = vld [vmem:[%s90 + $0x110] sm:$0xf]
    %v137 = vld [vmem:[%s90 + $0x114] sm:$0xff]
    %v138 = vld [vmem:[%s90 + $0x11c] sm:$0xf]
    %v141 = vunpack.c.l.b16 %v40
    %v142 = vunpack.c.h.b16 %v40
    %v143 = vunpack.c.l.b16 %v41
    %v144 = vunpack.c.h.b16 %v41
    %v145 = vpack.c.b16 %v141, %v141
    %v146 = vpack.c.b16 %v142, %v142
    %v147 = vpack.c.b16 %v143, %v143
    %v148 = vpack.c.b16 %v144, %v144
    %v149 = vunpack.c.l.b16 %v145
    %v150 = vunpack.c.l.b16 %v146
    %v151 = vunpack.c.l.b16 %v147
    %v152 = vunpack.c.l.b16 %v148
    %v153 = vrot.slane %v149, 1
    %vm154 = vcmask 1041409
    %v155 = vsel %vm154, %v151, %v153
    %v156 = vrot.slane %v150, 1
    %v157 = vsel %vm154, %v152, %v156
    %v158 = vpack.c.b16 %v155, %v155
    %v159 = vpack.c.b16 %v157, %v157
    %v209 = vunpack.c.l.b16 %v91
    %v210 = vunpack.c.h.b16 %v91
    %v211 = vunpack.c.l.b16 %v92
    %v212 = vunpack.c.l.b16 %v93
    %v213 = vunpack.c.h.b16 %v93
    %v214 = vunpack.c.l.b16 %v94
    %v215 = vunpack.c.l.b16 %v95
    %v216 = vunpack.c.h.b16 %v95
    %v217 = vunpack.c.l.b16 %v96
    %v218 = vunpack.c.l.b16 %v97
    %v219 = vunpack.c.h.b16 %v97
    %v220 = vunpack.c.l.b16 %v98
    %v221 = vunpack.c.l.b16 %v99
    %v222 = vunpack.c.h.b16 %v99
    %v223 = vunpack.c.l.b16 %v100
    %v224 = vunpack.c.l.b16 %v101
    %v225 = vunpack.c.h.b16 %v101
    %v226 = vunpack.c.l.b16 %v102
    %v227 = vunpack.c.l.b16 %v103
    %v228 = vunpack.c.h.b16 %v103
    %v229 = vunpack.c.l.b16 %v104
    %v230 = vunpack.c.l.b16 %v105
    %v231 = vunpack.c.h.b16 %v105
    %v232 = vunpack.c.l.b16 %v106
    %v233 = vunpack.c.l.b16 %v107
    %v234 = vunpack.c.h.b16 %v107
    %v235 = vunpack.c.l.b16 %v108
    %v236 = vunpack.c.l.b16 %v109
    %v237 = vunpack.c.h.b16 %v109
    %v238 = vunpack.c.l.b16 %v110
    %v239 = vunpack.c.l.b16 %v111
    %v240 = vunpack.c.h.b16 %v111
    %v241 = vunpack.c.l.b16 %v112
    %v242 = vunpack.c.l.b16 %v113
    %v243 = vunpack.c.h.b16 %v113
    %v244 = vunpack.c.l.b16 %v114
    %v245 = vunpack.c.l.b16 %v115
    %v246 = vunpack.c.h.b16 %v115
    %v247 = vunpack.c.l.b16 %v116
    %v248 = vunpack.c.l.b16 %v117
    %v249 = vunpack.c.h.b16 %v117
    %v250 = vunpack.c.l.b16 %v118
    %v251 = vunpack.c.l.b16 %v119
    %v252 = vunpack.c.h.b16 %v119
    %v253 = vunpack.c.l.b16 %v120
    %v254 = vunpack.c.l.b16 %v121
    %v255 = vunpack.c.h.b16 %v121
    %v256 = vunpack.c.l.b16 %v122
    %v257 = vunpack.c.l.b16 %v123
    %v258 = vunpack.c.h.b16 %v123
    %v259 = vunpack.c.l.b16 %v124
    %v260 = vunpack.c.l.b16 %v125
    %v261 = vunpack.c.h.b16 %v125
    %v262 = vunpack.c.l.b16 %v126
    %v263 = vunpack.c.l.b16 %v127
    %v264 = vunpack.c.h.b16 %v127
    %v265 = vunpack.c.l.b16 %v128
    %v266 = vunpack.c.l.b16 %v129
    %v267 = vunpack.c.h.b16 %v129
    %v268 = vunpack.c.l.b16 %v130
    %v269 = vunpack.c.l.b16 %v131
    %v270 = vunpack.c.h.b16 %v131
    %v271 = vunpack.c.l.b16 %v132
    %v272 = vunpack.c.l.b16 %v133
    %v273 = vunpack.c.h.b16 %v133
    %v274 = vunpack.c.l.b16 %v134
    %v275 = vunpack.c.l.b16 %v135
    %v276 = vunpack.c.h.b16 %v135
    %v277 = vunpack.c.l.b16 %v136
    %v278 = vunpack.c.l.b16 %v137
    %v279 = vunpack.c.h.b16 %v137
    %v280 = vunpack.c.l.b16 %v138
    %v281 = vpack.c.b16 %v212, %v209
    %v282 = vpack.c.b16 %v213, %v210
    %v283 = vpack.c.b16 %v214, %v211
    %v284 = vpack.c.b16 %v218, %v215
    %v285 = vpack.c.b16 %v219, %v216
    %v286 = vpack.c.b16 %v220, %v217
    %v287 = vpack.c.b16 %v224, %v221
    %v288 = vpack.c.b16 %v225, %v222
    %v289 = vpack.c.b16 %v226, %v223
    %v290 = vpack.c.b16 %v230, %v227
    %v291 = vpack.c.b16 %v231, %v228
    %v292 = vpack.c.b16 %v232, %v229
    %v293 = vpack.c.b16 %v236, %v233
    %v294 = vpack.c.b16 %v237, %v234
    %v295 = vpack.c.b16 %v238, %v235
    %v296 = vpack.c.b16 %v242, %v239
    %v297 = vpack.c.b16 %v243, %v240
    %v298 = vpack.c.b16 %v244, %v241
    %v299 = vpack.c.b16 %v248, %v245
    %v300 = vpack.c.b16 %v249, %v246
    %v301 = vpack.c.b16 %v250, %v247
    %v302 = vpack.c.b16 %v254, %v251
    %v303 = vpack.c.b16 %v255, %v252
    %v304 = vpack.c.b16 %v256, %v253
    %v305 = vpack.c.b16 %v260, %v257
    %v306 = vpack.c.b16 %v261, %v258
    %v307 = vpack.c.b16 %v262, %v259
    %v308 = vpack.c.b16 %v266, %v263
    %v309 = vpack.c.b16 %v267, %v264
    %v310 = vpack.c.b16 %v268, %v265
    %v311 = vpack.c.b16 %v272, %v269
    %v312 = vpack.c.b16 %v273, %v270
    %v313 = vpack.c.b16 %v274, %v271
    %v314 = vpack.c.b16 %v278, %v275
    %v315 = vpack.c.b16 %v279, %v276
    %v316 = vpack.c.b16 %v280, %v277
    %vm353 = vcmask 523264
    %v355 = vsel %vm353, %v159, 0
    %357 = vmatprep.subr.bf16.mxu0 %v303
    %358 = vmatpush1.bf16.msra.mxu0 %v302
    %359 = vmatprep.subr.bf16.mxu0 %v300
    %360 = vmatpush1.bf16.msra.mxu0 %v299
    %361 = vmatprep.subr.bf16.mxu0 %v297
    %362 = vmatpush1.bf16.msra.mxu0 %v296
    %363 = vmatprep.subr.bf16.mxu0 %v294
    %364 = vmatpush1.bf16.msra.mxu0 %v293
    %365 = vmatprep.subr.bf16.mxu0 %v291
    %366 = vmatpush1.bf16.msra.mxu0 %v290
    %367 = vmatprep.subr.bf16.mxu0 %v288
    %368 = vmatpush1.bf16.msra.mxu0 %v287
    %369 = vmatprep.subr.bf16.mxu0 %v285
    %370 = vmatpush1.bf16.msra.mxu0 %v284
    %371 = vmatprep.subr.bf16.mxu0 %v282
    %372 = vmatpush1.bf16.msra.mxu0 %v281
    %373 = vmatprep.subr.bf16.mxu0 0
    %374 = vmatpush2.bf16.msra.mxu0 0
    %375 = vmatprep.subr.bf16.mxu0 0
    %376 = vmatpush2.bf16.msra.mxu0 0
    %377 = vmatprep.subr.bf16.mxu0 0
    %378 = vmatpush2.bf16.msra.mxu0 0
    %379 = vmatprep.subr.bf16.mxu0 0
    %380 = vmatpush2.bf16.msra.mxu0 0
    %381 = vmatprep.subr.bf16.mxu0 %v315
    %382 = vmatpush2.bf16.msra.mxu0 %v314
    %383 = vmatprep.subr.bf16.mxu0 %v312
    %384 = vmatpush2.bf16.msra.mxu0 %v311
    %385 = vmatprep.subr.bf16.mxu0 %v309
    %386 = vmatpush2.bf16.msra.mxu0 %v308
    %387 = vmatprep.subr.bf16.mxu0 %v306
    %388 = vmatpush2.bf16.msra.mxu0 %v305
    %389 = vmatprep.mubr.bf16.mxu0 %v355
    %390 = vmatmul.mubr.bf16.gmra.mxu0 %v158
    %v391 = vpop.f32.mrf.mxu0
    %v392 = vadd.f32 0.0, %v391
    %v393 = vpop.f32.mrf.mxu0
    %v394 = vadd.f32 0.0, %v393
    %v395 = vpop.f32.mrf.mxu0
    %v396 = vpop.f32.mrf.mxu0
    %397 = vdwg.mxu0
    %398 = vmatprep.subr.bf16.mxu0 0
    %399 = vmatpush1.bf16.msra.mxu0 %v304
    %400 = vmatprep.subr.bf16.mxu0 0
    %401 = vmatpush1.bf16.msra.mxu0 %v301
    %402 = vmatprep.subr.bf16.mxu0 0
    %403 = vmatpush1.bf16.msra.mxu0 %v298
    %404 = vmatprep.subr.bf16.mxu0 0
    %405 = vmatpush1.bf16.msra.mxu0 %v295
    %406 = vmatprep.subr.bf16.mxu0 0
    %407 = vmatpush1.bf16.msra.mxu0 %v292
    %408 = vmatprep.subr.bf16.mxu0 0
    %409 = vmatpush1.bf16.msra.mxu0 %v289
    %410 = vmatprep.subr.bf16.mxu0 0
    %411 = vmatpush1.bf16.msra.mxu0 %v286
    %412 = vmatprep.subr.bf16.mxu0 0
    %413 = vmatpush1.bf16.msra.mxu0 %v283
    %414 = vmatprep.subr.bf16.mxu0 0
    %415 = vmatpush2.bf16.msra.mxu0 0
    %416 = vmatprep.subr.bf16.mxu0 0
    %417 = vmatpush2.bf16.msra.mxu0 0
    %418 = vmatprep.subr.bf16.mxu0 0
    %419 = vmatpush2.bf16.msra.mxu0 0
    %420 = vmatprep.subr.bf16.mxu0 0
    %421 = vmatpush2.bf16.msra.mxu0 0
    %422 = vmatprep.subr.bf16.mxu0 0
    %423 = vmatpush2.bf16.msra.mxu0 %v316
    %424 = vmatprep.subr.bf16.mxu0 0
    %425 = vmatpush2.bf16.msra.mxu0 %v313
    %426 = vmatprep.subr.bf16.mxu0 0
    %427 = vmatpush2.bf16.msra.mxu0 %v310
    %428 = vmatprep.subr.bf16.mxu0 0
    %429 = vmatpush2.bf16.msra.mxu0 %v307
    %430 = vmatprep.mubr.bf16.mxu0 %v355
    %431 = vmatmul.mubr.bf16.gmra.mxu0 %v158
    %v432 = vpop.f32.mrf.mxu0
    %v433 = vadd.f32 0.0, %v432
    %v434 = vpop.f32.mrf.mxu0
    %v435 = vpop.f32.mrf.mxu0
    %v436 = vpop.f32.mrf.mxu0
    %437 = vdwg.mxu0
    %v438 = vrot.slane %v151, 7
    %v439 = vsel %vm154, %v438, %v149
    %v440 = vrot.slane %v152, 7
    %v441 = vsel %vm154, %v440, %v150
    %v442 = vpack.c.b16 %v439, %v439
    %v443 = vpack.c.b16 %v441, %v441
    %v493 = vunpack.c.l.b16 %v42
    %v494 = vunpack.c.h.b16 %v42
    %v495 = vunpack.c.l.b16 %v43
    %v496 = vunpack.c.l.b16 %v44
    %v497 = vunpack.c.h.b16 %v44
    %v498 = vunpack.c.l.b16 %v45
    %v499 = vunpack.c.l.b16 %v46
    %v500 = vunpack.c.h.b16 %v46
    %v501 = vunpack.c.l.b16 %v47
    %v502 = vunpack.c.l.b16 %v48
    %v503 = vunpack.c.h.b16 %v48
    %v504 = vunpack.c.l.b16 %v49
    %v505 = vunpack.c.l.b16 %v50
    %v506 = vunpack.c.h.b16 %v50
    %v507 = vunpack.c.l.b16 %v51
    %v508 = vunpack.c.l.b16 %v52
    %v509 = vunpack.c.h.b16 %v52
    %v510 = vunpack.c.l.b16 %v53
    %v511 = vunpack.c.l.b16 %v54
    %v512 = vunpack.c.h.b16 %v54
    %v513 = vunpack.c.l.b16 %v55
    %v514 = vunpack.c.l.b16 %v56
    %v515 = vunpack.c.h.b16 %v56
    %v516 = vunpack.c.l.b16 %v57
    %v517 = vunpack.c.l.b16 %v58
    %v518 = vunpack.c.h.b16 %v58
    %v519 = vunpack.c.l.b16 %v59
    %v520 = vunpack.c.l.b16 %v60
    %v521 = vunpack.c.h.b16 %v60
    %v522 = vunpack.c.l.b16 %v61
    %v523 = vunpack.c.l.b16 %v62
    %v524 = vunpack.c.h.b16 %v62
    %v525 = vunpack.c.l.b16 %v63
    %v526 = vunpack.c.l.b16 %v64
    %v527 = vunpack.c.h.b16 %v64
    %v528 = vunpack.c.l.b16 %v65
    %v529 = vunpack.c.l.b16 %v66
    %v530 = vunpack.c.h.b16 %v66
    %v531 = vunpack.c.l.b16 %v67
    %v532 = vunpack.c.l.b16 %v68
    %v533 = vunpack.c.h.b16 %v68
    %v534 = vunpack.c.l.b16 %v69
    %v535 = vunpack.c.l.b16 %v70
    %v536 = vunpack.c.h.b16 %v70
    %v537 = vunpack.c.l.b16 %v71
    %v538 = vunpack.c.l.b16 %v72
    %v539 = vunpack.c.h.b16 %v72
    %v540 = vunpack.c.l.b16 %v73
    %v541 = vunpack.c.l.b16 %v74
    %v542 = vunpack.c.h.b16 %v74
    %v543 = vunpack.c.l.b16 %v75
    %v544 = vunpack.c.l.b16 %v76
    %v545 = vunpack.c.h.b16 %v76
    %v546 = vunpack.c.l.b16 %v77
    %v547 = vunpack.c.l.b16 %v78
    %v548 = vunpack.c.h.b16 %v78
    %v549 = vunpack.c.l.b16 %v79
    %v550 = vunpack.c.l.b16 %v80
    %v551 = vunpack.c.h.b16 %v80
    %v552 = vunpack.c.l.b16 %v81
    %v553 = vunpack.c.l.b16 %v82
    %v554 = vunpack.c.h.b16 %v82
    %v555 = vunpack.c.l.b16 %v83
    %v556 = vunpack.c.l.b16 %v84
    %v557 = vunpack.c.h.b16 %v84
    %v558 = vunpack.c.l.b16 %v85
    %v559 = vunpack.c.l.b16 %v86
    %v560 = vunpack.c.h.b16 %v86
    %v561 = vunpack.c.l.b16 %v87
    %v562 = vunpack.c.l.b16 %v88
    %v563 = vunpack.c.h.b16 %v88
    %v564 = vunpack.c.l.b16 %v89
    %v565 = vpack.c.b16 %v496, %v493
    %v566 = vpack.c.b16 %v497, %v494
    %v567 = vpack.c.b16 %v498, %v495
    %v568 = vpack.c.b16 %v502, %v499
    %v569 = vpack.c.b16 %v503, %v500
    %v570 = vpack.c.b16 %v504, %v501
    %v571 = vpack.c.b16 %v508, %v505
    %v572 = vpack.c.b16 %v509, %v506
    %v573 = vpack.c.b16 %v510, %v507
    %v574 = vpack.c.b16 %v514, %v511
    %v575 = vpack.c.b16 %v515, %v512
    %v576 = vpack.c.b16 %v516, %v513
    %v577 = vpack.c.b16 %v520, %v517
    %v578 = vpack.c.b16 %v521, %v518
    %v579 = vpack.c.b16 %v522, %v519
    %v580 = vpack.c.b16 %v526, %v523
    %v581 = vpack.c.b16 %v527, %v524
    %v582 = vpack.c.b16 %v528, %v525
    %v583 = vpack.c.b16 %v532, %v529
    %v584 = vpack.c.b16 %v533, %v530
    %v585 = vpack.c.b16 %v534, %v531
    %v586 = vpack.c.b16 %v538, %v535
    %v587 = vpack.c.b16 %v539, %v536
    %v588 = vpack.c.b16 %v540, %v537
    %v589 = vpack.c.b16 %v544, %v541
    %v590 = vpack.c.b16 %v545, %v542
    %v591 = vpack.c.b16 %v546, %v543
    %v592 = vpack.c.b16 %v550, %v547
    %v593 = vpack.c.b16 %v551, %v548
    %v594 = vpack.c.b16 %v552, %v549
    %v595 = vpack.c.b16 %v556, %v553
    %v596 = vpack.c.b16 %v557, %v554
    %v597 = vpack.c.b16 %v558, %v555
    %v598 = vpack.c.b16 %v562, %v559
    %v599 = vpack.c.b16 %v563, %v560
    %v600 = vpack.c.b16 %v564, %v561
    %v638 = vsel %vm353, %v443, 0
    %640 = vmatprep.subr.bf16.mxu0 %v587
    %641 = vmatpush1.bf16.msra.mxu0 %v586
    %642 = vmatprep.subr.bf16.mxu0 %v584
    %643 = vmatpush1.bf16.msra.mxu0 %v583
    %644 = vmatprep.subr.bf16.mxu0 %v581
    %645 = vmatpush1.bf16.msra.mxu0 %v580
    %646 = vmatprep.subr.bf16.mxu0 %v578
    %647 = vmatpush1.bf16.msra.mxu0 %v577
    %648 = vmatprep.subr.bf16.mxu0 %v575
    %649 = vmatpush1.bf16.msra.mxu0 %v574
    %650 = vmatprep.subr.bf16.mxu0 %v572
    %651 = vmatpush1.bf16.msra.mxu0 %v571
    %652 = vmatprep.subr.bf16.mxu0 %v569
    %653 = vmatpush1.bf16.msra.mxu0 %v568
    %654 = vmatprep.subr.bf16.mxu0 %v566
    %655 = vmatpush1.bf16.msra.mxu0 %v565
    %656 = vmatprep.subr.bf16.mxu0 0
    %657 = vmatpush2.bf16.msra.mxu0 0
    %658 = vmatprep.subr.bf16.mxu0 0
    %659 = vmatpush2.bf16.msra.mxu0 0
    %660 = vmatprep.subr.bf16.mxu0 0
    %661 = vmatpush2.bf16.msra.mxu0 0
    %662 = vmatprep.subr.bf16.mxu0 0
    %663 = vmatpush2.bf16.msra.mxu0 0
    %664 = vmatprep.subr.bf16.mxu0 %v599
    %665 = vmatpush2.bf16.msra.mxu0 %v598
    %666 = vmatprep.subr.bf16.mxu0 %v596
    %667 = vmatpush2.bf16.msra.mxu0 %v595
    %668 = vmatprep.subr.bf16.mxu0 %v593
    %669 = vmatpush2.bf16.msra.mxu0 %v592
    %670 = vmatprep.subr.bf16.mxu0 %v590
    %671 = vmatpush2.bf16.msra.mxu0 %v589
    %672 = vmatprep.mubr.bf16.mxu0 %v638
    %673 = vmatmul.mubr.bf16.gmra.mxu0 %v442
    %v674 = vpop.f32.mrf.mxu0
    %v675 = vadd.f32 %v392, %v674
    %v676 = vpop.f32.mrf.mxu0
    %v677 = vadd.f32 %v394, %v676
    %v678 = vpop.f32.mrf.mxu0
    %v679 = vpop.f32.mrf.mxu0
    %680 = vdwg.mxu0
    %681 = vmatprep.subr.bf16.mxu0 0
    %682 = vmatpush1.bf16.msra.mxu0 %v588
    %683 = vmatprep.subr.bf16.mxu0 0
    %684 = vmatpush1.bf16.msra.mxu0 %v585
    %685 = vmatprep.subr.bf16.mxu0 0
    %686 = vmatpush1.bf16.msra.mxu0 %v582
    %687 = vmatprep.subr.bf16.mxu0 0
    %688 = vmatpush1.bf16.msra.mxu0 %v579
    %689 = vmatprep.subr.bf16.mxu0 0
    %690 = vmatpush1.bf16.msra.mxu0 %v576
    %691 = vmatprep.subr.bf16.mxu0 0
    %692 = vmatpush1.bf16.msra.mxu0 %v573
    %693 = vmatprep.subr.bf16.mxu0 0
    %694 = vmatpush1.bf16.msra.mxu0 %v570
    %695 = vmatprep.subr.bf16.mxu0 0
    %696 = vmatpush1.bf16.msra.mxu0 %v567
    %697 = vmatprep.subr.bf16.mxu0 0
    %698 = vmatpush2.bf16.msra.mxu0 0
    %699 = vmatprep.subr.bf16.mxu0 0
    %700 = vmatpush2.bf16.msra.mxu0 0
    %701 = vmatprep.subr.bf16.mxu0 0
    %702 = vmatpush2.bf16.msra.mxu0 0
    %703 = vmatprep.subr.bf16.mxu0 0
    %704 = vmatpush2.bf16.msra.mxu0 0
    %705 = vmatprep.subr.bf16.mxu0 0
    %706 = vmatpush2.bf16.msra.mxu0 %v600
    %707 = vmatprep.subr.bf16.mxu0 0
    %708 = vmatpush2.bf16.msra.mxu0 %v597
    %709 = vmatprep.subr.bf16.mxu0 0
    %710 = vmatpush2.bf16.msra.mxu0 %v594
    %711 = vmatprep.subr.bf16.mxu0 0
    %712 = vmatpush2.bf16.msra.mxu0 %v591
    %713 = vmatprep.mubr.bf16.mxu0 %v638
    %714 = vmatmul.mubr.bf16.gmra.mxu0 %v442
    %v715 = vpop.f32.mrf.mxu0
    %v716 = vadd.f32 %v433, %v715
    %v717 = vpop.f32.mrf.mxu0
    %v718 = vpop.f32.mrf.mxu0
    %v719 = vpop.f32.mrf.mxu0
    %720 = vdwg.mxu0
    %v721 = vld [vmem:[%s0] sm:$0x22]
    %v722 = vld [vmem:[%s0 + $0x10] sm:$0x22]
    %s723 = scalar_lea.vmem %s1, 576
    %v724 = vld [vmem:[%s723] sm:$0xff]
    %v725 = vld [vmem:[%s723 + $0x8] sm:$0xf]
    %v726 = vld [vmem:[%s723 + $0xc] sm:$0xff]
    %v727 = vld [vmem:[%s723 + $0x14] sm:$0xf]
    %v728 = vld [vmem:[%s723 + $0x18] sm:$0xff]
    %v729 = vld [vmem:[%s723 + $0x20] sm:$0xf]
    %v730 = vld [vmem:[%s723 + $0x24] sm:$0xff]
    %v731 = vld [vmem:[%s723 + $0x2c] sm:$0xf]
    %v732 = vld [vmem:[%s723 + $0x30] sm:$0xff]
    %v733 = vld [vmem:[%s723 + $0x38] sm:$0xf]
    %v734 = vld [vmem:[%s723 + $0x3c] sm:$0xff]
    %v735 = vld [vmem:[%s723 + $0x44] sm:$0xf]
    %v736 = vld [vmem:[%s723 + $0x48] sm:$0xff]
    %v737 = vld [vmem:[%s723 + $0x50] sm:$0xf]
    %v738 = vld [vmem:[%s723 + $0x54] sm:$0xff]
    %v739 = vld [vmem:[%s723 + $0x5c] sm:$0xf]
    %v740 = vld [vmem:[%s723 + $0x60] sm:$0xff]
    %v741 = vld [vmem:[%s723 + $0x68] sm:$0xf]
    %v742 = vld [vmem:[%s723 + $0x6c] sm:$0xff]
    %v743 = vld [vmem:[%s723 + $0x74] sm:$0xf]
    %v744 = vld [vmem:[%s723 + $0x78] sm:$0xff]
    %v745 = vld [vmem:[%s723 + $0x80] sm:$0xf]
    %v746 = vld [vmem:[%s723 + $0x84] sm:$0xff]
    %v747 = vld [vmem:[%s723 + $0x8c] sm:$0xf]
    %v748 = vld [vmem:[%s723 + $0x90] sm:$0xff]
    %v749 = vld [vmem:[%s723 + $0x98] sm:$0xf]
    %v750 = vld [vmem:[%s723 + $0x9c] sm:$0xff]
    %v751 = vld [vmem:[%s723 + $0xa4] sm:$0xf]
    %v752 = vld [vmem:[%s723 + $0xa8] sm:$0xff]
    %v753 = vld [vmem:[%s723 + $0xb0] sm:$0xf]
    %v754 = vld [vmem:[%s723 + $0xb4] sm:$0xff]
    %v755 = vld [vmem:[%s723 + $0xbc] sm:$0xf]
    %v756 = vld [vmem:[%s723 + $0xc0] sm:$0xff]
    %v757 = vld [vmem:[%s723 + $0xc8] sm:$0xf]
    %v758 = vld [vmem:[%s723 + $0xcc] sm:$0xff]
    %v759 = vld [vmem:[%s723 + $0xd4] sm:$0xf]
    %v760 = vld [vmem:[%s723 + $0xd8] sm:$0xff]
    %v761 = vld [vmem:[%s723 + $0xe0] sm:$0xf]
    %v762 = vld [vmem:[%s723 + $0xe4] sm:$0xff]
    %v763 = vld [vmem:[%s723 + $0xec] sm:$0xf]
    %v764 = vld [vmem:[%s723 + $0xf0] sm:$0xff]
    %v765 = vld [vmem:[%s723 + $0xf8] sm:$0xf]
    %v766 = vld [vmem:[%s723 + $0xfc] sm:$0xff]
    %v767 = vld [vmem:[%s723 + $0x104] sm:$0xf]
    %v768 = vld [vmem:[%s723 + $0x108] sm:$0xff]
    %v769 = vld [vmem:[%s723 + $0x110] sm:$0xf]
    %v770 = vld [vmem:[%s723 + $0x114] sm:$0xff]
    %v771 = vld [vmem:[%s723 + $0x11c] sm:$0xf]
    %v774 = vunpack.c.l.b16 %v721
    %v775 = vunpack.c.h.b16 %v721
    %v776 = vunpack.c.l.b16 %v722
    %v777 = vunpack.c.h.b16 %v722
    %v778 = vpack.c.b16 %v774, %v774
    %v779 = vpack.c.b16 %v775, %v775
    %v780 = vpack.c.b16 %v776, %v776
    %v781 = vpack.c.b16 %v777, %v777
    %v782 = vunpack.c.l.b16 %v778
    %v783 = vunpack.c.l.b16 %v779
    %v784 = vunpack.c.l.b16 %v780
    %v785 = vunpack.c.l.b16 %v781
    %v786 = vrot.slane %v782, 2
    %v787 = vrot.slane %v784, 1
    %v788 = vsel %vm154, %v787, %v786
    %v789 = vrot.slane %v783, 2
    %v790 = vrot.slane %v785, 1
    %v791 = vsel %vm154, %v790, %v789
    %v792 = vpack.c.b16 %v788, %v788
    %v793 = vpack.c.b16 %v791, %v791
    %v843 = vunpack.c.l.b16 %v724
    %v844 = vunpack.c.h.b16 %v724
    %v845 = vunpack.c.l.b16 %v725
    %v846 = vunpack.c.l.b16 %v726
    %v847 = vunpack.c.h.b16 %v726
    %v848 = vunpack.c.l.b16 %v727
    %v849 = vunpack.c.l.b16 %v728
    %v850 = vunpack.c.h.b16 %v728
    %v851 = vunpack.c.l.b16 %v729
    %v852 = vunpack.c.l.b16 %v730
    %v853 = vunpack.c.h.b16 %v730
    %v854 = vunpack.c.l.b16 %v731
    %v855 = vunpack.c.l.b16 %v732
    %v856 = vunpack.c.h.b16 %v732
    %v857 = vunpack.c.l.b16 %v733
    %v858 = vunpack.c.l.b16 %v734
    %v859 = vunpack.c.h.b16 %v734
    %v860 = vunpack.c.l.b16 %v735
    %v861 = vunpack.c.l.b16 %v736
    %v862 = vunpack.c.h.b16 %v736
    %v863 = vunpack.c.l.b16 %v737
    %v864 = vunpack.c.l.b16 %v738
    %v865 = vunpack.c.h.b16 %v738
    %v866 = vunpack.c.l.b16 %v739
    %v867 = vunpack.c.l.b16 %v740
    %v868 = vunpack.c.h.b16 %v740
    %v869 = vunpack.c.l.b16 %v741
    %v870 = vunpack.c.l.b16 %v742
    %v871 = vunpack.c.h.b16 %v742
    %v872 = vunpack.c.l.b16 %v743
    %v873 = vunpack.c.l.b16 %v744
    %v874 = vunpack.c.h.b16 %v744
    %v875 = vunpack.c.l.b16 %v745
    %v876 = vunpack.c.l.b16 %v746
    %v877 = vunpack.c.h.b16 %v746
    %v878 = vunpack.c.l.b16 %v747
    %v879 = vunpack.c.l.b16 %v748
    %v880 = vunpack.c.h.b16 %v748
    %v881 = vunpack.c.l.b16 %v749
    %v882 = vunpack.c.l.b16 %v750
    %v883 = vunpack.c.h.b16 %v750
    %v884 = vunpack.c.l.b16 %v751
    %v885 = vunpack.c.l.b16 %v752
    %v886 = vunpack.c.h.b16 %v752
    %v887 = vunpack.c.l.b16 %v753
    %v888 = vunpack.c.l.b16 %v754
    %v889 = vunpack.c.h.b16 %v754
    %v890 = vunpack.c.l.b16 %v755
    %v891 = vunpack.c.l.b16 %v756
    %v892 = vunpack.c.h.b16 %v756
    %v893 = vunpack.c.l.b16 %v757
    %v894 = vunpack.c.l.b16 %v758
    %v895 = vunpack.c.h.b16 %v758
    %v896 = vunpack.c.l.b16 %v759
    %v897 = vunpack.c.l.b16 %v760
    %v898 = vunpack.c.h.b16 %v760
    %v899 = vunpack.c.l.b16 %v761
    %v900 = vunpack.c.l.b16 %v762
    %v901 = vunpack.c.h.b16 %v762
    %v902 = vunpack.c.l.b16 %v763
    %v903 = vunpack.c.l.b16 %v764
    %v904 = vunpack.c.h.b16 %v764
    %v905 = vunpack.c.l.b16 %v765
    %v906 = vunpack.c.l.b16 %v766
    %v907 = vunpack.c.h.b16 %v766
    %v908 = vunpack.c.l.b16 %v767
    %v909 = vunpack.c.l.b16 %v768
    %v910 = vunpack.c.h.b16 %v768
    %v911 = vunpack.c.l.b16 %v769
    %v912 = vunpack.c.l.b16 %v770
    %v913 = vunpack.c.h.b16 %v770
    %v914 = vunpack.c.l.b16 %v771
    %v915 = vpack.c.b16 %v846, %v843
    %v916 = vpack.c.b16 %v847, %v844
    %v917 = vpack.c.b16 %v848, %v845
    %v918 = vpack.c.b16 %v852, %v849
    %v919 = vpack.c.b16 %v853, %v850
    %v920 = vpack.c.b16 %v854, %v851
    %v921 = vpack.c.b16 %v858, %v855
    %v922 = vpack.c.b16 %v859, %v856
    %v923 = vpack.c.b16 %v860, %v857
    %v924 = vpack.c.b16 %v864, %v861
    %v925 = vpack.c.b16 %v865, %v862
    %v926 = vpack.c.b16 %v866, %v863
    %v927 = vpack.c.b16 %v870, %v867
    %v928 = vpack.c.b16 %v871, %v868
    %v929 = vpack.c.b16 %v872, %v869
    %v930 = vpack.c.b16 %v876, %v873
    %v931 = vpack.c.b16 %v877, %v874
    %v932 = vpack.c.b16 %v878, %v875
    %v933 = vpack.c.b16 %v882, %v879
    %v934 = vpack.c.b16 %v883, %v880
    %v935 = vpack.c.b16 %v884, %v881
    %v936 = vpack.c.b16 %v888, %v885
    %v937 = vpack.c.b16 %v889, %v886
    %v938 = vpack.c.b16 %v890, %v887
    %v939 = vpack.c.b16 %v894, %v891
    %v940 = vpack.c.b16 %v895, %v892
    %v941 = vpack.c.b16 %v896, %v893
    %v942 = vpack.c.b16 %v900, %v897
    %v943 = vpack.c.b16 %v901, %v898
    %v944 = vpack.c.b16 %v902, %v899
    %v945 = vpack.c.b16 %v906, %v903
    %v946 = vpack.c.b16 %v907, %v904
    %v947 = vpack.c.b16 %v908, %v905
    %v948 = vpack.c.b16 %v912, %v909
    %v949 = vpack.c.b16 %v913, %v910
    %v950 = vpack.c.b16 %v914, %v911
    %v988 = vsel %vm353, %v793, 0
    %990 = vmatprep.subr.bf16.mxu0 %v937
    %991 = vmatpush1.bf16.msra.mxu0 %v936
    %992 = vmatprep.subr.bf16.mxu0 %v934
    %993 = vmatpush1.bf16.msra.mxu0 %v933
    %994 = vmatprep.subr.bf16.mxu0 %v931
    %995 = vmatpush1.bf16.msra.mxu0 %v930
    %996 = vmatprep.subr.bf16.mxu0 %v928
    %997 = vmatpush1.bf16.msra.mxu0 %v927
    %998 = vmatprep.subr.bf16.mxu0 %v925
    %999 = vmatpush1.bf16.msra.mxu0 %v924
    %1000 = vmatprep.subr.bf16.mxu0 %v922
    %1001 = vmatpush1.bf16.msra.mxu0 %v921
    %1002 = vmatprep.subr.bf16.mxu0 %v919
    %1003 = vmatpush1.bf16.msra.mxu0 %v918
    %1004 = vmatprep.subr.bf16.mxu0 %v916
    %1005 = vmatpush1.bf16.msra.mxu0 %v915
    %1006 = vmatprep.subr.bf16.mxu0 0
    %1007 = vmatpush2.bf16.msra.mxu0 0
    %1008 = vmatprep.subr.bf16.mxu0 0
    %1009 = vmatpush2.bf16.msra.mxu0 0
    %1010 = vmatprep.subr.bf16.mxu0 0
    %1011 = vmatpush2.bf16.msra.mxu0 0
    %1012 = vmatprep.subr.bf16.mxu0 0
    %1013 = vmatpush2.bf16.msra.mxu0 0
    %1014 = vmatprep.subr.bf16.mxu0 %v949
    %1015 = vmatpush2.bf16.msra.mxu0 %v948
    %1016 = vmatprep.subr.bf16.mxu0 %v946
    %1017 = vmatpush2.bf16.msra.mxu0 %v945
    %1018 = vmatprep.subr.bf16.mxu0 %v943
    %1019 = vmatpush2.bf16.msra.mxu0 %v942
    %1020 = vmatprep.subr.bf16.mxu0 %v940
    %1021 = vmatpush2.bf16.msra.mxu0 %v939
    %1022 = vmatprep.mubr.bf16.mxu0 %v988
    %1023 = vmatmul.mubr.bf16.gmra.mxu0 %v792
    %v1024 = vpop.f32.mrf.mxu0
    %v1025 = vadd.f32 0.0, %v1024
    %v1026 = vpop.f32.mrf.mxu0
    %v1027 = vadd.f32 0.0, %v1026
    %v1028 = vpop.f32.mrf.mxu0
    %v1029 = vpop.f32.mrf.mxu0
    %1030 = vdwg.mxu0
    %1031 = vmatprep.subr.bf16.mxu0 0
    %1032 = vmatpush1.bf16.msra.mxu0 %v938
    %1033 = vmatprep.subr.bf16.mxu0 0
    %1034 = vmatpush1.bf16.msra.mxu0 %v935
    %1035 = vmatprep.subr.bf16.mxu0 0
    %1036 = vmatpush1.bf16.msra.mxu0 %v932
    %1037 = vmatprep.subr.bf16.mxu0 0
    %1038 = vmatpush1.bf16.msra.mxu0 %v929
    %1039 = vmatprep.subr.bf16.mxu0 0
    %1040 = vmatpush1.bf16.msra.mxu0 %v926
    %1041 = vmatprep.subr.bf16.mxu0 0
    %1042 = vmatpush1.bf16.msra.mxu0 %v923
    %1043 = vmatprep.subr.bf16.mxu0 0
    %1044 = vmatpush1.bf16.msra.mxu0 %v920
    %1045 = vmatprep.subr.bf16.mxu0 0
    %1046 = vmatpush1.bf16.msra.mxu0 %v917
    %1047 = vmatprep.subr.bf16.mxu0 0
    %1048 = vmatpush2.bf16.msra.mxu0 0
    %1049 = vmatprep.subr.bf16.mxu0 0
    %1050 = vmatpush2.bf16.msra.mxu0 0
    %1051 = vmatprep.subr.bf16.mxu0 0
    %1052 = vmatpush2.bf16.msra.mxu0 0
    %1053 = vmatprep.subr.bf16.mxu0 0
    %1054 = vmatpush2.bf16.msra.mxu0 0
    %1055 = vmatprep.subr.bf16.mxu0 0
    %1056 = vmatpush2.bf16.msra.mxu0 %v950
    %1057 = vmatprep.subr.bf16.mxu0 0
    %1058 = vmatpush2.bf16.msra.mxu0 %v947
    %1059 = vmatprep.subr.bf16.mxu0 0
    %1060 = vmatpush2.bf16.msra.mxu0 %v944
    %1061 = vmatprep.subr.bf16.mxu0 0
    %1062 = vmatpush2.bf16.msra.mxu0 %v941
    %1063 = vmatprep.mubr.bf16.mxu0 %v988
    %1064 = vmatmul.mubr.bf16.gmra.mxu0 %v792
    %v1065 = vpop.f32.mrf.mxu0
    %v1066 = vadd.f32 0.0, %v1065
    %v1067 = vpop.f32.mrf.mxu0
    %v1068 = vpop.f32.mrf.mxu0
    %v1069 = vpop.f32.mrf.mxu0
    %1070 = vdwg.mxu0
    %v1071 = vadd.f32 %v675, %v1025
    %v1072 = vadd.f32 %v677, %v1027
    %v1073 = vadd.f32 %v716, %v1066
    %1076 = vrot.lane.b32.xlu0 %v1071, 44
    %v1077 = vpop.permute.xlu0 %1076
    %1078 = vrot.lane.b32.xlu0 %v1072, 44
    %v1079 = vpop.permute.xlu0 %1078
    %vm1080 = vcmask 359424
    %v1081 = vsel %vm1080, %v1077, %v1079
    %v1083 = vmax.f32 %v1071, %v1081
    %1085 = vrot.lane.b32.xlu0 %v1073, 44
    %v1086 = vpop.permute.xlu0 %1085
    %v1087 = vsel %vm1080, %v1079, %v1086
    %v1089 = vmax.f32 %v1072, %v1087
    %1091 = vrot.lane.b32.xlu0 %v1089, 88
    %v1092 = vpop.permute.xlu0 %1091
    %v1094 = vmax.f32 %v1083, %v1092
    %v1095 = vld [vmem:[%s2] sm:$0x1]
    %v1097 = vlaneseq
    %v1098 = vshrl.u32 %v1097, 7
    %v1099 = vsub.s32 0, %v1098
    %v1100 = vrot.slane %v1095, %v1099
    %v1102 = vadd.f32 %v1094, %v1100
    %v1103 = vmax.f32 %v1102, 0.0
    %v1104 = vpack.c.bf16 %v1103, %v1103
    %1105 = vmatprep.subr.bf16.mxu0 %v303
    %1106 = vmatpush1.bf16.msra.mxu0 %v302
    %1107 = vmatprep.subr.bf16.mxu0 %v300
    %1108 = vmatpush1.bf16.msra.mxu0 %v299
    %1109 = vmatprep.subr.bf16.mxu0 %v297
    %1110 = vmatpush1.bf16.msra.mxu0 %v296
    %1111 = vmatprep.subr.bf16.mxu0 %v294
    %1112 = vmatpush1.bf16.msra.mxu0 %v293
    %1113 = vmatprep.subr.bf16.mxu0 %v291
    %1114 = vmatpush1.bf16.msra.mxu0 %v290
    %1115 = vmatprep.subr.bf16.mxu0 %v288
    %1116 = vmatpush1.bf16.msra.mxu0 %v287
    %1117 = vmatprep.subr.bf16.mxu0 %v285
    %1118 = vmatpush1.bf16.msra.mxu0 %v284
    %1119 = vmatprep.subr.bf16.mxu0 %v282
    %1120 = vmatpush1.bf16.msra.mxu0 %v281
    %1121 = vmatprep.subr.bf16.mxu0 0
    %1122 = vmatpush2.bf16.msra.mxu0 0
    %1123 = vmatprep.subr.bf16.mxu0 0
    %1124 = vmatpush2.bf16.msra.mxu0 0
    %1125 = vmatprep.subr.bf16.mxu0 0
    %1126 = vmatpush2.bf16.msra.mxu0 0
    %1127 = vmatprep.subr.bf16.mxu0 0
    %1128 = vmatpush2.bf16.msra.mxu0 0
    %1129 = vmatprep.subr.bf16.mxu0 %v315
    %1130 = vmatpush2.bf16.msra.mxu0 %v314
    %1131 = vmatprep.subr.bf16.mxu0 %v312
    %1132 = vmatpush2.bf16.msra.mxu0 %v311
    %1133 = vmatprep.subr.bf16.mxu0 %v309
    %1134 = vmatpush2.bf16.msra.mxu0 %v308
    %1135 = vmatprep.subr.bf16.mxu0 %v306
    %1136 = vmatpush2.bf16.msra.mxu0 %v305
    %1137 = vmatprep.mubr.bf16.mxu0 %v988
    %1138 = vmatmul.mubr.bf16.gmra.mxu0 %v792
    %v1139 = vpop.f32.mrf.mxu0
    %v1140 = vadd.f32 0.0, %v1139
    %v1141 = vpop.f32.mrf.mxu0
    %v1142 = vadd.f32 0.0, %v1141
    %v1143 = vpop.f32.mrf.mxu0
    %v1144 = vpop.f32.mrf.mxu0
    %1145 = vdwg.mxu0
    %1146 = vmatprep.subr.bf16.mxu0 0
    %1147 = vmatpush1.bf16.msra.mxu0 %v304
    %1148 = vmatprep.subr.bf16.mxu0 0
    %1149 = vmatpush1.bf16.msra.mxu0 %v301
    %1150 = vmatprep.subr.bf16.mxu0 0
    %1151 = vmatpush1.bf16.msra.mxu0 %v298
    %1152 = vmatprep.subr.bf16.mxu0 0
    %1153 = vmatpush1.bf16.msra.mxu0 %v295
    %1154 = vmatprep.subr.bf16.mxu0 0
    %1155 = vmatpush1.bf16.msra.mxu0 %v292
    %1156 = vmatprep.subr.bf16.mxu0 0
    %1157 = vmatpush1.bf16.msra.mxu0 %v289
    %1158 = vmatprep.subr.bf16.mxu0 0
    %1159 = vmatpush1.bf16.msra.mxu0 %v286
    %1160 = vmatprep.subr.bf16.mxu0 0
    %1161 = vmatpush1.bf16.msra.mxu0 %v283
    %1162 = vmatprep.subr.bf16.mxu0 0
    %1163 = vmatpush2.bf16.msra.mxu0 0
    %1164 = vmatprep.subr.bf16.mxu0 0
    %1165 = vmatpush2.bf16.msra.mxu0 0
    %1166 = vmatprep.subr.bf16.mxu0 0
    %1167 = vmatpush2.bf16.msra.mxu0 0
    %1168 = vmatprep.subr.bf16.mxu0 0
    %1169 = vmatpush2.bf16.msra.mxu0 0
    %1170 = vmatprep.subr.bf16.mxu0 0
    %1171 = vmatpush2.bf16.msra.mxu0 %v316
    %1172 = vmatprep.subr.bf16.mxu0 0
    %1173 = vmatpush2.bf16.msra.mxu0 %v313
    %1174 = vmatprep.subr.bf16.mxu0 0
    %1175 = vmatpush2.bf16.msra.mxu0 %v310
    %1176 = vmatprep.subr.bf16.mxu0 0
    %1177 = vmatpush2.bf16.msra.mxu0 %v307
    %1178 = vmatprep.mubr.bf16.mxu0 %v988
    %1179 = vmatmul.mubr.bf16.gmra.mxu0 %v792
    %v1180 = vpop.f32.mrf.mxu0
    %v1181 = vadd.f32 0.0, %v1180
    %v1182 = vpop.f32.mrf.mxu0
    %v1183 = vpop.f32.mrf.mxu0
    %v1184 = vpop.f32.mrf.mxu0
    %1185 = vdwg.mxu0
    %1186 = vmatprep.subr.bf16.mxu0 %v587
    %1187 = vmatpush1.bf16.msra.mxu0 %v586
    %1188 = vmatprep.subr.bf16.mxu0 %v584
    %1189 = vmatpush1.bf16.msra.mxu0 %v583
    %1190 = vmatprep.subr.bf16.mxu0 %v581
    %1191 = vmatpush1.bf16.msra.mxu0 %v580
    %1192 = vmatprep.subr.bf16.mxu0 %v578
    %1193 = vmatpush1.bf16.msra.mxu0 %v577
    %1194 = vmatprep.subr.bf16.mxu0 %v575
    %1195 = vmatpush1.bf16.msra.mxu0 %v574
    %1196 = vmatprep.subr.bf16.mxu0 %v572
    %1197 = vmatpush1.bf16.msra.mxu0 %v571
    %1198 = vmatprep.subr.bf16.mxu0 %v569
    %1199 = vmatpush1.bf16.msra.mxu0 %v568
    %1200 = vmatprep.subr.bf16.mxu0 %v566
    %1201 = vmatpush1.bf16.msra.mxu0 %v565
    %1202 = vmatprep.subr.bf16.mxu0 0
    %1203 = vmatpush2.bf16.msra.mxu0 0
    %1204 = vmatprep.subr.bf16.mxu0 0
    %1205 = vmatpush2.bf16.msra.mxu0 0
    %1206 = vmatprep.subr.bf16.mxu0 0
    %1207 = vmatpush2.bf16.msra.mxu0 0
    %1208 = vmatprep.subr.bf16.mxu0 0
    %1209 = vmatpush2.bf16.msra.mxu0 0
    %1210 = vmatprep.subr.bf16.mxu0 %v599
    %1211 = vmatpush2.bf16.msra.mxu0 %v598
    %1212 = vmatprep.subr.bf16.mxu0 %v596
    %1213 = vmatpush2.bf16.msra.mxu0 %v595
    %1214 = vmatprep.subr.bf16.mxu0 %v593
    %1215 = vmatpush2.bf16.msra.mxu0 %v592
    %1216 = vmatprep.subr.bf16.mxu0 %v590
    %1217 = vmatpush2.bf16.msra.mxu0 %v589
    %1218 = vmatprep.mubr.bf16.mxu0 %v355
    %1219 = vmatmul.mubr.bf16.gmra.mxu0 %v158
    %v1220 = vpop.f32.mrf.mxu0
    %v1221 = vadd.f32 %v1140, %v1220
    %v1222 = vpop.f32.mrf.mxu0
    %v1223 = vadd.f32 %v1142, %v1222
    %v1224 = vpop.f32.mrf.mxu0
    %v1225 = vpop.f32.mrf.mxu0
    %1226 = vdwg.mxu0
    %1227 = vmatprep.subr.bf16.mxu0 0
    %1228 = vmatpush1.bf16.msra.mxu0 %v588
    %1229 = vmatprep.subr.bf16.mxu0 0
    %1230 = vmatpush1.bf16.msra.mxu0 %v585
    %1231 = vmatprep.subr.bf16.mxu0 0
    %1232 = vmatpush1.bf16.msra.mxu0 %v582
    %1233 = vmatprep.subr.bf16.mxu0 0
    %1234 = vmatpush1.bf16.msra.mxu0 %v579
    %1235 = vmatprep.subr.bf16.mxu0 0
    %1236 = vmatpush1.bf16.msra.mxu0 %v576
    %1237 = vmatprep.subr.bf16.mxu0 0
    %1238 = vmatpush1.bf16.msra.mxu0 %v573
    %1239 = vmatprep.subr.bf16.mxu0 0
    %1240 = vmatpush1.bf16.msra.mxu0 %v570
    %1241 = vmatprep.subr.bf16.mxu0 0
    %1242 = vmatpush1.bf16.msra.mxu0 %v567
    %1243 = vmatprep.subr.bf16.mxu0 0
    %1244 = vmatpush2.bf16.msra.mxu0 0
    %1245 = vmatprep.subr.bf16.mxu0 0
    %1246 = vmatpush2.bf16.msra.mxu0 0
    %1247 = vmatprep.subr.bf16.mxu0 0
    %1248 = vmatpush2.bf16.msra.mxu0 0
    %1249 = vmatprep.subr.bf16.mxu0 0
    %1250 = vmatpush2.bf16.msra.mxu0 0
    %1251 = vmatprep.subr.bf16.mxu0 0
    %1252 = vmatpush2.bf16.msra.mxu0 %v600
    %1253 = vmatprep.subr.bf16.mxu0 0
    %1254 = vmatpush2.bf16.msra.mxu0 %v597
    %1255 = vmatprep.subr.bf16.mxu0 0
    %1256 = vmatpush2.bf16.msra.mxu0 %v594
    %1257 = vmatprep.subr.bf16.mxu0 0
    %1258 = vmatpush2.bf16.msra.mxu0 %v591
    %1259 = vmatprep.mubr.bf16.mxu0 %v355
    %1260 = vmatmul.mubr.bf16.gmra.mxu0 %v158
    %v1261 = vpop.f32.mrf.mxu0
    %v1262 = vadd.f32 %v1181, %v1261
    %v1263 = vpop.f32.mrf.mxu0
    %v1264 = vpop.f32.mrf.mxu0
    %v1265 = vpop.f32.mrf.mxu0
    %1266 = vdwg.mxu0
    %v1267 = vrot.slane %v782, 3
    %v1268 = vrot.slane %v784, 2
    %v1269 = vsel %vm154, %v1268, %v1267
    %v1270 = vrot.slane %v783, 3
    %v1271 = vrot.slane %v785, 2
    %v1272 = vsel %vm154, %v1271, %v1270
    %v1273 = vpack.c.b16 %v1269, %v1269
    %v1274 = vpack.c.b16 %v1272, %v1272
    %v1277 = vsel %vm353, %v1274, 0
    %1279 = vmatprep.subr.bf16.mxu0 %v937
    %1280 = vmatpush1.bf16.msra.mxu0 %v936
    %1281 = vmatprep.subr.bf16.mxu0 %v934
    %1282 = vmatpush1.bf16.msra.mxu0 %v933
    %1283 = vmatprep.subr.bf16.mxu0 %v931
    %1284 = vmatpush1.bf16.msra.mxu0 %v930
    %1285 = vmatprep.subr.bf16.mxu0 %v928
    %1286 = vmatpush1.bf16.msra.mxu0 %v927
    %1287 = vmatprep.subr.bf16.mxu0 %v925
    %1288 = vmatpush1.bf16.msra.mxu0 %v924
    %1289 = vmatprep.subr.bf16.mxu0 %v922
    %1290 = vmatpush1.bf16.msra.mxu0 %v921
    %1291 = vmatprep.subr.bf16.mxu0 %v919
    %1292 = vmatpush1.bf16.msra.mxu0 %v918
    %1293 = vmatprep.subr.bf16.mxu0 %v916
    %1294 = vmatpush1.bf16.msra.mxu0 %v915
    %1295 = vmatprep.subr.bf16.mxu0 0
    %1296 = vmatpush2.bf16.msra.mxu0 0
    %1297 = vmatprep.subr.bf16.mxu0 0
    %1298 = vmatpush2.bf16.msra.mxu0 0
    %1299 = vmatprep.subr.bf16.mxu0 0
    %1300 = vmatpush2.bf16.msra.mxu0 0
    %1301 = vmatprep.subr.bf16.mxu0 0
    %1302 = vmatpush2.bf16.msra.mxu0 0
    %1303 = vmatprep.subr.bf16.mxu0 %v949
    %1304 = vmatpush2.bf16.msra.mxu0 %v948
    %1305 = vmatprep.subr.bf16.mxu0 %v946
    %1306 = vmatpush2.bf16.msra.mxu0 %v945
    %1307 = vmatprep.subr.bf16.mxu0 %v943
    %1308 = vmatpush2.bf16.msra.mxu0 %v942
    %1309 = vmatprep.subr.bf16.mxu0 %v940
    %1310 = vmatpush2.bf16.msra.mxu0 %v939
    %1311 = vmatprep.mubr.bf16.mxu0 %v1277
    %1312 = vmatmul.mubr.bf16.gmra.mxu0 %v1273
    %v1313 = vpop.f32.mrf.mxu0
    %v1314 = vadd.f32 0.0, %v1313
    %v1315 = vpop.f32.mrf.mxu0
    %v1316 = vadd.f32 0.0, %v1315
    %v1317 = vpop.f32.mrf.mxu0
    %v1318 = vpop.f32.mrf.mxu0
    %1319 = vdwg.mxu0
    %1320 = vmatprep.subr.bf16.mxu0 0
    %1321 = vmatpush1.bf16.msra.mxu0 %v938
    %1322 = vmatprep.subr.bf16.mxu0 0
    %1323 = vmatpush1.bf16.msra.mxu0 %v935
    %1324 = vmatprep.subr.bf16.mxu0 0
    %1325 = vmatpush1.bf16.msra.mxu0 %v932
    %1326 = vmatprep.subr.bf16.mxu0 0
    %1327 = vmatpush1.bf16.msra.mxu0 %v929
    %1328 = vmatprep.subr.bf16.mxu0 0
    %1329 = vmatpush1.bf16.msra.mxu0 %v926
    %1330 = vmatprep.subr.bf16.mxu0 0
    %1331 = vmatpush1.bf16.msra.mxu0 %v923
    %1332 = vmatprep.subr.bf16.mxu0 0
    %1333 = vmatpush1.bf16.msra.mxu0 %v920
    %1334 = vmatprep.subr.bf16.mxu0 0
    %1335 = vmatpush1.bf16.msra.mxu0 %v917
    %1336 = vmatprep.subr.bf16.mxu0 0
    %1337 = vmatpush2.bf16.msra.mxu0 0
    %1338 = vmatprep.subr.bf16.mxu0 0
    %1339 = vmatpush2.bf16.msra.mxu0 0
    %1340 = vmatprep.subr.bf16.mxu0 0
    %1341 = vmatpush2.bf16.msra.mxu0 0
    %1342 = vmatprep.subr.bf16.mxu0 0
    %1343 = vmatpush2.bf16.msra.mxu0 0
    %1344 = vmatprep.subr.bf16.mxu0 0
    %1345 = vmatpush2.bf16.msra.mxu0 %v950
    %1346 = vmatprep.subr.bf16.mxu0 0
    %1347 = vmatpush2.bf16.msra.mxu0 %v947
    %1348 = vmatprep.subr.bf16.mxu0 0
    %1349 = vmatpush2.bf16.msra.mxu0 %v944
    %1350 = vmatprep.subr.bf16.mxu0 0
    %1351 = vmatpush2.bf16.msra.mxu0 %v941
    %1352 = vmatprep.mubr.bf16.mxu0 %v1277
    %1353 = vmatmul.mubr.bf16.gmra.mxu0 %v1273
    %v1354 = vpop.f32.mrf.mxu0
    %v1355 = vadd.f32 0.0, %v1354
    %v1356 = vpop.f32.mrf.mxu0
    %v1357 = vpop.f32.mrf.mxu0
    %v1358 = vpop.f32.mrf.mxu0
    %1359 = vdwg.mxu0
    %v1360 = vadd.f32 %v1221, %v1314
    %v1361 = vadd.f32 %v1223, %v1316
    %v1362 = vadd.f32 %v1262, %v1355
    %1365 = vrot.lane.b32.xlu0 %v1360, 44
    %v1366 = vpop.permute.xlu0 %1365
    %1367 = vrot.lane.b32.xlu0 %v1361, 44
    %v1368 = vpop.permute.xlu0 %1367
    %v1369 = vsel %vm1080, %v1366, %v1368
    %v1371 = vmax.f32 %v1360, %v1369
    %1373 = vrot.lane.b32.xlu0 %v1362, 44
    %v1374 = vpop.permute.xlu0 %1373
    %v1375 = vsel %vm1080, %v1368, %v1374
    %v1377 = vmax.f32 %v1361, %v1375
    %1379 = vrot.lane.b32.xlu0 %v1377, 88
    %v1380 = vpop.permute.xlu0 %1379
    %v1382 = vmax.f32 %v1371, %v1380
    %v1383 = vadd.f32 %v1382, %v1100
    %v1384 = vmax.f32 %v1383, 0.0
    %v1385 = vpack.c.bf16 %v1384, %v1384
    %1386 = vmatprep.subr.bf16.mxu0 %v303
    %1387 = vmatpush1.bf16.msra.mxu0 %v302
    %1388 = vmatprep.subr.bf16.mxu0 %v300
    %1389 = vmatpush1.bf16.msra.mxu0 %v299
    %1390 = vmatprep.subr.bf16.mxu0 %v297
    %1391 = vmatpush1.bf16.msra.mxu0 %v296
    %1392 = vmatprep.subr.bf16.mxu0 %v294
    %1393 = vmatpush1.bf16.msra.mxu0 %v293
    %1394 = vmatprep.subr.bf16.mxu0 %v291
    %1395 = vmatpush1.bf16.msra.mxu0 %v290
    %1396 = vmatprep.subr.bf16.mxu0 %v288
    %1397 = vmatpush1.bf16.msra.mxu0 %v287
    %1398 = vmatprep.subr.bf16.mxu0 %v285
    %1399 = vmatpush1.bf16.msra.mxu0 %v284
    %1400 = vmatprep.subr.bf16.mxu0 %v282
    %1401 = vmatpush1.bf16.msra.mxu0 %v281
    %1402 = vmatprep.subr.bf16.mxu0 0
    %1403 = vmatpush2.bf16.msra.mxu0 0
    %1404 = vmatprep.subr.bf16.mxu0 0
    %1405 = vmatpush2.bf16.msra.mxu0 0
    %1406 = vmatprep.subr.bf16.mxu0 0
    %1407 = vmatpush2.bf16.msra.mxu0 0
    %1408 = vmatprep.subr.bf16.mxu0 0
    %1409 = vmatpush2.bf16.msra.mxu0 0
    %1410 = vmatprep.subr.bf16.mxu0 %v315
    %1411 = vmatpush2.bf16.msra.mxu0 %v314
    %1412 = vmatprep.subr.bf16.mxu0 %v312
    %1413 = vmatpush2.bf16.msra.mxu0 %v311
    %1414 = vmatprep.subr.bf16.mxu0 %v309
    %1415 = vmatpush2.bf16.msra.mxu0 %v308
    %1416 = vmatprep.subr.bf16.mxu0 %v306
    %1417 = vmatpush2.bf16.msra.mxu0 %v305
    %1418 = vmatprep.mubr.bf16.mxu0 %v1277
    %1419 = vmatmul.mubr.bf16.gmra.mxu0 %v1273
    %v1420 = vpop.f32.mrf.mxu0
    %v1421 = vadd.f32 0.0, %v1420
    %v1422 = vpop.f32.mrf.mxu0
    %v1423 = vadd.f32 0.0, %v1422
    %v1424 = vpop.f32.mrf.mxu0
    %v1425 = vpop.f32.mrf.mxu0
    %1426 = vdwg.mxu0
    %1427 = vmatprep.subr.bf16.mxu0 0
    %1428 = vmatpush1.bf16.msra.mxu0 %v304
    %1429 = vmatprep.subr.bf16.mxu0 0
    %1430 = vmatpush1.bf16.msra.mxu0 %v301
    %1431 = vmatprep.subr.bf16.mxu0 0
    %1432 = vmatpush1.bf16.msra.mxu0 %v298
    %1433 = vmatprep.subr.bf16.mxu0 0
    %1434 = vmatpush1.bf16.msra.mxu0 %v295
    %1435 = vmatprep.subr.bf16.mxu0 0
    %1436 = vmatpush1.bf16.msra.mxu0 %v292
    %1437 = vmatprep.subr.bf16.mxu0 0
    %1438 = vmatpush1.bf16.msra.mxu0 %v289
    %1439 = vmatprep.subr.bf16.mxu0 0
    %1440 = vmatpush1.bf16.msra.mxu0 %v286
    %1441 = vmatprep.subr.bf16.mxu0 0
    %1442 = vmatpush1.bf16.msra.mxu0 %v283
    %1443 = vmatprep.subr.bf16.mxu0 0
    %1444 = vmatpush2.bf16.msra.mxu0 0
    %1445 = vmatprep.subr.bf16.mxu0 0
    %1446 = vmatpush2.bf16.msra.mxu0 0
    %1447 = vmatprep.subr.bf16.mxu0 0
    %1448 = vmatpush2.bf16.msra.mxu0 0
    %1449 = vmatprep.subr.bf16.mxu0 0
    %1450 = vmatpush2.bf16.msra.mxu0 0
    %1451 = vmatprep.subr.bf16.mxu0 0
    %1452 = vmatpush2.bf16.msra.mxu0 %v316
    %1453 = vmatprep.subr.bf16.mxu0 0
    %1454 = vmatpush2.bf16.msra.mxu0 %v313
    %1455 = vmatprep.subr.bf16.mxu0 0
    %1456 = vmatpush2.bf16.msra.mxu0 %v310
    %1457 = vmatprep.subr.bf16.mxu0 0
    %1458 = vmatpush2.bf16.msra.mxu0 %v307
    %1459 = vmatprep.mubr.bf16.mxu0 %v1277
    %1460 = vmatmul.mubr.bf16.gmra.mxu0 %v1273
    %v1461 = vpop.f32.mrf.mxu0
    %v1462 = vadd.f32 0.0, %v1461
    %v1463 = vpop.f32.mrf.mxu0
    %v1464 = vpop.f32.mrf.mxu0
    %v1465 = vpop.f32.mrf.mxu0
    %1466 = vdwg.mxu0
    %1467 = vmatprep.subr.bf16.mxu0 %v587
    %1468 = vmatpush1.bf16.msra.mxu0 %v586
    %1469 = vmatprep.subr.bf16.mxu0 %v584
    %1470 = vmatpush1.bf16.msra.mxu0 %v583
    %1471 = vmatprep.subr.bf16.mxu0 %v581
    %1472 = vmatpush1.bf16.msra.mxu0 %v580
    %1473 = vmatprep.subr.bf16.mxu0 %v578
    %1474 = vmatpush1.bf16.msra.mxu0 %v577
    %1475 = vmatprep.subr.bf16.mxu0 %v575
    %1476 = vmatpush1.bf16.msra.mxu0 %v574
    %1477 = vmatprep.subr.bf16.mxu0 %v572
    %1478 = vmatpush1.bf16.msra.mxu0 %v571
    %1479 = vmatprep.subr.bf16.mxu0 %v569
    %1480 = vmatpush1.bf16.msra.mxu0 %v568
    %1481 = vmatprep.subr.bf16.mxu0 %v566
    %1482 = vmatpush1.bf16.msra.mxu0 %v565
    %1483 = vmatprep.subr.bf16.mxu0 0
    %1484 = vmatpush2.bf16.msra.mxu0 0
    %1485 = vmatprep.subr.bf16.mxu0 0
    %1486 = vmatpush2.bf16.msra.mxu0 0
    %1487 = vmatprep.subr.bf16.mxu0 0
    %1488 = vmatpush2.bf16.msra.mxu0 0
    %1489 = vmatprep.subr.bf16.mxu0 0
    %1490 = vmatpush2.bf16.msra.mxu0 0
    %1491 = vmatprep.subr.bf16.mxu0 %v599
    %1492 = vmatpush2.bf16.msra.mxu0 %v598
    %1493 = vmatprep.subr.bf16.mxu0 %v596
    %1494 = vmatpush2.bf16.msra.mxu0 %v595
    %1495 = vmatprep.subr.bf16.mxu0 %v593
    %1496 = vmatpush2.bf16.msra.mxu0 %v592
    %1497 = vmatprep.subr.bf16.mxu0 %v590
    %1498 = vmatpush2.bf16.msra.mxu0 %v589
    %1499 = vmatprep.mubr.bf16.mxu0 %v988
    %1500 = vmatmul.mubr.bf16.gmra.mxu0 %v792
    %v1501 = vpop.f32.mrf.mxu0
    %v1502 = vadd.f32 %v1421, %v1501
    %v1503 = vpop.f32.mrf.mxu0
    %v1504 = vadd.f32 %v1423, %v1503
    %v1505 = vpop.f32.mrf.mxu0
    %v1506 = vpop.f32.mrf.mxu0
    %1507 = vdwg.mxu0
    %1508 = vmatprep.subr.bf16.mxu0 0
    %1509 = vmatpush1.bf16.msra.mxu0 %v588
    %1510 = vmatprep.subr.bf16.mxu0 0
    %1511 = vmatpush1.bf16.msra.mxu0 %v585
    %1512 = vmatprep.subr.bf16.mxu0 0
    %1513 = vmatpush1.bf16.msra.mxu0 %v582
    %1514 = vmatprep.subr.bf16.mxu0 0
    %1515 = vmatpush1.bf16.msra.mxu0 %v579
    %1516 = vmatprep.subr.bf16.mxu0 0
    %1517 = vmatpush1.bf16.msra.mxu0 %v576
    %1518 = vmatprep.subr.bf16.mxu0 0
    %1519 = vmatpush1.bf16.msra.mxu0 %v573
    %1520 = vmatprep.subr.bf16.mxu0 0
    %1521 = vmatpush1.bf16.msra.mxu0 %v570
    %1522 = vmatprep.subr.bf16.mxu0 0
    %1523 = vmatpush1.bf16.msra.mxu0 %v567
    %1524 = vmatprep.subr.bf16.mxu0 0
    %1525 = vmatpush2.bf16.msra.mxu0 0
    %1526 = vmatprep.subr.bf16.mxu0 0
    %1527 = vmatpush2.bf16.msra.mxu0 0
    %1528 = vmatprep.subr.bf16.mxu0 0
    %1529 = vmatpush2.bf16.msra.mxu0 0
    %1530 = vmatprep.subr.bf16.mxu0 0
    %1531 = vmatpush2.bf16.msra.mxu0 0
    %1532 = vmatprep.subr.bf16.mxu0 0
    %1533 = vmatpush2.bf16.msra.mxu0 %v600
    %1534 = vmatprep.subr.bf16.mxu0 0
    %1535 = vmatpush2.bf16.msra.mxu0 %v597
    %1536 = vmatprep.subr.bf16.mxu0 0
    %1537 = vmatpush2.bf16.msra.mxu0 %v594
    %1538 = vmatprep.subr.bf16.mxu0 0
    %1539 = vmatpush2.bf16.msra.mxu0 %v591
    %1540 = vmatprep.mubr.bf16.mxu0 %v988
    %1541 = vmatmul.mubr.bf16.gmra.mxu0 %v792
    %v1542 = vpop.f32.mrf.mxu0
    %v1543 = vadd.f32 %v1462, %v1542
    %v1544 = vpop.f32.mrf.mxu0
    %v1545 = vpop.f32.mrf.mxu0
    %v1546 = vpop.f32.mrf.mxu0
    %1547 = vdwg.mxu0
    %v1548 = vld [vmem:[%s0] sm:$0x44]
    %v1549 = vld [vmem:[%s0 + $0x10] sm:$0x44]
    %v1552 = vunpack.c.l.b16 %v1548
    %v1553 = vunpack.c.h.b16 %v1548
    %v1554 = vunpack.c.l.b16 %v1549
    %v1555 = vunpack.c.h.b16 %v1549
    %v1556 = vpack.c.b16 %v1552, %v1552
    %v1557 = vpack.c.b16 %v1553, %v1553
    %v1558 = vpack.c.b16 %v1554, %v1554
    %v1559 = vpack.c.b16 %v1555, %v1555
    %v1560 = vunpack.c.l.b16 %v1556
    %v1561 = vunpack.c.l.b16 %v1557
    %v1562 = vunpack.c.l.b16 %v1558
    %v1563 = vunpack.c.l.b16 %v1559
    %v1564 = vrot.slane %v1560, 4
    %v1565 = vrot.slane %v1562, 3
    %v1566 = vsel %vm154, %v1565, %v1564
    %v1567 = vrot.slane %v1561, 4
    %v1568 = vrot.slane %v1563, 3
    %v1569 = vsel %vm154, %v1568, %v1567
    %v1570 = vpack.c.b16 %v1566, %v1566
    %v1571 = vpack.c.b16 %v1569, %v1569
    %v1574 = vsel %vm353, %v1571, 0
    %1576 = vmatprep.subr.bf16.mxu0 %v937
    %1577 = vmatpush1.bf16.msra.mxu0 %v936
    %1578 = vmatprep.subr.bf16.mxu0 %v934
    %1579 = vmatpush1.bf16.msra.mxu0 %v933
    %1580 = vmatprep.subr.bf16.mxu0 %v931
    %1581 = vmatpush1.bf16.msra.mxu0 %v930
    %1582 = vmatprep.subr.bf16.mxu0 %v928
    %1583 = vmatpush1.bf16.msra.mxu0 %v927
    %1584 = vmatprep.subr.bf16.mxu0 %v925
    %1585 = vmatpush1.bf16.msra.mxu0 %v924
    %1586 = vmatprep.subr.bf16.mxu0 %v922
    %1587 = vmatpush1.bf16.msra.mxu0 %v921
    %1588 = vmatprep.subr.bf16.mxu0 %v919
    %1589 = vmatpush1.bf16.msra.mxu0 %v918
    %1590 = vmatprep.subr.bf16.mxu0 %v916
    %1591 = vmatpush1.bf16.msra.mxu0 %v915
    %1592 = vmatprep.subr.bf16.mxu0 0
    %1593 = vmatpush2.bf16.msra.mxu0 0
    %1594 = vmatprep.subr.bf16.mxu0 0
    %1595 = vmatpush2.bf16.msra.mxu0 0
    %1596 = vmatprep.subr.bf16.mxu0 0
    %1597 = vmatpush2.bf16.msra.mxu0 0
    %1598 = vmatprep.subr.bf16.mxu0 0
    %1599 = vmatpush2.bf16.msra.mxu0 0
    %1600 = vmatprep.subr.bf16.mxu0 %v949
    %1601 = vmatpush2.bf16.msra.mxu0 %v948
    %1602 = vmatprep.subr.bf16.mxu0 %v946
    %1603 = vmatpush2.bf16.msra.mxu0 %v945
    %1604 = vmatprep.subr.bf16.mxu0 %v943
    %1605 = vmatpush2.bf16.msra.mxu0 %v942
    %1606 = vmatprep.subr.bf16.mxu0 %v940
    %1607 = vmatpush2.bf16.msra.mxu0 %v939
    %1608 = vmatprep.mubr.bf16.mxu0 %v1574
    %1609 = vmatmul.mubr.bf16.gmra.mxu0 %v1570
    %v1610 = vpop.f32.mrf.mxu0
    %v1611 = vadd.f32 0.0, %v1610
    %v1612 = vpop.f32.mrf.mxu0
    %v1613 = vadd.f32 0.0, %v1612
    %v1614 = vpop.f32.mrf.mxu0
    %v1615 = vpop.f32.mrf.mxu0
    %1616 = vdwg.mxu0
    %1617 = vmatprep.subr.bf16.mxu0 0
    %1618 = vmatpush1.bf16.msra.mxu0 %v938
    %1619 = vmatprep.subr.bf16.mxu0 0
    %1620 = vmatpush1.bf16.msra.mxu0 %v935
    %1621 = vmatprep.subr.bf16.mxu0 0
    %1622 = vmatpush1.bf16.msra.mxu0 %v932
    %1623 = vmatprep.subr.bf16.mxu0 0
    %1624 = vmatpush1.bf16.msra.mxu0 %v929
    %1625 = vmatprep.subr.bf16.mxu0 0
    %1626 = vmatpush1.bf16.msra.mxu0 %v926
    %1627 = vmatprep.subr.bf16.mxu0 0
    %1628 = vmatpush1.bf16.msra.mxu0 %v923
    %1629 = vmatprep.subr.bf16.mxu0 0
    %1630 = vmatpush1.bf16.msra.mxu0 %v920
    %1631 = vmatprep.subr.bf16.mxu0 0
    %1632 = vmatpush1.bf16.msra.mxu0 %v917
    %1633 = vmatprep.subr.bf16.mxu0 0
    %1634 = vmatpush2.bf16.msra.mxu0 0
    %1635 = vmatprep.subr.bf16.mxu0 0
    %1636 = vmatpush2.bf16.msra.mxu0 0
    %1637 = vmatprep.subr.bf16.mxu0 0
    %1638 = vmatpush2.bf16.msra.mxu0 0
    %1639 = vmatprep.subr.bf16.mxu0 0
    %1640 = vmatpush2.bf16.msra.mxu0 0
    %1641 = vmatprep.subr.bf16.mxu0 0
    %1642 = vmatpush2.bf16.msra.mxu0 %v950
    %1643 = vmatprep.subr.bf16.mxu0 0
    %1644 = vmatpush2.bf16.msra.mxu0 %v947
    %1645 = vmatprep.subr.bf16.mxu0 0
    %1646 = vmatpush2.bf16.msra.mxu0 %v944
    %1647 = vmatprep.subr.bf16.mxu0 0
    %1648 = vmatpush2.bf16.msra.mxu0 %v941
    %1649 = vmatprep.mubr.bf16.mxu0 %v1574
    %1650 = vmatmul.mubr.bf16.gmra.mxu0 %v1570
    %v1651 = vpop.f32.mrf.mxu0
    %v1652 = vadd.f32 0.0, %v1651
    %v1653 = vpop.f32.mrf.mxu0
    %v1654 = vpop.f32.mrf.mxu0
    %v1655 = vpop.f32.mrf.mxu0
    %1656 = vdwg.mxu0
    %v1657 = vadd.f32 %v1502, %v1611
    %v1658 = vadd.f32 %v1504, %v1613
    %v1659 = vadd.f32 %v1543, %v1652
    %1662 = vrot.lane.b32.xlu0 %v1657, 44
    %v1663 = vpop.permute.xlu0 %1662
    %1664 = vrot.lane.b32.xlu0 %v1658, 44
    %v1665 = vpop.permute.xlu0 %1664
    %v1666 = vsel %vm1080, %v1663, %v1665
    %v1668 = vmax.f32 %v1657, %v1666
    %1670 = vrot.lane.b32.xlu0 %v1659, 44
    %v1671 = vpop.permute.xlu0 %1670
    %v1672 = vsel %vm1080, %v1665, %v1671
    %v1674 = vmax.f32 %v1658, %v1672
    %1676 = vrot.lane.b32.xlu0 %v1674, 88
    %v1677 = vpop.permute.xlu0 %1676
    %v1679 = vmax.f32 %v1668, %v1677
    %v1680 = vadd.f32 %v1679, %v1100
    %v1681 = vmax.f32 %v1680, 0.0
    %v1682 = vpack.c.bf16 %v1681, %v1681
    %1683 = vmatprep.subr.bf16.mxu0 %v303
    %1684 = vmatpush1.bf16.msra.mxu0 %v302
    %1685 = vmatprep.subr.bf16.mxu0 %v300
    %1686 = vmatpush1.bf16.msra.mxu0 %v299
    %1687 = vmatprep.subr.bf16.mxu0 %v297
    %1688 = vmatpush1.bf16.msra.mxu0 %v296
    %1689 = vmatprep.subr.bf16.mxu0 %v294
    %1690 = vmatpush1.bf16.msra.mxu0 %v293
    %1691 = vmatprep.subr.bf16.mxu0 %v291
    %1692 = vmatpush1.bf16.msra.mxu0 %v290
    %1693 = vmatprep.subr.bf16.mxu0 %v288
    %1694 = vmatpush1.bf16.msra.mxu0 %v287
    %1695 = vmatprep.subr.bf16.mxu0 %v285
    %1696 = vmatpush1.bf16.msra.mxu0 %v284
    %1697 = vmatprep.subr.bf16.mxu0 %v282
    %1698 = vmatpush1.bf16.msra.mxu0 %v281
    %1699 = vmatprep.subr.bf16.mxu0 0
    %1700 = vmatpush2.bf16.msra.mxu0 0
    %1701 = vmatprep.subr.bf16.mxu0 0
    %1702 = vmatpush2.bf16.msra.mxu0 0
    %1703 = vmatprep.subr.bf16.mxu0 0
    %1704 = vmatpush2.bf16.msra.mxu0 0
    %1705 = vmatprep.subr.bf16.mxu0 0
    %1706 = vmatpush2.bf16.msra.mxu0 0
    %1707 = vmatprep.subr.bf16.mxu0 %v315
    %1708 = vmatpush2.bf16.msra.mxu0 %v314
    %1709 = vmatprep.subr.bf16.mxu0 %v312
    %1710 = vmatpush2.bf16.msra.mxu0 %v311
    %1711 = vmatprep.subr.bf16.mxu0 %v309
    %1712 = vmatpush2.bf16.msra.mxu0 %v308
    %1713 = vmatprep.subr.bf16.mxu0 %v306
    %1714 = vmatpush2.bf16.msra.mxu0 %v305
    %1715 = vmatprep.mubr.bf16.mxu0 %v1574
    %1716 = vmatmul.mubr.bf16.gmra.mxu0 %v1570
    %v1717 = vpop.f32.mrf.mxu0
    %v1718 = vadd.f32 0.0, %v1717
    %v1719 = vpop.f32.mrf.mxu0
    %v1720 = vadd.f32 0.0, %v1719
    %v1721 = vpop.f32.mrf.mxu0
    %v1722 = vpop.f32.mrf.mxu0
    %1723 = vdwg.mxu0
    %1724 = vmatprep.subr.bf16.mxu0 0
    %1725 = vmatpush1.bf16.msra.mxu0 %v304
    %1726 = vmatprep.subr.bf16.mxu0 0
    %1727 = vmatpush1.bf16.msra.mxu0 %v301
    %1728 = vmatprep.subr.bf16.mxu0 0
    %1729 = vmatpush1.bf16.msra.mxu0 %v298
    %1730 = vmatprep.subr.bf16.mxu0 0
    %1731 = vmatpush1.bf16.msra.mxu0 %v295
    %1732 = vmatprep.subr.bf16.mxu0 0
    %1733 = vmatpush1.bf16.msra.mxu0 %v292
    %1734 = vmatprep.subr.bf16.mxu0 0
    %1735 = vmatpush1.bf16.msra.mxu0 %v289
    %1736 = vmatprep.subr.bf16.mxu0 0
    %1737 = vmatpush1.bf16.msra.mxu0 %v286
    %1738 = vmatprep.subr.bf16.mxu0 0
    %1739 = vmatpush1.bf16.msra.mxu0 %v283
    %1740 = vmatprep.subr.bf16.mxu0 0
    %1741 = vmatpush2.bf16.msra.mxu0 0
    %1742 = vmatprep.subr.bf16.mxu0 0
    %1743 = vmatpush2.bf16.msra.mxu0 0
    %1744 = vmatprep.subr.bf16.mxu0 0
    %1745 = vmatpush2.bf16.msra.mxu0 0
    %1746 = vmatprep.subr.bf16.mxu0 0
    %1747 = vmatpush2.bf16.msra.mxu0 0
    %1748 = vmatprep.subr.bf16.mxu0 0
    %1749 = vmatpush2.bf16.msra.mxu0 %v316
    %1750 = vmatprep.subr.bf16.mxu0 0
    %1751 = vmatpush2.bf16.msra.mxu0 %v313
    %1752 = vmatprep.subr.bf16.mxu0 0
    %1753 = vmatpush2.bf16.msra.mxu0 %v310
    %1754 = vmatprep.subr.bf16.mxu0 0
    %1755 = vmatpush2.bf16.msra.mxu0 %v307
    %1756 = vmatprep.mubr.bf16.mxu0 %v1574
    %1757 = vmatmul.mubr.bf16.gmra.mxu0 %v1570
    %v1758 = vpop.f32.mrf.mxu0
    %v1759 = vadd.f32 0.0, %v1758
    %v1760 = vpop.f32.mrf.mxu0
    %v1761 = vpop.f32.mrf.mxu0
    %v1762 = vpop.f32.mrf.mxu0
    %1763 = vdwg.mxu0
    %1764 = vmatprep.subr.bf16.mxu0 %v587
    %1765 = vmatpush1.bf16.msra.mxu0 %v586
    %1766 = vmatprep.subr.bf16.mxu0 %v584
    %1767 = vmatpush1.bf16.msra.mxu0 %v583
    %1768 = vmatprep.subr.bf16.mxu0 %v581
    %1769 = vmatpush1.bf16.msra.mxu0 %v580
    %1770 = vmatprep.subr.bf16.mxu0 %v578
    %1771 = vmatpush1.bf16.msra.mxu0 %v577
    %1772 = vmatprep.subr.bf16.mxu0 %v575
    %1773 = vmatpush1.bf16.msra.mxu0 %v574
    %1774 = vmatprep.subr.bf16.mxu0 %v572
    %1775 = vmatpush1.bf16.msra.mxu0 %v571
    %1776 = vmatprep.subr.bf16.mxu0 %v569
    %1777 = vmatpush1.bf16.msra.mxu0 %v568
    %1778 = vmatprep.subr.bf16.mxu0 %v566
    %1779 = vmatpush1.bf16.msra.mxu0 %v565
    %1780 = vmatprep.subr.bf16.mxu0 0
    %1781 = vmatpush2.bf16.msra.mxu0 0
    %1782 = vmatprep.subr.bf16.mxu0 0
    %1783 = vmatpush2.bf16.msra.mxu0 0
    %1784 = vmatprep.subr.bf16.mxu0 0
    %1785 = vmatpush2.bf16.msra.mxu0 0
    %1786 = vmatprep.subr.bf16.mxu0 0
    %1787 = vmatpush2.bf16.msra.mxu0 0
    %1788 = vmatprep.subr.bf16.mxu0 %v599
    %1789 = vmatpush2.bf16.msra.mxu0 %v598
    %1790 = vmatprep.subr.bf16.mxu0 %v596
    %1791 = vmatpush2.bf16.msra.mxu0 %v595
    %1792 = vmatprep.subr.bf16.mxu0 %v593
    %1793 = vmatpush2.bf16.msra.mxu0 %v592
    %1794 = vmatprep.subr.bf16.mxu0 %v590
    %1795 = vmatpush2.bf16.msra.mxu0 %v589
    %1796 = vmatprep.mubr.bf16.mxu0 %v1277
    %1797 = vmatmul.mubr.bf16.gmra.mxu0 %v1273
    %v1798 = vpop.f32.mrf.mxu0
    %v1799 = vadd.f32 %v1718, %v1798
    %v1800 = vpop.f32.mrf.mxu0
    %v1801 = vadd.f32 %v1720, %v1800
    %v1802 = vpop.f32.mrf.mxu0
    %v1803 = vpop.f32.mrf.mxu0
    %1804 = vdwg.mxu0
    %1805 = vmatprep.subr.bf16.mxu0 0
    %1806 = vmatpush1.bf16.msra.mxu0 %v588
    %1807 = vmatprep.subr.bf16.mxu0 0
    %1808 = vmatpush1.bf16.msra.mxu0 %v585
    %1809 = vmatprep.subr.bf16.mxu0 0
    %1810 = vmatpush1.bf16.msra.mxu0 %v582
    %1811 = vmatprep.subr.bf16.mxu0 0
    %1812 = vmatpush1.bf16.msra.mxu0 %v579
    %1813 = vmatprep.subr.bf16.mxu0 0
    %1814 = vmatpush1.bf16.msra.mxu0 %v576
    %1815 = vmatprep.subr.bf16.mxu0 0
    %1816 = vmatpush1.bf16.msra.mxu0 %v573
    %1817 = vmatprep.subr.bf16.mxu0 0
    %1818 = vmatpush1.bf16.msra.mxu0 %v570
    %1819 = vmatprep.subr.bf16.mxu0 0
    %1820 = vmatpush1.bf16.msra.mxu0 %v567
    %1821 = vmatprep.subr.bf16.mxu0 0
    %1822 = vmatpush2.bf16.msra.mxu0 0
    %1823 = vmatprep.subr.bf16.mxu0 0
    %1824 = vmatpush2.bf16.msra.mxu0 0
    %1825 = vmatprep.subr.bf16.mxu0 0
    %1826 = vmatpush2.bf16.msra.mxu0 0
    %1827 = vmatprep.subr.bf16.mxu0 0
    %1828 = vmatpush2.bf16.msra.mxu0 0
    %1829 = vmatprep.subr.bf16.mxu0 0
    %1830 = vmatpush2.bf16.msra.mxu0 %v600
    %1831 = vmatprep.subr.bf16.mxu0 0
    %1832 = vmatpush2.bf16.msra.mxu0 %v597
    %1833 = vmatprep.subr.bf16.mxu0 0
    %1834 = vmatpush2.bf16.msra.mxu0 %v594
    %1835 = vmatprep.subr.bf16.mxu0 0
    %1836 = vmatpush2.bf16.msra.mxu0 %v591
    %1837 = vmatprep.mubr.bf16.mxu0 %v1277
    %1838 = vmatmul.mubr.bf16.gmra.mxu0 %v1273
    %v1839 = vpop.f32.mrf.mxu0
    %v1840 = vadd.f32 %v1759, %v1839
    %v1841 = vpop.f32.mrf.mxu0
    %v1842 = vpop.f32.mrf.mxu0
    %v1843 = vpop.f32.mrf.mxu0
    %1844 = vdwg.mxu0
    %v1845 = vrot.slane %v1560, 5
    %v1846 = vrot.slane %v1562, 4
    %v1847 = vsel %vm154, %v1846, %v1845
    %v1848 = vrot.slane %v1561, 5
    %v1849 = vrot.slane %v1563, 4
    %v1850 = vsel %vm154, %v1849, %v1848
    %v1851 = vpack.c.b16 %v1847, %v1847
    %v1852 = vpack.c.b16 %v1850, %v1850
    %v1855 = vsel %vm353, %v1852, 0
    %1857 = vmatprep.subr.bf16.mxu0 %v937
    %1858 = vmatpush1.bf16.msra.mxu0 %v936
    %1859 = vmatprep.subr.bf16.mxu0 %v934
    %1860 = vmatpush1.bf16.msra.mxu0 %v933
    %1861 = vmatprep.subr.bf16.mxu0 %v931
    %1862 = vmatpush1.bf16.msra.mxu0 %v930
    %1863 = vmatprep.subr.bf16.mxu0 %v928
    %1864 = vmatpush1.bf16.msra.mxu0 %v927
    %1865 = vmatprep.subr.bf16.mxu0 %v925
    %1866 = vmatpush1.bf16.msra.mxu0 %v924
    %1867 = vmatprep.subr.bf16.mxu0 %v922
    %1868 = vmatpush1.bf16.msra.mxu0 %v921
    %1869 = vmatprep.subr.bf16.mxu0 %v919
    %1870 = vmatpush1.bf16.msra.mxu0 %v918
    %1871 = vmatprep.subr.bf16.mxu0 %v916
    %1872 = vmatpush1.bf16.msra.mxu0 %v915
    %1873 = vmatprep.subr.bf16.mxu0 0
    %1874 = vmatpush2.bf16.msra.mxu0 0
    %1875 = vmatprep.subr.bf16.mxu0 0
    %1876 = vmatpush2.bf16.msra.mxu0 0
    %1877 = vmatprep.subr.bf16.mxu0 0
    %1878 = vmatpush2.bf16.msra.mxu0 0
    %1879 = vmatprep.subr.bf16.mxu0 0
    %1880 = vmatpush2.bf16.msra.mxu0 0
    %1881 = vmatprep.subr.bf16.mxu0 %v949
    %1882 = vmatpush2.bf16.msra.mxu0 %v948
    %1883 = vmatprep.subr.bf16.mxu0 %v946
    %1884 = vmatpush2.bf16.msra.mxu0 %v945
    %1885 = vmatprep.subr.bf16.mxu0 %v943
    %1886 = vmatpush2.bf16.msra.mxu0 %v942
    %1887 = vmatprep.subr.bf16.mxu0 %v940
    %1888 = vmatpush2.bf16.msra.mxu0 %v939
    %1889 = vmatprep.mubr.bf16.mxu0 %v1855
    %1890 = vmatmul.mubr.bf16.gmra.mxu0 %v1851
    %v1891 = vpop.f32.mrf.mxu0
    %v1892 = vadd.f32 0.0, %v1891
    %v1893 = vpop.f32.mrf.mxu0
    %v1894 = vadd.f32 0.0, %v1893
    %v1895 = vpop.f32.mrf.mxu0
    %v1896 = vpop.f32.mrf.mxu0
    %1897 = vdwg.mxu0
    %1898 = vmatprep.subr.bf16.mxu0 0
    %1899 = vmatpush1.bf16.msra.mxu0 %v938
    %1900 = vmatprep.subr.bf16.mxu0 0
    %1901 = vmatpush1.bf16.msra.mxu0 %v935
    %1902 = vmatprep.subr.bf16.mxu0 0
    %1903 = vmatpush1.bf16.msra.mxu0 %v932
    %1904 = vmatprep.subr.bf16.mxu0 0
    %1905 = vmatpush1.bf16.msra.mxu0 %v929
    %1906 = vmatprep.subr.bf16.mxu0 0
    %1907 = vmatpush1.bf16.msra.mxu0 %v926
    %1908 = vmatprep.subr.bf16.mxu0 0
    %1909 = vmatpush1.bf16.msra.mxu0 %v923
    %1910 = vmatprep.subr.bf16.mxu0 0
    %1911 = vmatpush1.bf16.msra.mxu0 %v920
    %1912 = vmatprep.subr.bf16.mxu0 0
    %1913 = vmatpush1.bf16.msra.mxu0 %v917
    %1914 = vmatprep.subr.bf16.mxu0 0
    %1915 = vmatpush2.bf16.msra.mxu0 0
    %1916 = vmatprep.subr.bf16.mxu0 0
    %1917 = vmatpush2.bf16.msra.mxu0 0
    %1918 = vmatprep.subr.bf16.mxu0 0
    %1919 = vmatpush2.bf16.msra.mxu0 0
    %1920 = vmatprep.subr.bf16.mxu0 0
    %1921 = vmatpush2.bf16.msra.mxu0 0
    %1922 = vmatprep.subr.bf16.mxu0 0
    %1923 = vmatpush2.bf16.msra.mxu0 %v950
    %1924 = vmatprep.subr.bf16.mxu0 0
    %1925 = vmatpush2.bf16.msra.mxu0 %v947
    %1926 = vmatprep.subr.bf16.mxu0 0
    %1927 = vmatpush2.bf16.msra.mxu0 %v944
    %1928 = vmatprep.subr.bf16.mxu0 0
    %1929 = vmatpush2.bf16.msra.mxu0 %v941
    %1930 = vmatprep.mubr.bf16.mxu0 %v1855
    %1931 = vmatmul.mubr.bf16.gmra.mxu0 %v1851
    %v1932 = vpop.f32.mrf.mxu0
    %v1933 = vadd.f32 0.0, %v1932
    %v1934 = vpop.f32.mrf.mxu0
    %v1935 = vpop.f32.mrf.mxu0
    %v1936 = vpop.f32.mrf.mxu0
    %1937 = vdwg.mxu0
    %v1938 = vadd.f32 %v1799, %v1892
    %v1939 = vadd.f32 %v1801, %v1894
    %v1940 = vadd.f32 %v1840, %v1933
    %1943 = vrot.lane.b32.xlu0 %v1938, 44
    %v1944 = vpop.permute.xlu0 %1943
    %1945 = vrot.lane.b32.xlu0 %v1939, 44
    %v1946 = vpop.permute.xlu0 %1945
    %v1947 = vsel %vm1080, %v1944, %v1946
    %v1949 = vmax.f32 %v1938, %v1947
    %1951 = vrot.lane.b32.xlu0 %v1940, 44
    %v1952 = vpop.permute.xlu0 %1951
    %v1953 = vsel %vm1080, %v1946, %v1952
    %v1955 = vmax.f32 %v1939, %v1953
    %1957 = vrot.lane.b32.xlu0 %v1955, 88
    %v1958 = vpop.permute.xlu0 %1957
    %v1960 = vmax.f32 %v1949, %v1958
    %v1961 = vadd.f32 %v1960, %v1100
    %v1962 = vmax.f32 %v1961, 0.0
    %v1963 = vpack.c.bf16 %v1962, %v1962
    %1964 = vmatprep.subr.bf16.mxu0 %v303
    %1965 = vmatpush1.bf16.msra.mxu0 %v302
    %1966 = vmatprep.subr.bf16.mxu0 %v300
    %1967 = vmatpush1.bf16.msra.mxu0 %v299
    %1968 = vmatprep.subr.bf16.mxu0 %v297
    %1969 = vmatpush1.bf16.msra.mxu0 %v296
    %1970 = vmatprep.subr.bf16.mxu0 %v294
    %1971 = vmatpush1.bf16.msra.mxu0 %v293
    %1972 = vmatprep.subr.bf16.mxu0 %v291
    %1973 = vmatpush1.bf16.msra.mxu0 %v290
    %1974 = vmatprep.subr.bf16.mxu0 %v288
    %1975 = vmatpush1.bf16.msra.mxu0 %v287
    %1976 = vmatprep.subr.bf16.mxu0 %v285
    %1977 = vmatpush1.bf16.msra.mxu0 %v284
    %1978 = vmatprep.subr.bf16.mxu0 %v282
    %1979 = vmatpush1.bf16.msra.mxu0 %v281
    %1980 = vmatprep.subr.bf16.mxu0 0
    %1981 = vmatpush2.bf16.msra.mxu0 0
    %1982 = vmatprep.subr.bf16.mxu0 0
    %1983 = vmatpush2.bf16.msra.mxu0 0
    %1984 = vmatprep.subr.bf16.mxu0 0
    %1985 = vmatpush2.bf16.msra.mxu0 0
    %1986 = vmatprep.subr.bf16.mxu0 0
    %1987 = vmatpush2.bf16.msra.mxu0 0
    %1988 = vmatprep.subr.bf16.mxu0 %v315
    %1989 = vmatpush2.bf16.msra.mxu0 %v314
    %1990 = vmatprep.subr.bf16.mxu0 %v312
    %1991 = vmatpush2.bf16.msra.mxu0 %v311
    %1992 = vmatprep.subr.bf16.mxu0 %v309
    %1993 = vmatpush2.bf16.msra.mxu0 %v308
    %1994 = vmatprep.subr.bf16.mxu0 %v306
    %1995 = vmatpush2.bf16.msra.mxu0 %v305
    %1996 = vmatprep.mubr.bf16.mxu0 %v1855
    %1997 = vmatmul.mubr.bf16.gmra.mxu0 %v1851
    %v1998 = vpop.f32.mrf.mxu0
    %v1999 = vadd.f32 0.0, %v1998
    %v2000 = vpop.f32.mrf.mxu0
    %v2001 = vadd.f32 0.0, %v2000
    %v2002 = vpop.f32.mrf.mxu0
    %v2003 = vpop.f32.mrf.mxu0
    %2004 = vdwg.mxu0
    %2005 = vmatprep.subr.bf16.mxu0 0
    %2006 = vmatpush1.bf16.msra.mxu0 %v304
    %2007 = vmatprep.subr.bf16.mxu0 0
    %2008 = vmatpush1.bf16.msra.mxu0 %v301
    %2009 = vmatprep.subr.bf16.mxu0 0
    %2010 = vmatpush1.bf16.msra.mxu0 %v298
    %2011 = vmatprep.subr.bf16.mxu0 0
    %2012 = vmatpush1.bf16.msra.mxu0 %v295
    %2013 = vmatprep.subr.bf16.mxu0 0
    %2014 = vmatpush1.bf16.msra.mxu0 %v292
    %2015 = vmatprep.subr.bf16.mxu0 0
    %2016 = vmatpush1.bf16.msra.mxu0 %v289
    %2017 = vmatprep.subr.bf16.mxu0 0
    %2018 = vmatpush1.bf16.msra.mxu0 %v286
    %2019 = vmatprep.subr.bf16.mxu0 0
    %2020 = vmatpush1.bf16.msra.mxu0 %v283
    %2021 = vmatprep.subr.bf16.mxu0 0
    %2022 = vmatpush2.bf16.msra.mxu0 0
    %2023 = vmatprep.subr.bf16.mxu0 0
    %2024 = vmatpush2.bf16.msra.mxu0 0
    %2025 = vmatprep.subr.bf16.mxu0 0
    %2026 = vmatpush2.bf16.msra.mxu0 0
    %2027 = vmatprep.subr.bf16.mxu0 0
    %2028 = vmatpush2.bf16.msra.mxu0 0
    %2029 = vmatprep.subr.bf16.mxu0 0
    %2030 = vmatpush2.bf16.msra.mxu0 %v316
    %2031 = vmatprep.subr.bf16.mxu0 0
    %2032 = vmatpush2.bf16.msra.mxu0 %v313
    %2033 = vmatprep.subr.bf16.mxu0 0
    %2034 = vmatpush2.bf16.msra.mxu0 %v310
    %2035 = vmatprep.subr.bf16.mxu0 0
    %2036 = vmatpush2.bf16.msra.mxu0 %v307
    %2037 = vmatprep.mubr.bf16.mxu0 %v1855
    %2038 = vmatmul.mubr.bf16.gmra.mxu0 %v1851
    %v2039 = vpop.f32.mrf.mxu0
    %v2040 = vadd.f32 0.0, %v2039
    %v2041 = vpop.f32.mrf.mxu0
    %v2042 = vpop.f32.mrf.mxu0
    %v2043 = vpop.f32.mrf.mxu0
    %2044 = vdwg.mxu0
    %2045 = vmatprep.subr.bf16.mxu0 %v587
    %2046 = vmatpush1.bf16.msra.mxu0 %v586
    %2047 = vmatprep.subr.bf16.mxu0 %v584
    %2048 = vmatpush1.bf16.msra.mxu0 %v583
    %2049 = vmatprep.subr.bf16.mxu0 %v581
    %2050 = vmatpush1.bf16.msra.mxu0 %v580
    %2051 = vmatprep.subr.bf16.mxu0 %v578
    %2052 = vmatpush1.bf16.msra.mxu0 %v577
    %2053 = vmatprep.subr.bf16.mxu0 %v575
    %2054 = vmatpush1.bf16.msra.mxu0 %v574
    %2055 = vmatprep.subr.bf16.mxu0 %v572
    %2056 = vmatpush1.bf16.msra.mxu0 %v571
    %2057 = vmatprep.subr.bf16.mxu0 %v569
    %2058 = vmatpush1.bf16.msra.mxu0 %v568
    %2059 = vmatprep.subr.bf16.mxu0 %v566
    %2060 = vmatpush1.bf16.msra.mxu0 %v565
    %2061 = vmatprep.subr.bf16.mxu0 0
    %2062 = vmatpush2.bf16.msra.mxu0 0
    %2063 = vmatprep.subr.bf16.mxu0 0
    %2064 = vmatpush2.bf16.msra.mxu0 0
    %2065 = vmatprep.subr.bf16.mxu0 0
    %2066 = vmatpush2.bf16.msra.mxu0 0
    %2067 = vmatprep.subr.bf16.mxu0 0
    %2068 = vmatpush2.bf16.msra.mxu0 0
    %2069 = vmatprep.subr.bf16.mxu0 %v599
    %2070 = vmatpush2.bf16.msra.mxu0 %v598
    %2071 = vmatprep.subr.bf16.mxu0 %v596
    %2072 = vmatpush2.bf16.msra.mxu0 %v595
    %2073 = vmatprep.subr.bf16.mxu0 %v593
    %2074 = vmatpush2.bf16.msra.mxu0 %v592
    %2075 = vmatprep.subr.bf16.mxu0 %v590
    %2076 = vmatpush2.bf16.msra.mxu0 %v589
    %2077 = vmatprep.mubr.bf16.mxu0 %v1574
    %2078 = vmatmul.mubr.bf16.gmra.mxu0 %v1570
    %v2079 = vpop.f32.mrf.mxu0
    %v2080 = vadd.f32 %v1999, %v2079
    %v2081 = vpop.f32.mrf.mxu0
    %v2082 = vadd.f32 %v2001, %v2081
    %v2083 = vpop.f32.mrf.mxu0
    %v2084 = vpop.f32.mrf.mxu0
    %2085 = vdwg.mxu0
    %2086 = vmatprep.subr.bf16.mxu0 0
    %2087 = vmatpush1.bf16.msra.mxu0 %v588
    %2088 = vmatprep.subr.bf16.mxu0 0
    %2089 = vmatpush1.bf16.msra.mxu0 %v585
    %2090 = vmatprep.subr.bf16.mxu0 0
    %2091 = vmatpush1.bf16.msra.mxu0 %v582
    %2092 = vmatprep.subr.bf16.mxu0 0
    %2093 = vmatpush1.bf16.msra.mxu0 %v579
    %2094 = vmatprep.subr.bf16.mxu0 0
    %2095 = vmatpush1.bf16.msra.mxu0 %v576
    %2096 = vmatprep.subr.bf16.mxu0 0
    %2097 = vmatpush1.bf16.msra.mxu0 %v573
    %2098 = vmatprep.subr.bf16.mxu0 0
    %2099 = vmatpush1.bf16.msra.mxu0 %v570
    %2100 = vmatprep.subr.bf16.mxu0 0
    %2101 = vmatpush1.bf16.msra.mxu0 %v567
    %2102 = vmatprep.subr.bf16.mxu0 0
    %2103 = vmatpush2.bf16.msra.mxu0 0
    %2104 = vmatprep.subr.bf16.mxu0 0
    %2105 = vmatpush2.bf16.msra.mxu0 0
    %2106 = vmatprep.subr.bf16.mxu0 0
    %2107 = vmatpush2.bf16.msra.mxu0 0
    %2108 = vmatprep.subr.bf16.mxu0 0
    %2109 = vmatpush2.bf16.msra.mxu0 0
    %2110 = vmatprep.subr.bf16.mxu0 0
    %2111 = vmatpush2.bf16.msra.mxu0 %v600
    %2112 = vmatprep.subr.bf16.mxu0 0
    %2113 = vmatpush2.bf16.msra.mxu0 %v597
    %2114 = vmatprep.subr.bf16.mxu0 0
    %2115 = vmatpush2.bf16.msra.mxu0 %v594
    %2116 = vmatprep.subr.bf16.mxu0 0
    %2117 = vmatpush2.bf16.msra.mxu0 %v591
    %2118 = vmatprep.mubr.bf16.mxu0 %v1574
    %2119 = vmatmul.mubr.bf16.gmra.mxu0 %v1570
    %v2120 = vpop.f32.mrf.mxu0
    %v2121 = vadd.f32 %v2040, %v2120
    %v2122 = vpop.f32.mrf.mxu0
    %v2123 = vpop.f32.mrf.mxu0
    %v2124 = vpop.f32.mrf.mxu0
    %2125 = vdwg.mxu0
    %v2126 = vld [vmem:[%s0] sm:$0x88]
    %v2127 = vld [vmem:[%s0 + $0x10] sm:$0x88]
    %v2130 = vunpack.c.l.b16 %v2126
    %v2131 = vunpack.c.h.b16 %v2126
    %v2132 = vunpack.c.l.b16 %v2127
    %v2133 = vunpack.c.h.b16 %v2127
    %v2134 = vpack.c.b16 %v2130, %v2130
    %v2135 = vpack.c.b16 %v2131, %v2131
    %v2136 = vpack.c.b16 %v2132, %v2132
    %v2137 = vpack.c.b16 %v2133, %v2133
    %v2138 = vunpack.c.l.b16 %v2134
    %v2139 = vunpack.c.l.b16 %v2135
    %v2140 = vunpack.c.l.b16 %v2136
    %v2141 = vunpack.c.l.b16 %v2137
    %v2142 = vrot.slane %v2138, 6
    %v2143 = vrot.slane %v2140, 5
    %v2144 = vsel %vm154, %v2143, %v2142
    %v2145 = vrot.slane %v2139, 6
    %v2146 = vrot.slane %v2141, 5
    %v2147 = vsel %vm154, %v2146, %v2145
    %v2148 = vpack.c.b16 %v2144, %v2144
    %v2149 = vpack.c.b16 %v2147, %v2147
    %v2152 = vsel %vm353, %v2149, 0
    %2154 = vmatprep.subr.bf16.mxu0 %v937
    %2155 = vmatpush1.bf16.msra.mxu0 %v936
    %2156 = vmatprep.subr.bf16.mxu0 %v934
    %2157 = vmatpush1.bf16.msra.mxu0 %v933
    %2158 = vmatprep.subr.bf16.mxu0 %v931
    %2159 = vmatpush1.bf16.msra.mxu0 %v930
    %2160 = vmatprep.subr.bf16.mxu0 %v928
    %2161 = vmatpush1.bf16.msra.mxu0 %v927
    %2162 = vmatprep.subr.bf16.mxu0 %v925
    %2163 = vmatpush1.bf16.msra.mxu0 %v924
    %2164 = vmatprep.subr.bf16.mxu0 %v922
    %2165 = vmatpush1.bf16.msra.mxu0 %v921
    %2166 = vmatprep.subr.bf16.mxu0 %v919
    %2167 = vmatpush1.bf16.msra.mxu0 %v918
    %2168 = vmatprep.subr.bf16.mxu0 %v916
    %2169 = vmatpush1.bf16.msra.mxu0 %v915
    %2170 = vmatprep.subr.bf16.mxu0 0
    %2171 = vmatpush2.bf16.msra.mxu0 0
    %2172 = vmatprep.subr.bf16.mxu0 0
    %2173 = vmatpush2.bf16.msra.mxu0 0
    %2174 = vmatprep.subr.bf16.mxu0 0
    %2175 = vmatpush2.bf16.msra.mxu0 0
    %2176 = vmatprep.subr.bf16.mxu0 0
    %2177 = vmatpush2.bf16.msra.mxu0 0
    %2178 = vmatprep.subr.bf16.mxu0 %v949
    %2179 = vmatpush2.bf16.msra.mxu0 %v948
    %2180 = vmatprep.subr.bf16.mxu0 %v946
    %2181 = vmatpush2.bf16.msra.mxu0 %v945
    %2182 = vmatprep.subr.bf16.mxu0 %v943
    %2183 = vmatpush2.bf16.msra.mxu0 %v942
    %2184 = vmatprep.subr.bf16.mxu0 %v940
    %2185 = vmatpush2.bf16.msra.mxu0 %v939
    %2186 = vmatprep.mubr.bf16.mxu0 %v2152
    %2187 = vmatmul.mubr.bf16.gmra.mxu0 %v2148
    %v2188 = vpop.f32.mrf.mxu0
    %v2189 = vadd.f32 0.0, %v2188
    %v2190 = vpop.f32.mrf.mxu0
    %v2191 = vadd.f32 0.0, %v2190
    %v2192 = vpop.f32.mrf.mxu0
    %v2193 = vpop.f32.mrf.mxu0
    %2194 = vdwg.mxu0
    %2195 = vmatprep.subr.bf16.mxu0 0
    %2196 = vmatpush1.bf16.msra.mxu0 %v938
    %2197 = vmatprep.subr.bf16.mxu0 0
    %2198 = vmatpush1.bf16.msra.mxu0 %v935
    %2199 = vmatprep.subr.bf16.mxu0 0
    %2200 = vmatpush1.bf16.msra.mxu0 %v932
    %2201 = vmatprep.subr.bf16.mxu0 0
    %2202 = vmatpush1.bf16.msra.mxu0 %v929
    %2203 = vmatprep.subr.bf16.mxu0 0
    %2204 = vmatpush1.bf16.msra.mxu0 %v926
    %2205 = vmatprep.subr.bf16.mxu0 0
    %2206 = vmatpush1.bf16.msra.mxu0 %v923
    %2207 = vmatprep.subr.bf16.mxu0 0
    %2208 = vmatpush1.bf16.msra.mxu0 %v920
    %2209 = vmatprep.subr.bf16.mxu0 0
    %2210 = vmatpush1.bf16.msra.mxu0 %v917
    %2211 = vmatprep.subr.bf16.mxu0 0
    %2212 = vmatpush2.bf16.msra.mxu0 0
    %2213 = vmatprep.subr.bf16.mxu0 0
    %2214 = vmatpush2.bf16.msra.mxu0 0
    %2215 = vmatprep.subr.bf16.mxu0 0
    %2216 = vmatpush2.bf16.msra.mxu0 0
    %2217 = vmatprep.subr.bf16.mxu0 0
    %2218 = vmatpush2.bf16.msra.mxu0 0
    %2219 = vmatprep.subr.bf16.mxu0 0
    %2220 = vmatpush2.bf16.msra.mxu0 %v950
    %2221 = vmatprep.subr.bf16.mxu0 0
    %2222 = vmatpush2.bf16.msra.mxu0 %v947
    %2223 = vmatprep.subr.bf16.mxu0 0
    %2224 = vmatpush2.bf16.msra.mxu0 %v944
    %2225 = vmatprep.subr.bf16.mxu0 0
    %2226 = vmatpush2.bf16.msra.mxu0 %v941
    %2227 = vmatprep.mubr.bf16.mxu0 %v2152
    %2228 = vmatmul.mubr.bf16.gmra.mxu0 %v2148
    %v2229 = vpop.f32.mrf.mxu0
    %v2230 = vadd.f32 0.0, %v2229
    %v2231 = vpop.f32.mrf.mxu0
    %v2232 = vpop.f32.mrf.mxu0
    %v2233 = vpop.f32.mrf.mxu0
    %2234 = vdwg.mxu0
    %v2235 = vadd.f32 %v2080, %v2189
    %v2236 = vadd.f32 %v2082, %v2191
    %v2237 = vadd.f32 %v2121, %v2230
    %2240 = vrot.lane.b32.xlu0 %v2235, 44
    %v2241 = vpop.permute.xlu0 %2240
    %2242 = vrot.lane.b32.xlu0 %v2236, 44
    %v2243 = vpop.permute.xlu0 %2242
    %v2244 = vsel %vm1080, %v2241, %v2243
    %v2246 = vmax.f32 %v2235, %v2244
    %2248 = vrot.lane.b32.xlu0 %v2237, 44
    %v2249 = vpop.permute.xlu0 %2248
    %v2250 = vsel %vm1080, %v2243, %v2249
    %v2252 = vmax.f32 %v2236, %v2250
    %2254 = vrot.lane.b32.xlu0 %v2252, 88
    %v2255 = vpop.permute.xlu0 %2254
    %v2257 = vmax.f32 %v2246, %v2255
    %v2258 = vadd.f32 %v2257, %v1100
    %v2259 = vmax.f32 %v2258, 0.0
    %v2260 = vpack.c.bf16 %v2259, %v2259
    %2261 = vmatprep.subr.bf16.mxu0 %v303
    %2262 = vmatpush1.bf16.msra.mxu0 %v302
    %2263 = vmatprep.subr.bf16.mxu0 %v300
    %2264 = vmatpush1.bf16.msra.mxu0 %v299
    %2265 = vmatprep.subr.bf16.mxu0 %v297
    %2266 = vmatpush1.bf16.msra.mxu0 %v296
    %2267 = vmatprep.subr.bf16.mxu0 %v294
    %2268 = vmatpush1.bf16.msra.mxu0 %v293
    %2269 = vmatprep.subr.bf16.mxu0 %v291
    %2270 = vmatpush1.bf16.msra.mxu0 %v290
    %2271 = vmatprep.subr.bf16.mxu0 %v288
    %2272 = vmatpush1.bf16.msra.mxu0 %v287
    %2273 = vmatprep.subr.bf16.mxu0 %v285
    %2274 = vmatpush1.bf16.msra.mxu0 %v284
    %2275 = vmatprep.subr.bf16.mxu0 %v282
    %2276 = vmatpush1.bf16.msra.mxu0 %v281
    %2277 = vmatprep.subr.bf16.mxu0 0
    %2278 = vmatpush2.bf16.msra.mxu0 0
    %2279 = vmatprep.subr.bf16.mxu0 0
    %2280 = vmatpush2.bf16.msra.mxu0 0
    %2281 = vmatprep.subr.bf16.mxu0 0
    %2282 = vmatpush2.bf16.msra.mxu0 0
    %2283 = vmatprep.subr.bf16.mxu0 0
    %2284 = vmatpush2.bf16.msra.mxu0 0
    %2285 = vmatprep.subr.bf16.mxu0 %v315
    %2286 = vmatpush2.bf16.msra.mxu0 %v314
    %2287 = vmatprep.subr.bf16.mxu0 %v312
    %2288 = vmatpush2.bf16.msra.mxu0 %v311
    %2289 = vmatprep.subr.bf16.mxu0 %v309
    %2290 = vmatpush2.bf16.msra.mxu0 %v308
    %2291 = vmatprep.subr.bf16.mxu0 %v306
    %2292 = vmatpush2.bf16.msra.mxu0 %v305
    %2293 = vmatprep.mubr.bf16.mxu0 %v2152
    %2294 = vmatmul.mubr.bf16.gmra.mxu0 %v2148
    %v2295 = vpop.f32.mrf.mxu0
    %v2296 = vadd.f32 0.0, %v2295
    %v2297 = vpop.f32.mrf.mxu0
    %v2298 = vadd.f32 0.0, %v2297
    %v2299 = vpop.f32.mrf.mxu0
    %v2300 = vpop.f32.mrf.mxu0
    %2301 = vdwg.mxu0
    %2302 = vmatprep.subr.bf16.mxu0 0
    %2303 = vmatpush1.bf16.msra.mxu0 %v304
    %2304 = vmatprep.subr.bf16.mxu0 0
    %2305 = vmatpush1.bf16.msra.mxu0 %v301
    %2306 = vmatprep.subr.bf16.mxu0 0
    %2307 = vmatpush1.bf16.msra.mxu0 %v298
    %2308 = vmatprep.subr.bf16.mxu0 0
    %2309 = vmatpush1.bf16.msra.mxu0 %v295
    %2310 = vmatprep.subr.bf16.mxu0 0
    %2311 = vmatpush1.bf16.msra.mxu0 %v292
    %2312 = vmatprep.subr.bf16.mxu0 0
    %2313 = vmatpush1.bf16.msra.mxu0 %v289
    %2314 = vmatprep.subr.bf16.mxu0 0
    %2315 = vmatpush1.bf16.msra.mxu0 %v286
    %2316 = vmatprep.subr.bf16.mxu0 0
    %2317 = vmatpush1.bf16.msra.mxu0 %v283
    %2318 = vmatprep.subr.bf16.mxu0 0
    %2319 = vmatpush2.bf16.msra.mxu0 0
    %2320 = vmatprep.subr.bf16.mxu0 0
    %2321 = vmatpush2.bf16.msra.mxu0 0
    %2322 = vmatprep.subr.bf16.mxu0 0
    %2323 = vmatpush2.bf16.msra.mxu0 0
    %2324 = vmatprep.subr.bf16.mxu0 0
    %2325 = vmatpush2.bf16.msra.mxu0 0
    %2326 = vmatprep.subr.bf16.mxu0 0
    %2327 = vmatpush2.bf16.msra.mxu0 %v316
    %2328 = vmatprep.subr.bf16.mxu0 0
    %2329 = vmatpush2.bf16.msra.mxu0 %v313
    %2330 = vmatprep.subr.bf16.mxu0 0
    %2331 = vmatpush2.bf16.msra.mxu0 %v310
    %2332 = vmatprep.subr.bf16.mxu0 0
    %2333 = vmatpush2.bf16.msra.mxu0 %v307
    %2334 = vmatprep.mubr.bf16.mxu0 %v2152
    %2335 = vmatmul.mubr.bf16.gmra.mxu0 %v2148
    %v2336 = vpop.f32.mrf.mxu0
    %v2337 = vadd.f32 0.0, %v2336
    %v2338 = vpop.f32.mrf.mxu0
    %v2339 = vpop.f32.mrf.mxu0
    %v2340 = vpop.f32.mrf.mxu0
    %2341 = vdwg.mxu0
    %2342 = vmatprep.subr.bf16.mxu0 %v587
    %2343 = vmatpush1.bf16.msra.mxu0 %v586
    %2344 = vmatprep.subr.bf16.mxu0 %v584
    %2345 = vmatpush1.bf16.msra.mxu0 %v583
    %2346 = vmatprep.subr.bf16.mxu0 %v581
    %2347 = vmatpush1.bf16.msra.mxu0 %v580
    %2348 = vmatprep.subr.bf16.mxu0 %v578
    %2349 = vmatpush1.bf16.msra.mxu0 %v577
    %2350 = vmatprep.subr.bf16.mxu0 %v575
    %2351 = vmatpush1.bf16.msra.mxu0 %v574
    %2352 = vmatprep.subr.bf16.mxu0 %v572
    %2353 = vmatpush1.bf16.msra.mxu0 %v571
    %2354 = vmatprep.subr.bf16.mxu0 %v569
    %2355 = vmatpush1.bf16.msra.mxu0 %v568
    %2356 = vmatprep.subr.bf16.mxu0 %v566
    %2357 = vmatpush1.bf16.msra.mxu0 %v565
    %2358 = vmatprep.subr.bf16.mxu0 0
    %2359 = vmatpush2.bf16.msra.mxu0 0
    %2360 = vmatprep.subr.bf16.mxu0 0
    %2361 = vmatpush2.bf16.msra.mxu0 0
    %2362 = vmatprep.subr.bf16.mxu0 0
    %2363 = vmatpush2.bf16.msra.mxu0 0
    %2364 = vmatprep.subr.bf16.mxu0 0
    %2365 = vmatpush2.bf16.msra.mxu0 0
    %2366 = vmatprep.subr.bf16.mxu0 %v599
    %2367 = vmatpush2.bf16.msra.mxu0 %v598
    %2368 = vmatprep.subr.bf16.mxu0 %v596
    %2369 = vmatpush2.bf16.msra.mxu0 %v595
    %2370 = vmatprep.subr.bf16.mxu0 %v593
    %2371 = vmatpush2.bf16.msra.mxu0 %v592
    %2372 = vmatprep.subr.bf16.mxu0 %v590
    %2373 = vmatpush2.bf16.msra.mxu0 %v589
    %2374 = vmatprep.mubr.bf16.mxu0 %v1855
    %2375 = vmatmul.mubr.bf16.gmra.mxu0 %v1851
    %v2376 = vpop.f32.mrf.mxu0
    %v2377 = vadd.f32 %v2296, %v2376
    %v2378 = vpop.f32.mrf.mxu0
    %v2379 = vadd.f32 %v2298, %v2378
    %v2380 = vpop.f32.mrf.mxu0
    %v2381 = vpop.f32.mrf.mxu0
    %2382 = vdwg.mxu0
    %2383 = vmatprep.subr.bf16.mxu0 0
    %2384 = vmatpush1.bf16.msra.mxu0 %v588
    %2385 = vmatprep.subr.bf16.mxu0 0
    %2386 = vmatpush1.bf16.msra.mxu0 %v585
    %2387 = vmatprep.subr.bf16.mxu0 0
    %2388 = vmatpush1.bf16.msra.mxu0 %v582
    %2389 = vmatprep.subr.bf16.mxu0 0
    %2390 = vmatpush1.bf16.msra.mxu0 %v579
    %2391 = vmatprep.subr.bf16.mxu0 0
    %2392 = vmatpush1.bf16.msra.mxu0 %v576
    %2393 = vmatprep.subr.bf16.mxu0 0
    %2394 = vmatpush1.bf16.msra.mxu0 %v573
    %2395 = vmatprep.subr.bf16.mxu0 0
    %2396 = vmatpush1.bf16.msra.mxu0 %v570
    %2397 = vmatprep.subr.bf16.mxu0 0
    %2398 = vmatpush1.bf16.msra.mxu0 %v567
    %2399 = vmatprep.subr.bf16.mxu0 0
    %2400 = vmatpush2.bf16.msra.mxu0 0
    %2401 = vmatprep.subr.bf16.mxu0 0
    %2402 = vmatpush2.bf16.msra.mxu0 0
    %2403 = vmatprep.subr.bf16.mxu0 0
    %2404 = vmatpush2.bf16.msra.mxu0 0
    %2405 = vmatprep.subr.bf16.mxu0 0
    %2406 = vmatpush2.bf16.msra.mxu0 0
    %2407 = vmatprep.subr.bf16.mxu0 0
    %2408 = vmatpush2.bf16.msra.mxu0 %v600
    %2409 = vmatprep.subr.bf16.mxu0 0
    %2410 = vmatpush2.bf16.msra.mxu0 %v597
    %2411 = vmatprep.subr.bf16.mxu0 0
    %2412 = vmatpush2.bf16.msra.mxu0 %v594
    %2413 = vmatprep.subr.bf16.mxu0 0
    %2414 = vmatpush2.bf16.msra.mxu0 %v591
    %2415 = vmatprep.mubr.bf16.mxu0 %v1855
    %2416 = vmatmul.mubr.bf16.gmra.mxu0 %v1851
    %v2417 = vpop.f32.mrf.mxu0
    %v2418 = vadd.f32 %v2337, %v2417
    %v2419 = vpop.f32.mrf.mxu0
    %v2420 = vpop.f32.mrf.mxu0
    %v2421 = vpop.f32.mrf.mxu0
    %2422 = vdwg.mxu0
    %v2423 = vrot.slane %v2138, 7
    %v2424 = vrot.slane %v2140, 6
    %v2425 = vsel %vm154, %v2424, %v2423
    %v2426 = vrot.slane %v2139, 7
    %v2427 = vrot.slane %v2141, 6
    %v2428 = vsel %vm154, %v2427, %v2426
    %v2429 = vpack.c.b16 %v2425, %v2425
    %v2430 = vpack.c.b16 %v2428, %v2428
    %v2433 = vsel %vm353, %v2430, 0
    %2435 = vmatprep.subr.bf16.mxu0 %v937
    %2436 = vmatpush1.bf16.msra.mxu0 %v936
    %2437 = vmatprep.subr.bf16.mxu0 %v934
    %2438 = vmatpush1.bf16.msra.mxu0 %v933
    %2439 = vmatprep.subr.bf16.mxu0 %v931
    %2440 = vmatpush1.bf16.msra.mxu0 %v930
    %2441 = vmatprep.subr.bf16.mxu0 %v928
    %2442 = vmatpush1.bf16.msra.mxu0 %v927
    %2443 = vmatprep.subr.bf16.mxu0 %v925
    %2444 = vmatpush1.bf16.msra.mxu0 %v924
    %2445 = vmatprep.subr.bf16.mxu0 %v922
    %2446 = vmatpush1.bf16.msra.mxu0 %v921
    %2447 = vmatprep.subr.bf16.mxu0 %v919
    %2448 = vmatpush1.bf16.msra.mxu0 %v918
    %2449 = vmatprep.subr.bf16.mxu0 %v916
    %2450 = vmatpush1.bf16.msra.mxu0 %v915
    %2451 = vmatprep.subr.bf16.mxu0 0
    %2452 = vmatpush2.bf16.msra.mxu0 0
    %2453 = vmatprep.subr.bf16.mxu0 0
    %2454 = vmatpush2.bf16.msra.mxu0 0
    %2455 = vmatprep.subr.bf16.mxu0 0
    %2456 = vmatpush2.bf16.msra.mxu0 0
    %2457 = vmatprep.subr.bf16.mxu0 0
    %2458 = vmatpush2.bf16.msra.mxu0 0
    %2459 = vmatprep.subr.bf16.mxu0 %v949
    %2460 = vmatpush2.bf16.msra.mxu0 %v948
    %2461 = vmatprep.subr.bf16.mxu0 %v946
    %2462 = vmatpush2.bf16.msra.mxu0 %v945
    %2463 = vmatprep.subr.bf16.mxu0 %v943
    %2464 = vmatpush2.bf16.msra.mxu0 %v942
    %2465 = vmatprep.subr.bf16.mxu0 %v940
    %2466 = vmatpush2.bf16.msra.mxu0 %v939
    %2467 = vmatprep.mubr.bf16.mxu0 %v2433
    %2468 = vmatmul.mubr.bf16.gmra.mxu0 %v2429
    %v2469 = vpop.f32.mrf.mxu0
    %v2470 = vadd.f32 0.0, %v2469
    %v2471 = vpop.f32.mrf.mxu0
    %v2472 = vadd.f32 0.0, %v2471
    %v2473 = vpop.f32.mrf.mxu0
    %v2474 = vpop.f32.mrf.mxu0
    %2475 = vdwg.mxu0
    %2476 = vmatprep.subr.bf16.mxu0 0
    %2477 = vmatpush1.bf16.msra.mxu0 %v938
    %2478 = vmatprep.subr.bf16.mxu0 0
    %2479 = vmatpush1.bf16.msra.mxu0 %v935
    %2480 = vmatprep.subr.bf16.mxu0 0
    %2481 = vmatpush1.bf16.msra.mxu0 %v932
    %2482 = vmatprep.subr.bf16.mxu0 0
    %2483 = vmatpush1.bf16.msra.mxu0 %v929
    %2484 = vmatprep.subr.bf16.mxu0 0
    %2485 = vmatpush1.bf16.msra.mxu0 %v926
    %2486 = vmatprep.subr.bf16.mxu0 0
    %2487 = vmatpush1.bf16.msra.mxu0 %v923
    %2488 = vmatprep.subr.bf16.mxu0 0
    %2489 = vmatpush1.bf16.msra.mxu0 %v920
    %2490 = vmatprep.subr.bf16.mxu0 0
    %2491 = vmatpush1.bf16.msra.mxu0 %v917
    %2492 = vmatprep.subr.bf16.mxu0 0
    %2493 = vmatpush2.bf16.msra.mxu0 0
    %2494 = vmatprep.subr.bf16.mxu0 0
    %2495 = vmatpush2.bf16.msra.mxu0 0
    %2496 = vmatprep.subr.bf16.mxu0 0
    %2497 = vmatpush2.bf16.msra.mxu0 0
    %2498 = vmatprep.subr.bf16.mxu0 0
    %2499 = vmatpush2.bf16.msra.mxu0 0
    %2500 = vmatprep.subr.bf16.mxu0 0
    %2501 = vmatpush2.bf16.msra.mxu0 %v950
    %2502 = vmatprep.subr.bf16.mxu0 0
    %2503 = vmatpush2.bf16.msra.mxu0 %v947
    %2504 = vmatprep.subr.bf16.mxu0 0
    %2505 = vmatpush2.bf16.msra.mxu0 %v944
    %2506 = vmatprep.subr.bf16.mxu0 0
    %2507 = vmatpush2.bf16.msra.mxu0 %v941
    %2508 = vmatprep.mubr.bf16.mxu0 %v2433
    %2509 = vmatmul.mubr.bf16.gmra.mxu0 %v2429
    %v2510 = vpop.f32.mrf.mxu0
    %v2511 = vadd.f32 0.0, %v2510
    %v2512 = vpop.f32.mrf.mxu0
    %v2513 = vpop.f32.mrf.mxu0
    %v2514 = vpop.f32.mrf.mxu0
    %2515 = vdwg.mxu0
    %v2516 = vadd.f32 %v2377, %v2470
    %v2517 = vadd.f32 %v2379, %v2472
    %v2518 = vadd.f32 %v2418, %v2511
    %2521 = vrot.lane.b32.xlu0 %v2516, 44
    %v2522 = vpop.permute.xlu0 %2521
    %2523 = vrot.lane.b32.xlu0 %v2517, 44
    %v2524 = vpop.permute.xlu0 %2523
    %v2525 = vsel %vm1080, %v2522, %v2524
    %v2527 = vmax.f32 %v2516, %v2525
    %2529 = vrot.lane.b32.xlu0 %v2518, 44
    %v2530 = vpop.permute.xlu0 %2529
    %v2531 = vsel %vm1080, %v2524, %v2530
    %v2533 = vmax.f32 %v2517, %v2531
    %2535 = vrot.lane.b32.xlu0 %v2533, 88
    %v2536 = vpop.permute.xlu0 %2535
    %v2538 = vmax.f32 %v2527, %v2536
    %v2539 = vadd.f32 %v2538, %v1100
    %v2540 = vmax.f32 %v2539, 0.0
    %v2541 = vpack.c.bf16 %v2540, %v2540
    %2542 = vmatprep.subr.bf16.mxu0 %v303
    %2543 = vmatpush1.bf16.msra.mxu0 %v302
    %2544 = vmatprep.subr.bf16.mxu0 %v300
    %2545 = vmatpush1.bf16.msra.mxu0 %v299
    %2546 = vmatprep.subr.bf16.mxu0 %v297
    %2547 = vmatpush1.bf16.msra.mxu0 %v296
    %2548 = vmatprep.subr.bf16.mxu0 %v294
    %2549 = vmatpush1.bf16.msra.mxu0 %v293
    %2550 = vmatprep.subr.bf16.mxu0 %v291
    %2551 = vmatpush1.bf16.msra.mxu0 %v290
    %2552 = vmatprep.subr.bf16.mxu0 %v288
    %2553 = vmatpush1.bf16.msra.mxu0 %v287
    %2554 = vmatprep.subr.bf16.mxu0 %v285
    %2555 = vmatpush1.bf16.msra.mxu0 %v284
    %2556 = vmatprep.subr.bf16.mxu0 %v282
    %2557 = vmatpush1.bf16.msra.mxu0 %v281
    %2558 = vmatprep.subr.bf16.mxu0 0
    %2559 = vmatpush2.bf16.msra.mxu0 0
    %2560 = vmatprep.subr.bf16.mxu0 0
    %2561 = vmatpush2.bf16.msra.mxu0 0
    %2562 = vmatprep.subr.bf16.mxu0 0
    %2563 = vmatpush2.bf16.msra.mxu0 0
    %2564 = vmatprep.subr.bf16.mxu0 0
    %2565 = vmatpush2.bf16.msra.mxu0 0
    %2566 = vmatprep.subr.bf16.mxu0 %v315
    %2567 = vmatpush2.bf16.msra.mxu0 %v314
    %2568 = vmatprep.subr.bf16.mxu0 %v312
    %2569 = vmatpush2.bf16.msra.mxu0 %v311
    %2570 = vmatprep.subr.bf16.mxu0 %v309
    %2571 = vmatpush2.bf16.msra.mxu0 %v308
    %2572 = vmatprep.subr.bf16.mxu0 %v306
    %2573 = vmatpush2.bf16.msra.mxu0 %v305
    %2574 = vmatprep.mubr.bf16.mxu0 %v2433
    %2575 = vmatmul.mubr.bf16.gmra.mxu0 %v2429
    %v2576 = vpop.f32.mrf.mxu0
    %v2577 = vadd.f32 0.0, %v2576
    %v2578 = vpop.f32.mrf.mxu0
    %v2579 = vadd.f32 0.0, %v2578
    %v2580 = vpop.f32.mrf.mxu0
    %v2581 = vpop.f32.mrf.mxu0
    %2582 = vdwg.mxu0
    %2583 = vmatprep.subr.bf16.mxu0 0
    %2584 = vmatpush1.bf16.msra.mxu0 %v304
    %2585 = vmatprep.subr.bf16.mxu0 0
    %2586 = vmatpush1.bf16.msra.mxu0 %v301
    %2587 = vmatprep.subr.bf16.mxu0 0
    %2588 = vmatpush1.bf16.msra.mxu0 %v298
    %2589 = vmatprep.subr.bf16.mxu0 0
    %2590 = vmatpush1.bf16.msra.mxu0 %v295
    %2591 = vmatprep.subr.bf16.mxu0 0
    %2592 = vmatpush1.bf16.msra.mxu0 %v292
    %2593 = vmatprep.subr.bf16.mxu0 0
    %2594 = vmatpush1.bf16.msra.mxu0 %v289
    %2595 = vmatprep.subr.bf16.mxu0 0
    %2596 = vmatpush1.bf16.msra.mxu0 %v286
    %2597 = vmatprep.subr.bf16.mxu0 0
    %2598 = vmatpush1.bf16.msra.mxu0 %v283
    %2599 = vmatprep.subr.bf16.mxu0 0
    %2600 = vmatpush2.bf16.msra.mxu0 0
    %2601 = vmatprep.subr.bf16.mxu0 0
    %2602 = vmatpush2.bf16.msra.mxu0 0
    %2603 = vmatprep.subr.bf16.mxu0 0
    %2604 = vmatpush2.bf16.msra.mxu0 0
    %2605 = vmatprep.subr.bf16.mxu0 0
    %2606 = vmatpush2.bf16.msra.mxu0 0
    %2607 = vmatprep.subr.bf16.mxu0 0
    %2608 = vmatpush2.bf16.msra.mxu0 %v316
    %2609 = vmatprep.subr.bf16.mxu0 0
    %2610 = vmatpush2.bf16.msra.mxu0 %v313
    %2611 = vmatprep.subr.bf16.mxu0 0
    %2612 = vmatpush2.bf16.msra.mxu0 %v310
    %2613 = vmatprep.subr.bf16.mxu0 0
    %2614 = vmatpush2.bf16.msra.mxu0 %v307
    %2615 = vmatprep.mubr.bf16.mxu0 %v2433
    %2616 = vmatmul.mubr.bf16.gmra.mxu0 %v2429
    %v2617 = vpop.f32.mrf.mxu0
    %v2618 = vadd.f32 0.0, %v2617
    %v2619 = vpop.f32.mrf.mxu0
    %v2620 = vpop.f32.mrf.mxu0
    %v2621 = vpop.f32.mrf.mxu0
    %2622 = vdwg.mxu0
    %2623 = vmatprep.subr.bf16.mxu0 %v587
    %2624 = vmatpush1.bf16.msra.mxu0 %v586
    %2625 = vmatprep.subr.bf16.mxu0 %v584
    %2626 = vmatpush1.bf16.msra.mxu0 %v583
    %2627 = vmatprep.subr.bf16.mxu0 %v581
    %2628 = vmatpush1.bf16.msra.mxu0 %v580
    %2629 = vmatprep.subr.bf16.mxu0 %v578
    %2630 = vmatpush1.bf16.msra.mxu0 %v577
    %2631 = vmatprep.subr.bf16.mxu0 %v575
    %2632 = vmatpush1.bf16.msra.mxu0 %v574
    %2633 = vmatprep.subr.bf16.mxu0 %v572
    %2634 = vmatpush1.bf16.msra.mxu0 %v571
    %2635 = vmatprep.subr.bf16.mxu0 %v569
    %2636 = vmatpush1.bf16.msra.mxu0 %v568
    %2637 = vmatprep.subr.bf16.mxu0 %v566
    %2638 = vmatpush1.bf16.msra.mxu0 %v565
    %2639 = vmatprep.subr.bf16.mxu0 0
    %2640 = vmatpush2.bf16.msra.mxu0 0
    %2641 = vmatprep.subr.bf16.mxu0 0
    %2642 = vmatpush2.bf16.msra.mxu0 0
    %2643 = vmatprep.subr.bf16.mxu0 0
    %2644 = vmatpush2.bf16.msra.mxu0 0
    %2645 = vmatprep.subr.bf16.mxu0 0
    %2646 = vmatpush2.bf16.msra.mxu0 0
    %2647 = vmatprep.subr.bf16.mxu0 %v599
    %2648 = vmatpush2.bf16.msra.mxu0 %v598
    %2649 = vmatprep.subr.bf16.mxu0 %v596
    %2650 = vmatpush2.bf16.msra.mxu0 %v595
    %2651 = vmatprep.subr.bf16.mxu0 %v593
    %2652 = vmatpush2.bf16.msra.mxu0 %v592
    %2653 = vmatprep.subr.bf16.mxu0 %v590
    %2654 = vmatpush2.bf16.msra.mxu0 %v589
    %2655 = vmatprep.mubr.bf16.mxu0 %v2152
    %2656 = vmatmul.mubr.bf16.gmra.mxu0 %v2148
    %v2657 = vpop.f32.mrf.mxu0
    %v2658 = vadd.f32 %v2577, %v2657
    %v2659 = vpop.f32.mrf.mxu0
    %v2660 = vadd.f32 %v2579, %v2659
    %v2661 = vpop.f32.mrf.mxu0
    %v2662 = vpop.f32.mrf.mxu0
    %2663 = vdwg.mxu0
    %2664 = vmatprep.subr.bf16.mxu0 0
    %2665 = vmatpush1.bf16.msra.mxu0 %v588
    %2666 = vmatprep.subr.bf16.mxu0 0
    %2667 = vmatpush1.bf16.msra.mxu0 %v585
    %2668 = vmatprep.subr.bf16.mxu0 0
    %2669 = vmatpush1.bf16.msra.mxu0 %v582
    %2670 = vmatprep.subr.bf16.mxu0 0
    %2671 = vmatpush1.bf16.msra.mxu0 %v579
    %2672 = vmatprep.subr.bf16.mxu0 0
    %2673 = vmatpush1.bf16.msra.mxu0 %v576
    %2674 = vmatprep.subr.bf16.mxu0 0
    %2675 = vmatpush1.bf16.msra.mxu0 %v573
    %2676 = vmatprep.subr.bf16.mxu0 0
    %2677 = vmatpush1.bf16.msra.mxu0 %v570
    %2678 = vmatprep.subr.bf16.mxu0 0
    %2679 = vmatpush1.bf16.msra.mxu0 %v567
    %2680 = vmatprep.subr.bf16.mxu0 0
    %2681 = vmatpush2.bf16.msra.mxu0 0
    %2682 = vmatprep.subr.bf16.mxu0 0
    %2683 = vmatpush2.bf16.msra.mxu0 0
    %2684 = vmatprep.subr.bf16.mxu0 0
    %2685 = vmatpush2.bf16.msra.mxu0 0
    %2686 = vmatprep.subr.bf16.mxu0 0
    %2687 = vmatpush2.bf16.msra.mxu0 0
    %2688 = vmatprep.subr.bf16.mxu0 0
    %2689 = vmatpush2.bf16.msra.mxu0 %v600
    %2690 = vmatprep.subr.bf16.mxu0 0
    %2691 = vmatpush2.bf16.msra.mxu0 %v597
    %2692 = vmatprep.subr.bf16.mxu0 0
    %2693 = vmatpush2.bf16.msra.mxu0 %v594
    %2694 = vmatprep.subr.bf16.mxu0 0
    %2695 = vmatpush2.bf16.msra.mxu0 %v591
    %2696 = vmatprep.mubr.bf16.mxu0 %v2152
    %2697 = vmatmul.mubr.bf16.gmra.mxu0 %v2148
    %v2698 = vpop.f32.mrf.mxu0
    %v2699 = vadd.f32 %v2618, %v2698
    %v2700 = vpop.f32.mrf.mxu0
    %v2701 = vpop.f32.mrf.mxu0
    %v2702 = vpop.f32.mrf.mxu0
    %2703 = vdwg.mxu0
    %v2704 = vld [vmem:[%s0 + $0x8] sm:$0x11]
    %v2705 = vld [vmem:[%s0 + $0x18] sm:$0x11]
    %v2708 = vunpack.c.l.b16 %v2704
    %v2709 = vunpack.c.h.b16 %v2704
    %v2710 = vunpack.c.l.b16 %v2705
    %v2711 = vunpack.c.h.b16 %v2705
    %v2712 = vpack.c.b16 %v2708, %v2708
    %v2713 = vpack.c.b16 %v2709, %v2709
    %v2714 = vpack.c.b16 %v2710, %v2710
    %v2715 = vpack.c.b16 %v2711, %v2711
    %v2716 = vunpack.c.l.b16 %v2712
    %v2717 = vunpack.c.l.b16 %v2713
    %v2718 = vunpack.c.l.b16 %v2714
    %v2719 = vunpack.c.l.b16 %v2715
    %v2720 = vrot.slane %v2718, 7
    %v2721 = vsel %vm154, %v2720, %v2716
    %v2722 = vrot.slane %v2719, 7
    %v2723 = vsel %vm154, %v2722, %v2717
    %v2724 = vpack.c.b16 %v2721, %v2721
    %v2725 = vpack.c.b16 %v2723, %v2723
    %v2728 = vsel %vm353, %v2725, 0
    %2730 = vmatprep.subr.bf16.mxu0 %v937
    %2731 = vmatpush1.bf16.msra.mxu0 %v936
    %2732 = vmatprep.subr.bf16.mxu0 %v934
    %2733 = vmatpush1.bf16.msra.mxu0 %v933
    %2734 = vmatprep.subr.bf16.mxu0 %v931
    %2735 = vmatpush1.bf16.msra.mxu0 %v930
    %2736 = vmatprep.subr.bf16.mxu0 %v928
    %2737 = vmatpush1.bf16.msra.mxu0 %v927
    %2738 = vmatprep.subr.bf16.mxu0 %v925
    %2739 = vmatpush1.bf16.msra.mxu0 %v924
    %2740 = vmatprep.subr.bf16.mxu0 %v922
    %2741 = vmatpush1.bf16.msra.mxu0 %v921
    %2742 = vmatprep.subr.bf16.mxu0 %v919
    %2743 = vmatpush1.bf16.msra.mxu0 %v918
    %2744 = vmatprep.subr.bf16.mxu0 %v916
    %2745 = vmatpush1.bf16.msra.mxu0 %v915
    %2746 = vmatprep.subr.bf16.mxu0 0
    %2747 = vmatpush2.bf16.msra.mxu0 0
    %2748 = vmatprep.subr.bf16.mxu0 0
    %2749 = vmatpush2.bf16.msra.mxu0 0
    %2750 = vmatprep.subr.bf16.mxu0 0
    %2751 = vmatpush2.bf16.msra.mxu0 0
    %2752 = vmatprep.subr.bf16.mxu0 0
    %2753 = vmatpush2.bf16.msra.mxu0 0
    %2754 = vmatprep.subr.bf16.mxu0 %v949
    %2755 = vmatpush2.bf16.msra.mxu0 %v948
    %2756 = vmatprep.subr.bf16.mxu0 %v946
    %2757 = vmatpush2.bf16.msra.mxu0 %v945
    %2758 = vmatprep.subr.bf16.mxu0 %v943
    %2759 = vmatpush2.bf16.msra.mxu0 %v942
    %2760 = vmatprep.subr.bf16.mxu0 %v940
    %2761 = vmatpush2.bf16.msra.mxu0 %v939
    %2762 = vmatprep.mubr.bf16.mxu0 %v2728
    %2763 = vmatmul.mubr.bf16.gmra.mxu0 %v2724
    %v2764 = vpop.f32.mrf.mxu0
    %v2765 = vadd.f32 0.0, %v2764
    %v2766 = vpop.f32.mrf.mxu0
    %v2767 = vadd.f32 0.0, %v2766
    %v2768 = vpop.f32.mrf.mxu0
    %v2769 = vpop.f32.mrf.mxu0
    %2770 = vdwg.mxu0
    %2771 = vmatprep.subr.bf16.mxu0 0
    %2772 = vmatpush1.bf16.msra.mxu0 %v938
    %2773 = vmatprep.subr.bf16.mxu0 0
    %2774 = vmatpush1.bf16.msra.mxu0 %v935
    %2775 = vmatprep.subr.bf16.mxu0 0
    %2776 = vmatpush1.bf16.msra.mxu0 %v932
    %2777 = vmatprep.subr.bf16.mxu0 0
    %2778 = vmatpush1.bf16.msra.mxu0 %v929
    %2779 = vmatprep.subr.bf16.mxu0 0
    %2780 = vmatpush1.bf16.msra.mxu0 %v926
    %2781 = vmatprep.subr.bf16.mxu0 0
    %2782 = vmatpush1.bf16.msra.mxu0 %v923
    %2783 = vmatprep.subr.bf16.mxu0 0
    %2784 = vmatpush1.bf16.msra.mxu0 %v920
    %2785 = vmatprep.subr.bf16.mxu0 0
    %2786 = vmatpush1.bf16.msra.mxu0 %v917
    %2787 = vmatprep.subr.bf16.mxu0 0
    %2788 = vmatpush2.bf16.msra.mxu0 0
    %2789 = vmatprep.subr.bf16.mxu0 0
    %2790 = vmatpush2.bf16.msra.mxu0 0
    %2791 = vmatprep.subr.bf16.mxu0 0
    %2792 = vmatpush2.bf16.msra.mxu0 0
    %2793 = vmatprep.subr.bf16.mxu0 0
    %2794 = vmatpush2.bf16.msra.mxu0 0
    %2795 = vmatprep.subr.bf16.mxu0 0
    %2796 = vmatpush2.bf16.msra.mxu0 %v950
    %2797 = vmatprep.subr.bf16.mxu0 0
    %2798 = vmatpush2.bf16.msra.mxu0 %v947
    %2799 = vmatprep.subr.bf16.mxu0 0
    %2800 = vmatpush2.bf16.msra.mxu0 %v944
    %2801 = vmatprep.subr.bf16.mxu0 0
    %2802 = vmatpush2.bf16.msra.mxu0 %v941
    %2803 = vmatprep.mubr.bf16.mxu0 %v2728
    %2804 = vmatmul.mubr.bf16.gmra.mxu0 %v2724
    %v2805 = vpop.f32.mrf.mxu0
    %v2806 = vadd.f32 0.0, %v2805
    %v2807 = vpop.f32.mrf.mxu0
    %v2808 = vpop.f32.mrf.mxu0
    %v2809 = vpop.f32.mrf.mxu0
    %2810 = vdwg.mxu0
    %v2811 = vadd.f32 %v2658, %v2765
    %v2812 = vadd.f32 %v2660, %v2767
    %v2813 = vadd.f32 %v2699, %v2806
    %2816 = vrot.lane.b32.xlu0 %v2811, 44
    %v2817 = vpop.permute.xlu0 %2816
    %2818 = vrot.lane.b32.xlu0 %v2812, 44
    %v2819 = vpop.permute.xlu0 %2818
    %v2820 = vsel %vm1080, %v2817, %v2819
    %v2822 = vmax.f32 %v2811, %v2820
    %2824 = vrot.lane.b32.xlu0 %v2813, 44
    %v2825 = vpop.permute.xlu0 %2824
    %v2826 = vsel %vm1080, %v2819, %v2825
    %v2828 = vmax.f32 %v2812, %v2826
    %2830 = vrot.lane.b32.xlu0 %v2828, 88
    %v2831 = vpop.permute.xlu0 %2830
    %v2833 = vmax.f32 %v2822, %v2831
    %v2834 = vadd.f32 %v2833, %v1100
    %v2835 = vmax.f32 %v2834, 0.0
    %v2836 = vpack.c.bf16 %v2835, %v2835
    %2837 = vmatprep.subr.bf16.mxu0 %v303
    %2838 = vmatpush1.bf16.msra.mxu0 %v302
    %2839 = vmatprep.subr.bf16.mxu0 %v300
    %2840 = vmatpush1.bf16.msra.mxu0 %v299
    %2841 = vmatprep.subr.bf16.mxu0 %v297
    %2842 = vmatpush1.bf16.msra.mxu0 %v296
    %2843 = vmatprep.subr.bf16.mxu0 %v294
    %2844 = vmatpush1.bf16.msra.mxu0 %v293
    %2845 = vmatprep.subr.bf16.mxu0 %v291
    %2846 = vmatpush1.bf16.msra.mxu0 %v290
    %2847 = vmatprep.subr.bf16.mxu0 %v288
    %2848 = vmatpush1.bf16.msra.mxu0 %v287
    %2849 = vmatprep.subr.bf16.mxu0 %v285
    %2850 = vmatpush1.bf16.msra.mxu0 %v284
    %2851 = vmatprep.subr.bf16.mxu0 %v282
    %2852 = vmatpush1.bf16.msra.mxu0 %v281
    %2853 = vmatprep.subr.bf16.mxu0 0
    %2854 = vmatpush2.bf16.msra.mxu0 0
    %2855 = vmatprep.subr.bf16.mxu0 0
    %2856 = vmatpush2.bf16.msra.mxu0 0
    %2857 = vmatprep.subr.bf16.mxu0 0
    %2858 = vmatpush2.bf16.msra.mxu0 0
    %2859 = vmatprep.subr.bf16.mxu0 0
    %2860 = vmatpush2.bf16.msra.mxu0 0
    %2861 = vmatprep.subr.bf16.mxu0 %v315
    %2862 = vmatpush2.bf16.msra.mxu0 %v314
    %2863 = vmatprep.subr.bf16.mxu0 %v312
    %2864 = vmatpush2.bf16.msra.mxu0 %v311
    %2865 = vmatprep.subr.bf16.mxu0 %v309
    %2866 = vmatpush2.bf16.msra.mxu0 %v308
    %2867 = vmatprep.subr.bf16.mxu0 %v306
    %2868 = vmatpush2.bf16.msra.mxu0 %v305
    %2869 = vmatprep.mubr.bf16.mxu0 %v2728
    %2870 = vmatmul.mubr.bf16.gmra.mxu0 %v2724
    %v2871 = vpop.f32.mrf.mxu0
    %v2872 = vadd.f32 0.0, %v2871
    %v2873 = vpop.f32.mrf.mxu0
    %v2874 = vadd.f32 0.0, %v2873
    %v2875 = vpop.f32.mrf.mxu0
    %v2876 = vpop.f32.mrf.mxu0
    %2877 = vdwg.mxu0
    %2878 = vmatprep.subr.bf16.mxu0 0
    %2879 = vmatpush1.bf16.msra.mxu0 %v304
    %2880 = vmatprep.subr.bf16.mxu0 0
    %2881 = vmatpush1.bf16.msra.mxu0 %v301
    %2882 = vmatprep.subr.bf16.mxu0 0
    %2883 = vmatpush1.bf16.msra.mxu0 %v298
    %2884 = vmatprep.subr.bf16.mxu0 0
    %2885 = vmatpush1.bf16.msra.mxu0 %v295
    %2886 = vmatprep.subr.bf16.mxu0 0
    %2887 = vmatpush1.bf16.msra.mxu0 %v292
    %2888 = vmatprep.subr.bf16.mxu0 0
    %2889 = vmatpush1.bf16.msra.mxu0 %v289
    %2890 = vmatprep.subr.bf16.mxu0 0
    %2891 = vmatpush1.bf16.msra.mxu0 %v286
    %2892 = vmatprep.subr.bf16.mxu0 0
    %2893 = vmatpush1.bf16.msra.mxu0 %v283
    %2894 = vmatprep.subr.bf16.mxu0 0
    %2895 = vmatpush2.bf16.msra.mxu0 0
    %2896 = vmatprep.subr.bf16.mxu0 0
    %2897 = vmatpush2.bf16.msra.mxu0 0
    %2898 = vmatprep.subr.bf16.mxu0 0
    %2899 = vmatpush2.bf16.msra.mxu0 0
    %2900 = vmatprep.subr.bf16.mxu0 0
    %2901 = vmatpush2.bf16.msra.mxu0 0
    %2902 = vmatprep.subr.bf16.mxu0 0
    %2903 = vmatpush2.bf16.msra.mxu0 %v316
    %2904 = vmatprep.subr.bf16.mxu0 0
    %2905 = vmatpush2.bf16.msra.mxu0 %v313
    %2906 = vmatprep.subr.bf16.mxu0 0
    %2907 = vmatpush2.bf16.msra.mxu0 %v310
    %2908 = vmatprep.subr.bf16.mxu0 0
    %2909 = vmatpush2.bf16.msra.mxu0 %v307
    %2910 = vmatprep.mubr.bf16.mxu0 %v2728
    %2911 = vmatmul.mubr.bf16.gmra.mxu0 %v2724
    %v2912 = vpop.f32.mrf.mxu0
    %v2913 = vadd.f32 0.0, %v2912
    %v2914 = vpop.f32.mrf.mxu0
    %v2915 = vpop.f32.mrf.mxu0
    %v2916 = vpop.f32.mrf.mxu0
    %2917 = vdwg.mxu0
    %2918 = vmatprep.subr.bf16.mxu0 %v587
    %2919 = vmatpush1.bf16.msra.mxu0 %v586
    %2920 = vmatprep.subr.bf16.mxu0 %v584
    %2921 = vmatpush1.bf16.msra.mxu0 %v583
    %2922 = vmatprep.subr.bf16.mxu0 %v581
    %2923 = vmatpush1.bf16.msra.mxu0 %v580
    %2924 = vmatprep.subr.bf16.mxu0 %v578
    %2925 = vmatpush1.bf16.msra.mxu0 %v577
    %2926 = vmatprep.subr.bf16.mxu0 %v575
    %2927 = vmatpush1.bf16.msra.mxu0 %v574
    %2928 = vmatprep.subr.bf16.mxu0 %v572
    %2929 = vmatpush1.bf16.msra.mxu0 %v571
    %2930 = vmatprep.subr.bf16.mxu0 %v569
    %2931 = vmatpush1.bf16.msra.mxu0 %v568
    %2932 = vmatprep.subr.bf16.mxu0 %v566
    %2933 = vmatpush1.bf16.msra.mxu0 %v565
    %2934 = vmatprep.subr.bf16.mxu0 0
    %2935 = vmatpush2.bf16.msra.mxu0 0
    %2936 = vmatprep.subr.bf16.mxu0 0
    %2937 = vmatpush2.bf16.msra.mxu0 0
    %2938 = vmatprep.subr.bf16.mxu0 0
    %2939 = vmatpush2.bf16.msra.mxu0 0
    %2940 = vmatprep.subr.bf16.mxu0 0
    %2941 = vmatpush2.bf16.msra.mxu0 0
    %2942 = vmatprep.subr.bf16.mxu0 %v599
    %2943 = vmatpush2.bf16.msra.mxu0 %v598
    %2944 = vmatprep.subr.bf16.mxu0 %v596
    %2945 = vmatpush2.bf16.msra.mxu0 %v595
    %2946 = vmatprep.subr.bf16.mxu0 %v593
    %2947 = vmatpush2.bf16.msra.mxu0 %v592
    %2948 = vmatprep.subr.bf16.mxu0 %v590
    %2949 = vmatpush2.bf16.msra.mxu0 %v589
    %2950 = vmatprep.mubr.bf16.mxu0 %v2433
    %2951 = vmatmul.mubr.bf16.gmra.mxu0 %v2429
    %v2952 = vpop.f32.mrf.mxu0
    %v2953 = vadd.f32 %v2872, %v2952
    %v2954 = vpop.f32.mrf.mxu0
    %v2955 = vadd.f32 %v2874, %v2954
    %v2956 = vpop.f32.mrf.mxu0
    %v2957 = vpop.f32.mrf.mxu0
    %2958 = vdwg.mxu0
    %2959 = vmatprep.subr.bf16.mxu0 0
    %2960 = vmatpush1.bf16.msra.mxu0 %v588
    %2961 = vmatprep.subr.bf16.mxu0 0
    %2962 = vmatpush1.bf16.msra.mxu0 %v585
    %2963 = vmatprep.subr.bf16.mxu0 0
    %2964 = vmatpush1.bf16.msra.mxu0 %v582
    %2965 = vmatprep.subr.bf16.mxu0 0
    %2966 = vmatpush1.bf16.msra.mxu0 %v579
    %2967 = vmatprep.subr.bf16.mxu0 0
    %2968 = vmatpush1.bf16.msra.mxu0 %v576
    %2969 = vmatprep.subr.bf16.mxu0 0
    %2970 = vmatpush1.bf16.msra.mxu0 %v573
    %2971 = vmatprep.subr.bf16.mxu0 0
    %2972 = vmatpush1.bf16.msra.mxu0 %v570
    %2973 = vmatprep.subr.bf16.mxu0 0
    %2974 = vmatpush1.bf16.msra.mxu0 %v567
    %2975 = vmatprep.subr.bf16.mxu0 0
    %2976 = vmatpush2.bf16.msra.mxu0 0
    %2977 = vmatprep.subr.bf16.mxu0 0
    %2978 = vmatpush2.bf16.msra.mxu0 0
    %2979 = vmatprep.subr.bf16.mxu0 0
    %2980 = vmatpush2.bf16.msra.mxu0 0
    %2981 = vmatprep.subr.bf16.mxu0 0
    %2982 = vmatpush2.bf16.msra.mxu0 0
    %2983 = vmatprep.subr.bf16.mxu0 0
    %2984 = vmatpush2.bf16.msra.mxu0 %v600
    %2985 = vmatprep.subr.bf16.mxu0 0
    %2986 = vmatpush2.bf16.msra.mxu0 %v597
    %2987 = vmatprep.subr.bf16.mxu0 0
    %2988 = vmatpush2.bf16.msra.mxu0 %v594
    %2989 = vmatprep.subr.bf16.mxu0 0
    %2990 = vmatpush2.bf16.msra.mxu0 %v591
    %2991 = vmatprep.mubr.bf16.mxu0 %v2433
    %2992 = vmatmul.mubr.bf16.gmra.mxu0 %v2429
    %v2993 = vpop.f32.mrf.mxu0
    %v2994 = vadd.f32 %v2913, %v2993
    %v2995 = vpop.f32.mrf.mxu0
    %v2996 = vpop.f32.mrf.mxu0
    %v2997 = vpop.f32.mrf.mxu0
    %2998 = vdwg.mxu0
    %v2999 = vrot.slane %v2716, 1
    %v3000 = vsel %vm154, %v2718, %v2999
    %v3001 = vrot.slane %v2717, 1
    %v3002 = vsel %vm154, %v2719, %v3001
    %v3003 = vpack.c.b16 %v3000, %v3000
    %v3004 = vpack.c.b16 %v3002, %v3002
    %v3007 = vsel %vm353, %v3004, 0
    %3009 = vmatprep.subr.bf16.mxu0 %v937
    %3010 = vmatpush1.bf16.msra.mxu0 %v936
    %3011 = vmatprep.subr.bf16.mxu0 %v934
    %3012 = vmatpush1.bf16.msra.mxu0 %v933
    %3013 = vmatprep.subr.bf16.mxu0 %v931
    %3014 = vmatpush1.bf16.msra.mxu0 %v930
    %3015 = vmatprep.subr.bf16.mxu0 %v928
    %3016 = vmatpush1.bf16.msra.mxu0 %v927
    %3017 = vmatprep.subr.bf16.mxu0 %v925
    %3018 = vmatpush1.bf16.msra.mxu0 %v924
    %3019 = vmatprep.subr.bf16.mxu0 %v922
    %3020 = vmatpush1.bf16.msra.mxu0 %v921
    %3021 = vmatprep.subr.bf16.mxu0 %v919
    %3022 = vmatpush1.bf16.msra.mxu0 %v918
    %3023 = vmatprep.subr.bf16.mxu0 %v916
    %3024 = vmatpush1.bf16.msra.mxu0 %v915
    %3025 = vmatprep.subr.bf16.mxu0 0
    %3026 = vmatpush2.bf16.msra.mxu0 0
    %3027 = vmatprep.subr.bf16.mxu0 0
    %3028 = vmatpush2.bf16.msra.mxu0 0
    %3029 = vmatprep.subr.bf16.mxu0 0
    %3030 = vmatpush2.bf16.msra.mxu0 0
    %3031 = vmatprep.subr.bf16.mxu0 0
    %3032 = vmatpush2.bf16.msra.mxu0 0
    %3033 = vmatprep.subr.bf16.mxu0 %v949
    %3034 = vmatpush2.bf16.msra.mxu0 %v948
    %3035 = vmatprep.subr.bf16.mxu0 %v946
    %3036 = vmatpush2.bf16.msra.mxu0 %v945
    %3037 = vmatprep.subr.bf16.mxu0 %v943
    %3038 = vmatpush2.bf16.msra.mxu0 %v942
    %3039 = vmatprep.subr.bf16.mxu0 %v940
    %3040 = vmatpush2.bf16.msra.mxu0 %v939
    %3041 = vmatprep.mubr.bf16.mxu0 %v3007
    %3042 = vmatmul.mubr.bf16.gmra.mxu0 %v3003
    %v3043 = vpop.f32.mrf.mxu0
    %v3044 = vadd.f32 0.0, %v3043
    %v3045 = vpop.f32.mrf.mxu0
    %v3046 = vadd.f32 0.0, %v3045
    %v3047 = vpop.f32.mrf.mxu0
    %v3048 = vpop.f32.mrf.mxu0
    %3049 = vdwg.mxu0
    %3050 = vmatprep.subr.bf16.mxu0 0
    %3051 = vmatpush1.bf16.msra.mxu0 %v938
    %3052 = vmatprep.subr.bf16.mxu0 0
    %3053 = vmatpush1.bf16.msra.mxu0 %v935
    %3054 = vmatprep.subr.bf16.mxu0 0
    %3055 = vmatpush1.bf16.msra.mxu0 %v932
    %3056 = vmatprep.subr.bf16.mxu0 0
    %3057 = vmatpush1.bf16.msra.mxu0 %v929
    %3058 = vmatprep.subr.bf16.mxu0 0
    %3059 = vmatpush1.bf16.msra.mxu0 %v926
    %3060 = vmatprep.subr.bf16.mxu0 0
    %3061 = vmatpush1.bf16.msra.mxu0 %v923
    %3062 = vmatprep.subr.bf16.mxu0 0
    %3063 = vmatpush1.bf16.msra.mxu0 %v920
    %3064 = vmatprep.subr.bf16.mxu0 0
    %3065 = vmatpush1.bf16.msra.mxu0 %v917
    %3066 = vmatprep.subr.bf16.mxu0 0
    %3067 = vmatpush2.bf16.msra.mxu0 0
    %3068 = vmatprep.subr.bf16.mxu0 0
    %3069 = vmatpush2.bf16.msra.mxu0 0
    %3070 = vmatprep.subr.bf16.mxu0 0
    %3071 = vmatpush2.bf16.msra.mxu0 0
    %3072 = vmatprep.subr.bf16.mxu0 0
    %3073 = vmatpush2.bf16.msra.mxu0 0
    %3074 = vmatprep.subr.bf16.mxu0 0
    %3075 = vmatpush2.bf16.msra.mxu0 %v950
    %3076 = vmatprep.subr.bf16.mxu0 0
    %3077 = vmatpush2.bf16.msra.mxu0 %v947
    %3078 = vmatprep.subr.bf16.mxu0 0
    %3079 = vmatpush2.bf16.msra.mxu0 %v944
    %3080 = vmatprep.subr.bf16.mxu0 0
    %3081 = vmatpush2.bf16.msra.mxu0 %v941
    %3082 = vmatprep.mubr.bf16.mxu0 %v3007
    %3083 = vmatmul.mubr.bf16.gmra.mxu0 %v3003
    %v3084 = vpop.f32.mrf.mxu0
    %v3085 = vadd.f32 0.0, %v3084
    %v3086 = vpop.f32.mrf.mxu0
    %v3087 = vpop.f32.mrf.mxu0
    %v3088 = vpop.f32.mrf.mxu0
    %3089 = vdwg.mxu0
    %v3090 = vadd.f32 %v2953, %v3044
    %v3091 = vadd.f32 %v2955, %v3046
    %v3092 = vadd.f32 %v2994, %v3085
    %3095 = vrot.lane.b32.xlu0 %v3090, 44
    %v3096 = vpop.permute.xlu0 %3095
    %3097 = vrot.lane.b32.xlu0 %v3091, 44
    %v3098 = vpop.permute.xlu0 %3097
    %v3099 = vsel %vm1080, %v3096, %v3098
    %v3101 = vmax.f32 %v3090, %v3099
    %3103 = vrot.lane.b32.xlu0 %v3092, 44
    %v3104 = vpop.permute.xlu0 %3103
    %v3105 = vsel %vm1080, %v3098, %v3104
    %v3107 = vmax.f32 %v3091, %v3105
    %3109 = vrot.lane.b32.xlu0 %v3107, 88
    %v3110 = vpop.permute.xlu0 %3109
    %v3112 = vmax.f32 %v3101, %v3110
    %v3113 = vadd.f32 %v3112, %v1100
    %v3114 = vmax.f32 %v3113, 0.0
    %v3115 = vpack.c.bf16 %v3114, %v3114
    %3116 = vmatprep.subr.bf16.mxu0 %v303
    %3117 = vmatpush1.bf16.msra.mxu0 %v302
    %3118 = vmatprep.subr.bf16.mxu0 %v300
    %3119 = vmatpush1.bf16.msra.mxu0 %v299
    %3120 = vmatprep.subr.bf16.mxu0 %v297
    %3121 = vmatpush1.bf16.msra.mxu0 %v296
    %3122 = vmatprep.subr.bf16.mxu0 %v294
    %3123 = vmatpush1.bf16.msra.mxu0 %v293
    %3124 = vmatprep.subr.bf16.mxu0 %v291
    %3125 = vmatpush1.bf16.msra.mxu0 %v290
    %3126 = vmatprep.subr.bf16.mxu0 %v288
    %3127 = vmatpush1.bf16.msra.mxu0 %v287
    %3128 = vmatprep.subr.bf16.mxu0 %v285
    %3129 = vmatpush1.bf16.msra.mxu0 %v284
    %3130 = vmatprep.subr.bf16.mxu0 %v282
    %3131 = vmatpush1.bf16.msra.mxu0 %v281
    %3132 = vmatprep.subr.bf16.mxu0 0
    %3133 = vmatpush2.bf16.msra.mxu0 0
    %3134 = vmatprep.subr.bf16.mxu0 0
    %3135 = vmatpush2.bf16.msra.mxu0 0
    %3136 = vmatprep.subr.bf16.mxu0 0
    %3137 = vmatpush2.bf16.msra.mxu0 0
    %3138 = vmatprep.subr.bf16.mxu0 0
    %3139 = vmatpush2.bf16.msra.mxu0 0
    %3140 = vmatprep.subr.bf16.mxu0 %v315
    %3141 = vmatpush2.bf16.msra.mxu0 %v314
    %3142 = vmatprep.subr.bf16.mxu0 %v312
    %3143 = vmatpush2.bf16.msra.mxu0 %v311
    %3144 = vmatprep.subr.bf16.mxu0 %v309
    %3145 = vmatpush2.bf16.msra.mxu0 %v308
    %3146 = vmatprep.subr.bf16.mxu0 %v306
    %3147 = vmatpush2.bf16.msra.mxu0 %v305
    %3148 = vmatprep.mubr.bf16.mxu0 %v3007
    %3149 = vmatmul.mubr.bf16.gmra.mxu0 %v3003
    %v3150 = vpop.f32.mrf.mxu0
    %v3151 = vadd.f32 0.0, %v3150
    %v3152 = vpop.f32.mrf.mxu0
    %v3153 = vadd.f32 0.0, %v3152
    %v3154 = vpop.f32.mrf.mxu0
    %v3155 = vpop.f32.mrf.mxu0
    %3156 = vdwg.mxu0
    %3157 = vmatprep.subr.bf16.mxu0 0
    %3158 = vmatpush1.bf16.msra.mxu0 %v304
    %3159 = vmatprep.subr.bf16.mxu0 0
    %3160 = vmatpush1.bf16.msra.mxu0 %v301
    %3161 = vmatprep.subr.bf16.mxu0 0
    %3162 = vmatpush1.bf16.msra.mxu0 %v298
    %3163 = vmatprep.subr.bf16.mxu0 0
    %3164 = vmatpush1.bf16.msra.mxu0 %v295
    %3165 = vmatprep.subr.bf16.mxu0 0
    %3166 = vmatpush1.bf16.msra.mxu0 %v292
    %3167 = vmatprep.subr.bf16.mxu0 0
    %3168 = vmatpush1.bf16.msra.mxu0 %v289
    %3169 = vmatprep.subr.bf16.mxu0 0
    %3170 = vmatpush1.bf16.msra.mxu0 %v286
    %3171 = vmatprep.subr.bf16.mxu0 0
    %3172 = vmatpush1.bf16.msra.mxu0 %v283
    %3173 = vmatprep.subr.bf16.mxu0 0
    %3174 = vmatpush2.bf16.msra.mxu0 0
    %3175 = vmatprep.subr.bf16.mxu0 0
    %3176 = vmatpush2.bf16.msra.mxu0 0
    %3177 = vmatprep.subr.bf16.mxu0 0
    %3178 = vmatpush2.bf16.msra.mxu0 0
    %3179 = vmatprep.subr.bf16.mxu0 0
    %3180 = vmatpush2.bf16.msra.mxu0 0
    %3181 = vmatprep.subr.bf16.mxu0 0
    %3182 = vmatpush2.bf16.msra.mxu0 %v316
    %3183 = vmatprep.subr.bf16.mxu0 0
    %3184 = vmatpush2.bf16.msra.mxu0 %v313
    %3185 = vmatprep.subr.bf16.mxu0 0
    %3186 = vmatpush2.bf16.msra.mxu0 %v310
    %3187 = vmatprep.subr.bf16.mxu0 0
    %3188 = vmatpush2.bf16.msra.mxu0 %v307
    %3189 = vmatprep.mubr.bf16.mxu0 %v3007
    %3190 = vmatmul.mubr.bf16.gmra.mxu0 %v3003
    %v3191 = vpop.f32.mrf.mxu0
    %v3192 = vadd.f32 0.0, %v3191
    %v3193 = vpop.f32.mrf.mxu0
    %v3194 = vpop.f32.mrf.mxu0
    %v3195 = vpop.f32.mrf.mxu0
    %3196 = vdwg.mxu0
    %3197 = vmatprep.subr.bf16.mxu0 %v587
    %3198 = vmatpush1.bf16.msra.mxu0 %v586
    %3199 = vmatprep.subr.bf16.mxu0 %v584
    %3200 = vmatpush1.bf16.msra.mxu0 %v583
    %3201 = vmatprep.subr.bf16.mxu0 %v581
    %3202 = vmatpush1.bf16.msra.mxu0 %v580
    %3203 = vmatprep.subr.bf16.mxu0 %v578
    %3204 = vmatpush1.bf16.msra.mxu0 %v577
    %3205 = vmatprep.subr.bf16.mxu0 %v575
    %3206 = vmatpush1.bf16.msra.mxu0 %v574
    %3207 = vmatprep.subr.bf16.mxu0 %v572
    %3208 = vmatpush1.bf16.msra.mxu0 %v571
    %3209 = vmatprep.subr.bf16.mxu0 %v569
    %3210 = vmatpush1.bf16.msra.mxu0 %v568
    %3211 = vmatprep.subr.bf16.mxu0 %v566
    %3212 = vmatpush1.bf16.msra.mxu0 %v565
    %3213 = vmatprep.subr.bf16.mxu0 0
    %3214 = vmatpush2.bf16.msra.mxu0 0
    %3215 = vmatprep.subr.bf16.mxu0 0
    %3216 = vmatpush2.bf16.msra.mxu0 0
    %3217 = vmatprep.subr.bf16.mxu0 0
    %3218 = vmatpush2.bf16.msra.mxu0 0
    %3219 = vmatprep.subr.bf16.mxu0 0
    %3220 = vmatpush2.bf16.msra.mxu0 0
    %3221 = vmatprep.subr.bf16.mxu0 %v599
    %3222 = vmatpush2.bf16.msra.mxu0 %v598
    %3223 = vmatprep.subr.bf16.mxu0 %v596
    %3224 = vmatpush2.bf16.msra.mxu0 %v595
    %3225 = vmatprep.subr.bf16.mxu0 %v593
    %3226 = vmatpush2.bf16.msra.mxu0 %v592
    %3227 = vmatprep.subr.bf16.mxu0 %v590
    %3228 = vmatpush2.bf16.msra.mxu0 %v589
    %3229 = vmatprep.mubr.bf16.mxu0 %v2728
    %3230 = vmatmul.mubr.bf16.gmra.mxu0 %v2724
    %v3231 = vpop.f32.mrf.mxu0
    %v3232 = vadd.f32 %v3151, %v3231
    %v3233 = vpop.f32.mrf.mxu0
    %v3234 = vadd.f32 %v3153, %v3233
    %v3235 = vpop.f32.mrf.mxu0
    %v3236 = vpop.f32.mrf.mxu0
    %3237 = vdwg.mxu0
    %3238 = vmatprep.subr.bf16.mxu0 0
    %3239 = vmatpush1.bf16.msra.mxu0 %v588
    %3240 = vmatprep.subr.bf16.mxu0 0
    %3241 = vmatpush1.bf16.msra.mxu0 %v585
    %3242 = vmatprep.subr.bf16.mxu0 0
    %3243 = vmatpush1.bf16.msra.mxu0 %v582
    %3244 = vmatprep.subr.bf16.mxu0 0
    %3245 = vmatpush1.bf16.msra.mxu0 %v579
    %3246 = vmatprep.subr.bf16.mxu0 0
    %3247 = vmatpush1.bf16.msra.mxu0 %v576
    %3248 = vmatprep.subr.bf16.mxu0 0
    %3249 = vmatpush1.bf16.msra.mxu0 %v573
    %3250 = vmatprep.subr.bf16.mxu0 0
    %3251 = vmatpush1.bf16.msra.mxu0 %v570
    %3252 = vmatprep.subr.bf16.mxu0 0
    %3253 = vmatpush1.bf16.msra.mxu0 %v567
    %3254 = vmatprep.subr.bf16.mxu0 0
    %3255 = vmatpush2.bf16.msra.mxu0 0
    %3256 = vmatprep.subr.bf16.mxu0 0
    %3257 = vmatpush2.bf16.msra.mxu0 0
    %3258 = vmatprep.subr.bf16.mxu0 0
    %3259 = vmatpush2.bf16.msra.mxu0 0
    %3260 = vmatprep.subr.bf16.mxu0 0
    %3261 = vmatpush2.bf16.msra.mxu0 0
    %3262 = vmatprep.subr.bf16.mxu0 0
    %3263 = vmatpush2.bf16.msra.mxu0 %v600
    %3264 = vmatprep.subr.bf16.mxu0 0
    %3265 = vmatpush2.bf16.msra.mxu0 %v597
    %3266 = vmatprep.subr.bf16.mxu0 0
    %3267 = vmatpush2.bf16.msra.mxu0 %v594
    %3268 = vmatprep.subr.bf16.mxu0 0
    %3269 = vmatpush2.bf16.msra.mxu0 %v591
    %3270 = vmatprep.mubr.bf16.mxu0 %v2728
    %3271 = vmatmul.mubr.bf16.gmra.mxu0 %v2724
    %v3272 = vpop.f32.mrf.mxu0
    %v3273 = vadd.f32 %v3192, %v3272
    %v3274 = vpop.f32.mrf.mxu0
    %v3275 = vpop.f32.mrf.mxu0
    %v3276 = vpop.f32.mrf.mxu0
    %3277 = vdwg.mxu0
    %v3278 = vld [vmem:[%s0 + $0x8] sm:$0x22]
    %v3279 = vld [vmem:[%s0 + $0x18] sm:$0x22]
    %v3282 = vunpack.c.l.b16 %v3278
    %v3283 = vunpack.c.h.b16 %v3278
    %v3284 = vunpack.c.l.b16 %v3279
    %v3285 = vunpack.c.h.b16 %v3279
    %v3286 = vpack.c.b16 %v3282, %v3282
    %v3287 = vpack.c.b16 %v3283, %v3283
    %v3288 = vpack.c.b16 %v3284, %v3284
    %v3289 = vpack.c.b16 %v3285, %v3285
    %v3290 = vunpack.c.l.b16 %v3286
    %v3291 = vunpack.c.l.b16 %v3287
    %v3292 = vunpack.c.l.b16 %v3288
    %v3293 = vunpack.c.l.b16 %v3289
    %v3294 = vrot.slane %v3290, 2
    %v3295 = vrot.slane %v3292, 1
    %v3296 = vsel %vm154, %v3295, %v3294
    %v3297 = vrot.slane %v3291, 2
    %v3298 = vrot.slane %v3293, 1
    %v3299 = vsel %vm154, %v3298, %v3297
    %v3300 = vpack.c.b16 %v3296, %v3296
    %v3301 = vpack.c.b16 %v3299, %v3299
    %v3304 = vsel %vm353, %v3301, 0
    %3306 = vmatprep.subr.bf16.mxu0 %v937
    %3307 = vmatpush1.bf16.msra.mxu0 %v936
    %3308 = vmatprep.subr.bf16.mxu0 %v934
    %3309 = vmatpush1.bf16.msra.mxu0 %v933
    %3310 = vmatprep.subr.bf16.mxu0 %v931
    %3311 = vmatpush1.bf16.msra.mxu0 %v930
    %3312 = vmatprep.subr.bf16.mxu0 %v928
    %3313 = vmatpush1.bf16.msra.mxu0 %v927
    %3314 = vmatprep.subr.bf16.mxu0 %v925
    %3315 = vmatpush1.bf16.msra.mxu0 %v924
    %3316 = vmatprep.subr.bf16.mxu0 %v922
    %3317 = vmatpush1.bf16.msra.mxu0 %v921
    %3318 = vmatprep.subr.bf16.mxu0 %v919
    %3319 = vmatpush1.bf16.msra.mxu0 %v918
    %3320 = vmatprep.subr.bf16.mxu0 %v916
    %3321 = vmatpush1.bf16.msra.mxu0 %v915
    %3322 = vmatprep.subr.bf16.mxu0 0
    %3323 = vmatpush2.bf16.msra.mxu0 0
    %3324 = vmatprep.subr.bf16.mxu0 0
    %3325 = vmatpush2.bf16.msra.mxu0 0
    %3326 = vmatprep.subr.bf16.mxu0 0
    %3327 = vmatpush2.bf16.msra.mxu0 0
    %3328 = vmatprep.subr.bf16.mxu0 0
    %3329 = vmatpush2.bf16.msra.mxu0 0
    %3330 = vmatprep.subr.bf16.mxu0 %v949
    %3331 = vmatpush2.bf16.msra.mxu0 %v948
    %3332 = vmatprep.subr.bf16.mxu0 %v946
    %3333 = vmatpush2.bf16.msra.mxu0 %v945
    %3334 = vmatprep.subr.bf16.mxu0 %v943
    %3335 = vmatpush2.bf16.msra.mxu0 %v942
    %3336 = vmatprep.subr.bf16.mxu0 %v940
    %3337 = vmatpush2.bf16.msra.mxu0 %v939
    %3338 = vmatprep.mubr.bf16.mxu0 %v3304
    %3339 = vmatmul.mubr.bf16.gmra.mxu0 %v3300
    %v3340 = vpop.f32.mrf.mxu0
    %v3341 = vadd.f32 0.0, %v3340
    %v3342 = vpop.f32.mrf.mxu0
    %v3343 = vadd.f32 0.0, %v3342
    %v3344 = vpop.f32.mrf.mxu0
    %v3345 = vpop.f32.mrf.mxu0
    %3346 = vdwg.mxu0
    %3347 = vmatprep.subr.bf16.mxu0 0
    %3348 = vmatpush1.bf16.msra.mxu0 %v938
    %3349 = vmatprep.subr.bf16.mxu0 0
    %3350 = vmatpush1.bf16.msra.mxu0 %v935
    %3351 = vmatprep.subr.bf16.mxu0 0
    %3352 = vmatpush1.bf16.msra.mxu0 %v932
    %3353 = vmatprep.subr.bf16.mxu0 0
    %3354 = vmatpush1.bf16.msra.mxu0 %v929
    %3355 = vmatprep.subr.bf16.mxu0 0
    %3356 = vmatpush1.bf16.msra.mxu0 %v926
    %3357 = vmatprep.subr.bf16.mxu0 0
    %3358 = vmatpush1.bf16.msra.mxu0 %v923
    %3359 = vmatprep.subr.bf16.mxu0 0
    %3360 = vmatpush1.bf16.msra.mxu0 %v920
    %3361 = vmatprep.subr.bf16.mxu0 0
    %3362 = vmatpush1.bf16.msra.mxu0 %v917
    %3363 = vmatprep.subr.bf16.mxu0 0
    %3364 = vmatpush2.bf16.msra.mxu0 0
    %3365 = vmatprep.subr.bf16.mxu0 0
    %3366 = vmatpush2.bf16.msra.mxu0 0
    %3367 = vmatprep.subr.bf16.mxu0 0
    %3368 = vmatpush2.bf16.msra.mxu0 0
    %3369 = vmatprep.subr.bf16.mxu0 0
    %3370 = vmatpush2.bf16.msra.mxu0 0
    %3371 = vmatprep.subr.bf16.mxu0 0
    %3372 = vmatpush2.bf16.msra.mxu0 %v950
    %3373 = vmatprep.subr.bf16.mxu0 0
    %3374 = vmatpush2.bf16.msra.mxu0 %v947
    %3375 = vmatprep.subr.bf16.mxu0 0
    %3376 = vmatpush2.bf16.msra.mxu0 %v944
    %3377 = vmatprep.subr.bf16.mxu0 0
    %3378 = vmatpush2.bf16.msra.mxu0 %v941
    %3379 = vmatprep.mubr.bf16.mxu0 %v3304
    %3380 = vmatmul.mubr.bf16.gmra.mxu0 %v3300
    %v3381 = vpop.f32.mrf.mxu0
    %v3382 = vadd.f32 0.0, %v3381
    %v3383 = vpop.f32.mrf.mxu0
    %v3384 = vpop.f32.mrf.mxu0
    %v3385 = vpop.f32.mrf.mxu0
    %3386 = vdwg.mxu0
    %v3387 = vadd.f32 %v3232, %v3341
    %v3388 = vadd.f32 %v3234, %v3343
    %v3389 = vadd.f32 %v3273, %v3382
    %3392 = vrot.lane.b32.xlu0 %v3387, 44
    %v3393 = vpop.permute.xlu0 %3392
    %3394 = vrot.lane.b32.xlu0 %v3388, 44
    %v3395 = vpop.permute.xlu0 %3394
    %v3396 = vsel %vm1080, %v3393, %v3395
    %v3398 = vmax.f32 %v3387, %v3396
    %3400 = vrot.lane.b32.xlu0 %v3389, 44
    %v3401 = vpop.permute.xlu0 %3400
    %v3402 = vsel %vm1080, %v3395, %v3401
    %v3404 = vmax.f32 %v3388, %v3402
    %3406 = vrot.lane.b32.xlu0 %v3404, 88
    %v3407 = vpop.permute.xlu0 %3406
    %v3409 = vmax.f32 %v3398, %v3407
    %v3410 = vadd.f32 %v3409, %v1100
    %v3411 = vmax.f32 %v3410, 0.0
    %v3412 = vpack.c.bf16 %v3411, %v3411
    %3413 = vmatprep.subr.bf16.mxu0 %v303
    %3414 = vmatpush1.bf16.msra.mxu0 %v302
    %3415 = vmatprep.subr.bf16.mxu0 %v300
    %3416 = vmatpush1.bf16.msra.mxu0 %v299
    %3417 = vmatprep.subr.bf16.mxu0 %v297
    %3418 = vmatpush1.bf16.msra.mxu0 %v296
    %3419 = vmatprep.subr.bf16.mxu0 %v294
    %3420 = vmatpush1.bf16.msra.mxu0 %v293
    %3421 = vmatprep.subr.bf16.mxu0 %v291
    %3422 = vmatpush1.bf16.msra.mxu0 %v290
    %3423 = vmatprep.subr.bf16.mxu0 %v288
    %3424 = vmatpush1.bf16.msra.mxu0 %v287
    %3425 = vmatprep.subr.bf16.mxu0 %v285
    %3426 = vmatpush1.bf16.msra.mxu0 %v284
    %3427 = vmatprep.subr.bf16.mxu0 %v282
    %3428 = vmatpush1.bf16.msra.mxu0 %v281
    %3429 = vmatprep.subr.bf16.mxu0 0
    %3430 = vmatpush2.bf16.msra.mxu0 0
    %3431 = vmatprep.subr.bf16.mxu0 0
    %3432 = vmatpush2.bf16.msra.mxu0 0
    %3433 = vmatprep.subr.bf16.mxu0 0
    %3434 = vmatpush2.bf16.msra.mxu0 0
    %3435 = vmatprep.subr.bf16.mxu0 0
    %3436 = vmatpush2.bf16.msra.mxu0 0
    %3437 = vmatprep.subr.bf16.mxu0 %v315
    %3438 = vmatpush2.bf16.msra.mxu0 %v314
    %3439 = vmatprep.subr.bf16.mxu0 %v312
    %3440 = vmatpush2.bf16.msra.mxu0 %v311
    %3441 = vmatprep.subr.bf16.mxu0 %v309
    %3442 = vmatpush2.bf16.msra.mxu0 %v308
    %3443 = vmatprep.subr.bf16.mxu0 %v306
    %3444 = vmatpush2.bf16.msra.mxu0 %v305
    %3445 = vmatprep.mubr.bf16.mxu0 %v3304
    %3446 = vmatmul.mubr.bf16.gmra.mxu0 %v3300
    %v3447 = vpop.f32.mrf.mxu0
    %v3448 = vadd.f32 0.0, %v3447
    %v3449 = vpop.f32.mrf.mxu0
    %v3450 = vadd.f32 0.0, %v3449
    %v3451 = vpop.f32.mrf.mxu0
    %v3452 = vpop.f32.mrf.mxu0
    %3453 = vdwg.mxu0
    %3454 = vmatprep.subr.bf16.mxu0 0
    %3455 = vmatpush1.bf16.msra.mxu0 %v304
    %3456 = vmatprep.subr.bf16.mxu0 0
    %3457 = vmatpush1.bf16.msra.mxu0 %v301
    %3458 = vmatprep.subr.bf16.mxu0 0
    %3459 = vmatpush1.bf16.msra.mxu0 %v298
    %3460 = vmatprep.subr.bf16.mxu0 0
    %3461 = vmatpush1.bf16.msra.mxu0 %v295
    %3462 = vmatprep.subr.bf16.mxu0 0
    %3463 = vmatpush1.bf16.msra.mxu0 %v292
    %3464 = vmatprep.subr.bf16.mxu0 0
    %3465 = vmatpush1.bf16.msra.mxu0 %v289
    %3466 = vmatprep.subr.bf16.mxu0 0
    %3467 = vmatpush1.bf16.msra.mxu0 %v286
    %3468 = vmatprep.subr.bf16.mxu0 0
    %3469 = vmatpush1.bf16.msra.mxu0 %v283
    %3470 = vmatprep.subr.bf16.mxu0 0
    %3471 = vmatpush2.bf16.msra.mxu0 0
    %3472 = vmatprep.subr.bf16.mxu0 0
    %3473 = vmatpush2.bf16.msra.mxu0 0
    %3474 = vmatprep.subr.bf16.mxu0 0
    %3475 = vmatpush2.bf16.msra.mxu0 0
    %3476 = vmatprep.subr.bf16.mxu0 0
    %3477 = vmatpush2.bf16.msra.mxu0 0
    %3478 = vmatprep.subr.bf16.mxu0 0
    %3479 = vmatpush2.bf16.msra.mxu0 %v316
    %3480 = vmatprep.subr.bf16.mxu0 0
    %3481 = vmatpush2.bf16.msra.mxu0 %v313
    %3482 = vmatprep.subr.bf16.mxu0 0
    %3483 = vmatpush2.bf16.msra.mxu0 %v310
    %3484 = vmatprep.subr.bf16.mxu0 0
    %3485 = vmatpush2.bf16.msra.mxu0 %v307
    %3486 = vmatprep.mubr.bf16.mxu0 %v3304
    %3487 = vmatmul.mubr.bf16.gmra.mxu0 %v3300
    %v3488 = vpop.f32.mrf.mxu0
    %v3489 = vadd.f32 0.0, %v3488
    %v3490 = vpop.f32.mrf.mxu0
    %v3491 = vpop.f32.mrf.mxu0
    %v3492 = vpop.f32.mrf.mxu0
    %3493 = vdwg.mxu0
    %3494 = vmatprep.subr.bf16.mxu0 %v587
    %3495 = vmatpush1.bf16.msra.mxu0 %v586
    %3496 = vmatprep.subr.bf16.mxu0 %v584
    %3497 = vmatpush1.bf16.msra.mxu0 %v583
    %3498 = vmatprep.subr.bf16.mxu0 %v581
    %3499 = vmatpush1.bf16.msra.mxu0 %v580
    %3500 = vmatprep.subr.bf16.mxu0 %v578
    %3501 = vmatpush1.bf16.msra.mxu0 %v577
    %3502 = vmatprep.subr.bf16.mxu0 %v575
    %3503 = vmatpush1.bf16.msra.mxu0 %v574
    %3504 = vmatprep.subr.bf16.mxu0 %v572
    %3505 = vmatpush1.bf16.msra.mxu0 %v571
    %3506 = vmatprep.subr.bf16.mxu0 %v569
    %3507 = vmatpush1.bf16.msra.mxu0 %v568
    %3508 = vmatprep.subr.bf16.mxu0 %v566
    %3509 = vmatpush1.bf16.msra.mxu0 %v565
    %3510 = vmatprep.subr.bf16.mxu0 0
    %3511 = vmatpush2.bf16.msra.mxu0 0
    %3512 = vmatprep.subr.bf16.mxu0 0
    %3513 = vmatpush2.bf16.msra.mxu0 0
    %3514 = vmatprep.subr.bf16.mxu0 0
    %3515 = vmatpush2.bf16.msra.mxu0 0
    %3516 = vmatprep.subr.bf16.mxu0 0
    %3517 = vmatpush2.bf16.msra.mxu0 0
    %3518 = vmatprep.subr.bf16.mxu0 %v599
    %3519 = vmatpush2.bf16.msra.mxu0 %v598
    %3520 = vmatprep.subr.bf16.mxu0 %v596
    %3521 = vmatpush2.bf16.msra.mxu0 %v595
    %3522 = vmatprep.subr.bf16.mxu0 %v593
    %3523 = vmatpush2.bf16.msra.mxu0 %v592
    %3524 = vmatprep.subr.bf16.mxu0 %v590
    %3525 = vmatpush2.bf16.msra.mxu0 %v589
    %3526 = vmatprep.mubr.bf16.mxu0 %v3007
    %3527 = vmatmul.mubr.bf16.gmra.mxu0 %v3003
    %v3528 = vpop.f32.mrf.mxu0
    %v3529 = vadd.f32 %v3448, %v3528
    %v3530 = vpop.f32.mrf.mxu0
    %v3531 = vadd.f32 %v3450, %v3530
    %v3532 = vpop.f32.mrf.mxu0
    %v3533 = vpop.f32.mrf.mxu0
    %3534 = vdwg.mxu0
    %3535 = vmatprep.subr.bf16.mxu0 0
    %3536 = vmatpush1.bf16.msra.mxu0 %v588
    %3537 = vmatprep.subr.bf16.mxu0 0
    %3538 = vmatpush1.bf16.msra.mxu0 %v585
    %3539 = vmatprep.subr.bf16.mxu0 0
    %3540 = vmatpush1.bf16.msra.mxu0 %v582
    %3541 = vmatprep.subr.bf16.mxu0 0
    %3542 = vmatpush1.bf16.msra.mxu0 %v579
    %3543 = vmatprep.subr.bf16.mxu0 0
    %3544 = vmatpush1.bf16.msra.mxu0 %v576
    %3545 = vmatprep.subr.bf16.mxu0 0
    %3546 = vmatpush1.bf16.msra.mxu0 %v573
    %3547 = vmatprep.subr.bf16.mxu0 0
    %3548 = vmatpush1.bf16.msra.mxu0 %v570
    %3549 = vmatprep.subr.bf16.mxu0 0
    %3550 = vmatpush1.bf16.msra.mxu0 %v567
    %3551 = vmatprep.subr.bf16.mxu0 0
    %3552 = vmatpush2.bf16.msra.mxu0 0
    %3553 = vmatprep.subr.bf16.mxu0 0
    %3554 = vmatpush2.bf16.msra.mxu0 0
    %3555 = vmatprep.subr.bf16.mxu0 0
    %3556 = vmatpush2.bf16.msra.mxu0 0
    %3557 = vmatprep.subr.bf16.mxu0 0
    %3558 = vmatpush2.bf16.msra.mxu0 0
    %3559 = vmatprep.subr.bf16.mxu0 0
    %3560 = vmatpush2.bf16.msra.mxu0 %v600
    %3561 = vmatprep.subr.bf16.mxu0 0
    %3562 = vmatpush2.bf16.msra.mxu0 %v597
    %3563 = vmatprep.subr.bf16.mxu0 0
    %3564 = vmatpush2.bf16.msra.mxu0 %v594
    %3565 = vmatprep.subr.bf16.mxu0 0
    %3566 = vmatpush2.bf16.msra.mxu0 %v591
    %3567 = vmatprep.mubr.bf16.mxu0 %v3007
    %3568 = vmatmul.mubr.bf16.gmra.mxu0 %v3003
    %v3569 = vpop.f32.mrf.mxu0
    %v3570 = vadd.f32 %v3489, %v3569
    %v3571 = vpop.f32.mrf.mxu0
    %v3572 = vpop.f32.mrf.mxu0
    %v3573 = vpop.f32.mrf.mxu0
    %3574 = vdwg.mxu0
    %v3575 = vrot.slane %v3290, 3
    %v3576 = vrot.slane %v3292, 2
    %v3577 = vsel %vm154, %v3576, %v3575
    %v3578 = vrot.slane %v3291, 3
    %v3579 = vrot.slane %v3293, 2
    %v3580 = vsel %vm154, %v3579, %v3578
    %v3581 = vpack.c.b16 %v3577, %v3577
    %v3582 = vpack.c.b16 %v3580, %v3580
    %v3585 = vsel %vm353, %v3582, 0
    %3587 = vmatprep.subr.bf16.mxu0 %v937
    %3588 = vmatpush1.bf16.msra.mxu0 %v936
    %3589 = vmatprep.subr.bf16.mxu0 %v934
    %3590 = vmatpush1.bf16.msra.mxu0 %v933
    %3591 = vmatprep.subr.bf16.mxu0 %v931
    %3592 = vmatpush1.bf16.msra.mxu0 %v930
    %3593 = vmatprep.subr.bf16.mxu0 %v928
    %3594 = vmatpush1.bf16.msra.mxu0 %v927
    %3595 = vmatprep.subr.bf16.mxu0 %v925
    %3596 = vmatpush1.bf16.msra.mxu0 %v924
    %3597 = vmatprep.subr.bf16.mxu0 %v922
    %3598 = vmatpush1.bf16.msra.mxu0 %v921
    %3599 = vmatprep.subr.bf16.mxu0 %v919
    %3600 = vmatpush1.bf16.msra.mxu0 %v918
    %3601 = vmatprep.subr.bf16.mxu0 %v916
    %3602 = vmatpush1.bf16.msra.mxu0 %v915
    %3603 = vmatprep.subr.bf16.mxu0 0
    %3604 = vmatpush2.bf16.msra.mxu0 0
    %3605 = vmatprep.subr.bf16.mxu0 0
    %3606 = vmatpush2.bf16.msra.mxu0 0
    %3607 = vmatprep.subr.bf16.mxu0 0
    %3608 = vmatpush2.bf16.msra.mxu0 0
    %3609 = vmatprep.subr.bf16.mxu0 0
    %3610 = vmatpush2.bf16.msra.mxu0 0
    %3611 = vmatprep.subr.bf16.mxu0 %v949
    %3612 = vmatpush2.bf16.msra.mxu0 %v948
    %3613 = vmatprep.subr.bf16.mxu0 %v946
    %3614 = vmatpush2.bf16.msra.mxu0 %v945
    %3615 = vmatprep.subr.bf16.mxu0 %v943
    %3616 = vmatpush2.bf16.msra.mxu0 %v942
    %3617 = vmatprep.subr.bf16.mxu0 %v940
    %3618 = vmatpush2.bf16.msra.mxu0 %v939
    %3619 = vmatprep.mubr.bf16.mxu0 %v3585
    %3620 = vmatmul.mubr.bf16.gmra.mxu0 %v3581
    %v3621 = vpop.f32.mrf.mxu0
    %v3622 = vadd.f32 0.0, %v3621
    %v3623 = vpop.f32.mrf.mxu0
    %v3624 = vadd.f32 0.0, %v3623
    %v3625 = vpop.f32.mrf.mxu0
    %v3626 = vpop.f32.mrf.mxu0
    %3627 = vdwg.mxu0
    %3628 = vmatprep.subr.bf16.mxu0 0
    %3629 = vmatpush1.bf16.msra.mxu0 %v938
    %3630 = vmatprep.subr.bf16.mxu0 0
    %3631 = vmatpush1.bf16.msra.mxu0 %v935
    %3632 = vmatprep.subr.bf16.mxu0 0
    %3633 = vmatpush1.bf16.msra.mxu0 %v932
    %3634 = vmatprep.subr.bf16.mxu0 0
    %3635 = vmatpush1.bf16.msra.mxu0 %v929
    %3636 = vmatprep.subr.bf16.mxu0 0
    %3637 = vmatpush1.bf16.msra.mxu0 %v926
    %3638 = vmatprep.subr.bf16.mxu0 0
    %3639 = vmatpush1.bf16.msra.mxu0 %v923
    %3640 = vmatprep.subr.bf16.mxu0 0
    %3641 = vmatpush1.bf16.msra.mxu0 %v920
    %3642 = vmatprep.subr.bf16.mxu0 0
    %3643 = vmatpush1.bf16.msra.mxu0 %v917
    %3644 = vmatprep.subr.bf16.mxu0 0
    %3645 = vmatpush2.bf16.msra.mxu0 0
    %3646 = vmatprep.subr.bf16.mxu0 0
    %3647 = vmatpush2.bf16.msra.mxu0 0
    %3648 = vmatprep.subr.bf16.mxu0 0
    %3649 = vmatpush2.bf16.msra.mxu0 0
    %3650 = vmatprep.subr.bf16.mxu0 0
    %3651 = vmatpush2.bf16.msra.mxu0 0
    %3652 = vmatprep.subr.bf16.mxu0 0
    %3653 = vmatpush2.bf16.msra.mxu0 %v950
    %3654 = vmatprep.subr.bf16.mxu0 0
    %3655 = vmatpush2.bf16.msra.mxu0 %v947
    %3656 = vmatprep.subr.bf16.mxu0 0
    %3657 = vmatpush2.bf16.msra.mxu0 %v944
    %3658 = vmatprep.subr.bf16.mxu0 0
    %3659 = vmatpush2.bf16.msra.mxu0 %v941
    %3660 = vmatprep.mubr.bf16.mxu0 %v3585
    %3661 = vmatmul.mubr.bf16.gmra.mxu0 %v3581
    %v3662 = vpop.f32.mrf.mxu0
    %v3663 = vadd.f32 0.0, %v3662
    %v3664 = vpop.f32.mrf.mxu0
    %v3665 = vpop.f32.mrf.mxu0
    %v3666 = vpop.f32.mrf.mxu0
    %3667 = vdwg.mxu0
    %v3668 = vadd.f32 %v3529, %v3622
    %v3669 = vadd.f32 %v3531, %v3624
    %v3670 = vadd.f32 %v3570, %v3663
    %3673 = vrot.lane.b32.xlu0 %v3668, 44
    %v3674 = vpop.permute.xlu0 %3673
    %3675 = vrot.lane.b32.xlu0 %v3669, 44
    %v3676 = vpop.permute.xlu0 %3675
    %v3677 = vsel %vm1080, %v3674, %v3676
    %v3679 = vmax.f32 %v3668, %v3677
    %3681 = vrot.lane.b32.xlu0 %v3670, 44
    %v3682 = vpop.permute.xlu0 %3681
    %v3683 = vsel %vm1080, %v3676, %v3682
    %v3685 = vmax.f32 %v3669, %v3683
    %3687 = vrot.lane.b32.xlu0 %v3685, 88
    %v3688 = vpop.permute.xlu0 %3687
    %v3690 = vmax.f32 %v3679, %v3688
    %v3691 = vadd.f32 %v3690, %v1100
    %v3692 = vmax.f32 %v3691, 0.0
    %v3693 = vpack.c.bf16 %v3692, %v3692
    %3694 = vmatprep.subr.bf16.mxu0 %v303
    %3695 = vmatpush1.bf16.msra.mxu0 %v302
    %3696 = vmatprep.subr.bf16.mxu0 %v300
    %3697 = vmatpush1.bf16.msra.mxu0 %v299
    %3698 = vmatprep.subr.bf16.mxu0 %v297
    %3699 = vmatpush1.bf16.msra.mxu0 %v296
    %3700 = vmatprep.subr.bf16.mxu0 %v294
    %3701 = vmatpush1.bf16.msra.mxu0 %v293
    %3702 = vmatprep.subr.bf16.mxu0 %v291
    %3703 = vmatpush1.bf16.msra.mxu0 %v290
    %3704 = vmatprep.subr.bf16.mxu0 %v288
    %3705 = vmatpush1.bf16.msra.mxu0 %v287
    %3706 = vmatprep.subr.bf16.mxu0 %v285
    %3707 = vmatpush1.bf16.msra.mxu0 %v284
    %3708 = vmatprep.subr.bf16.mxu0 %v282
    %3709 = vmatpush1.bf16.msra.mxu0 %v281
    %3710 = vmatprep.subr.bf16.mxu0 0
    %3711 = vmatpush2.bf16.msra.mxu0 0
    %3712 = vmatprep.subr.bf16.mxu0 0
    %3713 = vmatpush2.bf16.msra.mxu0 0
    %3714 = vmatprep.subr.bf16.mxu0 0
    %3715 = vmatpush2.bf16.msra.mxu0 0
    %3716 = vmatprep.subr.bf16.mxu0 0
    %3717 = vmatpush2.bf16.msra.mxu0 0
    %3718 = vmatprep.subr.bf16.mxu0 %v315
    %3719 = vmatpush2.bf16.msra.mxu0 %v314
    %3720 = vmatprep.subr.bf16.mxu0 %v312
    %3721 = vmatpush2.bf16.msra.mxu0 %v311
    %3722 = vmatprep.subr.bf16.mxu0 %v309
    %3723 = vmatpush2.bf16.msra.mxu0 %v308
    %3724 = vmatprep.subr.bf16.mxu0 %v306
    %3725 = vmatpush2.bf16.msra.mxu0 %v305
    %3726 = vmatprep.mubr.bf16.mxu0 %v3585
    %3727 = vmatmul.mubr.bf16.gmra.mxu0 %v3581
    %v3728 = vpop.f32.mrf.mxu0
    %v3729 = vadd.f32 0.0, %v3728
    %v3730 = vpop.f32.mrf.mxu0
    %v3731 = vadd.f32 0.0, %v3730
    %v3732 = vpop.f32.mrf.mxu0
    %v3733 = vpop.f32.mrf.mxu0
    %3734 = vdwg.mxu0
    %3735 = vmatprep.subr.bf16.mxu0 0
    %3736 = vmatpush1.bf16.msra.mxu0 %v304
    %3737 = vmatprep.subr.bf16.mxu0 0
    %3738 = vmatpush1.bf16.msra.mxu0 %v301
    %3739 = vmatprep.subr.bf16.mxu0 0
    %3740 = vmatpush1.bf16.msra.mxu0 %v298
    %3741 = vmatprep.subr.bf16.mxu0 0
    %3742 = vmatpush1.bf16.msra.mxu0 %v295
    %3743 = vmatprep.subr.bf16.mxu0 0
    %3744 = vmatpush1.bf16.msra.mxu0 %v292
    %3745 = vmatprep.subr.bf16.mxu0 0
    %3746 = vmatpush1.bf16.msra.mxu0 %v289
    %3747 = vmatprep.subr.bf16.mxu0 0
    %3748 = vmatpush1.bf16.msra.mxu0 %v286
    %3749 = vmatprep.subr.bf16.mxu0 0
    %3750 = vmatpush1.bf16.msra.mxu0 %v283
    %3751 = vmatprep.subr.bf16.mxu0 0
    %3752 = vmatpush2.bf16.msra.mxu0 0
    %3753 = vmatprep.subr.bf16.mxu0 0
    %3754 = vmatpush2.bf16.msra.mxu0 0
    %3755 = vmatprep.subr.bf16.mxu0 0
    %3756 = vmatpush2.bf16.msra.mxu0 0
    %3757 = vmatprep.subr.bf16.mxu0 0
    %3758 = vmatpush2.bf16.msra.mxu0 0
    %3759 = vmatprep.subr.bf16.mxu0 0
    %3760 = vmatpush2.bf16.msra.mxu0 %v316
    %3761 = vmatprep.subr.bf16.mxu0 0
    %3762 = vmatpush2.bf16.msra.mxu0 %v313
    %3763 = vmatprep.subr.bf16.mxu0 0
    %3764 = vmatpush2.bf16.msra.mxu0 %v310
    %3765 = vmatprep.subr.bf16.mxu0 0
    %3766 = vmatpush2.bf16.msra.mxu0 %v307
    %3767 = vmatprep.mubr.bf16.mxu0 %v3585
    %3768 = vmatmul.mubr.bf16.gmra.mxu0 %v3581
    %v3769 = vpop.f32.mrf.mxu0
    %v3770 = vadd.f32 0.0, %v3769
    %v3771 = vpop.f32.mrf.mxu0
    %v3772 = vpop.f32.mrf.mxu0
    %v3773 = vpop.f32.mrf.mxu0
    %3774 = vdwg.mxu0
    %3775 = vmatprep.subr.bf16.mxu0 %v587
    %3776 = vmatpush1.bf16.msra.mxu0 %v586
    %3777 = vmatprep.subr.bf16.mxu0 %v584
    %3778 = vmatpush1.bf16.msra.mxu0 %v583
    %3779 = vmatprep.subr.bf16.mxu0 %v581
    %3780 = vmatpush1.bf16.msra.mxu0 %v580
    %3781 = vmatprep.subr.bf16.mxu0 %v578
    %3782 = vmatpush1.bf16.msra.mxu0 %v577
    %3783 = vmatprep.subr.bf16.mxu0 %v575
    %3784 = vmatpush1.bf16.msra.mxu0 %v574
    %3785 = vmatprep.subr.bf16.mxu0 %v572
    %3786 = vmatpush1.bf16.msra.mxu0 %v571
    %3787 = vmatprep.subr.bf16.mxu0 %v569
    %3788 = vmatpush1.bf16.msra.mxu0 %v568
    %3789 = vmatprep.subr.bf16.mxu0 %v566
    %3790 = vmatpush1.bf16.msra.mxu0 %v565
    %3791 = vmatprep.subr.bf16.mxu0 0
    %3792 = vmatpush2.bf16.msra.mxu0 0
    %3793 = vmatprep.subr.bf16.mxu0 0
    %3794 = vmatpush2.bf16.msra.mxu0 0
    %3795 = vmatprep.subr.bf16.mxu0 0
    %3796 = vmatpush2.bf16.msra.mxu0 0
    %3797 = vmatprep.subr.bf16.mxu0 0
    %3798 = vmatpush2.bf16.msra.mxu0 0
    %3799 = vmatprep.subr.bf16.mxu0 %v599
    %3800 = vmatpush2.bf16.msra.mxu0 %v598
    %3801 = vmatprep.subr.bf16.mxu0 %v596
    %3802 = vmatpush2.bf16.msra.mxu0 %v595
    %3803 = vmatprep.subr.bf16.mxu0 %v593
    %3804 = vmatpush2.bf16.msra.mxu0 %v592
    %3805 = vmatprep.subr.bf16.mxu0 %v590
    %3806 = vmatpush2.bf16.msra.mxu0 %v589
    %3807 = vmatprep.mubr.bf16.mxu0 %v3304
    %3808 = vmatmul.mubr.bf16.gmra.mxu0 %v3300
    %v3809 = vpop.f32.mrf.mxu0
    %v3810 = vadd.f32 %v3729, %v3809
    %v3811 = vpop.f32.mrf.mxu0
    %v3812 = vadd.f32 %v3731, %v3811
    %v3813 = vpop.f32.mrf.mxu0
    %v3814 = vpop.f32.mrf.mxu0
    %3815 = vdwg.mxu0
    %3816 = vmatprep.subr.bf16.mxu0 0
    %3817 = vmatpush1.bf16.msra.mxu0 %v588
    %3818 = vmatprep.subr.bf16.mxu0 0
    %3819 = vmatpush1.bf16.msra.mxu0 %v585
    %3820 = vmatprep.subr.bf16.mxu0 0
    %3821 = vmatpush1.bf16.msra.mxu0 %v582
    %3822 = vmatprep.subr.bf16.mxu0 0
    %3823 = vmatpush1.bf16.msra.mxu0 %v579
    %3824 = vmatprep.subr.bf16.mxu0 0
    %3825 = vmatpush1.bf16.msra.mxu0 %v576
    %3826 = vmatprep.subr.bf16.mxu0 0
    %3827 = vmatpush1.bf16.msra.mxu0 %v573
    %3828 = vmatprep.subr.bf16.mxu0 0
    %3829 = vmatpush1.bf16.msra.mxu0 %v570
    %3830 = vmatprep.subr.bf16.mxu0 0
    %3831 = vmatpush1.bf16.msra.mxu0 %v567
    %3832 = vmatprep.subr.bf16.mxu0 0
    %3833 = vmatpush2.bf16.msra.mxu0 0
    %3834 = vmatprep.subr.bf16.mxu0 0
    %3835 = vmatpush2.bf16.msra.mxu0 0
    %3836 = vmatprep.subr.bf16.mxu0 0
    %3837 = vmatpush2.bf16.msra.mxu0 0
    %3838 = vmatprep.subr.bf16.mxu0 0
    %3839 = vmatpush2.bf16.msra.mxu0 0
    %3840 = vmatprep.subr.bf16.mxu0 0
    %3841 = vmatpush2.bf16.msra.mxu0 %v600
    %3842 = vmatprep.subr.bf16.mxu0 0
    %3843 = vmatpush2.bf16.msra.mxu0 %v597
    %3844 = vmatprep.subr.bf16.mxu0 0
    %3845 = vmatpush2.bf16.msra.mxu0 %v594
    %3846 = vmatprep.subr.bf16.mxu0 0
    %3847 = vmatpush2.bf16.msra.mxu0 %v591
    %3848 = vmatprep.mubr.bf16.mxu0 %v3304
    %3849 = vmatmul.mubr.bf16.gmra.mxu0 %v3300
    %v3850 = vpop.f32.mrf.mxu0
    %v3851 = vadd.f32 %v3770, %v3850
    %v3852 = vpop.f32.mrf.mxu0
    %v3853 = vpop.f32.mrf.mxu0
    %v3854 = vpop.f32.mrf.mxu0
    %3855 = vdwg.mxu0
    %v3856 = vld [vmem:[%s0 + $0x8] sm:$0x44]
    %v3857 = vld [vmem:[%s0 + $0x18] sm:$0x44]
    %v3860 = vunpack.c.l.b16 %v3856
    %v3861 = vunpack.c.h.b16 %v3856
    %v3862 = vunpack.c.l.b16 %v3857
    %v3863 = vunpack.c.h.b16 %v3857
    %v3864 = vpack.c.b16 %v3860, %v3860
    %v3865 = vpack.c.b16 %v3861, %v3861
    %v3866 = vpack.c.b16 %v3862, %v3862
    %v3867 = vpack.c.b16 %v3863, %v3863
    %v3868 = vunpack.c.l.b16 %v3864
    %v3869 = vunpack.c.l.b16 %v3865
    %v3870 = vunpack.c.l.b16 %v3866
    %v3871 = vunpack.c.l.b16 %v3867
    %v3872 = vrot.slane %v3868, 4
    %v3873 = vrot.slane %v3870, 3
    %v3874 = vsel %vm154, %v3873, %v3872
    %v3875 = vrot.slane %v3869, 4
    %v3876 = vrot.slane %v3871, 3
    %v3877 = vsel %vm154, %v3876, %v3875
    %v3878 = vpack.c.b16 %v3874, %v3874
    %v3879 = vpack.c.b16 %v3877, %v3877
    %v3882 = vsel %vm353, %v3879, 0
    %3884 = vmatprep.subr.bf16.mxu0 %v937
    %3885 = vmatpush1.bf16.msra.mxu0 %v936
    %3886 = vmatprep.subr.bf16.mxu0 %v934
    %3887 = vmatpush1.bf16.msra.mxu0 %v933
    %3888 = vmatprep.subr.bf16.mxu0 %v931
    %3889 = vmatpush1.bf16.msra.mxu0 %v930
    %3890 = vmatprep.subr.bf16.mxu0 %v928
    %3891 = vmatpush1.bf16.msra.mxu0 %v927
    %3892 = vmatprep.subr.bf16.mxu0 %v925
    %3893 = vmatpush1.bf16.msra.mxu0 %v924
    %3894 = vmatprep.subr.bf16.mxu0 %v922
    %3895 = vmatpush1.bf16.msra.mxu0 %v921
    %3896 = vmatprep.subr.bf16.mxu0 %v919
    %3897 = vmatpush1.bf16.msra.mxu0 %v918
    %3898 = vmatprep.subr.bf16.mxu0 %v916
    %3899 = vmatpush1.bf16.msra.mxu0 %v915
    %3900 = vmatprep.subr.bf16.mxu0 0
    %3901 = vmatpush2.bf16.msra.mxu0 0
    %3902 = vmatprep.subr.bf16.mxu0 0
    %3903 = vmatpush2.bf16.msra.mxu0 0
    %3904 = vmatprep.subr.bf16.mxu0 0
    %3905 = vmatpush2.bf16.msra.mxu0 0
    %3906 = vmatprep.subr.bf16.mxu0 0
    %3907 = vmatpush2.bf16.msra.mxu0 0
    %3908 = vmatprep.subr.bf16.mxu0 %v949
    %3909 = vmatpush2.bf16.msra.mxu0 %v948
    %3910 = vmatprep.subr.bf16.mxu0 %v946
    %3911 = vmatpush2.bf16.msra.mxu0 %v945
    %3912 = vmatprep.subr.bf16.mxu0 %v943
    %3913 = vmatpush2.bf16.msra.mxu0 %v942
    %3914 = vmatprep.subr.bf16.mxu0 %v940
    %3915 = vmatpush2.bf16.msra.mxu0 %v939
    %3916 = vmatprep.mubr.bf16.mxu0 %v3882
    %3917 = vmatmul.mubr.bf16.gmra.mxu0 %v3878
    %v3918 = vpop.f32.mrf.mxu0
    %v3919 = vadd.f32 0.0, %v3918
    %v3920 = vpop.f32.mrf.mxu0
    %v3921 = vadd.f32 0.0, %v3920
    %v3922 = vpop.f32.mrf.mxu0
    %v3923 = vpop.f32.mrf.mxu0
    %3924 = vdwg.mxu0
    %3925 = vmatprep.subr.bf16.mxu0 0
    %3926 = vmatpush1.bf16.msra.mxu0 %v938
    %3927 = vmatprep.subr.bf16.mxu0 0
    %3928 = vmatpush1.bf16.msra.mxu0 %v935
    %3929 = vmatprep.subr.bf16.mxu0 0
    %3930 = vmatpush1.bf16.msra.mxu0 %v932
    %3931 = vmatprep.subr.bf16.mxu0 0
    %3932 = vmatpush1.bf16.msra.mxu0 %v929
    %3933 = vmatprep.subr.bf16.mxu0 0
    %3934 = vmatpush1.bf16.msra.mxu0 %v926
    %3935 = vmatprep.subr.bf16.mxu0 0
    %3936 = vmatpush1.bf16.msra.mxu0 %v923
    %3937 = vmatprep.subr.bf16.mxu0 0
    %3938 = vmatpush1.bf16.msra.mxu0 %v920
    %3939 = vmatprep.subr.bf16.mxu0 0
    %3940 = vmatpush1.bf16.msra.mxu0 %v917
    %3941 = vmatprep.subr.bf16.mxu0 0
    %3942 = vmatpush2.bf16.msra.mxu0 0
    %3943 = vmatprep.subr.bf16.mxu0 0
    %3944 = vmatpush2.bf16.msra.mxu0 0
    %3945 = vmatprep.subr.bf16.mxu0 0
    %3946 = vmatpush2.bf16.msra.mxu0 0
    %3947 = vmatprep.subr.bf16.mxu0 0
    %3948 = vmatpush2.bf16.msra.mxu0 0
    %3949 = vmatprep.subr.bf16.mxu0 0
    %3950 = vmatpush2.bf16.msra.mxu0 %v950
    %3951 = vmatprep.subr.bf16.mxu0 0
    %3952 = vmatpush2.bf16.msra.mxu0 %v947
    %3953 = vmatprep.subr.bf16.mxu0 0
    %3954 = vmatpush2.bf16.msra.mxu0 %v944
    %3955 = vmatprep.subr.bf16.mxu0 0
    %3956 = vmatpush2.bf16.msra.mxu0 %v941
    %3957 = vmatprep.mubr.bf16.mxu0 %v3882
    %3958 = vmatmul.mubr.bf16.gmra.mxu0 %v3878
    %v3959 = vpop.f32.mrf.mxu0
    %v3960 = vadd.f32 0.0, %v3959
    %v3961 = vpop.f32.mrf.mxu0
    %v3962 = vpop.f32.mrf.mxu0
    %v3963 = vpop.f32.mrf.mxu0
    %3964 = vdwg.mxu0
    %v3965 = vadd.f32 %v3810, %v3919
    %v3966 = vadd.f32 %v3812, %v3921
    %v3967 = vadd.f32 %v3851, %v3960
    %3970 = vrot.lane.b32.xlu0 %v3965, 44
    %v3971 = vpop.permute.xlu0 %3970
    %3972 = vrot.lane.b32.xlu0 %v3966, 44
    %v3973 = vpop.permute.xlu0 %3972
    %v3974 = vsel %vm1080, %v3971, %v3973
    %v3976 = vmax.f32 %v3965, %v3974
    %3978 = vrot.lane.b32.xlu0 %v3967, 44
    %v3979 = vpop.permute.xlu0 %3978
    %v3980 = vsel %vm1080, %v3973, %v3979
    %v3982 = vmax.f32 %v3966, %v3980
    %3984 = vrot.lane.b32.xlu0 %v3982, 88
    %v3985 = vpop.permute.xlu0 %3984
    %v3987 = vmax.f32 %v3976, %v3985
    %v3988 = vadd.f32 %v3987, %v1100
    %v3989 = vmax.f32 %v3988, 0.0
    %v3990 = vpack.c.bf16 %v3989, %v3989
    %3991 = vmatprep.subr.bf16.mxu0 %v303
    %3992 = vmatpush1.bf16.msra.mxu0 %v302
    %3993 = vmatprep.subr.bf16.mxu0 %v300
    %3994 = vmatpush1.bf16.msra.mxu0 %v299
    %3995 = vmatprep.subr.bf16.mxu0 %v297
    %3996 = vmatpush1.bf16.msra.mxu0 %v296
    %3997 = vmatprep.subr.bf16.mxu0 %v294
    %3998 = vmatpush1.bf16.msra.mxu0 %v293
    %3999 = vmatprep.subr.bf16.mxu0 %v291
    %4000 = vmatpush1.bf16.msra.mxu0 %v290
    %4001 = vmatprep.subr.bf16.mxu0 %v288
    %4002 = vmatpush1.bf16.msra.mxu0 %v287
    %4003 = vmatprep.subr.bf16.mxu0 %v285
    %4004 = vmatpush1.bf16.msra.mxu0 %v284
    %4005 = vmatprep.subr.bf16.mxu0 %v282
    %4006 = vmatpush1.bf16.msra.mxu0 %v281
    %4007 = vmatprep.subr.bf16.mxu0 0
    %4008 = vmatpush2.bf16.msra.mxu0 0
    %4009 = vmatprep.subr.bf16.mxu0 0
    %4010 = vmatpush2.bf16.msra.mxu0 0
    %4011 = vmatprep.subr.bf16.mxu0 0
    %4012 = vmatpush2.bf16.msra.mxu0 0
    %4013 = vmatprep.subr.bf16.mxu0 0
    %4014 = vmatpush2.bf16.msra.mxu0 0
    %4015 = vmatprep.subr.bf16.mxu0 %v315
    %4016 = vmatpush2.bf16.msra.mxu0 %v314
    %4017 = vmatprep.subr.bf16.mxu0 %v312
    %4018 = vmatpush2.bf16.msra.mxu0 %v311
    %4019 = vmatprep.subr.bf16.mxu0 %v309
    %4020 = vmatpush2.bf16.msra.mxu0 %v308
    %4021 = vmatprep.subr.bf16.mxu0 %v306
    %4022 = vmatpush2.bf16.msra.mxu0 %v305
    %4023 = vmatprep.mubr.bf16.mxu0 %v3882
    %4024 = vmatmul.mubr.bf16.gmra.mxu0 %v3878
    %v4025 = vpop.f32.mrf.mxu0
    %v4026 = vadd.f32 0.0, %v4025
    %v4027 = vpop.f32.mrf.mxu0
    %v4028 = vadd.f32 0.0, %v4027
    %v4029 = vpop.f32.mrf.mxu0
    %v4030 = vpop.f32.mrf.mxu0
    %4031 = vdwg.mxu0
    %4032 = vmatprep.subr.bf16.mxu0 0
    %4033 = vmatpush1.bf16.msra.mxu0 %v304
    %4034 = vmatprep.subr.bf16.mxu0 0
    %4035 = vmatpush1.bf16.msra.mxu0 %v301
    %4036 = vmatprep.subr.bf16.mxu0 0
    %4037 = vmatpush1.bf16.msra.mxu0 %v298
    %4038 = vmatprep.subr.bf16.mxu0 0
    %4039 = vmatpush1.bf16.msra.mxu0 %v295
    %4040 = vmatprep.subr.bf16.mxu0 0
    %4041 = vmatpush1.bf16.msra.mxu0 %v292
    %4042 = vmatprep.subr.bf16.mxu0 0
    %4043 = vmatpush1.bf16.msra.mxu0 %v289
    %4044 = vmatprep.subr.bf16.mxu0 0
    %4045 = vmatpush1.bf16.msra.mxu0 %v286
    %4046 = vmatprep.subr.bf16.mxu0 0
    %4047 = vmatpush1.bf16.msra.mxu0 %v283
    %4048 = vmatprep.subr.bf16.mxu0 0
    %4049 = vmatpush2.bf16.msra.mxu0 0
    %4050 = vmatprep.subr.bf16.mxu0 0
    %4051 = vmatpush2.bf16.msra.mxu0 0
    %4052 = vmatprep.subr.bf16.mxu0 0
    %4053 = vmatpush2.bf16.msra.mxu0 0
    %4054 = vmatprep.subr.bf16.mxu0 0
    %4055 = vmatpush2.bf16.msra.mxu0 0
    %4056 = vmatprep.subr.bf16.mxu0 0
    %4057 = vmatpush2.bf16.msra.mxu0 %v316
    %4058 = vmatprep.subr.bf16.mxu0 0
    %4059 = vmatpush2.bf16.msra.mxu0 %v313
    %4060 = vmatprep.subr.bf16.mxu0 0
    %4061 = vmatpush2.bf16.msra.mxu0 %v310
    %4062 = vmatprep.subr.bf16.mxu0 0
    %4063 = vmatpush2.bf16.msra.mxu0 %v307
    %4064 = vmatprep.mubr.bf16.mxu0 %v3882
    %4065 = vmatmul.mubr.bf16.gmra.mxu0 %v3878
    %v4066 = vpop.f32.mrf.mxu0
    %v4067 = vadd.f32 0.0, %v4066
    %v4068 = vpop.f32.mrf.mxu0
    %v4069 = vpop.f32.mrf.mxu0
    %v4070 = vpop.f32.mrf.mxu0
    %4071 = vdwg.mxu0
    %4072 = vmatprep.subr.bf16.mxu0 %v587
    %4073 = vmatpush1.bf16.msra.mxu0 %v586
    %4074 = vmatprep.subr.bf16.mxu0 %v584
    %4075 = vmatpush1.bf16.msra.mxu0 %v583
    %4076 = vmatprep.subr.bf16.mxu0 %v581
    %4077 = vmatpush1.bf16.msra.mxu0 %v580
    %4078 = vmatprep.subr.bf16.mxu0 %v578
    %4079 = vmatpush1.bf16.msra.mxu0 %v577
    %4080 = vmatprep.subr.bf16.mxu0 %v575
    %4081 = vmatpush1.bf16.msra.mxu0 %v574
    %4082 = vmatprep.subr.bf16.mxu0 %v572
    %4083 = vmatpush1.bf16.msra.mxu0 %v571
    %4084 = vmatprep.subr.bf16.mxu0 %v569
    %4085 = vmatpush1.bf16.msra.mxu0 %v568
    %4086 = vmatprep.subr.bf16.mxu0 %v566
    %4087 = vmatpush1.bf16.msra.mxu0 %v565
    %4088 = vmatprep.subr.bf16.mxu0 0
    %4089 = vmatpush2.bf16.msra.mxu0 0
    %4090 = vmatprep.subr.bf16.mxu0 0
    %4091 = vmatpush2.bf16.msra.mxu0 0
    %4092 = vmatprep.subr.bf16.mxu0 0
    %4093 = vmatpush2.bf16.msra.mxu0 0
    %4094 = vmatprep.subr.bf16.mxu0 0
    %4095 = vmatpush2.bf16.msra.mxu0 0
    %4096 = vmatprep.subr.bf16.mxu0 %v599
    %4097 = vmatpush2.bf16.msra.mxu0 %v598
    %4098 = vmatprep.subr.bf16.mxu0 %v596
    %4099 = vmatpush2.bf16.msra.mxu0 %v595
    %4100 = vmatprep.subr.bf16.mxu0 %v593
    %4101 = vmatpush2.bf16.msra.mxu0 %v592
    %4102 = vmatprep.subr.bf16.mxu0 %v590
    %4103 = vmatpush2.bf16.msra.mxu0 %v589
    %4104 = vmatprep.mubr.bf16.mxu0 %v3585
    %4105 = vmatmul.mubr.bf16.gmra.mxu0 %v3581
    %v4106 = vpop.f32.mrf.mxu0
    %v4107 = vadd.f32 %v4026, %v4106
    %v4108 = vpop.f32.mrf.mxu0
    %v4109 = vadd.f32 %v4028, %v4108
    %v4110 = vpop.f32.mrf.mxu0
    %v4111 = vpop.f32.mrf.mxu0
    %4112 = vdwg.mxu0
    %4113 = vmatprep.subr.bf16.mxu0 0
    %4114 = vmatpush1.bf16.msra.mxu0 %v588
    %4115 = vmatprep.subr.bf16.mxu0 0
    %4116 = vmatpush1.bf16.msra.mxu0 %v585
    %4117 = vmatprep.subr.bf16.mxu0 0
    %4118 = vmatpush1.bf16.msra.mxu0 %v582
    %4119 = vmatprep.subr.bf16.mxu0 0
    %4120 = vmatpush1.bf16.msra.mxu0 %v579
    %4121 = vmatprep.subr.bf16.mxu0 0
    %4122 = vmatpush1.bf16.msra.mxu0 %v576
    %4123 = vmatprep.subr.bf16.mxu0 0
    %4124 = vmatpush1.bf16.msra.mxu0 %v573
    %4125 = vmatprep.subr.bf16.mxu0 0
    %4126 = vmatpush1.bf16.msra.mxu0 %v570
    %4127 = vmatprep.subr.bf16.mxu0 0
    %4128 = vmatpush1.bf16.msra.mxu0 %v567
    %4129 = vmatprep.subr.bf16.mxu0 0
    %4130 = vmatpush2.bf16.msra.mxu0 0
    %4131 = vmatprep.subr.bf16.mxu0 0
    %4132 = vmatpush2.bf16.msra.mxu0 0
    %4133 = vmatprep.subr.bf16.mxu0 0
    %4134 = vmatpush2.bf16.msra.mxu0 0
    %4135 = vmatprep.subr.bf16.mxu0 0
    %4136 = vmatpush2.bf16.msra.mxu0 0
    %4137 = vmatprep.subr.bf16.mxu0 0
    %4138 = vmatpush2.bf16.msra.mxu0 %v600
    %4139 = vmatprep.subr.bf16.mxu0 0
    %4140 = vmatpush2.bf16.msra.mxu0 %v597
    %4141 = vmatprep.subr.bf16.mxu0 0
    %4142 = vmatpush2.bf16.msra.mxu0 %v594
    %4143 = vmatprep.subr.bf16.mxu0 0
    %4144 = vmatpush2.bf16.msra.mxu0 %v591
    %4145 = vmatprep.mubr.bf16.mxu0 %v3585
    %4146 = vmatmul.mubr.bf16.gmra.mxu0 %v3581
    %v4147 = vpop.f32.mrf.mxu0
    %v4148 = vadd.f32 %v4067, %v4147
    %v4149 = vpop.f32.mrf.mxu0
    %v4150 = vpop.f32.mrf.mxu0
    %v4151 = vpop.f32.mrf.mxu0
    %4152 = vdwg.mxu0
    %v4153 = vrot.slane %v3868, 5
    %v4154 = vrot.slane %v3870, 4
    %v4155 = vsel %vm154, %v4154, %v4153
    %v4156 = vrot.slane %v3869, 5
    %v4157 = vrot.slane %v3871, 4
    %v4158 = vsel %vm154, %v4157, %v4156
    %v4159 = vpack.c.b16 %v4155, %v4155
    %v4160 = vpack.c.b16 %v4158, %v4158
    %v4163 = vsel %vm353, %v4160, 0
    %4165 = vmatprep.subr.bf16.mxu0 %v937
    %4166 = vmatpush1.bf16.msra.mxu0 %v936
    %4167 = vmatprep.subr.bf16.mxu0 %v934
    %4168 = vmatpush1.bf16.msra.mxu0 %v933
    %4169 = vmatprep.subr.bf16.mxu0 %v931
    %4170 = vmatpush1.bf16.msra.mxu0 %v930
    %4171 = vmatprep.subr.bf16.mxu0 %v928
    %4172 = vmatpush1.bf16.msra.mxu0 %v927
    %4173 = vmatprep.subr.bf16.mxu0 %v925
    %4174 = vmatpush1.bf16.msra.mxu0 %v924
    %4175 = vmatprep.subr.bf16.mxu0 %v922
    %4176 = vmatpush1.bf16.msra.mxu0 %v921
    %4177 = vmatprep.subr.bf16.mxu0 %v919
    %4178 = vmatpush1.bf16.msra.mxu0 %v918
    %4179 = vmatprep.subr.bf16.mxu0 %v916
    %4180 = vmatpush1.bf16.msra.mxu0 %v915
    %4181 = vmatprep.subr.bf16.mxu0 0
    %4182 = vmatpush2.bf16.msra.mxu0 0
    %4183 = vmatprep.subr.bf16.mxu0 0
    %4184 = vmatpush2.bf16.msra.mxu0 0
    %4185 = vmatprep.subr.bf16.mxu0 0
    %4186 = vmatpush2.bf16.msra.mxu0 0
    %4187 = vmatprep.subr.bf16.mxu0 0
    %4188 = vmatpush2.bf16.msra.mxu0 0
    %4189 = vmatprep.subr.bf16.mxu0 %v949
    %4190 = vmatpush2.bf16.msra.mxu0 %v948
    %4191 = vmatprep.subr.bf16.mxu0 %v946
    %4192 = vmatpush2.bf16.msra.mxu0 %v945
    %4193 = vmatprep.subr.bf16.mxu0 %v943
    %4194 = vmatpush2.bf16.msra.mxu0 %v942
    %4195 = vmatprep.subr.bf16.mxu0 %v940
    %4196 = vmatpush2.bf16.msra.mxu0 %v939
    %4197 = vmatprep.mubr.bf16.mxu0 %v4163
    %4198 = vmatmul.mubr.bf16.gmra.mxu0 %v4159
    %v4199 = vpop.f32.mrf.mxu0
    %v4200 = vadd.f32 0.0, %v4199
    %v4201 = vpop.f32.mrf.mxu0
    %v4202 = vadd.f32 0.0, %v4201
    %v4203 = vpop.f32.mrf.mxu0
    %v4204 = vpop.f32.mrf.mxu0
    %4205 = vdwg.mxu0
    %4206 = vmatprep.subr.bf16.mxu0 0
    %4207 = vmatpush1.bf16.msra.mxu0 %v938
    %4208 = vmatprep.subr.bf16.mxu0 0
    %4209 = vmatpush1.bf16.msra.mxu0 %v935
    %4210 = vmatprep.subr.bf16.mxu0 0
    %4211 = vmatpush1.bf16.msra.mxu0 %v932
    %4212 = vmatprep.subr.bf16.mxu0 0
    %4213 = vmatpush1.bf16.msra.mxu0 %v929
    %4214 = vmatprep.subr.bf16.mxu0 0
    %4215 = vmatpush1.bf16.msra.mxu0 %v926
    %4216 = vmatprep.subr.bf16.mxu0 0
    %4217 = vmatpush1.bf16.msra.mxu0 %v923
    %4218 = vmatprep.subr.bf16.mxu0 0
    %4219 = vmatpush1.bf16.msra.mxu0 %v920
    %4220 = vmatprep.subr.bf16.mxu0 0
    %4221 = vmatpush1.bf16.msra.mxu0 %v917
    %4222 = vmatprep.subr.bf16.mxu0 0
    %4223 = vmatpush2.bf16.msra.mxu0 0
    %4224 = vmatprep.subr.bf16.mxu0 0
    %4225 = vmatpush2.bf16.msra.mxu0 0
    %4226 = vmatprep.subr.bf16.mxu0 0
    %4227 = vmatpush2.bf16.msra.mxu0 0
    %4228 = vmatprep.subr.bf16.mxu0 0
    %4229 = vmatpush2.bf16.msra.mxu0 0
    %4230 = vmatprep.subr.bf16.mxu0 0
    %4231 = vmatpush2.bf16.msra.mxu0 %v950
    %4232 = vmatprep.subr.bf16.mxu0 0
    %4233 = vmatpush2.bf16.msra.mxu0 %v947
    %4234 = vmatprep.subr.bf16.mxu0 0
    %4235 = vmatpush2.bf16.msra.mxu0 %v944
    %4236 = vmatprep.subr.bf16.mxu0 0
    %4237 = vmatpush2.bf16.msra.mxu0 %v941
    %4238 = vmatprep.mubr.bf16.mxu0 %v4163
    %4239 = vmatmul.mubr.bf16.gmra.mxu0 %v4159
    %v4240 = vpop.f32.mrf.mxu0
    %v4241 = vadd.f32 0.0, %v4240
    %v4242 = vpop.f32.mrf.mxu0
    %v4243 = vpop.f32.mrf.mxu0
    %v4244 = vpop.f32.mrf.mxu0
    %4245 = vdwg.mxu0
    %v4246 = vadd.f32 %v4107, %v4200
    %v4247 = vadd.f32 %v4109, %v4202
    %v4248 = vadd.f32 %v4148, %v4241
    %4251 = vrot.lane.b32.xlu0 %v4246, 44
    %v4252 = vpop.permute.xlu0 %4251
    %4253 = vrot.lane.b32.xlu0 %v4247, 44
    %v4254 = vpop.permute.xlu0 %4253
    %v4255 = vsel %vm1080, %v4252, %v4254
    %v4257 = vmax.f32 %v4246, %v4255
    %4259 = vrot.lane.b32.xlu0 %v4248, 44
    %v4260 = vpop.permute.xlu0 %4259
    %v4261 = vsel %vm1080, %v4254, %v4260
    %v4263 = vmax.f32 %v4247, %v4261
    %4265 = vrot.lane.b32.xlu0 %v4263, 88
    %v4266 = vpop.permute.xlu0 %4265
    %v4268 = vmax.f32 %v4257, %v4266
    %v4269 = vadd.f32 %v4268, %v1100
    %v4270 = vmax.f32 %v4269, 0.0
    %v4271 = vpack.c.bf16 %v4270, %v4270
    %4272 = vmatprep.subr.bf16.mxu0 %v303
    %4273 = vmatpush1.bf16.msra.mxu0 %v302
    %4274 = vmatprep.subr.bf16.mxu0 %v300
    %4275 = vmatpush1.bf16.msra.mxu0 %v299
    %4276 = vmatprep.subr.bf16.mxu0 %v297
    %4277 = vmatpush1.bf16.msra.mxu0 %v296
    %4278 = vmatprep.subr.bf16.mxu0 %v294
    %4279 = vmatpush1.bf16.msra.mxu0 %v293
    %4280 = vmatprep.subr.bf16.mxu0 %v291
    %4281 = vmatpush1.bf16.msra.mxu0 %v290
    %4282 = vmatprep.subr.bf16.mxu0 %v288
    %4283 = vmatpush1.bf16.msra.mxu0 %v287
    %4284 = vmatprep.subr.bf16.mxu0 %v285
    %4285 = vmatpush1.bf16.msra.mxu0 %v284
    %4286 = vmatprep.subr.bf16.mxu0 %v282
    %4287 = vmatpush1.bf16.msra.mxu0 %v281
    %4288 = vmatprep.subr.bf16.mxu0 0
    %4289 = vmatpush2.bf16.msra.mxu0 0
    %4290 = vmatprep.subr.bf16.mxu0 0
    %4291 = vmatpush2.bf16.msra.mxu0 0
    %4292 = vmatprep.subr.bf16.mxu0 0
    %4293 = vmatpush2.bf16.msra.mxu0 0
    %4294 = vmatprep.subr.bf16.mxu0 0
    %4295 = vmatpush2.bf16.msra.mxu0 0
    %4296 = vmatprep.subr.bf16.mxu0 %v315
    %4297 = vmatpush2.bf16.msra.mxu0 %v314
    %4298 = vmatprep.subr.bf16.mxu0 %v312
    %4299 = vmatpush2.bf16.msra.mxu0 %v311
    %4300 = vmatprep.subr.bf16.mxu0 %v309
    %4301 = vmatpush2.bf16.msra.mxu0 %v308
    %4302 = vmatprep.subr.bf16.mxu0 %v306
    %4303 = vmatpush2.bf16.msra.mxu0 %v305
    %4304 = vmatprep.mubr.bf16.mxu0 %v4163
    %4305 = vmatmul.mubr.bf16.gmra.mxu0 %v4159
    %v4306 = vpop.f32.mrf.mxu0
    %v4307 = vadd.f32 0.0, %v4306
    %v4308 = vpop.f32.mrf.mxu0
    %v4309 = vadd.f32 0.0, %v4308
    %v4310 = vpop.f32.mrf.mxu0
    %v4311 = vpop.f32.mrf.mxu0
    %4312 = vdwg.mxu0
    %4313 = vmatprep.subr.bf16.mxu0 0
    %4314 = vmatpush1.bf16.msra.mxu0 %v304
    %4315 = vmatprep.subr.bf16.mxu0 0
    %4316 = vmatpush1.bf16.msra.mxu0 %v301
    %4317 = vmatprep.subr.bf16.mxu0 0
    %4318 = vmatpush1.bf16.msra.mxu0 %v298
    %4319 = vmatprep.subr.bf16.mxu0 0
    %4320 = vmatpush1.bf16.msra.mxu0 %v295
    %4321 = vmatprep.subr.bf16.mxu0 0
    %4322 = vmatpush1.bf16.msra.mxu0 %v292
    %4323 = vmatprep.subr.bf16.mxu0 0
    %4324 = vmatpush1.bf16.msra.mxu0 %v289
    %4325 = vmatprep.subr.bf16.mxu0 0
    %4326 = vmatpush1.bf16.msra.mxu0 %v286
    %4327 = vmatprep.subr.bf16.mxu0 0
    %4328 = vmatpush1.bf16.msra.mxu0 %v283
    %4329 = vmatprep.subr.bf16.mxu0 0
    %4330 = vmatpush2.bf16.msra.mxu0 0
    %4331 = vmatprep.subr.bf16.mxu0 0
    %4332 = vmatpush2.bf16.msra.mxu0 0
    %4333 = vmatprep.subr.bf16.mxu0 0
    %4334 = vmatpush2.bf16.msra.mxu0 0
    %4335 = vmatprep.subr.bf16.mxu0 0
    %4336 = vmatpush2.bf16.msra.mxu0 0
    %4337 = vmatprep.subr.bf16.mxu0 0
    %4338 = vmatpush2.bf16.msra.mxu0 %v316
    %4339 = vmatprep.subr.bf16.mxu0 0
    %4340 = vmatpush2.bf16.msra.mxu0 %v313
    %4341 = vmatprep.subr.bf16.mxu0 0
    %4342 = vmatpush2.bf16.msra.mxu0 %v310
    %4343 = vmatprep.subr.bf16.mxu0 0
    %4344 = vmatpush2.bf16.msra.mxu0 %v307
    %4345 = vmatprep.mubr.bf16.mxu0 %v4163
    %4346 = vmatmul.mubr.bf16.gmra.mxu0 %v4159
    %v4347 = vpop.f32.mrf.mxu0
    %v4348 = vadd.f32 0.0, %v4347
    %v4349 = vpop.f32.mrf.mxu0
    %v4350 = vpop.f32.mrf.mxu0
    %v4351 = vpop.f32.mrf.mxu0
    %4352 = vdwg.mxu0
    %4353 = vmatprep.subr.bf16.mxu0 %v587
    %4354 = vmatpush1.bf16.msra.mxu0 %v586
    %4355 = vmatprep.subr.bf16.mxu0 %v584
    %4356 = vmatpush1.bf16.msra.mxu0 %v583
    %4357 = vmatprep.subr.bf16.mxu0 %v581
    %4358 = vmatpush1.bf16.msra.mxu0 %v580
    %4359 = vmatprep.subr.bf16.mxu0 %v578
    %4360 = vmatpush1.bf16.msra.mxu0 %v577
    %4361 = vmatprep.subr.bf16.mxu0 %v575
    %4362 = vmatpush1.bf16.msra.mxu0 %v574
    %4363 = vmatprep.subr.bf16.mxu0 %v572
    %4364 = vmatpush1.bf16.msra.mxu0 %v571
    %4365 = vmatprep.subr.bf16.mxu0 %v569
    %4366 = vmatpush1.bf16.msra.mxu0 %v568
    %4367 = vmatprep.subr.bf16.mxu0 %v566
    %4368 = vmatpush1.bf16.msra.mxu0 %v565
    %4369 = vmatprep.subr.bf16.mxu0 0
    %4370 = vmatpush2.bf16.msra.mxu0 0
    %4371 = vmatprep.subr.bf16.mxu0 0
    %4372 = vmatpush2.bf16.msra.mxu0 0
    %4373 = vmatprep.subr.bf16.mxu0 0
    %4374 = vmatpush2.bf16.msra.mxu0 0
    %4375 = vmatprep.subr.bf16.mxu0 0
    %4376 = vmatpush2.bf16.msra.mxu0 0
    %4377 = vmatprep.subr.bf16.mxu0 %v599
    %4378 = vmatpush2.bf16.msra.mxu0 %v598
    %4379 = vmatprep.subr.bf16.mxu0 %v596
    %4380 = vmatpush2.bf16.msra.mxu0 %v595
    %4381 = vmatprep.subr.bf16.mxu0 %v593
    %4382 = vmatpush2.bf16.msra.mxu0 %v592
    %4383 = vmatprep.subr.bf16.mxu0 %v590
    %4384 = vmatpush2.bf16.msra.mxu0 %v589
    %4385 = vmatprep.mubr.bf16.mxu0 %v3882
    %4386 = vmatmul.mubr.bf16.gmra.mxu0 %v3878
    %v4387 = vpop.f32.mrf.mxu0
    %v4388 = vadd.f32 %v4307, %v4387
    %v4389 = vpop.f32.mrf.mxu0
    %v4390 = vadd.f32 %v4309, %v4389
    %v4391 = vpop.f32.mrf.mxu0
    %v4392 = vpop.f32.mrf.mxu0
    %4393 = vdwg.mxu0
    %4394 = vmatprep.subr.bf16.mxu0 0
    %4395 = vmatpush1.bf16.msra.mxu0 %v588
    %4396 = vmatprep.subr.bf16.mxu0 0
    %4397 = vmatpush1.bf16.msra.mxu0 %v585
    %4398 = vmatprep.subr.bf16.mxu0 0
    %4399 = vmatpush1.bf16.msra.mxu0 %v582
    %4400 = vmatprep.subr.bf16.mxu0 0
    %4401 = vmatpush1.bf16.msra.mxu0 %v579
    %4402 = vmatprep.subr.bf16.mxu0 0
    %4403 = vmatpush1.bf16.msra.mxu0 %v576
    %4404 = vmatprep.subr.bf16.mxu0 0
    %4405 = vmatpush1.bf16.msra.mxu0 %v573
    %4406 = vmatprep.subr.bf16.mxu0 0
    %4407 = vmatpush1.bf16.msra.mxu0 %v570
    %4408 = vmatprep.subr.bf16.mxu0 0
    %4409 = vmatpush1.bf16.msra.mxu0 %v567
    %4410 = vmatprep.subr.bf16.mxu0 0
    %4411 = vmatpush2.bf16.msra.mxu0 0
    %4412 = vmatprep.subr.bf16.mxu0 0
    %4413 = vmatpush2.bf16.msra.mxu0 0
    %4414 = vmatprep.subr.bf16.mxu0 0
    %4415 = vmatpush2.bf16.msra.mxu0 0
    %4416 = vmatprep.subr.bf16.mxu0 0
    %4417 = vmatpush2.bf16.msra.mxu0 0
    %4418 = vmatprep.subr.bf16.mxu0 0
    %4419 = vmatpush2.bf16.msra.mxu0 %v600
    %4420 = vmatprep.subr.bf16.mxu0 0
    %4421 = vmatpush2.bf16.msra.mxu0 %v597
    %4422 = vmatprep.subr.bf16.mxu0 0
    %4423 = vmatpush2.bf16.msra.mxu0 %v594
    %4424 = vmatprep.subr.bf16.mxu0 0
    %4425 = vmatpush2.bf16.msra.mxu0 %v591
    %4426 = vmatprep.mubr.bf16.mxu0 %v3882
    %4427 = vmatmul.mubr.bf16.gmra.mxu0 %v3878
    %v4428 = vpop.f32.mrf.mxu0
    %v4429 = vadd.f32 %v4348, %v4428
    %v4430 = vpop.f32.mrf.mxu0
    %v4431 = vpop.f32.mrf.mxu0
    %v4432 = vpop.f32.mrf.mxu0
    %4433 = vdwg.mxu0
    %v4434 = vld [vmem:[%s0 + $0x8] sm:$0x88]
    %v4435 = vld [vmem:[%s0 + $0x18] sm:$0x88]
    %v4438 = vunpack.c.l.b16 %v4434
    %v4439 = vunpack.c.h.b16 %v4434
    %v4440 = vunpack.c.l.b16 %v4435
    %v4441 = vunpack.c.h.b16 %v4435
    %v4442 = vpack.c.b16 %v4438, %v4438
    %v4443 = vpack.c.b16 %v4439, %v4439
    %v4444 = vpack.c.b16 %v4440, %v4440
    %v4445 = vpack.c.b16 %v4441, %v4441
    %v4446 = vunpack.c.l.b16 %v4442
    %v4447 = vunpack.c.l.b16 %v4443
    %v4448 = vunpack.c.l.b16 %v4444
    %v4449 = vunpack.c.l.b16 %v4445
    %v4450 = vrot.slane %v4446, 6
    %v4451 = vrot.slane %v4448, 5
    %v4452 = vsel %vm154, %v4451, %v4450
    %v4453 = vrot.slane %v4447, 6
    %v4454 = vrot.slane %v4449, 5
    %v4455 = vsel %vm154, %v4454, %v4453
    %v4456 = vpack.c.b16 %v4452, %v4452
    %v4457 = vpack.c.b16 %v4455, %v4455
    %v4460 = vsel %vm353, %v4457, 0
    %4462 = vmatprep.subr.bf16.mxu0 %v937
    %4463 = vmatpush1.bf16.msra.mxu0 %v936
    %4464 = vmatprep.subr.bf16.mxu0 %v934
    %4465 = vmatpush1.bf16.msra.mxu0 %v933
    %4466 = vmatprep.subr.bf16.mxu0 %v931
    %4467 = vmatpush1.bf16.msra.mxu0 %v930
    %4468 = vmatprep.subr.bf16.mxu0 %v928
    %4469 = vmatpush1.bf16.msra.mxu0 %v927
    %4470 = vmatprep.subr.bf16.mxu0 %v925
    %4471 = vmatpush1.bf16.msra.mxu0 %v924
    %4472 = vmatprep.subr.bf16.mxu0 %v922
    %4473 = vmatpush1.bf16.msra.mxu0 %v921
    %4474 = vmatprep.subr.bf16.mxu0 %v919
    %4475 = vmatpush1.bf16.msra.mxu0 %v918
    %4476 = vmatprep.subr.bf16.mxu0 %v916
    %4477 = vmatpush1.bf16.msra.mxu0 %v915
    %4478 = vmatprep.subr.bf16.mxu0 0
    %4479 = vmatpush2.bf16.msra.mxu0 0
    %4480 = vmatprep.subr.bf16.mxu0 0
    %4481 = vmatpush2.bf16.msra.mxu0 0
    %4482 = vmatprep.subr.bf16.mxu0 0
    %4483 = vmatpush2.bf16.msra.mxu0 0
    %4484 = vmatprep.subr.bf16.mxu0 0
    %4485 = vmatpush2.bf16.msra.mxu0 0
    %4486 = vmatprep.subr.bf16.mxu0 %v949
    %4487 = vmatpush2.bf16.msra.mxu0 %v948
    %4488 = vmatprep.subr.bf16.mxu0 %v946
    %4489 = vmatpush2.bf16.msra.mxu0 %v945
    %4490 = vmatprep.subr.bf16.mxu0 %v943
    %4491 = vmatpush2.bf16.msra.mxu0 %v942
    %4492 = vmatprep.subr.bf16.mxu0 %v940
    %4493 = vmatpush2.bf16.msra.mxu0 %v939
    %4494 = vmatprep.mubr.bf16.mxu0 %v4460
    %4495 = vmatmul.mubr.bf16.gmra.mxu0 %v4456
    %v4496 = vpop.f32.mrf.mxu0
    %v4497 = vadd.f32 0.0, %v4496
    %v4498 = vpop.f32.mrf.mxu0
    %v4499 = vadd.f32 0.0, %v4498
    %v4500 = vpop.f32.mrf.mxu0
    %v4501 = vpop.f32.mrf.mxu0
    %4502 = vdwg.mxu0
    %4503 = vmatprep.subr.bf16.mxu0 0
    %4504 = vmatpush1.bf16.msra.mxu0 %v938
    %4505 = vmatprep.subr.bf16.mxu0 0
    %4506 = vmatpush1.bf16.msra.mxu0 %v935
    %4507 = vmatprep.subr.bf16.mxu0 0
    %4508 = vmatpush1.bf16.msra.mxu0 %v932
    %4509 = vmatprep.subr.bf16.mxu0 0
    %4510 = vmatpush1.bf16.msra.mxu0 %v929
    %4511 = vmatprep.subr.bf16.mxu0 0
    %4512 = vmatpush1.bf16.msra.mxu0 %v926
    %4513 = vmatprep.subr.bf16.mxu0 0
    %4514 = vmatpush1.bf16.msra.mxu0 %v923
    %4515 = vmatprep.subr.bf16.mxu0 0
    %4516 = vmatpush1.bf16.msra.mxu0 %v920
    %4517 = vmatprep.subr.bf16.mxu0 0
    %4518 = vmatpush1.bf16.msra.mxu0 %v917
    %4519 = vmatprep.subr.bf16.mxu0 0
    %4520 = vmatpush2.bf16.msra.mxu0 0
    %4521 = vmatprep.subr.bf16.mxu0 0
    %4522 = vmatpush2.bf16.msra.mxu0 0
    %4523 = vmatprep.subr.bf16.mxu0 0
    %4524 = vmatpush2.bf16.msra.mxu0 0
    %4525 = vmatprep.subr.bf16.mxu0 0
    %4526 = vmatpush2.bf16.msra.mxu0 0
    %4527 = vmatprep.subr.bf16.mxu0 0
    %4528 = vmatpush2.bf16.msra.mxu0 %v950
    %4529 = vmatprep.subr.bf16.mxu0 0
    %4530 = vmatpush2.bf16.msra.mxu0 %v947
    %4531 = vmatprep.subr.bf16.mxu0 0
    %4532 = vmatpush2.bf16.msra.mxu0 %v944
    %4533 = vmatprep.subr.bf16.mxu0 0
    %4534 = vmatpush2.bf16.msra.mxu0 %v941
    %4535 = vmatprep.mubr.bf16.mxu0 %v4460
    %4536 = vmatmul.mubr.bf16.gmra.mxu0 %v4456
    %v4537 = vpop.f32.mrf.mxu0
    %v4538 = vadd.f32 0.0, %v4537
    %v4539 = vpop.f32.mrf.mxu0
    %v4540 = vpop.f32.mrf.mxu0
    %v4541 = vpop.f32.mrf.mxu0
    %4542 = vdwg.mxu0
    %v4543 = vadd.f32 %v4388, %v4497
    %v4544 = vadd.f32 %v4390, %v4499
    %v4545 = vadd.f32 %v4429, %v4538
    %4548 = vrot.lane.b32.xlu0 %v4543, 44
    %v4549 = vpop.permute.xlu0 %4548
    %4550 = vrot.lane.b32.xlu0 %v4544, 44
    %v4551 = vpop.permute.xlu0 %4550
    %v4552 = vsel %vm1080, %v4549, %v4551
    %v4554 = vmax.f32 %v4543, %v4552
    %4556 = vrot.lane.b32.xlu0 %v4545, 44
    %v4557 = vpop.permute.xlu0 %4556
    %v4558 = vsel %vm1080, %v4551, %v4557
    %v4560 = vmax.f32 %v4544, %v4558
    %4562 = vrot.lane.b32.xlu0 %v4560, 88
    %v4563 = vpop.permute.xlu0 %4562
    %v4565 = vmax.f32 %v4554, %v4563
    %v4566 = vadd.f32 %v4565, %v1100
    %v4567 = vmax.f32 %v4566, 0.0
    %v4568 = vpack.c.bf16 %v4567, %v4567
    %4569 = vmatprep.subr.bf16.mxu0 %v303
    %4570 = vmatpush1.bf16.msra.mxu0 %v302
    %4571 = vmatprep.subr.bf16.mxu0 %v300
    %4572 = vmatpush1.bf16.msra.mxu0 %v299
    %4573 = vmatprep.subr.bf16.mxu0 %v297
    %4574 = vmatpush1.bf16.msra.mxu0 %v296
    %4575 = vmatprep.subr.bf16.mxu0 %v294
    %4576 = vmatpush1.bf16.msra.mxu0 %v293
    %4577 = vmatprep.subr.bf16.mxu0 %v291
    %4578 = vmatpush1.bf16.msra.mxu0 %v290
    %4579 = vmatprep.subr.bf16.mxu0 %v288
    %4580 = vmatpush1.bf16.msra.mxu0 %v287
    %4581 = vmatprep.subr.bf16.mxu0 %v285
    %4582 = vmatpush1.bf16.msra.mxu0 %v284
    %4583 = vmatprep.subr.bf16.mxu0 %v282
    %4584 = vmatpush1.bf16.msra.mxu0 %v281
    %4585 = vmatprep.subr.bf16.mxu0 0
    %4586 = vmatpush2.bf16.msra.mxu0 0
    %4587 = vmatprep.subr.bf16.mxu0 0
    %4588 = vmatpush2.bf16.msra.mxu0 0
    %4589 = vmatprep.subr.bf16.mxu0 0
    %4590 = vmatpush2.bf16.msra.mxu0 0
    %4591 = vmatprep.subr.bf16.mxu0 0
    %4592 = vmatpush2.bf16.msra.mxu0 0
    %4593 = vmatprep.subr.bf16.mxu0 %v315
    %4594 = vmatpush2.bf16.msra.mxu0 %v314
    %4595 = vmatprep.subr.bf16.mxu0 %v312
    %4596 = vmatpush2.bf16.msra.mxu0 %v311
    %4597 = vmatprep.subr.bf16.mxu0 %v309
    %4598 = vmatpush2.bf16.msra.mxu0 %v308
    %4599 = vmatprep.subr.bf16.mxu0 %v306
    %4600 = vmatpush2.bf16.msra.mxu0 %v305
    %4601 = vmatprep.mubr.bf16.mxu0 %v4460
    %4602 = vmatmul.mubr.bf16.gmra.mxu0 %v4456
    %v4603 = vpop.f32.mrf.mxu0
    %v4604 = vadd.f32 0.0, %v4603
    %v4605 = vpop.f32.mrf.mxu0
    %v4606 = vadd.f32 0.0, %v4605
    %v4607 = vpop.f32.mrf.mxu0
    %v4608 = vpop.f32.mrf.mxu0
    %4609 = vdwg.mxu0
    %4610 = vmatprep.subr.bf16.mxu0 0
    %4611 = vmatpush1.bf16.msra.mxu0 %v304
    %4612 = vmatprep.subr.bf16.mxu0 0
    %4613 = vmatpush1.bf16.msra.mxu0 %v301
    %4614 = vmatprep.subr.bf16.mxu0 0
    %4615 = vmatpush1.bf16.msra.mxu0 %v298
    %4616 = vmatprep.subr.bf16.mxu0 0
    %4617 = vmatpush1.bf16.msra.mxu0 %v295
    %4618 = vmatprep.subr.bf16.mxu0 0
    %4619 = vmatpush1.bf16.msra.mxu0 %v292
    %4620 = vmatprep.subr.bf16.mxu0 0
    %4621 = vmatpush1.bf16.msra.mxu0 %v289
    %4622 = vmatprep.subr.bf16.mxu0 0
    %4623 = vmatpush1.bf16.msra.mxu0 %v286
    %4624 = vmatprep.subr.bf16.mxu0 0
    %4625 = vmatpush1.bf16.msra.mxu0 %v283
    %4626 = vmatprep.subr.bf16.mxu0 0
    %4627 = vmatpush2.bf16.msra.mxu0 0
    %4628 = vmatprep.subr.bf16.mxu0 0
    %4629 = vmatpush2.bf16.msra.mxu0 0
    %4630 = vmatprep.subr.bf16.mxu0 0
    %4631 = vmatpush2.bf16.msra.mxu0 0
    %4632 = vmatprep.subr.bf16.mxu0 0
    %4633 = vmatpush2.bf16.msra.mxu0 0
    %4634 = vmatprep.subr.bf16.mxu0 0
    %4635 = vmatpush2.bf16.msra.mxu0 %v316
    %4636 = vmatprep.subr.bf16.mxu0 0
    %4637 = vmatpush2.bf16.msra.mxu0 %v313
    %4638 = vmatprep.subr.bf16.mxu0 0
    %4639 = vmatpush2.bf16.msra.mxu0 %v310
    %4640 = vmatprep.subr.bf16.mxu0 0
    %4641 = vmatpush2.bf16.msra.mxu0 %v307
    %4642 = vmatprep.mubr.bf16.mxu0 %v4460
    %4643 = vmatmul.mubr.bf16.gmra.mxu0 %v4456
    %v4644 = vpop.f32.mrf.mxu0
    %v4645 = vadd.f32 0.0, %v4644
    %v4646 = vpop.f32.mrf.mxu0
    %v4647 = vpop.f32.mrf.mxu0
    %v4648 = vpop.f32.mrf.mxu0
    %4649 = vdwg.mxu0
    %4650 = vmatprep.subr.bf16.mxu0 %v587
    %4651 = vmatpush1.bf16.msra.mxu0 %v586
    %4652 = vmatprep.subr.bf16.mxu0 %v584
    %4653 = vmatpush1.bf16.msra.mxu0 %v583
    %4654 = vmatprep.subr.bf16.mxu0 %v581
    %4655 = vmatpush1.bf16.msra.mxu0 %v580
    %4656 = vmatprep.subr.bf16.mxu0 %v578
    %4657 = vmatpush1.bf16.msra.mxu0 %v577
    %4658 = vmatprep.subr.bf16.mxu0 %v575
    %4659 = vmatpush1.bf16.msra.mxu0 %v574
    %4660 = vmatprep.subr.bf16.mxu0 %v572
    %4661 = vmatpush1.bf16.msra.mxu0 %v571
    %4662 = vmatprep.subr.bf16.mxu0 %v569
    %4663 = vmatpush1.bf16.msra.mxu0 %v568
    %4664 = vmatprep.subr.bf16.mxu0 %v566
    %4665 = vmatpush1.bf16.msra.mxu0 %v565
    %4666 = vmatprep.subr.bf16.mxu0 0
    %4667 = vmatpush2.bf16.msra.mxu0 0
    %4668 = vmatprep.subr.bf16.mxu0 0
    %4669 = vmatpush2.bf16.msra.mxu0 0
    %4670 = vmatprep.subr.bf16.mxu0 0
    %4671 = vmatpush2.bf16.msra.mxu0 0
    %4672 = vmatprep.subr.bf16.mxu0 0
    %4673 = vmatpush2.bf16.msra.mxu0 0
    %4674 = vmatprep.subr.bf16.mxu0 %v599
    %4675 = vmatpush2.bf16.msra.mxu0 %v598
    %4676 = vmatprep.subr.bf16.mxu0 %v596
    %4677 = vmatpush2.bf16.msra.mxu0 %v595
    %4678 = vmatprep.subr.bf16.mxu0 %v593
    %4679 = vmatpush2.bf16.msra.mxu0 %v592
    %4680 = vmatprep.subr.bf16.mxu0 %v590
    %4681 = vmatpush2.bf16.msra.mxu0 %v589
    %4682 = vmatprep.mubr.bf16.mxu0 %v4163
    %4683 = vmatmul.mubr.bf16.gmra.mxu0 %v4159
    %v4684 = vpop.f32.mrf.mxu0
    %v4685 = vadd.f32 %v4604, %v4684
    %v4686 = vpop.f32.mrf.mxu0
    %v4687 = vadd.f32 %v4606, %v4686
    %v4688 = vpop.f32.mrf.mxu0
    %v4689 = vpop.f32.mrf.mxu0
    %4690 = vdwg.mxu0
    %4691 = vmatprep.subr.bf16.mxu0 0
    %4692 = vmatpush1.bf16.msra.mxu0 %v588
    %4693 = vmatprep.subr.bf16.mxu0 0
    %4694 = vmatpush1.bf16.msra.mxu0 %v585
    %4695 = vmatprep.subr.bf16.mxu0 0
    %4696 = vmatpush1.bf16.msra.mxu0 %v582
    %4697 = vmatprep.subr.bf16.mxu0 0
    %4698 = vmatpush1.bf16.msra.mxu0 %v579
    %4699 = vmatprep.subr.bf16.mxu0 0
    %4700 = vmatpush1.bf16.msra.mxu0 %v576
    %4701 = vmatprep.subr.bf16.mxu0 0
    %4702 = vmatpush1.bf16.msra.mxu0 %v573
    %4703 = vmatprep.subr.bf16.mxu0 0
    %4704 = vmatpush1.bf16.msra.mxu0 %v570
    %4705 = vmatprep.subr.bf16.mxu0 0
    %4706 = vmatpush1.bf16.msra.mxu0 %v567
    %4707 = vmatprep.subr.bf16.mxu0 0
    %4708 = vmatpush2.bf16.msra.mxu0 0
    %4709 = vmatprep.subr.bf16.mxu0 0
    %4710 = vmatpush2.bf16.msra.mxu0 0
    %4711 = vmatprep.subr.bf16.mxu0 0
    %4712 = vmatpush2.bf16.msra.mxu0 0
    %4713 = vmatprep.subr.bf16.mxu0 0
    %4714 = vmatpush2.bf16.msra.mxu0 0
    %4715 = vmatprep.subr.bf16.mxu0 0
    %4716 = vmatpush2.bf16.msra.mxu0 %v600
    %4717 = vmatprep.subr.bf16.mxu0 0
    %4718 = vmatpush2.bf16.msra.mxu0 %v597
    %4719 = vmatprep.subr.bf16.mxu0 0
    %4720 = vmatpush2.bf16.msra.mxu0 %v594
    %4721 = vmatprep.subr.bf16.mxu0 0
    %4722 = vmatpush2.bf16.msra.mxu0 %v591
    %4723 = vmatprep.mubr.bf16.mxu0 %v4163
    %4724 = vmatmul.mubr.bf16.gmra.mxu0 %v4159
    %v4725 = vpop.f32.mrf.mxu0
    %v4726 = vadd.f32 %v4645, %v4725
    %v4727 = vpop.f32.mrf.mxu0
    %v4728 = vpop.f32.mrf.mxu0
    %v4729 = vpop.f32.mrf.mxu0
    %4730 = vdwg.mxu0
    %v4731 = vrot.slane %v4446, 7
    %v4732 = vrot.slane %v4448, 6
    %v4733 = vsel %vm154, %v4732, %v4731
    %v4734 = vrot.slane %v4447, 7
    %v4735 = vrot.slane %v4449, 6
    %v4736 = vsel %vm154, %v4735, %v4734
    %v4737 = vpack.c.b16 %v4733, %v4733
    %v4738 = vpack.c.b16 %v4736, %v4736
    %v4741 = vsel %vm353, %v4738, 0
    %4743 = vmatprep.subr.bf16.mxu0 %v937
    %4744 = vmatpush1.bf16.msra.mxu0 %v936
    %4745 = vmatprep.subr.bf16.mxu0 %v934
    %4746 = vmatpush1.bf16.msra.mxu0 %v933
    %4747 = vmatprep.subr.bf16.mxu0 %v931
    %4748 = vmatpush1.bf16.msra.mxu0 %v930
    %4749 = vmatprep.subr.bf16.mxu0 %v928
    %4750 = vmatpush1.bf16.msra.mxu0 %v927
    %4751 = vmatprep.subr.bf16.mxu0 %v925
    %4752 = vmatpush1.bf16.msra.mxu0 %v924
    %4753 = vmatprep.subr.bf16.mxu0 %v922
    %4754 = vmatpush1.bf16.msra.mxu0 %v921
    %4755 = vmatprep.subr.bf16.mxu0 %v919
    %4756 = vmatpush1.bf16.msra.mxu0 %v918
    %4757 = vmatprep.subr.bf16.mxu0 %v916
    %4758 = vmatpush1.bf16.msra.mxu0 %v915
    %4759 = vmatprep.subr.bf16.mxu0 0
    %4760 = vmatpush2.bf16.msra.mxu0 0
    %4761 = vmatprep.subr.bf16.mxu0 0
    %4762 = vmatpush2.bf16.msra.mxu0 0
    %4763 = vmatprep.subr.bf16.mxu0 0
    %4764 = vmatpush2.bf16.msra.mxu0 0
    %4765 = vmatprep.subr.bf16.mxu0 0
    %4766 = vmatpush2.bf16.msra.mxu0 0
    %4767 = vmatprep.subr.bf16.mxu0 %v949
    %4768 = vmatpush2.bf16.msra.mxu0 %v948
    %4769 = vmatprep.subr.bf16.mxu0 %v946
    %4770 = vmatpush2.bf16.msra.mxu0 %v945
    %4771 = vmatprep.subr.bf16.mxu0 %v943
    %4772 = vmatpush2.bf16.msra.mxu0 %v942
    %4773 = vmatprep.subr.bf16.mxu0 %v940
    %4774 = vmatpush2.bf16.msra.mxu0 %v939
    %4775 = vmatprep.mubr.bf16.mxu0 %v4741
    %4776 = vmatmul.mubr.bf16.gmra.mxu0 %v4737
    %v4777 = vpop.f32.mrf.mxu0
    %v4778 = vadd.f32 0.0, %v4777
    %v4779 = vpop.f32.mrf.mxu0
    %v4780 = vadd.f32 0.0, %v4779
    %v4781 = vpop.f32.mrf.mxu0
    %v4782 = vpop.f32.mrf.mxu0
    %4783 = vdwg.mxu0
    %4784 = vmatprep.subr.bf16.mxu0 0
    %4785 = vmatpush1.bf16.msra.mxu0 %v938
    %4786 = vmatprep.subr.bf16.mxu0 0
    %4787 = vmatpush1.bf16.msra.mxu0 %v935
    %4788 = vmatprep.subr.bf16.mxu0 0
    %4789 = vmatpush1.bf16.msra.mxu0 %v932
    %4790 = vmatprep.subr.bf16.mxu0 0
    %4791 = vmatpush1.bf16.msra.mxu0 %v929
    %4792 = vmatprep.subr.bf16.mxu0 0
    %4793 = vmatpush1.bf16.msra.mxu0 %v926
    %4794 = vmatprep.subr.bf16.mxu0 0
    %4795 = vmatpush1.bf16.msra.mxu0 %v923
    %4796 = vmatprep.subr.bf16.mxu0 0
    %4797 = vmatpush1.bf16.msra.mxu0 %v920
    %4798 = vmatprep.subr.bf16.mxu0 0
    %4799 = vmatpush1.bf16.msra.mxu0 %v917
    %4800 = vmatprep.subr.bf16.mxu0 0
    %4801 = vmatpush2.bf16.msra.mxu0 0
    %4802 = vmatprep.subr.bf16.mxu0 0
    %4803 = vmatpush2.bf16.msra.mxu0 0
    %4804 = vmatprep.subr.bf16.mxu0 0
    %4805 = vmatpush2.bf16.msra.mxu0 0
    %4806 = vmatprep.subr.bf16.mxu0 0
    %4807 = vmatpush2.bf16.msra.mxu0 0
    %4808 = vmatprep.subr.bf16.mxu0 0
    %4809 = vmatpush2.bf16.msra.mxu0 %v950
    %4810 = vmatprep.subr.bf16.mxu0 0
    %4811 = vmatpush2.bf16.msra.mxu0 %v947
    %4812 = vmatprep.subr.bf16.mxu0 0
    %4813 = vmatpush2.bf16.msra.mxu0 %v944
    %4814 = vmatprep.subr.bf16.mxu0 0
    %4815 = vmatpush2.bf16.msra.mxu0 %v941
    %4816 = vmatprep.mubr.bf16.mxu0 %v4741
    %4817 = vmatmul.mubr.bf16.gmra.mxu0 %v4737
    %v4818 = vpop.f32.mrf.mxu0
    %v4819 = vadd.f32 0.0, %v4818
    %v4820 = vpop.f32.mrf.mxu0
    %v4821 = vpop.f32.mrf.mxu0
    %v4822 = vpop.f32.mrf.mxu0
    %4823 = vdwg.mxu0
    %v4824 = vadd.f32 %v4685, %v4778
    %v4825 = vadd.f32 %v4687, %v4780
    %v4826 = vadd.f32 %v4726, %v4819
    %4829 = vrot.lane.b32.xlu0 %v4824, 44
    %v4830 = vpop.permute.xlu0 %4829
    %4831 = vrot.lane.b32.xlu0 %v4825, 44
    %v4832 = vpop.permute.xlu0 %4831
    %v4833 = vsel %vm1080, %v4830, %v4832
    %v4835 = vmax.f32 %v4824, %v4833
    %4837 = vrot.lane.b32.xlu0 %v4826, 44
    %v4838 = vpop.permute.xlu0 %4837
    %v4839 = vsel %vm1080, %v4832, %v4838
    %v4841 = vmax.f32 %v4825, %v4839
    %4843 = vrot.lane.b32.xlu0 %v4841, 88
    %v4844 = vpop.permute.xlu0 %4843
    %v4846 = vmax.f32 %v4835, %v4844
    %v4847 = vadd.f32 %v4846, %v1100
    %v4848 = vmax.f32 %v4847, 0.0
    %v4849 = vpack.c.bf16 %v4848, %v4848
    %v4850 = vld [vmem:[%s3] sm:$0xff]
    %v4851 = vld [vmem:[%s3 + $0x8] sm:$0xf]
    %v4852 = vld [vmem:[%s3 + $0xc] sm:$0xff]
    %v4853 = vld [vmem:[%s3 + $0x14] sm:$0xf]
    %v4854 = vld [vmem:[%s3 + $0x18] sm:$0xff]
    %v4855 = vld [vmem:[%s3 + $0x20] sm:$0xf]
    %v4856 = vld [vmem:[%s3 + $0x24] sm:$0xff]
    %v4857 = vld [vmem:[%s3 + $0x2c] sm:$0xf]
    %v4858 = vld [vmem:[%s3 + $0x30] sm:$0xff]
    %v4859 = vld [vmem:[%s3 + $0x38] sm:$0xf]
    %v4860 = vld [vmem:[%s3 + $0x3c] sm:$0xff]
    %v4861 = vld [vmem:[%s3 + $0x44] sm:$0xf]
    %v4862 = vld [vmem:[%s3 + $0x48] sm:$0xff]
    %v4863 = vld [vmem:[%s3 + $0x50] sm:$0xf]
    %v4864 = vld [vmem:[%s3 + $0x54] sm:$0xff]
    %v4865 = vld [vmem:[%s3 + $0x5c] sm:$0xf]
    %v4866 = vld [vmem:[%s3 + $0x60] sm:$0xff]
    %v4867 = vld [vmem:[%s3 + $0x68] sm:$0xf]
    %v4868 = vld [vmem:[%s3 + $0x6c] sm:$0xff]
    %v4869 = vld [vmem:[%s3 + $0x74] sm:$0xf]
    %v4870 = vld [vmem:[%s3 + $0x78] sm:$0x33]
    %v4871 = vld [vmem:[%s3 + $0x80] sm:$0x3]
    %s4872 = scalar_lea.vmem %s3, 132
    %v4873 = vld [vmem:[%s4872] sm:$0xff]
    %v4874 = vld [vmem:[%s4872 + $0x8] sm:$0xf]
    %v4875 = vld [vmem:[%s4872 + $0xc] sm:$0xff]
    %v4876 = vld [vmem:[%s4872 + $0x14] sm:$0xf]
    %v4877 = vld [vmem:[%s4872 + $0x18] sm:$0xff]
    %v4878 = vld [vmem:[%s4872 + $0x20] sm:$0xf]
    %v4879 = vld [vmem:[%s4872 + $0x24] sm:$0xff]
    %v4880 = vld [vmem:[%s4872 + $0x2c] sm:$0xf]
    %v4881 = vld [vmem:[%s4872 + $0x30] sm:$0xff]
    %v4882 = vld [vmem:[%s4872 + $0x38] sm:$0xf]
    %v4883 = vld [vmem:[%s4872 + $0x3c] sm:$0xff]
    %v4884 = vld [vmem:[%s4872 + $0x44] sm:$0xf]
    %v4885 = vld [vmem:[%s4872 + $0x48] sm:$0xff]
    %v4886 = vld [vmem:[%s4872 + $0x50] sm:$0xf]
    %v4887 = vld [vmem:[%s4872 + $0x54] sm:$0xff]
    %v4888 = vld [vmem:[%s4872 + $0x5c] sm:$0xf]
    %v4889 = vld [vmem:[%s4872 + $0x60] sm:$0xff]
    %v4890 = vld [vmem:[%s4872 + $0x68] sm:$0xf]
    %v4891 = vld [vmem:[%s4872 + $0x6c] sm:$0xff]
    %v4892 = vld [vmem:[%s4872 + $0x74] sm:$0xf]
    %v4893 = vld [vmem:[%s4872 + $0x78] sm:$0x33]
    %v4894 = vld [vmem:[%s4872 + $0x80] sm:$0x3]
    %v4917 = vunpack.c.l.b16 %v4873
    %v4918 = vunpack.c.h.b16 %v4873
    %v4919 = vunpack.c.l.b16 %v4874
    %v4920 = vunpack.c.l.b16 %v4875
    %v4921 = vunpack.c.h.b16 %v4875
    %v4922 = vunpack.c.l.b16 %v4876
    %v4923 = vunpack.c.l.b16 %v4877
    %v4924 = vunpack.c.h.b16 %v4877
    %v4925 = vunpack.c.l.b16 %v4878
    %v4926 = vunpack.c.l.b16 %v4879
    %v4927 = vunpack.c.h.b16 %v4879
    %v4928 = vunpack.c.l.b16 %v4880
    %v4929 = vunpack.c.l.b16 %v4881
    %v4930 = vunpack.c.h.b16 %v4881
    %v4931 = vunpack.c.l.b16 %v4882
    %v4932 = vunpack.c.l.b16 %v4883
    %v4933 = vunpack.c.h.b16 %v4883
    %v4934 = vunpack.c.l.b16 %v4884
    %v4935 = vunpack.c.l.b16 %v4885
    %v4936 = vunpack.c.h.b16 %v4885
    %v4937 = vunpack.c.l.b16 %v4886
    %v4938 = vunpack.c.l.b16 %v4887
    %v4939 = vunpack.c.h.b16 %v4887
    %v4940 = vunpack.c.l.b16 %v4888
    %v4941 = vunpack.c.l.b16 %v4889
    %v4942 = vunpack.c.h.b16 %v4889
    %v4943 = vunpack.c.l.b16 %v4890
    %v4944 = vunpack.c.l.b16 %v4891
    %v4945 = vunpack.c.h.b16 %v4891
    %v4946 = vunpack.c.l.b16 %v4892
    %v4947 = vunpack.c.l.b16 %v4893
    %v4948 = vunpack.c.h.b16 %v4893
    %v4949 = vunpack.c.l.b16 %v4894
    %v4950 = vpack.c.b16 %v4920, %v4917
    %v4951 = vpack.c.b16 %v4921, %v4918
    %v4952 = vpack.c.b16 %v4922, %v4919
    %v4953 = vpack.c.b16 %v4926, %v4923
    %v4954 = vpack.c.b16 %v4927, %v4924
    %v4955 = vpack.c.b16 %v4928, %v4925
    %v4956 = vpack.c.b16 %v4932, %v4929
    %v4957 = vpack.c.b16 %v4933, %v4930
    %v4958 = vpack.c.b16 %v4934, %v4931
    %v4959 = vpack.c.b16 %v4938, %v4935
    %v4960 = vpack.c.b16 %v4939, %v4936
    %v4961 = vpack.c.b16 %v4940, %v4937
    %v4962 = vpack.c.b16 %v4944, %v4941
    %v4963 = vpack.c.b16 %v4945, %v4942
    %v4964 = vpack.c.b16 %v4946, %v4943
    %v4965 = vpack.c.b16 %v4947, %v4947
    %v4966 = vpack.c.b16 %v4948, %v4948
    %v4967 = vpack.c.b16 %v4949, %v4949
    %vm4983 = vcmask 687104
    %v4985 = vsel %vm4983, %v1385, 0
    %vm4987 = vcmask 1041408
    %v4989 = vsel %vm4987, %v4965, 0
    %v4992 = vsel %vm4987, %v4966, 0
    %v4995 = vsel %vm4987, %v4967, 0
    %4997 = vmatprep.subr.bf16.mxu0 0
    %4998 = vmatpush1.bf16.msra.mxu0 0
    %4999 = vmatprep.subr.bf16.mxu0 0
    %5000 = vmatpush1.bf16.msra.mxu0 0
    %5001 = vmatprep.subr.bf16.mxu0 %v4992
    %5002 = vmatpush1.bf16.msra.mxu0 %v4989
    %5003 = vmatprep.subr.bf16.mxu0 %v4963
    %5004 = vmatpush1.bf16.msra.mxu0 %v4962
    %5005 = vmatprep.subr.bf16.mxu0 %v4960
    %5006 = vmatpush1.bf16.msra.mxu0 %v4959
    %5007 = vmatprep.subr.bf16.mxu0 %v4957
    %5008 = vmatpush1.bf16.msra.mxu0 %v4956
    %5009 = vmatprep.subr.bf16.mxu0 %v4954
    %5010 = vmatpush1.bf16.msra.mxu0 %v4953
    %5011 = vmatprep.subr.bf16.mxu0 %v4951
    %5012 = vmatpush1.bf16.msra.mxu0 %v4950
    %5013 = vmatprep.subr.bf16.mxu0 0
    %5014 = vmatpush2.bf16.msra.mxu0 0
    %5015 = vmatprep.subr.bf16.mxu0 0
    %5016 = vmatpush2.bf16.msra.mxu0 0
    %5017 = vmatprep.subr.bf16.mxu0 0
    %5018 = vmatpush2.bf16.msra.mxu0 0
    %5019 = vmatprep.subr.bf16.mxu0 0
    %5020 = vmatpush2.bf16.msra.mxu0 0
    %5021 = vmatprep.subr.bf16.mxu0 0
    %5022 = vmatpush2.bf16.msra.mxu0 0
    %5023 = vmatprep.subr.bf16.mxu0 0
    %5024 = vmatpush2.bf16.msra.mxu0 0
    %5025 = vmatprep.subr.bf16.mxu0 0
    %5026 = vmatpush2.bf16.msra.mxu0 0
    %5027 = vmatprep.subr.bf16.mxu0 0
    %5028 = vmatpush2.bf16.msra.mxu0 0
    %5029 = vmatprep.mubr.bf16.mxu0 0
    %5030 = vmatmul.mubr.bf16.gmra.mxu0 %v4985
    %v5031 = vpop.f32.mrf.mxu0
    %v5032 = vadd.f32 0.0, %v5031
    %v5033 = vpop.f32.mrf.mxu0
    %v5034 = vadd.f32 0.0, %v5033
    %v5035 = vpop.f32.mrf.mxu0
    %v5036 = vpop.f32.mrf.mxu0
    %5037 = vdwg.mxu0
    %5038 = vmatprep.subr.bf16.mxu0 0
    %5039 = vmatpush1.bf16.msra.mxu0 0
    %5040 = vmatprep.subr.bf16.mxu0 0
    %5041 = vmatpush1.bf16.msra.mxu0 0
    %5042 = vmatprep.subr.bf16.mxu0 0
    %5043 = vmatpush1.bf16.msra.mxu0 %v4995
    %5044 = vmatprep.subr.bf16.mxu0 0
    %5045 = vmatpush1.bf16.msra.mxu0 %v4964
    %5046 = vmatprep.subr.bf16.mxu0 0
    %5047 = vmatpush1.bf16.msra.mxu0 %v4961
    %5048 = vmatprep.subr.bf16.mxu0 0
    %5049 = vmatpush1.bf16.msra.mxu0 %v4958
    %5050 = vmatprep.subr.bf16.mxu0 0
    %5051 = vmatpush1.bf16.msra.mxu0 %v4955
    %5052 = vmatprep.subr.bf16.mxu0 0
    %5053 = vmatpush1.bf16.msra.mxu0 %v4952
    %5054 = vmatprep.subr.bf16.mxu0 0
    %5055 = vmatpush2.bf16.msra.mxu0 0
    %5056 = vmatprep.subr.bf16.mxu0 0
    %5057 = vmatpush2.bf16.msra.mxu0 0
    %5058 = vmatprep.subr.bf16.mxu0 0
    %5059 = vmatpush2.bf16.msra.mxu0 0
    %5060 = vmatprep.subr.bf16.mxu0 0
    %5061 = vmatpush2.bf16.msra.mxu0 0
    %5062 = vmatprep.subr.bf16.mxu0 0
    %5063 = vmatpush2.bf16.msra.mxu0 0
    %5064 = vmatprep.subr.bf16.mxu0 0
    %5065 = vmatpush2.bf16.msra.mxu0 0
    %5066 = vmatprep.subr.bf16.mxu0 0
    %5067 = vmatpush2.bf16.msra.mxu0 0
    %5068 = vmatprep.subr.bf16.mxu0 0
    %5069 = vmatpush2.bf16.msra.mxu0 0
    %5070 = vmatprep.mubr.bf16.mxu0 0
    %5071 = vmatmul.mubr.bf16.gmra.mxu0 %v4985
    %v5072 = vpop.f32.mrf.mxu0
    %v5073 = vadd.f32 0.0, %v5072
    %v5074 = vpop.f32.mrf.mxu0
    %v5075 = vpop.f32.mrf.mxu0
    %v5076 = vpop.f32.mrf.mxu0
    %5077 = vdwg.mxu0
    %v5100 = vunpack.c.l.b16 %v4850
    %v5101 = vunpack.c.h.b16 %v4850
    %v5102 = vunpack.c.l.b16 %v4851
    %v5103 = vunpack.c.l.b16 %v4852
    %v5104 = vunpack.c.h.b16 %v4852
    %v5105 = vunpack.c.l.b16 %v4853
    %v5106 = vunpack.c.l.b16 %v4854
    %v5107 = vunpack.c.h.b16 %v4854
    %v5108 = vunpack.c.l.b16 %v4855
    %v5109 = vunpack.c.l.b16 %v4856
    %v5110 = vunpack.c.h.b16 %v4856
    %v5111 = vunpack.c.l.b16 %v4857
    %v5112 = vunpack.c.l.b16 %v4858
    %v5113 = vunpack.c.h.b16 %v4858
    %v5114 = vunpack.c.l.b16 %v4859
    %v5115 = vunpack.c.l.b16 %v4860
    %v5116 = vunpack.c.h.b16 %v4860
    %v5117 = vunpack.c.l.b16 %v4861
    %v5118 = vunpack.c.l.b16 %v4862
    %v5119 = vunpack.c.h.b16 %v4862
    %v5120 = vunpack.c.l.b16 %v4863
    %v5121 = vunpack.c.l.b16 %v4864
    %v5122 = vunpack.c.h.b16 %v4864
    %v5123 = vunpack.c.l.b16 %v4865
    %v5124 = vunpack.c.l.b16 %v4866
    %v5125 = vunpack.c.h.b16 %v4866
    %v5126 = vunpack.c.l.b16 %v4867
    %v5127 = vunpack.c.l.b16 %v4868
    %v5128 = vunpack.c.h.b16 %v4868
    %v5129 = vunpack.c.l.b16 %v4869
    %v5130 = vunpack.c.l.b16 %v4870
    %v5131 = vunpack.c.h.b16 %v4870
    %v5132 = vunpack.c.l.b16 %v4871
    %v5133 = vpack.c.b16 %v5103, %v5100
    %v5134 = vpack.c.b16 %v5104, %v5101
    %v5135 = vpack.c.b16 %v5105, %v5102
    %v5136 = vpack.c.b16 %v5109, %v5106
    %v5137 = vpack.c.b16 %v5110, %v5107
    %v5138 = vpack.c.b16 %v5111, %v5108
    %v5139 = vpack.c.b16 %v5115, %v5112
    %v5140 = vpack.c.b16 %v5116, %v5113
    %v5141 = vpack.c.b16 %v5117, %v5114
    %v5142 = vpack.c.b16 %v5121, %v5118
    %v5143 = vpack.c.b16 %v5122, %v5119
    %v5144 = vpack.c.b16 %v5123, %v5120
    %v5145 = vpack.c.b16 %v5127, %v5124
    %v5146 = vpack.c.b16 %v5128, %v5125
    %v5147 = vpack.c.b16 %v5129, %v5126
    %v5148 = vpack.c.b16 %v5130, %v5130
    %v5149 = vpack.c.b16 %v5131, %v5131
    %v5150 = vpack.c.b16 %v5132, %v5132
    %v5167 = vsel %vm4983, %v1104, 0
    %v5170 = vsel %vm4987, %v5148, 0
    %v5173 = vsel %vm4987, %v5149, 0
    %v5176 = vsel %vm4987, %v5150, 0
    %5178 = vmatprep.subr.bf16.mxu0 0
    %5179 = vmatpush1.bf16.msra.mxu0 0
    %5180 = vmatprep.subr.bf16.mxu0 0
    %5181 = vmatpush1.bf16.msra.mxu0 0
    %5182 = vmatprep.subr.bf16.mxu0 %v5173
    %5183 = vmatpush1.bf16.msra.mxu0 %v5170
    %5184 = vmatprep.subr.bf16.mxu0 %v5146
    %5185 = vmatpush1.bf16.msra.mxu0 %v5145
    %5186 = vmatprep.subr.bf16.mxu0 %v5143
    %5187 = vmatpush1.bf16.msra.mxu0 %v5142
    %5188 = vmatprep.subr.bf16.mxu0 %v5140
    %5189 = vmatpush1.bf16.msra.mxu0 %v5139
    %5190 = vmatprep.subr.bf16.mxu0 %v5137
    %5191 = vmatpush1.bf16.msra.mxu0 %v5136
    %5192 = vmatprep.subr.bf16.mxu0 %v5134
    %5193 = vmatpush1.bf16.msra.mxu0 %v5133
    %5194 = vmatprep.subr.bf16.mxu0 0
    %5195 = vmatpush2.bf16.msra.mxu0 0
    %5196 = vmatprep.subr.bf16.mxu0 0
    %5197 = vmatpush2.bf16.msra.mxu0 0
    %5198 = vmatprep.subr.bf16.mxu0 0
    %5199 = vmatpush2.bf16.msra.mxu0 0
    %5200 = vmatprep.subr.bf16.mxu0 0
    %5201 = vmatpush2.bf16.msra.mxu0 0
    %5202 = vmatprep.subr.bf16.mxu0 0
    %5203 = vmatpush2.bf16.msra.mxu0 0
    %5204 = vmatprep.subr.bf16.mxu0 0
    %5205 = vmatpush2.bf16.msra.mxu0 0
    %5206 = vmatprep.subr.bf16.mxu0 0
    %5207 = vmatpush2.bf16.msra.mxu0 0
    %5208 = vmatprep.subr.bf16.mxu0 0
    %5209 = vmatpush2.bf16.msra.mxu0 0
    %5210 = vmatprep.mubr.bf16.mxu0 0
    %5211 = vmatmul.mubr.bf16.gmra.mxu0 %v5167
    %v5212 = vpop.f32.mrf.mxu0
    %v5213 = vadd.f32 %v5032, %v5212
    %v5214 = vpop.f32.mrf.mxu0
    %v5215 = vadd.f32 %v5034, %v5214
    %v5216 = vpop.f32.mrf.mxu0
    %v5217 = vpop.f32.mrf.mxu0
    %5218 = vdwg.mxu0
    %5219 = vmatprep.subr.bf16.mxu0 0
    %5220 = vmatpush1.bf16.msra.mxu0 0
    %5221 = vmatprep.subr.bf16.mxu0 0
    %5222 = vmatpush1.bf16.msra.mxu0 0
    %5223 = vmatprep.subr.bf16.mxu0 0
    %5224 = vmatpush1.bf16.msra.mxu0 %v5176
    %5225 = vmatprep.subr.bf16.mxu0 0
    %5226 = vmatpush1.bf16.msra.mxu0 %v5147
    %5227 = vmatprep.subr.bf16.mxu0 0
    %5228 = vmatpush1.bf16.msra.mxu0 %v5144
    %5229 = vmatprep.subr.bf16.mxu0 0
    %5230 = vmatpush1.bf16.msra.mxu0 %v5141
    %5231 = vmatprep.subr.bf16.mxu0 0
    %5232 = vmatpush1.bf16.msra.mxu0 %v5138
    %5233 = vmatprep.subr.bf16.mxu0 0
    %5234 = vmatpush1.bf16.msra.mxu0 %v5135
    %5235 = vmatprep.subr.bf16.mxu0 0
    %5236 = vmatpush2.bf16.msra.mxu0 0
    %5237 = vmatprep.subr.bf16.mxu0 0
    %5238 = vmatpush2.bf16.msra.mxu0 0
    %5239 = vmatprep.subr.bf16.mxu0 0
    %5240 = vmatpush2.bf16.msra.mxu0 0
    %5241 = vmatprep.subr.bf16.mxu0 0
    %5242 = vmatpush2.bf16.msra.mxu0 0
    %5243 = vmatprep.subr.bf16.mxu0 0
    %5244 = vmatpush2.bf16.msra.mxu0 0
    %5245 = vmatprep.subr.bf16.mxu0 0
    %5246 = vmatpush2.bf16.msra.mxu0 0
    %5247 = vmatprep.subr.bf16.mxu0 0
    %5248 = vmatpush2.bf16.msra.mxu0 0
    %5249 = vmatprep.subr.bf16.mxu0 0
    %5250 = vmatpush2.bf16.msra.mxu0 0
    %5251 = vmatprep.mubr.bf16.mxu0 0
    %5252 = vmatmul.mubr.bf16.gmra.mxu0 %v5167
    %v5253 = vpop.f32.mrf.mxu0
    %v5254 = vadd.f32 %v5073, %v5253
    %v5255 = vpop.f32.mrf.mxu0
    %v5256 = vpop.f32.mrf.mxu0
    %v5257 = vpop.f32.mrf.mxu0
    %5258 = vdwg.mxu0
    %s5259 = scalar_lea.vmem %s3, 264
    %v5260 = vld [vmem:[%s5259] sm:$0xff]
    %v5261 = vld [vmem:[%s5259 + $0x8] sm:$0xf]
    %v5262 = vld [vmem:[%s5259 + $0xc] sm:$0xff]
    %v5263 = vld [vmem:[%s5259 + $0x14] sm:$0xf]
    %v5264 = vld [vmem:[%s5259 + $0x18] sm:$0xff]
    %v5265 = vld [vmem:[%s5259 + $0x20] sm:$0xf]
    %v5266 = vld [vmem:[%s5259 + $0x24] sm:$0xff]
    %v5267 = vld [vmem:[%s5259 + $0x2c] sm:$0xf]
    %v5268 = vld [vmem:[%s5259 + $0x30] sm:$0xff]
    %v5269 = vld [vmem:[%s5259 + $0x38] sm:$0xf]
    %v5270 = vld [vmem:[%s5259 + $0x3c] sm:$0xff]
    %v5271 = vld [vmem:[%s5259 + $0x44] sm:$0xf]
    %v5272 = vld [vmem:[%s5259 + $0x48] sm:$0xff]
    %v5273 = vld [vmem:[%s5259 + $0x50] sm:$0xf]
    %v5274 = vld [vmem:[%s5259 + $0x54] sm:$0xff]
    %v5275 = vld [vmem:[%s5259 + $0x5c] sm:$0xf]
    %v5276 = vld [vmem:[%s5259 + $0x60] sm:$0xff]
    %v5277 = vld [vmem:[%s5259 + $0x68] sm:$0xf]
    %v5278 = vld [vmem:[%s5259 + $0x6c] sm:$0xff]
    %v5279 = vld [vmem:[%s5259 + $0x74] sm:$0xf]
    %v5280 = vld [vmem:[%s5259 + $0x78] sm:$0x33]
    %v5281 = vld [vmem:[%s5259 + $0x80] sm:$0x3]
    %v5304 = vunpack.c.l.b16 %v5260
    %v5305 = vunpack.c.h.b16 %v5260
    %v5306 = vunpack.c.l.b16 %v5261
    %v5307 = vunpack.c.l.b16 %v5262
    %v5308 = vunpack.c.h.b16 %v5262
    %v5309 = vunpack.c.l.b16 %v5263
    %v5310 = vunpack.c.l.b16 %v5264
    %v5311 = vunpack.c.h.b16 %v5264
    %v5312 = vunpack.c.l.b16 %v5265
    %v5313 = vunpack.c.l.b16 %v5266
    %v5314 = vunpack.c.h.b16 %v5266
    %v5315 = vunpack.c.l.b16 %v5267
    %v5316 = vunpack.c.l.b16 %v5268
    %v5317 = vunpack.c.h.b16 %v5268
    %v5318 = vunpack.c.l.b16 %v5269
    %v5319 = vunpack.c.l.b16 %v5270
    %v5320 = vunpack.c.h.b16 %v5270
    %v5321 = vunpack.c.l.b16 %v5271
    %v5322 = vunpack.c.l.b16 %v5272
    %v5323 = vunpack.c.h.b16 %v5272
    %v5324 = vunpack.c.l.b16 %v5273
    %v5325 = vunpack.c.l.b16 %v5274
    %v5326 = vunpack.c.h.b16 %v5274
    %v5327 = vunpack.c.l.b16 %v5275
    %v5328 = vunpack.c.l.b16 %v5276
    %v5329 = vunpack.c.h.b16 %v5276
    %v5330 = vunpack.c.l.b16 %v5277
    %v5331 = vunpack.c.l.b16 %v5278
    %v5332 = vunpack.c.h.b16 %v5278
    %v5333 = vunpack.c.l.b16 %v5279
    %v5334 = vunpack.c.l.b16 %v5280
    %v5335 = vunpack.c.h.b16 %v5280
    %v5336 = vunpack.c.l.b16 %v5281
    %v5337 = vpack.c.b16 %v5307, %v5304
    %v5338 = vpack.c.b16 %v5308, %v5305
    %v5339 = vpack.c.b16 %v5309, %v5306
    %v5340 = vpack.c.b16 %v5313, %v5310
    %v5341 = vpack.c.b16 %v5314, %v5311
    %v5342 = vpack.c.b16 %v5315, %v5312
    %v5343 = vpack.c.b16 %v5319, %v5316
    %v5344 = vpack.c.b16 %v5320, %v5317
    %v5345 = vpack.c.b16 %v5321, %v5318
    %v5346 = vpack.c.b16 %v5325, %v5322
    %v5347 = vpack.c.b16 %v5326, %v5323
    %v5348 = vpack.c.b16 %v5327, %v5324
    %v5349 = vpack.c.b16 %v5331, %v5328
    %v5350 = vpack.c.b16 %v5332, %v5329
    %v5351 = vpack.c.b16 %v5333, %v5330
    %v5352 = vpack.c.b16 %v5334, %v5334
    %v5353 = vpack.c.b16 %v5335, %v5335
    %v5354 = vpack.c.b16 %v5336, %v5336
    %v5371 = vsel %vm4983, %v1682, 0
    %v5374 = vsel %vm4987, %v5352, 0
    %v5377 = vsel %vm4987, %v5353, 0
    %v5380 = vsel %vm4987, %v5354, 0
    %5382 = vmatprep.subr.bf16.mxu0 0
    %5383 = vmatpush1.bf16.msra.mxu0 0
    %5384 = vmatprep.subr.bf16.mxu0 0
    %5385 = vmatpush1.bf16.msra.mxu0 0
    %5386 = vmatprep.subr.bf16.mxu0 %v5377
    %5387 = vmatpush1.bf16.msra.mxu0 %v5374
    %5388 = vmatprep.subr.bf16.mxu0 %v5350
    %5389 = vmatpush1.bf16.msra.mxu0 %v5349
    %5390 = vmatprep.subr.bf16.mxu0 %v5347
    %5391 = vmatpush1.bf16.msra.mxu0 %v5346
    %5392 = vmatprep.subr.bf16.mxu0 %v5344
    %5393 = vmatpush1.bf16.msra.mxu0 %v5343
    %5394 = vmatprep.subr.bf16.mxu0 %v5341
    %5395 = vmatpush1.bf16.msra.mxu0 %v5340
    %5396 = vmatprep.subr.bf16.mxu0 %v5338
    %5397 = vmatpush1.bf16.msra.mxu0 %v5337
    %5398 = vmatprep.subr.bf16.mxu0 0
    %5399 = vmatpush2.bf16.msra.mxu0 0
    %5400 = vmatprep.subr.bf16.mxu0 0
    %5401 = vmatpush2.bf16.msra.mxu0 0
    %5402 = vmatprep.subr.bf16.mxu0 0
    %5403 = vmatpush2.bf16.msra.mxu0 0
    %5404 = vmatprep.subr.bf16.mxu0 0
    %5405 = vmatpush2.bf16.msra.mxu0 0
    %5406 = vmatprep.subr.bf16.mxu0 0
    %5407 = vmatpush2.bf16.msra.mxu0 0
    %5408 = vmatprep.subr.bf16.mxu0 0
    %5409 = vmatpush2.bf16.msra.mxu0 0
    %5410 = vmatprep.subr.bf16.mxu0 0
    %5411 = vmatpush2.bf16.msra.mxu0 0
    %5412 = vmatprep.subr.bf16.mxu0 0
    %5413 = vmatpush2.bf16.msra.mxu0 0
    %5414 = vmatprep.mubr.bf16.mxu0 0
    %5415 = vmatmul.mubr.bf16.gmra.mxu0 %v5371
    %v5416 = vpop.f32.mrf.mxu0
    %v5417 = vadd.f32 0.0, %v5416
    %v5418 = vpop.f32.mrf.mxu0
    %v5419 = vadd.f32 0.0, %v5418
    %v5420 = vpop.f32.mrf.mxu0
    %v5421 = vpop.f32.mrf.mxu0
    %5422 = vdwg.mxu0
    %5423 = vmatprep.subr.bf16.mxu0 0
    %5424 = vmatpush1.bf16.msra.mxu0 0
    %5425 = vmatprep.subr.bf16.mxu0 0
    %5426 = vmatpush1.bf16.msra.mxu0 0
    %5427 = vmatprep.subr.bf16.mxu0 0
    %5428 = vmatpush1.bf16.msra.mxu0 %v5380
    %5429 = vmatprep.subr.bf16.mxu0 0
    %5430 = vmatpush1.bf16.msra.mxu0 %v5351
    %5431 = vmatprep.subr.bf16.mxu0 0
    %5432 = vmatpush1.bf16.msra.mxu0 %v5348
    %5433 = vmatprep.subr.bf16.mxu0 0
    %5434 = vmatpush1.bf16.msra.mxu0 %v5345
    %5435 = vmatprep.subr.bf16.mxu0 0
    %5436 = vmatpush1.bf16.msra.mxu0 %v5342
    %5437 = vmatprep.subr.bf16.mxu0 0
    %5438 = vmatpush1.bf16.msra.mxu0 %v5339
    %5439 = vmatprep.subr.bf16.mxu0 0
    %5440 = vmatpush2.bf16.msra.mxu0 0
    %5441 = vmatprep.subr.bf16.mxu0 0
    %5442 = vmatpush2.bf16.msra.mxu0 0
    %5443 = vmatprep.subr.bf16.mxu0 0
    %5444 = vmatpush2.bf16.msra.mxu0 0
    %5445 = vmatprep.subr.bf16.mxu0 0
    %5446 = vmatpush2.bf16.msra.mxu0 0
    %5447 = vmatprep.subr.bf16.mxu0 0
    %5448 = vmatpush2.bf16.msra.mxu0 0
    %5449 = vmatprep.subr.bf16.mxu0 0
    %5450 = vmatpush2.bf16.msra.mxu0 0
    %5451 = vmatprep.subr.bf16.mxu0 0
    %5452 = vmatpush2.bf16.msra.mxu0 0
    %5453 = vmatprep.subr.bf16.mxu0 0
    %5454 = vmatpush2.bf16.msra.mxu0 0
    %5455 = vmatprep.mubr.bf16.mxu0 0
    %5456 = vmatmul.mubr.bf16.gmra.mxu0 %v5371
    %v5457 = vpop.f32.mrf.mxu0
    %v5458 = vadd.f32 0.0, %v5457
    %v5459 = vpop.f32.mrf.mxu0
    %v5460 = vpop.f32.mrf.mxu0
    %v5461 = vpop.f32.mrf.mxu0
    %5462 = vdwg.mxu0
    %v5463 = vadd.f32 %v5213, %v5417
    %v5464 = vadd.f32 %v5215, %v5419
    %v5465 = vadd.f32 %v5254, %v5458
    %s5466 = scalar_lea.vmem %s3, 396
    %v5467 = vld [vmem:[%s5466] sm:$0xff]
    %v5468 = vld [vmem:[%s5466 + $0x8] sm:$0xf]
    %v5469 = vld [vmem:[%s5466 + $0xc] sm:$0xff]
    %v5470 = vld [vmem:[%s5466 + $0x14] sm:$0xf]
    %v5471 = vld [vmem:[%s5466 + $0x18] sm:$0xff]
    %v5472 = vld [vmem:[%s5466 + $0x20] sm:$0xf]
    %v5473 = vld [vmem:[%s5466 + $0x24] sm:$0xff]
    %v5474 = vld [vmem:[%s5466 + $0x2c] sm:$0xf]
    %v5475 = vld [vmem:[%s5466 + $0x30] sm:$0xff]
    %v5476 = vld [vmem:[%s5466 + $0x38] sm:$0xf]
    %v5477 = vld [vmem:[%s5466 + $0x3c] sm:$0xff]
    %v5478 = vld [vmem:[%s5466 + $0x44] sm:$0xf]
    %v5479 = vld [vmem:[%s5466 + $0x48] sm:$0xff]
    %v5480 = vld [vmem:[%s5466 + $0x50] sm:$0xf]
    %v5481 = vld [vmem:[%s5466 + $0x54] sm:$0xff]
    %v5482 = vld [vmem:[%s5466 + $0x5c] sm:$0xf]
    %v5483 = vld [vmem:[%s5466 + $0x60] sm:$0xff]
    %v5484 = vld [vmem:[%s5466 + $0x68] sm:$0xf]
    %v5485 = vld [vmem:[%s5466 + $0x6c] sm:$0xff]
    %v5486 = vld [vmem:[%s5466 + $0x74] sm:$0xf]
    %v5487 = vld [vmem:[%s5466 + $0x78] sm:$0x33]
    %v5488 = vld [vmem:[%s5466 + $0x80] sm:$0x3]
    %v5511 = vunpack.c.l.b16 %v5467
    %v5512 = vunpack.c.h.b16 %v5467
    %v5513 = vunpack.c.l.b16 %v5468
    %v5514 = vunpack.c.l.b16 %v5469
    %v5515 = vunpack.c.h.b16 %v5469
    %v5516 = vunpack.c.l.b16 %v5470
    %v5517 = vunpack.c.l.b16 %v5471
    %v5518 = vunpack.c.h.b16 %v5471
    %v5519 = vunpack.c.l.b16 %v5472
    %v5520 = vunpack.c.l.b16 %v5473
    %v5521 = vunpack.c.h.b16 %v5473
    %v5522 = vunpack.c.l.b16 %v5474
    %v5523 = vunpack.c.l.b16 %v5475
    %v5524 = vunpack.c.h.b16 %v5475
    %v5525 = vunpack.c.l.b16 %v5476
    %v5526 = vunpack.c.l.b16 %v5477
    %v5527 = vunpack.c.h.b16 %v5477
    %v5528 = vunpack.c.l.b16 %v5478
    %v5529 = vunpack.c.l.b16 %v5479
    %v5530 = vunpack.c.h.b16 %v5479
    %v5531 = vunpack.c.l.b16 %v5480
    %v5532 = vunpack.c.l.b16 %v5481
    %v5533 = vunpack.c.h.b16 %v5481
    %v5534 = vunpack.c.l.b16 %v5482
    %v5535 = vunpack.c.l.b16 %v5483
    %v5536 = vunpack.c.h.b16 %v5483
    %v5537 = vunpack.c.l.b16 %v5484
    %v5538 = vunpack.c.l.b16 %v5485
    %v5539 = vunpack.c.h.b16 %v5485
    %v5540 = vunpack.c.l.b16 %v5486
    %v5541 = vunpack.c.l.b16 %v5487
    %v5542 = vunpack.c.h.b16 %v5487
    %v5543 = vunpack.c.l.b16 %v5488
    %v5544 = vpack.c.b16 %v5514, %v5511
    %v5545 = vpack.c.b16 %v5515, %v5512
    %v5546 = vpack.c.b16 %v5516, %v5513
    %v5547 = vpack.c.b16 %v5520, %v5517
    %v5548 = vpack.c.b16 %v5521, %v5518
    %v5549 = vpack.c.b16 %v5522, %v5519
    %v5550 = vpack.c.b16 %v5526, %v5523
    %v5551 = vpack.c.b16 %v5527, %v5524
    %v5552 = vpack.c.b16 %v5528, %v5525
    %v5553 = vpack.c.b16 %v5532, %v5529
    %v5554 = vpack.c.b16 %v5533, %v5530
    %v5555 = vpack.c.b16 %v5534, %v5531
    %v5556 = vpack.c.b16 %v5538, %v5535
    %v5557 = vpack.c.b16 %v5539, %v5536
    %v5558 = vpack.c.b16 %v5540, %v5537
    %v5559 = vpack.c.b16 %v5541, %v5541
    %v5560 = vpack.c.b16 %v5542, %v5542
    %v5561 = vpack.c.b16 %v5543, %v5543
    %v5578 = vsel %vm4983, %v1963, 0
    %v5581 = vsel %vm4987, %v5559, 0
    %v5584 = vsel %vm4987, %v5560, 0
    %v5587 = vsel %vm4987, %v5561, 0
    %5589 = vmatprep.subr.bf16.mxu0 0
    %5590 = vmatpush1.bf16.msra.mxu0 0
    %5591 = vmatprep.subr.bf16.mxu0 0
    %5592 = vmatpush1.bf16.msra.mxu0 0
    %5593 = vmatprep.subr.bf16.mxu0 %v5584
    %5594 = vmatpush1.bf16.msra.mxu0 %v5581
    %5595 = vmatprep.subr.bf16.mxu0 %v5557
    %5596 = vmatpush1.bf16.msra.mxu0 %v5556
    %5597 = vmatprep.subr.bf16.mxu0 %v5554
    %5598 = vmatpush1.bf16.msra.mxu0 %v5553
    %5599 = vmatprep.subr.bf16.mxu0 %v5551
    %5600 = vmatpush1.bf16.msra.mxu0 %v5550
    %5601 = vmatprep.subr.bf16.mxu0 %v5548
    %5602 = vmatpush1.bf16.msra.mxu0 %v5547
    %5603 = vmatprep.subr.bf16.mxu0 %v5545
    %5604 = vmatpush1.bf16.msra.mxu0 %v5544
    %5605 = vmatprep.subr.bf16.mxu0 0
    %5606 = vmatpush2.bf16.msra.mxu0 0
    %5607 = vmatprep.subr.bf16.mxu0 0
    %5608 = vmatpush2.bf16.msra.mxu0 0
    %5609 = vmatprep.subr.bf16.mxu0 0
    %5610 = vmatpush2.bf16.msra.mxu0 0
    %5611 = vmatprep.subr.bf16.mxu0 0
    %5612 = vmatpush2.bf16.msra.mxu0 0
    %5613 = vmatprep.subr.bf16.mxu0 0
    %5614 = vmatpush2.bf16.msra.mxu0 0
    %5615 = vmatprep.subr.bf16.mxu0 0
    %5616 = vmatpush2.bf16.msra.mxu0 0
    %5617 = vmatprep.subr.bf16.mxu0 0
    %5618 = vmatpush2.bf16.msra.mxu0 0
    %5619 = vmatprep.subr.bf16.mxu0 0
    %5620 = vmatpush2.bf16.msra.mxu0 0
    %5621 = vmatprep.mubr.bf16.mxu0 0
    %5622 = vmatmul.mubr.bf16.gmra.mxu0 %v5578
    %v5623 = vpop.f32.mrf.mxu0
    %v5624 = vadd.f32 0.0, %v5623
    %v5625 = vpop.f32.mrf.mxu0
    %v5626 = vadd.f32 0.0, %v5625
    %v5627 = vpop.f32.mrf.mxu0
    %v5628 = vpop.f32.mrf.mxu0
    %5629 = vdwg.mxu0
    %5630 = vmatprep.subr.bf16.mxu0 0
    %5631 = vmatpush1.bf16.msra.mxu0 0
    %5632 = vmatprep.subr.bf16.mxu0 0
    %5633 = vmatpush1.bf16.msra.mxu0 0
    %5634 = vmatprep.subr.bf16.mxu0 0
    %5635 = vmatpush1.bf16.msra.mxu0 %v5587
    %5636 = vmatprep.subr.bf16.mxu0 0
    %5637 = vmatpush1.bf16.msra.mxu0 %v5558
    %5638 = vmatprep.subr.bf16.mxu0 0
    %5639 = vmatpush1.bf16.msra.mxu0 %v5555
    %5640 = vmatprep.subr.bf16.mxu0 0
    %5641 = vmatpush1.bf16.msra.mxu0 %v5552
    %5642 = vmatprep.subr.bf16.mxu0 0
    %5643 = vmatpush1.bf16.msra.mxu0 %v5549
    %5644 = vmatprep.subr.bf16.mxu0 0
    %5645 = vmatpush1.bf16.msra.mxu0 %v5546
    %5646 = vmatprep.subr.bf16.mxu0 0
    %5647 = vmatpush2.bf16.msra.mxu0 0
    %5648 = vmatprep.subr.bf16.mxu0 0
    %5649 = vmatpush2.bf16.msra.mxu0 0
    %5650 = vmatprep.subr.bf16.mxu0 0
    %5651 = vmatpush2.bf16.msra.mxu0 0
    %5652 = vmatprep.subr.bf16.mxu0 0
    %5653 = vmatpush2.bf16.msra.mxu0 0
    %5654 = vmatprep.subr.bf16.mxu0 0
    %5655 = vmatpush2.bf16.msra.mxu0 0
    %5656 = vmatprep.subr.bf16.mxu0 0
    %5657 = vmatpush2.bf16.msra.mxu0 0
    %5658 = vmatprep.subr.bf16.mxu0 0
    %5659 = vmatpush2.bf16.msra.mxu0 0
    %5660 = vmatprep.subr.bf16.mxu0 0
    %5661 = vmatpush2.bf16.msra.mxu0 0
    %5662 = vmatprep.mubr.bf16.mxu0 0
    %5663 = vmatmul.mubr.bf16.gmra.mxu0 %v5578
    %v5664 = vpop.f32.mrf.mxu0
    %v5665 = vadd.f32 0.0, %v5664
    %v5666 = vpop.f32.mrf.mxu0
    %v5667 = vpop.f32.mrf.mxu0
    %v5668 = vpop.f32.mrf.mxu0
    %5669 = vdwg.mxu0
    %v5670 = vadd.f32 %v5463, %v5624
    %v5671 = vadd.f32 %v5464, %v5626
    %v5672 = vadd.f32 %v5465, %v5665
    %s5673 = scalar_lea.vmem %s3, 528
    %v5674 = vld [vmem:[%s5673] sm:$0xff]
    %v5675 = vld [vmem:[%s5673 + $0x8] sm:$0xf]
    %v5676 = vld [vmem:[%s5673 + $0xc] sm:$0xff]
    %v5677 = vld [vmem:[%s5673 + $0x14] sm:$0xf]
    %v5678 = vld [vmem:[%s5673 + $0x18] sm:$0xff]
    %v5679 = vld [vmem:[%s5673 + $0x20] sm:$0xf]
    %v5680 = vld [vmem:[%s5673 + $0x24] sm:$0xff]
    %v5681 = vld [vmem:[%s5673 + $0x2c] sm:$0xf]
    %v5682 = vld [vmem:[%s5673 + $0x30] sm:$0xff]
    %v5683 = vld [vmem:[%s5673 + $0x38] sm:$0xf]
    %v5684 = vld [vmem:[%s5673 + $0x3c] sm:$0xff]
    %v5685 = vld [vmem:[%s5673 + $0x44] sm:$0xf]
    %v5686 = vld [vmem:[%s5673 + $0x48] sm:$0xff]
    %v5687 = vld [vmem:[%s5673 + $0x50] sm:$0xf]
    %v5688 = vld [vmem:[%s5673 + $0x54] sm:$0xff]
    %v5689 = vld [vmem:[%s5673 + $0x5c] sm:$0xf]
    %v5690 = vld [vmem:[%s5673 + $0x60] sm:$0xff]
    %v5691 = vld [vmem:[%s5673 + $0x68] sm:$0xf]
    %v5692 = vld [vmem:[%s5673 + $0x6c] sm:$0xff]
    %v5693 = vld [vmem:[%s5673 + $0x74] sm:$0xf]
    %v5694 = vld [vmem:[%s5673 + $0x78] sm:$0x33]
    %v5695 = vld [vmem:[%s5673 + $0x80] sm:$0x3]
    %v5718 = vunpack.c.l.b16 %v5674
    %v5719 = vunpack.c.h.b16 %v5674
    %v5720 = vunpack.c.l.b16 %v5675
    %v5721 = vunpack.c.l.b16 %v5676
    %v5722 = vunpack.c.h.b16 %v5676
    %v5723 = vunpack.c.l.b16 %v5677
    %v5724 = vunpack.c.l.b16 %v5678
    %v5725 = vunpack.c.h.b16 %v5678
    %v5726 = vunpack.c.l.b16 %v5679
    %v5727 = vunpack.c.l.b16 %v5680
    %v5728 = vunpack.c.h.b16 %v5680
    %v5729 = vunpack.c.l.b16 %v5681
    %v5730 = vunpack.c.l.b16 %v5682
    %v5731 = vunpack.c.h.b16 %v5682
    %v5732 = vunpack.c.l.b16 %v5683
    %v5733 = vunpack.c.l.b16 %v5684
    %v5734 = vunpack.c.h.b16 %v5684
    %v5735 = vunpack.c.l.b16 %v5685
    %v5736 = vunpack.c.l.b16 %v5686
    %v5737 = vunpack.c.h.b16 %v5686
    %v5738 = vunpack.c.l.b16 %v5687
    %v5739 = vunpack.c.l.b16 %v5688
    %v5740 = vunpack.c.h.b16 %v5688
    %v5741 = vunpack.c.l.b16 %v5689
    %v5742 = vunpack.c.l.b16 %v5690
    %v5743 = vunpack.c.h.b16 %v5690
    %v5744 = vunpack.c.l.b16 %v5691
    %v5745 = vunpack.c.l.b16 %v5692
    %v5746 = vunpack.c.h.b16 %v5692
    %v5747 = vunpack.c.l.b16 %v5693
    %v5748 = vunpack.c.l.b16 %v5694
    %v5749 = vunpack.c.h.b16 %v5694
    %v5750 = vunpack.c.l.b16 %v5695
    %v5751 = vpack.c.b16 %v5721, %v5718
    %v5752 = vpack.c.b16 %v5722, %v5719
    %v5753 = vpack.c.b16 %v5723, %v5720
    %v5754 = vpack.c.b16 %v5727, %v5724
    %v5755 = vpack.c.b16 %v5728, %v5725
    %v5756 = vpack.c.b16 %v5729, %v5726
    %v5757 = vpack.c.b16 %v5733, %v5730
    %v5758 = vpack.c.b16 %v5734, %v5731
    %v5759 = vpack.c.b16 %v5735, %v5732
    %v5760 = vpack.c.b16 %v5739, %v5736
    %v5761 = vpack.c.b16 %v5740, %v5737
    %v5762 = vpack.c.b16 %v5741, %v5738
    %v5763 = vpack.c.b16 %v5745, %v5742
    %v5764 = vpack.c.b16 %v5746, %v5743
    %v5765 = vpack.c.b16 %v5747, %v5744
    %v5766 = vpack.c.b16 %v5748, %v5748
    %v5767 = vpack.c.b16 %v5749, %v5749
    %v5768 = vpack.c.b16 %v5750, %v5750
    %v5785 = vsel %vm4983, %v2260, 0
    %v5788 = vsel %vm4987, %v5766, 0
    %v5791 = vsel %vm4987, %v5767, 0
    %v5794 = vsel %vm4987, %v5768, 0
    %5796 = vmatprep.subr.bf16.mxu0 0
    %5797 = vmatpush1.bf16.msra.mxu0 0
    %5798 = vmatprep.subr.bf16.mxu0 0
    %5799 = vmatpush1.bf16.msra.mxu0 0
    %5800 = vmatprep.subr.bf16.mxu0 %v5791
    %5801 = vmatpush1.bf16.msra.mxu0 %v5788
    %5802 = vmatprep.subr.bf16.mxu0 %v5764
    %5803 = vmatpush1.bf16.msra.mxu0 %v5763
    %5804 = vmatprep.subr.bf16.mxu0 %v5761
    %5805 = vmatpush1.bf16.msra.mxu0 %v5760
    %5806 = vmatprep.subr.bf16.mxu0 %v5758
    %5807 = vmatpush1.bf16.msra.mxu0 %v5757
    %5808 = vmatprep.subr.bf16.mxu0 %v5755
    %5809 = vmatpush1.bf16.msra.mxu0 %v5754
    %5810 = vmatprep.subr.bf16.mxu0 %v5752
    %5811 = vmatpush1.bf16.msra.mxu0 %v5751
    %5812 = vmatprep.subr.bf16.mxu0 0
    %5813 = vmatpush2.bf16.msra.mxu0 0
    %5814 = vmatprep.subr.bf16.mxu0 0
    %5815 = vmatpush2.bf16.msra.mxu0 0
    %5816 = vmatprep.subr.bf16.mxu0 0
    %5817 = vmatpush2.bf16.msra.mxu0 0
    %5818 = vmatprep.subr.bf16.mxu0 0
    %5819 = vmatpush2.bf16.msra.mxu0 0
    %5820 = vmatprep.subr.bf16.mxu0 0
    %5821 = vmatpush2.bf16.msra.mxu0 0
    %5822 = vmatprep.subr.bf16.mxu0 0
    %5823 = vmatpush2.bf16.msra.mxu0 0
    %5824 = vmatprep.subr.bf16.mxu0 0
    %5825 = vmatpush2.bf16.msra.mxu0 0
    %5826 = vmatprep.subr.bf16.mxu0 0
    %5827 = vmatpush2.bf16.msra.mxu0 0
    %5828 = vmatprep.mubr.bf16.mxu0 0
    %5829 = vmatmul.mubr.bf16.gmra.mxu0 %v5785
    %v5830 = vpop.f32.mrf.mxu0
    %v5831 = vadd.f32 0.0, %v5830
    %v5832 = vpop.f32.mrf.mxu0
    %v5833 = vadd.f32 0.0, %v5832
    %v5834 = vpop.f32.mrf.mxu0
    %v5835 = vpop.f32.mrf.mxu0
    %5836 = vdwg.mxu0
    %5837 = vmatprep.subr.bf16.mxu0 0
    %5838 = vmatpush1.bf16.msra.mxu0 0
    %5839 = vmatprep.subr.bf16.mxu0 0
    %5840 = vmatpush1.bf16.msra.mxu0 0
    %5841 = vmatprep.subr.bf16.mxu0 0
    %5842 = vmatpush1.bf16.msra.mxu0 %v5794
    %5843 = vmatprep.subr.bf16.mxu0 0
    %5844 = vmatpush1.bf16.msra.mxu0 %v5765
    %5845 = vmatprep.subr.bf16.mxu0 0
    %5846 = vmatpush1.bf16.msra.mxu0 %v5762
    %5847 = vmatprep.subr.bf16.mxu0 0
    %5848 = vmatpush1.bf16.msra.mxu0 %v5759
    %5849 = vmatprep.subr.bf16.mxu0 0
    %5850 = vmatpush1.bf16.msra.mxu0 %v5756
    %5851 = vmatprep.subr.bf16.mxu0 0
    %5852 = vmatpush1.bf16.msra.mxu0 %v5753
    %5853 = vmatprep.subr.bf16.mxu0 0
    %5854 = vmatpush2.bf16.msra.mxu0 0
    %5855 = vmatprep.subr.bf16.mxu0 0
    %5856 = vmatpush2.bf16.msra.mxu0 0
    %5857 = vmatprep.subr.bf16.mxu0 0
    %5858 = vmatpush2.bf16.msra.mxu0 0
    %5859 = vmatprep.subr.bf16.mxu0 0
    %5860 = vmatpush2.bf16.msra.mxu0 0
    %5861 = vmatprep.subr.bf16.mxu0 0
    %5862 = vmatpush2.bf16.msra.mxu0 0
    %5863 = vmatprep.subr.bf16.mxu0 0
    %5864 = vmatpush2.bf16.msra.mxu0 0
    %5865 = vmatprep.subr.bf16.mxu0 0
    %5866 = vmatpush2.bf16.msra.mxu0 0
    %5867 = vmatprep.subr.bf16.mxu0 0
    %5868 = vmatpush2.bf16.msra.mxu0 0
    %5869 = vmatprep.mubr.bf16.mxu0 0
    %5870 = vmatmul.mubr.bf16.gmra.mxu0 %v5785
    %v5871 = vpop.f32.mrf.mxu0
    %v5872 = vadd.f32 0.0, %v5871
    %v5873 = vpop.f32.mrf.mxu0
    %v5874 = vpop.f32.mrf.mxu0
    %v5875 = vpop.f32.mrf.mxu0
    %5876 = vdwg.mxu0
    %v5877 = vadd.f32 %v5670, %v5831
    %v5878 = vadd.f32 %v5671, %v5833
    %v5879 = vadd.f32 %v5672, %v5872
    %s5880 = scalar_lea.vmem %s3, 660
    %v5881 = vld [vmem:[%s5880] sm:$0xff]
    %v5882 = vld [vmem:[%s5880 + $0x8] sm:$0xf]
    %v5883 = vld [vmem:[%s5880 + $0xc] sm:$0xff]
    %v5884 = vld [vmem:[%s5880 + $0x14] sm:$0xf]
    %v5885 = vld [vmem:[%s5880 + $0x18] sm:$0xff]
    %v5886 = vld [vmem:[%s5880 + $0x20] sm:$0xf]
    %v5887 = vld [vmem:[%s5880 + $0x24] sm:$0xff]
    %v5888 = vld [vmem:[%s5880 + $0x2c] sm:$0xf]
    %v5889 = vld [vmem:[%s5880 + $0x30] sm:$0xff]
    %v5890 = vld [vmem:[%s5880 + $0x38] sm:$0xf]
    %v5891 = vld [vmem:[%s5880 + $0x3c] sm:$0xff]
    %v5892 = vld [vmem:[%s5880 + $0x44] sm:$0xf]
    %v5893 = vld [vmem:[%s5880 + $0x48] sm:$0xff]
    %v5894 = vld [vmem:[%s5880 + $0x50] sm:$0xf]
    %v5895 = vld [vmem:[%s5880 + $0x54] sm:$0xff]
    %v5896 = vld [vmem:[%s5880 + $0x5c] sm:$0xf]
    %v5897 = vld [vmem:[%s5880 + $0x60] sm:$0xff]
    %v5898 = vld [vmem:[%s5880 + $0x68] sm:$0xf]
    %v5899 = vld [vmem:[%s5880 + $0x6c] sm:$0xff]
    %v5900 = vld [vmem:[%s5880 + $0x74] sm:$0xf]
    %v5901 = vld [vmem:[%s5880 + $0x78] sm:$0x33]
    %v5902 = vld [vmem:[%s5880 + $0x80] sm:$0x3]
    %v5925 = vunpack.c.l.b16 %v5881
    %v5926 = vunpack.c.h.b16 %v5881
    %v5927 = vunpack.c.l.b16 %v5882
    %v5928 = vunpack.c.l.b16 %v5883
    %v5929 = vunpack.c.h.b16 %v5883
    %v5930 = vunpack.c.l.b16 %v5884
    %v5931 = vunpack.c.l.b16 %v5885
    %v5932 = vunpack.c.h.b16 %v5885
    %v5933 = vunpack.c.l.b16 %v5886
    %v5934 = vunpack.c.l.b16 %v5887
    %v5935 = vunpack.c.h.b16 %v5887
    %v5936 = vunpack.c.l.b16 %v5888
    %v5937 = vunpack.c.l.b16 %v5889
    %v5938 = vunpack.c.h.b16 %v5889
    %v5939 = vunpack.c.l.b16 %v5890
    %v5940 = vunpack.c.l.b16 %v5891
    %v5941 = vunpack.c.h.b16 %v5891
    %v5942 = vunpack.c.l.b16 %v5892
    %v5943 = vunpack.c.l.b16 %v5893
    %v5944 = vunpack.c.h.b16 %v5893
    %v5945 = vunpack.c.l.b16 %v5894
    %v5946 = vunpack.c.l.b16 %v5895
    %v5947 = vunpack.c.h.b16 %v5895
    %v5948 = vunpack.c.l.b16 %v5896
    %v5949 = vunpack.c.l.b16 %v5897
    %v5950 = vunpack.c.h.b16 %v5897
    %v5951 = vunpack.c.l.b16 %v5898
    %v5952 = vunpack.c.l.b16 %v5899
    %v5953 = vunpack.c.h.b16 %v5899
    %v5954 = vunpack.c.l.b16 %v5900
    %v5955 = vunpack.c.l.b16 %v5901
    %v5956 = vunpack.c.h.b16 %v5901
    %v5957 = vunpack.c.l.b16 %v5902
    %v5958 = vpack.c.b16 %v5928, %v5925
    %v5959 = vpack.c.b16 %v5929, %v5926
    %v5960 = vpack.c.b16 %v5930, %v5927
    %v5961 = vpack.c.b16 %v5934, %v5931
    %v5962 = vpack.c.b16 %v5935, %v5932
    %v5963 = vpack.c.b16 %v5936, %v5933
    %v5964 = vpack.c.b16 %v5940, %v5937
    %v5965 = vpack.c.b16 %v5941, %v5938
    %v5966 = vpack.c.b16 %v5942, %v5939
    %v5967 = vpack.c.b16 %v5946, %v5943
    %v5968 = vpack.c.b16 %v5947, %v5944
    %v5969 = vpack.c.b16 %v5948, %v5945
    %v5970 = vpack.c.b16 %v5952, %v5949
    %v5971 = vpack.c.b16 %v5953, %v5950
    %v5972 = vpack.c.b16 %v5954, %v5951
    %v5973 = vpack.c.b16 %v5955, %v5955
    %v5974 = vpack.c.b16 %v5956, %v5956
    %v5975 = vpack.c.b16 %v5957, %v5957
    %v5992 = vsel %vm4983, %v2541, 0
    %v5995 = vsel %vm4987, %v5973, 0
    %v5998 = vsel %vm4987, %v5974, 0
    %v6001 = vsel %vm4987, %v5975, 0
    %6003 = vmatprep.subr.bf16.mxu0 0
    %6004 = vmatpush1.bf16.msra.mxu0 0
    %6005 = vmatprep.subr.bf16.mxu0 0
    %6006 = vmatpush1.bf16.msra.mxu0 0
    %6007 = vmatprep.subr.bf16.mxu0 %v5998
    %6008 = vmatpush1.bf16.msra.mxu0 %v5995
    %6009 = vmatprep.subr.bf16.mxu0 %v5971
    %6010 = vmatpush1.bf16.msra.mxu0 %v5970
    %6011 = vmatprep.subr.bf16.mxu0 %v5968
    %6012 = vmatpush1.bf16.msra.mxu0 %v5967
    %6013 = vmatprep.subr.bf16.mxu0 %v5965
    %6014 = vmatpush1.bf16.msra.mxu0 %v5964
    %6015 = vmatprep.subr.bf16.mxu0 %v5962
    %6016 = vmatpush1.bf16.msra.mxu0 %v5961
    %6017 = vmatprep.subr.bf16.mxu0 %v5959
    %6018 = vmatpush1.bf16.msra.mxu0 %v5958
    %6019 = vmatprep.subr.bf16.mxu0 0
    %6020 = vmatpush2.bf16.msra.mxu0 0
    %6021 = vmatprep.subr.bf16.mxu0 0
    %6022 = vmatpush2.bf16.msra.mxu0 0
    %6023 = vmatprep.subr.bf16.mxu0 0
    %6024 = vmatpush2.bf16.msra.mxu0 0
    %6025 = vmatprep.subr.bf16.mxu0 0
    %6026 = vmatpush2.bf16.msra.mxu0 0
    %6027 = vmatprep.subr.bf16.mxu0 0
    %6028 = vmatpush2.bf16.msra.mxu0 0
    %6029 = vmatprep.subr.bf16.mxu0 0
    %6030 = vmatpush2.bf16.msra.mxu0 0
    %6031 = vmatprep.subr.bf16.mxu0 0
    %6032 = vmatpush2.bf16.msra.mxu0 0
    %6033 = vmatprep.subr.bf16.mxu0 0
    %6034 = vmatpush2.bf16.msra.mxu0 0
    %6035 = vmatprep.mubr.bf16.mxu0 0
    %6036 = vmatmul.mubr.bf16.gmra.mxu0 %v5992
    %v6037 = vpop.f32.mrf.mxu0
    %v6038 = vadd.f32 0.0, %v6037
    %v6039 = vpop.f32.mrf.mxu0
    %v6040 = vadd.f32 0.0, %v6039
    %v6041 = vpop.f32.mrf.mxu0
    %v6042 = vpop.f32.mrf.mxu0
    %6043 = vdwg.mxu0
    %6044 = vmatprep.subr.bf16.mxu0 0
    %6045 = vmatpush1.bf16.msra.mxu0 0
    %6046 = vmatprep.subr.bf16.mxu0 0
    %6047 = vmatpush1.bf16.msra.mxu0 0
    %6048 = vmatprep.subr.bf16.mxu0 0
    %6049 = vmatpush1.bf16.msra.mxu0 %v6001
    %6050 = vmatprep.subr.bf16.mxu0 0
    %6051 = vmatpush1.bf16.msra.mxu0 %v5972
    %6052 = vmatprep.subr.bf16.mxu0 0
    %6053 = vmatpush1.bf16.msra.mxu0 %v5969
    %6054 = vmatprep.subr.bf16.mxu0 0
    %6055 = vmatpush1.bf16.msra.mxu0 %v5966
    %6056 = vmatprep.subr.bf16.mxu0 0
    %6057 = vmatpush1.bf16.msra.mxu0 %v5963
    %6058 = vmatprep.subr.bf16.mxu0 0
    %6059 = vmatpush1.bf16.msra.mxu0 %v5960
    %6060 = vmatprep.subr.bf16.mxu0 0
    %6061 = vmatpush2.bf16.msra.mxu0 0
    %6062 = vmatprep.subr.bf16.mxu0 0
    %6063 = vmatpush2.bf16.msra.mxu0 0
    %6064 = vmatprep.subr.bf16.mxu0 0
    %6065 = vmatpush2.bf16.msra.mxu0 0
    %6066 = vmatprep.subr.bf16.mxu0 0
    %6067 = vmatpush2.bf16.msra.mxu0 0
    %6068 = vmatprep.subr.bf16.mxu0 0
    %6069 = vmatpush2.bf16.msra.mxu0 0
    %6070 = vmatprep.subr.bf16.mxu0 0
    %6071 = vmatpush2.bf16.msra.mxu0 0
    %6072 = vmatprep.subr.bf16.mxu0 0
    %6073 = vmatpush2.bf16.msra.mxu0 0
    %6074 = vmatprep.subr.bf16.mxu0 0
    %6075 = vmatpush2.bf16.msra.mxu0 0
    %6076 = vmatprep.mubr.bf16.mxu0 0
    %6077 = vmatmul.mubr.bf16.gmra.mxu0 %v5992
    %v6078 = vpop.f32.mrf.mxu0
    %v6079 = vadd.f32 0.0, %v6078
    %v6080 = vpop.f32.mrf.mxu0
    %v6081 = vpop.f32.mrf.mxu0
    %v6082 = vpop.f32.mrf.mxu0
    %6083 = vdwg.mxu0
    %v6084 = vadd.f32 %v5877, %v6038
    %v6085 = vadd.f32 %v5878, %v6040
    %v6086 = vadd.f32 %v5879, %v6079
    %6089 = vrot.lane.b32.xlu0 %v6084, 48
    %v6090 = vpop.permute.xlu0 %6089
    %6091 = vrot.lane.b32.xlu0 %v6085, 48
    %v6092 = vpop.permute.xlu0 %6091
    %vm6093 = vcmask 392192
    %v6094 = vsel %vm6093, %v6090, %v6092
    %v6096 = vmax.f32 %v6084, %v6094
    %6098 = vrot.lane.b32.xlu0 %v6086, 48
    %v6099 = vpop.permute.xlu0 %6098
    %v6100 = vsel %vm6093, %v6092, %v6099
    %v6102 = vmax.f32 %v6085, %v6100
    %6104 = vrot.lane.b32.xlu0 %v6102, 96
    %v6105 = vpop.permute.xlu0 %6104
    %v6107 = vmax.f32 %v6096, %v6105
    %v6108 = vld [vmem:[%s4] sm:$0x1]
    %v6110 = vlaneseq
    %v6111 = vshrl.u32 %v6110, 7
    %v6112 = vsub.s32 0, %v6111
    %v6113 = vrot.slane %v6108, %v6112
    %v6115 = vadd.f32 %v6107, %v6113
    %v6116 = vmax.f32 %v6115, 0.0
    %v6117 = vpack.c.bf16 %v6116, %v6116
    %v6118 = vld [vmem:[%s5] sm:$0xf]
    %v6119 = vld [vmem:[%s5 + $0x4] sm:$0xf]
    %v6120 = vld [vmem:[%s5 + $0x8] sm:$0xf]
    %v6121 = vld [vmem:[%s5 + $0xc] sm:$0xf]
    %v6122 = vld [vmem:[%s5 + $0x10] sm:$0xf]
    %v6123 = vld [vmem:[%s5 + $0x14] sm:$0xf]
    %v6124 = vld [vmem:[%s5 + $0x18] sm:$0xf]
    %v6125 = vld [vmem:[%s5 + $0x1c] sm:$0xf]
    %v6126 = vld [vmem:[%s5 + $0x20] sm:$0xf]
    %v6127 = vld [vmem:[%s5 + $0x24] sm:$0xf]
    %6128 = vmatprep.subr.bf16.mxu0 0
    %6129 = vmatpush1.bf16.msra.mxu0 0
    %6130 = vmatprep.subr.bf16.mxu0 0
    %6131 = vmatpush1.bf16.msra.mxu0 0
    %6132 = vmatprep.subr.bf16.mxu0 %v4992
    %6133 = vmatpush1.bf16.msra.mxu0 %v4989
    %6134 = vmatprep.subr.bf16.mxu0 %v4963
    %6135 = vmatpush1.bf16.msra.mxu0 %v4962
    %6136 = vmatprep.subr.bf16.mxu0 %v4960
    %6137 = vmatpush1.bf16.msra.mxu0 %v4959
    %6138 = vmatprep.subr.bf16.mxu0 %v4957
    %6139 = vmatpush1.bf16.msra.mxu0 %v4956
    %6140 = vmatprep.subr.bf16.mxu0 %v4954
    %6141 = vmatpush1.bf16.msra.mxu0 %v4953
    %6142 = vmatprep.subr.bf16.mxu0 %v4951
    %6143 = vmatpush1.bf16.msra.mxu0 %v4950
    %6144 = vmatprep.subr.bf16.mxu0 0
    %6145 = vmatpush2.bf16.msra.mxu0 0
    %6146 = vmatprep.subr.bf16.mxu0 0
    %6147 = vmatpush2.bf16.msra.mxu0 0
    %6148 = vmatprep.subr.bf16.mxu0 0
    %6149 = vmatpush2.bf16.msra.mxu0 0
    %6150 = vmatprep.subr.bf16.mxu0 0
    %6151 = vmatpush2.bf16.msra.mxu0 0
    %6152 = vmatprep.subr.bf16.mxu0 0
    %6153 = vmatpush2.bf16.msra.mxu0 0
    %6154 = vmatprep.subr.bf16.mxu0 0
    %6155 = vmatpush2.bf16.msra.mxu0 0
    %6156 = vmatprep.subr.bf16.mxu0 0
    %6157 = vmatpush2.bf16.msra.mxu0 0
    %6158 = vmatprep.subr.bf16.mxu0 0
    %6159 = vmatpush2.bf16.msra.mxu0 0
    %6160 = vmatprep.mubr.bf16.mxu0 0
    %6161 = vmatmul.mubr.bf16.gmra.mxu0 %v5578
    %v6162 = vpop.f32.mrf.mxu0
    %v6163 = vadd.f32 0.0, %v6162
    %v6164 = vpop.f32.mrf.mxu0
    %v6165 = vadd.f32 0.0, %v6164
    %v6166 = vpop.f32.mrf.mxu0
    %v6167 = vpop.f32.mrf.mxu0
    %6168 = vdwg.mxu0
    %6169 = vmatprep.subr.bf16.mxu0 0
    %6170 = vmatpush1.bf16.msra.mxu0 0
    %6171 = vmatprep.subr.bf16.mxu0 0
    %6172 = vmatpush1.bf16.msra.mxu0 0
    %6173 = vmatprep.subr.bf16.mxu0 0
    %6174 = vmatpush1.bf16.msra.mxu0 %v4995
    %6175 = vmatprep.subr.bf16.mxu0 0
    %6176 = vmatpush1.bf16.msra.mxu0 %v4964
    %6177 = vmatprep.subr.bf16.mxu0 0
    %6178 = vmatpush1.bf16.msra.mxu0 %v4961
    %6179 = vmatprep.subr.bf16.mxu0 0
    %6180 = vmatpush1.bf16.msra.mxu0 %v4958
    %6181 = vmatprep.subr.bf16.mxu0 0
    %6182 = vmatpush1.bf16.msra.mxu0 %v4955
    %6183 = vmatprep.subr.bf16.mxu0 0
    %6184 = vmatpush1.bf16.msra.mxu0 %v4952
    %6185 = vmatprep.subr.bf16.mxu0 0
    %6186 = vmatpush2.bf16.msra.mxu0 0
    %6187 = vmatprep.subr.bf16.mxu0 0
    %6188 = vmatpush2.bf16.msra.mxu0 0
    %6189 = vmatprep.subr.bf16.mxu0 0
    %6190 = vmatpush2.bf16.msra.mxu0 0
    %6191 = vmatprep.subr.bf16.mxu0 0
    %6192 = vmatpush2.bf16.msra.mxu0 0
    %6193 = vmatprep.subr.bf16.mxu0 0
    %6194 = vmatpush2.bf16.msra.mxu0 0
    %6195 = vmatprep.subr.bf16.mxu0 0
    %6196 = vmatpush2.bf16.msra.mxu0 0
    %6197 = vmatprep.subr.bf16.mxu0 0
    %6198 = vmatpush2.bf16.msra.mxu0 0
    %6199 = vmatprep.subr.bf16.mxu0 0
    %6200 = vmatpush2.bf16.msra.mxu0 0
    %6201 = vmatprep.mubr.bf16.mxu0 0
    %6202 = vmatmul.mubr.bf16.gmra.mxu0 %v5578
    %v6203 = vpop.f32.mrf.mxu0
    %v6204 = vadd.f32 0.0, %v6203
    %v6205 = vpop.f32.mrf.mxu0
    %v6206 = vpop.f32.mrf.mxu0
    %v6207 = vpop.f32.mrf.mxu0
    %6208 = vdwg.mxu0
    %6209 = vmatprep.subr.bf16.mxu0 0
    %6210 = vmatpush1.bf16.msra.mxu0 0
    %6211 = vmatprep.subr.bf16.mxu0 0
    %6212 = vmatpush1.bf16.msra.mxu0 0
    %6213 = vmatprep.subr.bf16.mxu0 %v5173
    %6214 = vmatpush1.bf16.msra.mxu0 %v5170
    %6215 = vmatprep.subr.bf16.mxu0 %v5146
    %6216 = vmatpush1.bf16.msra.mxu0 %v5145
    %6217 = vmatprep.subr.bf16.mxu0 %v5143
    %6218 = vmatpush1.bf16.msra.mxu0 %v5142
    %6219 = vmatprep.subr.bf16.mxu0 %v5140
    %6220 = vmatpush1.bf16.msra.mxu0 %v5139
    %6221 = vmatprep.subr.bf16.mxu0 %v5137
    %6222 = vmatpush1.bf16.msra.mxu0 %v5136
    %6223 = vmatprep.subr.bf16.mxu0 %v5134
    %6224 = vmatpush1.bf16.msra.mxu0 %v5133
    %6225 = vmatprep.subr.bf16.mxu0 0
    %6226 = vmatpush2.bf16.msra.mxu0 0
    %6227 = vmatprep.subr.bf16.mxu0 0
    %6228 = vmatpush2.bf16.msra.mxu0 0
    %6229 = vmatprep.subr.bf16.mxu0 0
    %6230 = vmatpush2.bf16.msra.mxu0 0
    %6231 = vmatprep.subr.bf16.mxu0 0
    %6232 = vmatpush2.bf16.msra.mxu0 0
    %6233 = vmatprep.subr.bf16.mxu0 0
    %6234 = vmatpush2.bf16.msra.mxu0 0
    %6235 = vmatprep.subr.bf16.mxu0 0
    %6236 = vmatpush2.bf16.msra.mxu0 0
    %6237 = vmatprep.subr.bf16.mxu0 0
    %6238 = vmatpush2.bf16.msra.mxu0 0
    %6239 = vmatprep.subr.bf16.mxu0 0
    %6240 = vmatpush2.bf16.msra.mxu0 0
    %6241 = vmatprep.mubr.bf16.mxu0 0
    %6242 = vmatmul.mubr.bf16.gmra.mxu0 %v5371
    %v6243 = vpop.f32.mrf.mxu0
    %v6244 = vadd.f32 %v6163, %v6243
    %v6245 = vpop.f32.mrf.mxu0
    %v6246 = vadd.f32 %v6165, %v6245
    %v6247 = vpop.f32.mrf.mxu0
    %v6248 = vpop.f32.mrf.mxu0
    %6249 = vdwg.mxu0
    %6250 = vmatprep.subr.bf16.mxu0 0
    %6251 = vmatpush1.bf16.msra.mxu0 0
    %6252 = vmatprep.subr.bf16.mxu0 0
    %6253 = vmatpush1.bf16.msra.mxu0 0
    %6254 = vmatprep.subr.bf16.mxu0 0
    %6255 = vmatpush1.bf16.msra.mxu0 %v5176
    %6256 = vmatprep.subr.bf16.mxu0 0
    %6257 = vmatpush1.bf16.msra.mxu0 %v5147
    %6258 = vmatprep.subr.bf16.mxu0 0
    %6259 = vmatpush1.bf16.msra.mxu0 %v5144
    %6260 = vmatprep.subr.bf16.mxu0 0
    %6261 = vmatpush1.bf16.msra.mxu0 %v5141
    %6262 = vmatprep.subr.bf16.mxu0 0
    %6263 = vmatpush1.bf16.msra.mxu0 %v5138
    %6264 = vmatprep.subr.bf16.mxu0 0
    %6265 = vmatpush1.bf16.msra.mxu0 %v5135
    %6266 = vmatprep.subr.bf16.mxu0 0
    %6267 = vmatpush2.bf16.msra.mxu0 0
    %6268 = vmatprep.subr.bf16.mxu0 0
    %6269 = vmatpush2.bf16.msra.mxu0 0
    %6270 = vmatprep.subr.bf16.mxu0 0
    %6271 = vmatpush2.bf16.msra.mxu0 0
    %6272 = vmatprep.subr.bf16.mxu0 0
    %6273 = vmatpush2.bf16.msra.mxu0 0
    %6274 = vmatprep.subr.bf16.mxu0 0
    %6275 = vmatpush2.bf16.msra.mxu0 0
    %6276 = vmatprep.subr.bf16.mxu0 0
    %6277 = vmatpush2.bf16.msra.mxu0 0
    %6278 = vmatprep.subr.bf16.mxu0 0
    %6279 = vmatpush2.bf16.msra.mxu0 0
    %6280 = vmatprep.subr.bf16.mxu0 0
    %6281 = vmatpush2.bf16.msra.mxu0 0
    %6282 = vmatprep.mubr.bf16.mxu0 0
    %6283 = vmatmul.mubr.bf16.gmra.mxu0 %v5371
    %v6284 = vpop.f32.mrf.mxu0
    %v6285 = vadd.f32 %v6204, %v6284
    %v6286 = vpop.f32.mrf.mxu0
    %v6287 = vpop.f32.mrf.mxu0
    %v6288 = vpop.f32.mrf.mxu0
    %6289 = vdwg.mxu0
    %6290 = vmatprep.subr.bf16.mxu0 0
    %6291 = vmatpush1.bf16.msra.mxu0 0
    %6292 = vmatprep.subr.bf16.mxu0 0
    %6293 = vmatpush1.bf16.msra.mxu0 0
    %6294 = vmatprep.subr.bf16.mxu0 %v5377
    %6295 = vmatpush1.bf16.msra.mxu0 %v5374
    %6296 = vmatprep.subr.bf16.mxu0 %v5350
    %6297 = vmatpush1.bf16.msra.mxu0 %v5349
    %6298 = vmatprep.subr.bf16.mxu0 %v5347
    %6299 = vmatpush1.bf16.msra.mxu0 %v5346
    %6300 = vmatprep.subr.bf16.mxu0 %v5344
    %6301 = vmatpush1.bf16.msra.mxu0 %v5343
    %6302 = vmatprep.subr.bf16.mxu0 %v5341
    %6303 = vmatpush1.bf16.msra.mxu0 %v5340
    %6304 = vmatprep.subr.bf16.mxu0 %v5338
    %6305 = vmatpush1.bf16.msra.mxu0 %v5337
    %6306 = vmatprep.subr.bf16.mxu0 0
    %6307 = vmatpush2.bf16.msra.mxu0 0
    %6308 = vmatprep.subr.bf16.mxu0 0
    %6309 = vmatpush2.bf16.msra.mxu0 0
    %6310 = vmatprep.subr.bf16.mxu0 0
    %6311 = vmatpush2.bf16.msra.mxu0 0
    %6312 = vmatprep.subr.bf16.mxu0 0
    %6313 = vmatpush2.bf16.msra.mxu0 0
    %6314 = vmatprep.subr.bf16.mxu0 0
    %6315 = vmatpush2.bf16.msra.mxu0 0
    %6316 = vmatprep.subr.bf16.mxu0 0
    %6317 = vmatpush2.bf16.msra.mxu0 0
    %6318 = vmatprep.subr.bf16.mxu0 0
    %6319 = vmatpush2.bf16.msra.mxu0 0
    %6320 = vmatprep.subr.bf16.mxu0 0
    %6321 = vmatpush2.bf16.msra.mxu0 0
    %6322 = vmatprep.mubr.bf16.mxu0 0
    %6323 = vmatmul.mubr.bf16.gmra.mxu0 %v5785
    %v6324 = vpop.f32.mrf.mxu0
    %v6325 = vadd.f32 0.0, %v6324
    %v6326 = vpop.f32.mrf.mxu0
    %v6327 = vadd.f32 0.0, %v6326
    %v6328 = vpop.f32.mrf.mxu0
    %v6329 = vpop.f32.mrf.mxu0
    %6330 = vdwg.mxu0
    %6331 = vmatprep.subr.bf16.mxu0 0
    %6332 = vmatpush1.bf16.msra.mxu0 0
    %6333 = vmatprep.subr.bf16.mxu0 0
    %6334 = vmatpush1.bf16.msra.mxu0 0
    %6335 = vmatprep.subr.bf16.mxu0 0
    %6336 = vmatpush1.bf16.msra.mxu0 %v5380
    %6337 = vmatprep.subr.bf16.mxu0 0
    %6338 = vmatpush1.bf16.msra.mxu0 %v5351
    %6339 = vmatprep.subr.bf16.mxu0 0
    %6340 = vmatpush1.bf16.msra.mxu0 %v5348
    %6341 = vmatprep.subr.bf16.mxu0 0
    %6342 = vmatpush1.bf16.msra.mxu0 %v5345
    %6343 = vmatprep.subr.bf16.mxu0 0
    %6344 = vmatpush1.bf16.msra.mxu0 %v5342
    %6345 = vmatprep.subr.bf16.mxu0 0
    %6346 = vmatpush1.bf16.msra.mxu0 %v5339
    %6347 = vmatprep.subr.bf16.mxu0 0
    %6348 = vmatpush2.bf16.msra.mxu0 0
    %6349 = vmatprep.subr.bf16.mxu0 0
    %6350 = vmatpush2.bf16.msra.mxu0 0
    %6351 = vmatprep.subr.bf16.mxu0 0
    %6352 = vmatpush2.bf16.msra.mxu0 0
    %6353 = vmatprep.subr.bf16.mxu0 0
    %6354 = vmatpush2.bf16.msra.mxu0 0
    %6355 = vmatprep.subr.bf16.mxu0 0
    %6356 = vmatpush2.bf16.msra.mxu0 0
    %6357 = vmatprep.subr.bf16.mxu0 0
    %6358 = vmatpush2.bf16.msra.mxu0 0
    %6359 = vmatprep.subr.bf16.mxu0 0
    %6360 = vmatpush2.bf16.msra.mxu0 0
    %6361 = vmatprep.subr.bf16.mxu0 0
    %6362 = vmatpush2.bf16.msra.mxu0 0
    %6363 = vmatprep.mubr.bf16.mxu0 0
    %6364 = vmatmul.mubr.bf16.gmra.mxu0 %v5785
    %v6365 = vpop.f32.mrf.mxu0
    %v6366 = vadd.f32 0.0, %v6365
    %v6367 = vpop.f32.mrf.mxu0
    %v6368 = vpop.f32.mrf.mxu0
    %v6369 = vpop.f32.mrf.mxu0
    %6370 = vdwg.mxu0
    %v6371 = vadd.f32 %v6244, %v6325
    %v6372 = vadd.f32 %v6246, %v6327
    %v6373 = vadd.f32 %v6285, %v6366
    %6374 = vmatprep.subr.bf16.mxu0 0
    %6375 = vmatpush1.bf16.msra.mxu0 0
    %6376 = vmatprep.subr.bf16.mxu0 0
    %6377 = vmatpush1.bf16.msra.mxu0 0
    %6378 = vmatprep.subr.bf16.mxu0 %v5584
    %6379 = vmatpush1.bf16.msra.mxu0 %v5581
    %6380 = vmatprep.subr.bf16.mxu0 %v5557
    %6381 = vmatpush1.bf16.msra.mxu0 %v5556
    %6382 = vmatprep.subr.bf16.mxu0 %v5554
    %6383 = vmatpush1.bf16.msra.mxu0 %v5553
    %6384 = vmatprep.subr.bf16.mxu0 %v5551
    %6385 = vmatpush1.bf16.msra.mxu0 %v5550
    %6386 = vmatprep.subr.bf16.mxu0 %v5548
    %6387 = vmatpush1.bf16.msra.mxu0 %v5547
    %6388 = vmatprep.subr.bf16.mxu0 %v5545
    %6389 = vmatpush1.bf16.msra.mxu0 %v5544
    %6390 = vmatprep.subr.bf16.mxu0 0
    %6391 = vmatpush2.bf16.msra.mxu0 0
    %6392 = vmatprep.subr.bf16.mxu0 0
    %6393 = vmatpush2.bf16.msra.mxu0 0
    %6394 = vmatprep.subr.bf16.mxu0 0
    %6395 = vmatpush2.bf16.msra.mxu0 0
    %6396 = vmatprep.subr.bf16.mxu0 0
    %6397 = vmatpush2.bf16.msra.mxu0 0
    %6398 = vmatprep.subr.bf16.mxu0 0
    %6399 = vmatpush2.bf16.msra.mxu0 0
    %6400 = vmatprep.subr.bf16.mxu0 0
    %6401 = vmatpush2.bf16.msra.mxu0 0
    %6402 = vmatprep.subr.bf16.mxu0 0
    %6403 = vmatpush2.bf16.msra.mxu0 0
    %6404 = vmatprep.subr.bf16.mxu0 0
    %6405 = vmatpush2.bf16.msra.mxu0 0
    %6406 = vmatprep.mubr.bf16.mxu0 0
    %6407 = vmatmul.mubr.bf16.gmra.mxu0 %v5992
    %v6408 = vpop.f32.mrf.mxu0
    %v6409 = vadd.f32 0.0, %v6408
    %v6410 = vpop.f32.mrf.mxu0
    %v6411 = vadd.f32 0.0, %v6410
    %v6412 = vpop.f32.mrf.mxu0
    %v6413 = vpop.f32.mrf.mxu0
    %6414 = vdwg.mxu0
    %6415 = vmatprep.subr.bf16.mxu0 0
    %6416 = vmatpush1.bf16.msra.mxu0 0
    %6417 = vmatprep.subr.bf16.mxu0 0
    %6418 = vmatpush1.bf16.msra.mxu0 0
    %6419 = vmatprep.subr.bf16.mxu0 0
    %6420 = vmatpush1.bf16.msra.mxu0 %v5587
    %6421 = vmatprep.subr.bf16.mxu0 0
    %6422 = vmatpush1.bf16.msra.mxu0 %v5558
    %6423 = vmatprep.subr.bf16.mxu0 0
    %6424 = vmatpush1.bf16.msra.mxu0 %v5555
    %6425 = vmatprep.subr.bf16.mxu0 0
    %6426 = vmatpush1.bf16.msra.mxu0 %v5552
    %6427 = vmatprep.subr.bf16.mxu0 0
    %6428 = vmatpush1.bf16.msra.mxu0 %v5549
    %6429 = vmatprep.subr.bf16.mxu0 0
    %6430 = vmatpush1.bf16.msra.mxu0 %v5546
    %6431 = vmatprep.subr.bf16.mxu0 0
    %6432 = vmatpush2.bf16.msra.mxu0 0
    %6433 = vmatprep.subr.bf16.mxu0 0
    %6434 = vmatpush2.bf16.msra.mxu0 0
    %6435 = vmatprep.subr.bf16.mxu0 0
    %6436 = vmatpush2.bf16.msra.mxu0 0
    %6437 = vmatprep.subr.bf16.mxu0 0
    %6438 = vmatpush2.bf16.msra.mxu0 0
    %6439 = vmatprep.subr.bf16.mxu0 0
    %6440 = vmatpush2.bf16.msra.mxu0 0
    %6441 = vmatprep.subr.bf16.mxu0 0
    %6442 = vmatpush2.bf16.msra.mxu0 0
    %6443 = vmatprep.subr.bf16.mxu0 0
    %6444 = vmatpush2.bf16.msra.mxu0 0
    %6445 = vmatprep.subr.bf16.mxu0 0
    %6446 = vmatpush2.bf16.msra.mxu0 0
    %6447 = vmatprep.mubr.bf16.mxu0 0
    %6448 = vmatmul.mubr.bf16.gmra.mxu0 %v5992
    %v6449 = vpop.f32.mrf.mxu0
    %v6450 = vadd.f32 0.0, %v6449
    %v6451 = vpop.f32.mrf.mxu0
    %v6452 = vpop.f32.mrf.mxu0
    %v6453 = vpop.f32.mrf.mxu0
    %6454 = vdwg.mxu0
    %v6455 = vadd.f32 %v6371, %v6409
    %v6456 = vadd.f32 %v6372, %v6411
    %v6457 = vadd.f32 %v6373, %v6450
    %v6459 = vsel %vm4983, %v2836, 0
    %6461 = vmatprep.subr.bf16.mxu0 0
    %6462 = vmatpush1.bf16.msra.mxu0 0
    %6463 = vmatprep.subr.bf16.mxu0 0
    %6464 = vmatpush1.bf16.msra.mxu0 0
    %6465 = vmatprep.subr.bf16.mxu0 %v5791
    %6466 = vmatpush1.bf16.msra.mxu0 %v5788
    %6467 = vmatprep.subr.bf16.mxu0 %v5764
    %6468 = vmatpush1.bf16.msra.mxu0 %v5763
    %6469 = vmatprep.subr.bf16.mxu0 %v5761
    %6470 = vmatpush1.bf16.msra.mxu0 %v5760
    %6471 = vmatprep.subr.bf16.mxu0 %v5758
    %6472 = vmatpush1.bf16.msra.mxu0 %v5757
    %6473 = vmatprep.subr.bf16.mxu0 %v5755
    %6474 = vmatpush1.bf16.msra.mxu0 %v5754
    %6475 = vmatprep.subr.bf16.mxu0 %v5752
    %6476 = vmatpush1.bf16.msra.mxu0 %v5751
    %6477 = vmatprep.subr.bf16.mxu0 0
    %6478 = vmatpush2.bf16.msra.mxu0 0
    %6479 = vmatprep.subr.bf16.mxu0 0
    %6480 = vmatpush2.bf16.msra.mxu0 0
    %6481 = vmatprep.subr.bf16.mxu0 0
    %6482 = vmatpush2.bf16.msra.mxu0 0
    %6483 = vmatprep.subr.bf16.mxu0 0
    %6484 = vmatpush2.bf16.msra.mxu0 0
    %6485 = vmatprep.subr.bf16.mxu0 0
    %6486 = vmatpush2.bf16.msra.mxu0 0
    %6487 = vmatprep.subr.bf16.mxu0 0
    %6488 = vmatpush2.bf16.msra.mxu0 0
    %6489 = vmatprep.subr.bf16.mxu0 0
    %6490 = vmatpush2.bf16.msra.mxu0 0
    %6491 = vmatprep.subr.bf16.mxu0 0
    %6492 = vmatpush2.bf16.msra.mxu0 0
    %6493 = vmatprep.mubr.bf16.mxu0 0
    %6494 = vmatmul.mubr.bf16.gmra.mxu0 %v6459
    %v6495 = vpop.f32.mrf.mxu0
    %v6496 = vadd.f32 0.0, %v6495
    %v6497 = vpop.f32.mrf.mxu0
    %v6498 = vadd.f32 0.0, %v6497
    %v6499 = vpop.f32.mrf.mxu0
    %v6500 = vpop.f32.mrf.mxu0
    %6501 = vdwg.mxu0
    %6502 = vmatprep.subr.bf16.mxu0 0
    %6503 = vmatpush1.bf16.msra.mxu0 0
    %6504 = vmatprep.subr.bf16.mxu0 0
    %6505 = vmatpush1.bf16.msra.mxu0 0
    %6506 = vmatprep.subr.bf16.mxu0 0
    %6507 = vmatpush1.bf16.msra.mxu0 %v5794
    %6508 = vmatprep.subr.bf16.mxu0 0
    %6509 = vmatpush1.bf16.msra.mxu0 %v5765
    %6510 = vmatprep.subr.bf16.mxu0 0
    %6511 = vmatpush1.bf16.msra.mxu0 %v5762
    %6512 = vmatprep.subr.bf16.mxu0 0
    %6513 = vmatpush1.bf16.msra.mxu0 %v5759
    %6514 = vmatprep.subr.bf16.mxu0 0
    %6515 = vmatpush1.bf16.msra.mxu0 %v5756
    %6516 = vmatprep.subr.bf16.mxu0 0
    %6517 = vmatpush1.bf16.msra.mxu0 %v5753
    %6518 = vmatprep.subr.bf16.mxu0 0
    %6519 = vmatpush2.bf16.msra.mxu0 0
    %6520 = vmatprep.subr.bf16.mxu0 0
    %6521 = vmatpush2.bf16.msra.mxu0 0
    %6522 = vmatprep.subr.bf16.mxu0 0
    %6523 = vmatpush2.bf16.msra.mxu0 0
    %6524 = vmatprep.subr.bf16.mxu0 0
    %6525 = vmatpush2.bf16.msra.mxu0 0
    %6526 = vmatprep.subr.bf16.mxu0 0
    %6527 = vmatpush2.bf16.msra.mxu0 0
    %6528 = vmatprep.subr.bf16.mxu0 0
    %6529 = vmatpush2.bf16.msra.mxu0 0
    %6530 = vmatprep.subr.bf16.mxu0 0
    %6531 = vmatpush2.bf16.msra.mxu0 0
    %6532 = vmatprep.subr.bf16.mxu0 0
    %6533 = vmatpush2.bf16.msra.mxu0 0
    %6534 = vmatprep.mubr.bf16.mxu0 0
    %6535 = vmatmul.mubr.bf16.gmra.mxu0 %v6459
    %v6536 = vpop.f32.mrf.mxu0
    %v6537 = vadd.f32 0.0, %v6536
    %v6538 = vpop.f32.mrf.mxu0
    %v6539 = vpop.f32.mrf.mxu0
    %v6540 = vpop.f32.mrf.mxu0
    %6541 = vdwg.mxu0
    %v6542 = vadd.f32 %v6455, %v6496
    %v6543 = vadd.f32 %v6456, %v6498
    %v6544 = vadd.f32 %v6457, %v6537
    %v6546 = vsel %vm4983, %v3115, 0
    %6548 = vmatprep.subr.bf16.mxu0 0
    %6549 = vmatpush1.bf16.msra.mxu0 0
    %6550 = vmatprep.subr.bf16.mxu0 0
    %6551 = vmatpush1.bf16.msra.mxu0 0
    %6552 = vmatprep.subr.bf16.mxu0 %v5998
    %6553 = vmatpush1.bf16.msra.mxu0 %v5995
    %6554 = vmatprep.subr.bf16.mxu0 %v5971
    %6555 = vmatpush1.bf16.msra.mxu0 %v5970
    %6556 = vmatprep.subr.bf16.mxu0 %v5968
    %6557 = vmatpush1.bf16.msra.mxu0 %v5967
    %6558 = vmatprep.subr.bf16.mxu0 %v5965
    %6559 = vmatpush1.bf16.msra.mxu0 %v5964
    %6560 = vmatprep.subr.bf16.mxu0 %v5962
    %6561 = vmatpush1.bf16.msra.mxu0 %v5961
    %6562 = vmatprep.subr.bf16.mxu0 %v5959
    %6563 = vmatpush1.bf16.msra.mxu0 %v5958
    %6564 = vmatprep.subr.bf16.mxu0 0
    %6565 = vmatpush2.bf16.msra.mxu0 0
    %6566 = vmatprep.subr.bf16.mxu0 0
    %6567 = vmatpush2.bf16.msra.mxu0 0
    %6568 = vmatprep.subr.bf16.mxu0 0
    %6569 = vmatpush2.bf16.msra.mxu0 0
    %6570 = vmatprep.subr.bf16.mxu0 0
    %6571 = vmatpush2.bf16.msra.mxu0 0
    %6572 = vmatprep.subr.bf16.mxu0 0
    %6573 = vmatpush2.bf16.msra.mxu0 0
    %6574 = vmatprep.subr.bf16.mxu0 0
    %6575 = vmatpush2.bf16.msra.mxu0 0
    %6576 = vmatprep.subr.bf16.mxu0 0
    %6577 = vmatpush2.bf16.msra.mxu0 0
    %6578 = vmatprep.subr.bf16.mxu0 0
    %6579 = vmatpush2.bf16.msra.mxu0 0
    %6580 = vmatprep.mubr.bf16.mxu0 0
    %6581 = vmatmul.mubr.bf16.gmra.mxu0 %v6546
    %v6582 = vpop.f32.mrf.mxu0
    %v6583 = vadd.f32 0.0, %v6582
    %v6584 = vpop.f32.mrf.mxu0
    %v6585 = vadd.f32 0.0, %v6584
    %v6586 = vpop.f32.mrf.mxu0
    %v6587 = vpop.f32.mrf.mxu0
    %6588 = vdwg.mxu0
    %6589 = vmatprep.subr.bf16.mxu0 0
    %6590 = vmatpush1.bf16.msra.mxu0 0
    %6591 = vmatprep.subr.bf16.mxu0 0
    %6592 = vmatpush1.bf16.msra.mxu0 0
    %6593 = vmatprep.subr.bf16.mxu0 0
    %6594 = vmatpush1.bf16.msra.mxu0 %v6001
    %6595 = vmatprep.subr.bf16.mxu0 0
    %6596 = vmatpush1.bf16.msra.mxu0 %v5972
    %6597 = vmatprep.subr.bf16.mxu0 0
    %6598 = vmatpush1.bf16.msra.mxu0 %v5969
    %6599 = vmatprep.subr.bf16.mxu0 0
    %6600 = vmatpush1.bf16.msra.mxu0 %v5966
    %6601 = vmatprep.subr.bf16.mxu0 0
    %6602 = vmatpush1.bf16.msra.mxu0 %v5963
    %6603 = vmatprep.subr.bf16.mxu0 0
    %6604 = vmatpush1.bf16.msra.mxu0 %v5960
    %6605 = vmatprep.subr.bf16.mxu0 0
    %6606 = vmatpush2.bf16.msra.mxu0 0
    %6607 = vmatprep.subr.bf16.mxu0 0
    %6608 = vmatpush2.bf16.msra.mxu0 0
    %6609 = vmatprep.subr.bf16.mxu0 0
    %6610 = vmatpush2.bf16.msra.mxu0 0
    %6611 = vmatprep.subr.bf16.mxu0 0
    %6612 = vmatpush2.bf16.msra.mxu0 0
    %6613 = vmatprep.subr.bf16.mxu0 0
    %6614 = vmatpush2.bf16.msra.mxu0 0
    %6615 = vmatprep.subr.bf16.mxu0 0
    %6616 = vmatpush2.bf16.msra.mxu0 0
    %6617 = vmatprep.subr.bf16.mxu0 0
    %6618 = vmatpush2.bf16.msra.mxu0 0
    %6619 = vmatprep.subr.bf16.mxu0 0
    %6620 = vmatpush2.bf16.msra.mxu0 0
    %6621 = vmatprep.mubr.bf16.mxu0 0
    %6622 = vmatmul.mubr.bf16.gmra.mxu0 %v6546
    %v6623 = vpop.f32.mrf.mxu0
    %v6624 = vadd.f32 0.0, %v6623
    %v6625 = vpop.f32.mrf.mxu0
    %v6626 = vpop.f32.mrf.mxu0
    %v6627 = vpop.f32.mrf.mxu0
    %6628 = vdwg.mxu0
    %v6629 = vadd.f32 %v6542, %v6583
    %v6630 = vadd.f32 %v6543, %v6585
    %v6631 = vadd.f32 %v6544, %v6624
    %6634 = vrot.lane.b32.xlu0 %v6629, 48
    %v6635 = vpop.permute.xlu0 %6634
    %6636 = vrot.lane.b32.xlu0 %v6630, 48
    %v6637 = vpop.permute.xlu0 %6636
    %v6638 = vsel %vm6093, %v6635, %v6637
    %v6640 = vmax.f32 %v6629, %v6638
    %6642 = vrot.lane.b32.xlu0 %v6631, 48
    %v6643 = vpop.permute.xlu0 %6642
    %v6644 = vsel %vm6093, %v6637, %v6643
    %v6646 = vmax.f32 %v6630, %v6644
    %6648 = vrot.lane.b32.xlu0 %v6646, 96
    %v6649 = vpop.permute.xlu0 %6648
    %v6651 = vmax.f32 %v6640, %v6649
    %v6652 = vadd.f32 %v6651, %v6113
    %v6653 = vmax.f32 %v6652, 0.0
    %v6654 = vpack.c.bf16 %v6653, %v6653
    %s6655 = scalar_lea.vmem %s5, 40
    %v6656 = vld [vmem:[%s6655] sm:$0xf]
    %v6657 = vld [vmem:[%s6655 + $0x4] sm:$0xf]
    %v6658 = vld [vmem:[%s6655 + $0x8] sm:$0xf]
    %v6659 = vld [vmem:[%s6655 + $0xc] sm:$0xf]
    %v6660 = vld [vmem:[%s6655 + $0x10] sm:$0xf]
    %v6661 = vld [vmem:[%s6655 + $0x14] sm:$0xf]
    %v6662 = vld [vmem:[%s6655 + $0x18] sm:$0xf]
    %v6663 = vld [vmem:[%s6655 + $0x1c] sm:$0xf]
    %v6664 = vld [vmem:[%s6655 + $0x20] sm:$0xf]
    %v6665 = vld [vmem:[%s6655 + $0x24] sm:$0xf]
    %v6676 = vunpack.c.l.b16 %v6656
    %v6677 = vunpack.c.l.b16 %v6657
    %v6678 = vunpack.c.l.b16 %v6658
    %v6679 = vunpack.c.l.b16 %v6659
    %v6680 = vunpack.c.l.b16 %v6660
    %v6681 = vunpack.c.l.b16 %v6661
    %v6682 = vunpack.c.l.b16 %v6662
    %v6683 = vunpack.c.l.b16 %v6663
    %v6684 = vunpack.c.l.b16 %v6664
    %v6685 = vunpack.c.l.b16 %v6665
    %v6686 = vpack.c.b16 %v6677, %v6676
    %v6687 = vpack.c.b16 %v6679, %v6678
    %v6688 = vpack.c.b16 %v6681, %v6680
    %v6689 = vpack.c.b16 %v6683, %v6682
    %v6690 = vpack.c.b16 %v6685, %v6684
    %vm6696 = vcmask 654336
    %v6698 = vsel %vm6696, %v6654, 0
    %6700 = vmatprep.subr.bf16.mxu0 0
    %6701 = vmatpush1.bf16.msra.mxu0 0
    %6702 = vmatprep.subr.bf16.mxu0 0
    %6703 = vmatpush1.bf16.msra.mxu0 0
    %6704 = vmatprep.subr.bf16.mxu0 0
    %6705 = vmatpush1.bf16.msra.mxu0 0
    %6706 = vmatprep.subr.bf16.mxu0 0
    %6707 = vmatpush1.bf16.msra.mxu0 %v6690
    %6708 = vmatprep.subr.bf16.mxu0 0
    %6709 = vmatpush1.bf16.msra.mxu0 %v6689
    %6710 = vmatprep.subr.bf16.mxu0 0
    %6711 = vmatpush1.bf16.msra.mxu0 %v6688
    %6712 = vmatprep.subr.bf16.mxu0 0
    %6713 = vmatpush1.bf16.msra.mxu0 %v6687
    %6714 = vmatprep.subr.bf16.mxu0 0
    %6715 = vmatpush1.bf16.msra.mxu0 %v6686
    %6716 = vmatprep.subr.bf16.mxu0 0
    %6717 = vmatpush2.bf16.msra.mxu0 0
    %6718 = vmatprep.subr.bf16.mxu0 0
    %6719 = vmatpush2.bf16.msra.mxu0 0
    %6720 = vmatprep.subr.bf16.mxu0 0
    %6721 = vmatpush2.bf16.msra.mxu0 0
    %6722 = vmatprep.subr.bf16.mxu0 0
    %6723 = vmatpush2.bf16.msra.mxu0 0
    %6724 = vmatprep.subr.bf16.mxu0 0
    %6725 = vmatpush2.bf16.msra.mxu0 0
    %6726 = vmatprep.subr.bf16.mxu0 0
    %6727 = vmatpush2.bf16.msra.mxu0 0
    %6728 = vmatprep.subr.bf16.mxu0 0
    %6729 = vmatpush2.bf16.msra.mxu0 0
    %6730 = vmatprep.subr.bf16.mxu0 0
    %6731 = vmatpush2.bf16.msra.mxu0 0
    %6732 = vmatprep.mubr.bf16.mxu0 0
    %6733 = vmatmul.mubr.bf16.gmra.mxu0 %v6698
    %v6734 = vpop.f32.mrf.mxu0
    %v6735 = vadd.f32 0.0, %v6734
    %v6736 = vpop.f32.mrf.mxu0
    %v6737 = vpop.f32.mrf.mxu0
    %v6738 = vpop.f32.mrf.mxu0
    %6739 = vdwg.mxu0
    %v6750 = vunpack.c.l.b16 %v6118
    %v6751 = vunpack.c.l.b16 %v6119
    %v6752 = vunpack.c.l.b16 %v6120
    %v6753 = vunpack.c.l.b16 %v6121
    %v6754 = vunpack.c.l.b16 %v6122
    %v6755 = vunpack.c.l.b16 %v6123
    %v6756 = vunpack.c.l.b16 %v6124
    %v6757 = vunpack.c.l.b16 %v6125
    %v6758 = vunpack.c.l.b16 %v6126
    %v6759 = vunpack.c.l.b16 %v6127
    %v6760 = vpack.c.b16 %v6751, %v6750
    %v6761 = vpack.c.b16 %v6753, %v6752
    %v6762 = vpack.c.b16 %v6755, %v6754
    %v6763 = vpack.c.b16 %v6757, %v6756
    %v6764 = vpack.c.b16 %v6759, %v6758
    %v6771 = vsel %vm6696, %v6117, 0
    %6773 = vmatprep.subr.bf16.mxu0 0
    %6774 = vmatpush1.bf16.msra.mxu0 0
    %6775 = vmatprep.subr.bf16.mxu0 0
    %6776 = vmatpush1.bf16.msra.mxu0 0
    %6777 = vmatprep.subr.bf16.mxu0 0
    %6778 = vmatpush1.bf16.msra.mxu0 0
    %6779 = vmatprep.subr.bf16.mxu0 0
    %6780 = vmatpush1.bf16.msra.mxu0 %v6764
    %6781 = vmatprep.subr.bf16.mxu0 0
    %6782 = vmatpush1.bf16.msra.mxu0 %v6763
    %6783 = vmatprep.subr.bf16.mxu0 0
    %6784 = vmatpush1.bf16.msra.mxu0 %v6762
    %6785 = vmatprep.subr.bf16.mxu0 0
    %6786 = vmatpush1.bf16.msra.mxu0 %v6761
    %6787 = vmatprep.subr.bf16.mxu0 0
    %6788 = vmatpush1.bf16.msra.mxu0 %v6760
    %6789 = vmatprep.subr.bf16.mxu0 0
    %6790 = vmatpush2.bf16.msra.mxu0 0
    %6791 = vmatprep.subr.bf16.mxu0 0
    %6792 = vmatpush2.bf16.msra.mxu0 0
    %6793 = vmatprep.subr.bf16.mxu0 0
    %6794 = vmatpush2.bf16.msra.mxu0 0
    %6795 = vmatprep.subr.bf16.mxu0 0
    %6796 = vmatpush2.bf16.msra.mxu0 0
    %6797 = vmatprep.subr.bf16.mxu0 0
    %6798 = vmatpush2.bf16.msra.mxu0 0
    %6799 = vmatprep.subr.bf16.mxu0 0
    %6800 = vmatpush2.bf16.msra.mxu0 0
    %6801 = vmatprep.subr.bf16.mxu0 0
    %6802 = vmatpush2.bf16.msra.mxu0 0
    %6803 = vmatprep.subr.bf16.mxu0 0
    %6804 = vmatpush2.bf16.msra.mxu0 0
    %6805 = vmatprep.mubr.bf16.mxu0 0
    %6806 = vmatmul.mubr.bf16.gmra.mxu0 %v6771
    %v6807 = vpop.f32.mrf.mxu0
    %v6808 = vadd.f32 %v6735, %v6807
    %v6809 = vpop.f32.mrf.mxu0
    %v6810 = vpop.f32.mrf.mxu0
    %v6811 = vpop.f32.mrf.mxu0
    %6812 = vdwg.mxu0
    %6813 = vmatprep.subr.bf16.mxu0 0
    %6814 = vmatpush1.bf16.msra.mxu0 0
    %6815 = vmatprep.subr.bf16.mxu0 0
    %6816 = vmatpush1.bf16.msra.mxu0 0
    %6817 = vmatprep.subr.bf16.mxu0 %v4992
    %6818 = vmatpush1.bf16.msra.mxu0 %v4989
    %6819 = vmatprep.subr.bf16.mxu0 %v4963
    %6820 = vmatpush1.bf16.msra.mxu0 %v4962
    %6821 = vmatprep.subr.bf16.mxu0 %v4960
    %6822 = vmatpush1.bf16.msra.mxu0 %v4959
    %6823 = vmatprep.subr.bf16.mxu0 %v4957
    %6824 = vmatpush1.bf16.msra.mxu0 %v4956
    %6825 = vmatprep.subr.bf16.mxu0 %v4954
    %6826 = vmatpush1.bf16.msra.mxu0 %v4953
    %6827 = vmatprep.subr.bf16.mxu0 %v4951
    %6828 = vmatpush1.bf16.msra.mxu0 %v4950
    %6829 = vmatprep.subr.bf16.mxu0 0
    %6830 = vmatpush2.bf16.msra.mxu0 0
    %6831 = vmatprep.subr.bf16.mxu0 0
    %6832 = vmatpush2.bf16.msra.mxu0 0
    %6833 = vmatprep.subr.bf16.mxu0 0
    %6834 = vmatpush2.bf16.msra.mxu0 0
    %6835 = vmatprep.subr.bf16.mxu0 0
    %6836 = vmatpush2.bf16.msra.mxu0 0
    %6837 = vmatprep.subr.bf16.mxu0 0
    %6838 = vmatpush2.bf16.msra.mxu0 0
    %6839 = vmatprep.subr.bf16.mxu0 0
    %6840 = vmatpush2.bf16.msra.mxu0 0
    %6841 = vmatprep.subr.bf16.mxu0 0
    %6842 = vmatpush2.bf16.msra.mxu0 0
    %6843 = vmatprep.subr.bf16.mxu0 0
    %6844 = vmatpush2.bf16.msra.mxu0 0
    %6845 = vmatprep.mubr.bf16.mxu0 0
    %6846 = vmatmul.mubr.bf16.gmra.mxu0 %v5992
    %v6847 = vpop.f32.mrf.mxu0
    %v6848 = vadd.f32 0.0, %v6847
    %v6849 = vpop.f32.mrf.mxu0
    %v6850 = vadd.f32 0.0, %v6849
    %v6851 = vpop.f32.mrf.mxu0
    %v6852 = vpop.f32.mrf.mxu0
    %6853 = vdwg.mxu0
    %6854 = vmatprep.subr.bf16.mxu0 0
    %6855 = vmatpush1.bf16.msra.mxu0 0
    %6856 = vmatprep.subr.bf16.mxu0 0
    %6857 = vmatpush1.bf16.msra.mxu0 0
    %6858 = vmatprep.subr.bf16.mxu0 0
    %6859 = vmatpush1.bf16.msra.mxu0 %v4995
    %6860 = vmatprep.subr.bf16.mxu0 0
    %6861 = vmatpush1.bf16.msra.mxu0 %v4964
    %6862 = vmatprep.subr.bf16.mxu0 0
    %6863 = vmatpush1.bf16.msra.mxu0 %v4961
    %6864 = vmatprep.subr.bf16.mxu0 0
    %6865 = vmatpush1.bf16.msra.mxu0 %v4958
    %6866 = vmatprep.subr.bf16.mxu0 0
    %6867 = vmatpush1.bf16.msra.mxu0 %v4955
    %6868 = vmatprep.subr.bf16.mxu0 0
    %6869 = vmatpush1.bf16.msra.mxu0 %v4952
    %6870 = vmatprep.subr.bf16.mxu0 0
    %6871 = vmatpush2.bf16.msra.mxu0 0
    %6872 = vmatprep.subr.bf16.mxu0 0
    %6873 = vmatpush2.bf16.msra.mxu0 0
    %6874 = vmatprep.subr.bf16.mxu0 0
    %6875 = vmatpush2.bf16.msra.mxu0 0
    %6876 = vmatprep.subr.bf16.mxu0 0
    %6877 = vmatpush2.bf16.msra.mxu0 0
    %6878 = vmatprep.subr.bf16.mxu0 0
    %6879 = vmatpush2.bf16.msra.mxu0 0
    %6880 = vmatprep.subr.bf16.mxu0 0
    %6881 = vmatpush2.bf16.msra.mxu0 0
    %6882 = vmatprep.subr.bf16.mxu0 0
    %6883 = vmatpush2.bf16.msra.mxu0 0
    %6884 = vmatprep.subr.bf16.mxu0 0
    %6885 = vmatpush2.bf16.msra.mxu0 0
    %6886 = vmatprep.mubr.bf16.mxu0 0
    %6887 = vmatmul.mubr.bf16.gmra.mxu0 %v5992
    %v6888 = vpop.f32.mrf.mxu0
    %v6889 = vadd.f32 0.0, %v6888
    %v6890 = vpop.f32.mrf.mxu0
    %v6891 = vpop.f32.mrf.mxu0
    %v6892 = vpop.f32.mrf.mxu0
    %6893 = vdwg.mxu0
    %6894 = vmatprep.subr.bf16.mxu0 0
    %6895 = vmatpush1.bf16.msra.mxu0 0
    %6896 = vmatprep.subr.bf16.mxu0 0
    %6897 = vmatpush1.bf16.msra.mxu0 0
    %6898 = vmatprep.subr.bf16.mxu0 %v5173
    %6899 = vmatpush1.bf16.msra.mxu0 %v5170
    %6900 = vmatprep.subr.bf16.mxu0 %v5146
    %6901 = vmatpush1.bf16.msra.mxu0 %v5145
    %6902 = vmatprep.subr.bf16.mxu0 %v5143
    %6903 = vmatpush1.bf16.msra.mxu0 %v5142
    %6904 = vmatprep.subr.bf16.mxu0 %v5140
    %6905 = vmatpush1.bf16.msra.mxu0 %v5139
    %6906 = vmatprep.subr.bf16.mxu0 %v5137
    %6907 = vmatpush1.bf16.msra.mxu0 %v5136
    %6908 = vmatprep.subr.bf16.mxu0 %v5134
    %6909 = vmatpush1.bf16.msra.mxu0 %v5133
    %6910 = vmatprep.subr.bf16.mxu0 0
    %6911 = vmatpush2.bf16.msra.mxu0 0
    %6912 = vmatprep.subr.bf16.mxu0 0
    %6913 = vmatpush2.bf16.msra.mxu0 0
    %6914 = vmatprep.subr.bf16.mxu0 0
    %6915 = vmatpush2.bf16.msra.mxu0 0
    %6916 = vmatprep.subr.bf16.mxu0 0
    %6917 = vmatpush2.bf16.msra.mxu0 0
    %6918 = vmatprep.subr.bf16.mxu0 0
    %6919 = vmatpush2.bf16.msra.mxu0 0
    %6920 = vmatprep.subr.bf16.mxu0 0
    %6921 = vmatpush2.bf16.msra.mxu0 0
    %6922 = vmatprep.subr.bf16.mxu0 0
    %6923 = vmatpush2.bf16.msra.mxu0 0
    %6924 = vmatprep.subr.bf16.mxu0 0
    %6925 = vmatpush2.bf16.msra.mxu0 0
    %6926 = vmatprep.mubr.bf16.mxu0 0
    %6927 = vmatmul.mubr.bf16.gmra.mxu0 %v5785
    %v6928 = vpop.f32.mrf.mxu0
    %v6929 = vadd.f32 %v6848, %v6928
    %v6930 = vpop.f32.mrf.mxu0
    %v6931 = vadd.f32 %v6850, %v6930
    %v6932 = vpop.f32.mrf.mxu0
    %v6933 = vpop.f32.mrf.mxu0
    %6934 = vdwg.mxu0
    %6935 = vmatprep.subr.bf16.mxu0 0
    %6936 = vmatpush1.bf16.msra.mxu0 0
    %6937 = vmatprep.subr.bf16.mxu0 0
    %6938 = vmatpush1.bf16.msra.mxu0 0
    %6939 = vmatprep.subr.bf16.mxu0 0
    %6940 = vmatpush1.bf16.msra.mxu0 %v5176
    %6941 = vmatprep.subr.bf16.mxu0 0
    %6942 = vmatpush1.bf16.msra.mxu0 %v5147
    %6943 = vmatprep.subr.bf16.mxu0 0
    %6944 = vmatpush1.bf16.msra.mxu0 %v5144
    %6945 = vmatprep.subr.bf16.mxu0 0
    %6946 = vmatpush1.bf16.msra.mxu0 %v5141
    %6947 = vmatprep.subr.bf16.mxu0 0
    %6948 = vmatpush1.bf16.msra.mxu0 %v5138
    %6949 = vmatprep.subr.bf16.mxu0 0
    %6950 = vmatpush1.bf16.msra.mxu0 %v5135
    %6951 = vmatprep.subr.bf16.mxu0 0
    %6952 = vmatpush2.bf16.msra.mxu0 0
    %6953 = vmatprep.subr.bf16.mxu0 0
    %6954 = vmatpush2.bf16.msra.mxu0 0
    %6955 = vmatprep.subr.bf16.mxu0 0
    %6956 = vmatpush2.bf16.msra.mxu0 0
    %6957 = vmatprep.subr.bf16.mxu0 0
    %6958 = vmatpush2.bf16.msra.mxu0 0
    %6959 = vmatprep.subr.bf16.mxu0 0
    %6960 = vmatpush2.bf16.msra.mxu0 0
    %6961 = vmatprep.subr.bf16.mxu0 0
    %6962 = vmatpush2.bf16.msra.mxu0 0
    %6963 = vmatprep.subr.bf16.mxu0 0
    %6964 = vmatpush2.bf16.msra.mxu0 0
    %6965 = vmatprep.subr.bf16.mxu0 0
    %6966 = vmatpush2.bf16.msra.mxu0 0
    %6967 = vmatprep.mubr.bf16.mxu0 0
    %6968 = vmatmul.mubr.bf16.gmra.mxu0 %v5785
    %v6969 = vpop.f32.mrf.mxu0
    %v6970 = vadd.f32 %v6889, %v6969
    %v6971 = vpop.f32.mrf.mxu0
    %v6972 = vpop.f32.mrf.mxu0
    %v6973 = vpop.f32.mrf.mxu0
    %6974 = vdwg.mxu0
    %6975 = vmatprep.subr.bf16.mxu0 0
    %6976 = vmatpush1.bf16.msra.mxu0 0
    %6977 = vmatprep.subr.bf16.mxu0 0
    %6978 = vmatpush1.bf16.msra.mxu0 0
    %6979 = vmatprep.subr.bf16.mxu0 %v5377
    %6980 = vmatpush1.bf16.msra.mxu0 %v5374
    %6981 = vmatprep.subr.bf16.mxu0 %v5350
    %6982 = vmatpush1.bf16.msra.mxu0 %v5349
    %6983 = vmatprep.subr.bf16.mxu0 %v5347
    %6984 = vmatpush1.bf16.msra.mxu0 %v5346
    %6985 = vmatprep.subr.bf16.mxu0 %v5344
    %6986 = vmatpush1.bf16.msra.mxu0 %v5343
    %6987 = vmatprep.subr.bf16.mxu0 %v5341
    %6988 = vmatpush1.bf16.msra.mxu0 %v5340
    %6989 = vmatprep.subr.bf16.mxu0 %v5338
    %6990 = vmatpush1.bf16.msra.mxu0 %v5337
    %6991 = vmatprep.subr.bf16.mxu0 0
    %6992 = vmatpush2.bf16.msra.mxu0 0
    %6993 = vmatprep.subr.bf16.mxu0 0
    %6994 = vmatpush2.bf16.msra.mxu0 0
    %6995 = vmatprep.subr.bf16.mxu0 0
    %6996 = vmatpush2.bf16.msra.mxu0 0
    %6997 = vmatprep.subr.bf16.mxu0 0
    %6998 = vmatpush2.bf16.msra.mxu0 0
    %6999 = vmatprep.subr.bf16.mxu0 0
    %7000 = vmatpush2.bf16.msra.mxu0 0
    %7001 = vmatprep.subr.bf16.mxu0 0
    %7002 = vmatpush2.bf16.msra.mxu0 0
    %7003 = vmatprep.subr.bf16.mxu0 0
    %7004 = vmatpush2.bf16.msra.mxu0 0
    %7005 = vmatprep.subr.bf16.mxu0 0
    %7006 = vmatpush2.bf16.msra.mxu0 0
    %7007 = vmatprep.mubr.bf16.mxu0 0
    %7008 = vmatmul.mubr.bf16.gmra.mxu0 %v6459
    %v7009 = vpop.f32.mrf.mxu0
    %v7010 = vadd.f32 0.0, %v7009
    %v7011 = vpop.f32.mrf.mxu0
    %v7012 = vadd.f32 0.0, %v7011
    %v7013 = vpop.f32.mrf.mxu0
    %v7014 = vpop.f32.mrf.mxu0
    %7015 = vdwg.mxu0
    %7016 = vmatprep.subr.bf16.mxu0 0
    %7017 = vmatpush1.bf16.msra.mxu0 0
    %7018 = vmatprep.subr.bf16.mxu0 0
    %7019 = vmatpush1.bf16.msra.mxu0 0
    %7020 = vmatprep.subr.bf16.mxu0 0
    %7021 = vmatpush1.bf16.msra.mxu0 %v5380
    %7022 = vmatprep.subr.bf16.mxu0 0
    %7023 = vmatpush1.bf16.msra.mxu0 %v5351
    %7024 = vmatprep.subr.bf16.mxu0 0
    %7025 = vmatpush1.bf16.msra.mxu0 %v5348
    %7026 = vmatprep.subr.bf16.mxu0 0
    %7027 = vmatpush1.bf16.msra.mxu0 %v5345
    %7028 = vmatprep.subr.bf16.mxu0 0
    %7029 = vmatpush1.bf16.msra.mxu0 %v5342
    %7030 = vmatprep.subr.bf16.mxu0 0
    %7031 = vmatpush1.bf16.msra.mxu0 %v5339
    %7032 = vmatprep.subr.bf16.mxu0 0
    %7033 = vmatpush2.bf16.msra.mxu0 0
    %7034 = vmatprep.subr.bf16.mxu0 0
    %7035 = vmatpush2.bf16.msra.mxu0 0
    %7036 = vmatprep.subr.bf16.mxu0 0
    %7037 = vmatpush2.bf16.msra.mxu0 0
    %7038 = vmatprep.subr.bf16.mxu0 0
    %7039 = vmatpush2.bf16.msra.mxu0 0
    %7040 = vmatprep.subr.bf16.mxu0 0
    %7041 = vmatpush2.bf16.msra.mxu0 0
    %7042 = vmatprep.subr.bf16.mxu0 0
    %7043 = vmatpush2.bf16.msra.mxu0 0
    %7044 = vmatprep.subr.bf16.mxu0 0
    %7045 = vmatpush2.bf16.msra.mxu0 0
    %7046 = vmatprep.subr.bf16.mxu0 0
    %7047 = vmatpush2.bf16.msra.mxu0 0
    %7048 = vmatprep.mubr.bf16.mxu0 0
    %7049 = vmatmul.mubr.bf16.gmra.mxu0 %v6459
    %v7050 = vpop.f32.mrf.mxu0
    %v7051 = vadd.f32 0.0, %v7050
    %v7052 = vpop.f32.mrf.mxu0
    %v7053 = vpop.f32.mrf.mxu0
    %v7054 = vpop.f32.mrf.mxu0
    %7055 = vdwg.mxu0
    %v7056 = vadd.f32 %v6929, %v7010
    %v7057 = vadd.f32 %v6931, %v7012
    %v7058 = vadd.f32 %v6970, %v7051
    %7059 = vmatprep.subr.bf16.mxu0 0
    %7060 = vmatpush1.bf16.msra.mxu0 0
    %7061 = vmatprep.subr.bf16.mxu0 0
    %7062 = vmatpush1.bf16.msra.mxu0 0
    %7063 = vmatprep.subr.bf16.mxu0 %v5584
    %7064 = vmatpush1.bf16.msra.mxu0 %v5581
    %7065 = vmatprep.subr.bf16.mxu0 %v5557
    %7066 = vmatpush1.bf16.msra.mxu0 %v5556
    %7067 = vmatprep.subr.bf16.mxu0 %v5554
    %7068 = vmatpush1.bf16.msra.mxu0 %v5553
    %7069 = vmatprep.subr.bf16.mxu0 %v5551
    %7070 = vmatpush1.bf16.msra.mxu0 %v5550
    %7071 = vmatprep.subr.bf16.mxu0 %v5548
    %7072 = vmatpush1.bf16.msra.mxu0 %v5547
    %7073 = vmatprep.subr.bf16.mxu0 %v5545
    %7074 = vmatpush1.bf16.msra.mxu0 %v5544
    %7075 = vmatprep.subr.bf16.mxu0 0
    %7076 = vmatpush2.bf16.msra.mxu0 0
    %7077 = vmatprep.subr.bf16.mxu0 0
    %7078 = vmatpush2.bf16.msra.mxu0 0
    %7079 = vmatprep.subr.bf16.mxu0 0
    %7080 = vmatpush2.bf16.msra.mxu0 0
    %7081 = vmatprep.subr.bf16.mxu0 0
    %7082 = vmatpush2.bf16.msra.mxu0 0
    %7083 = vmatprep.subr.bf16.mxu0 0
    %7084 = vmatpush2.bf16.msra.mxu0 0
    %7085 = vmatprep.subr.bf16.mxu0 0
    %7086 = vmatpush2.bf16.msra.mxu0 0
    %7087 = vmatprep.subr.bf16.mxu0 0
    %7088 = vmatpush2.bf16.msra.mxu0 0
    %7089 = vmatprep.subr.bf16.mxu0 0
    %7090 = vmatpush2.bf16.msra.mxu0 0
    %7091 = vmatprep.mubr.bf16.mxu0 0
    %7092 = vmatmul.mubr.bf16.gmra.mxu0 %v6546
    %v7093 = vpop.f32.mrf.mxu0
    %v7094 = vadd.f32 0.0, %v7093
    %v7095 = vpop.f32.mrf.mxu0
    %v7096 = vadd.f32 0.0, %v7095
    %v7097 = vpop.f32.mrf.mxu0
    %v7098 = vpop.f32.mrf.mxu0
    %7099 = vdwg.mxu0
    %7100 = vmatprep.subr.bf16.mxu0 0
    %7101 = vmatpush1.bf16.msra.mxu0 0
    %7102 = vmatprep.subr.bf16.mxu0 0
    %7103 = vmatpush1.bf16.msra.mxu0 0
    %7104 = vmatprep.subr.bf16.mxu0 0
    %7105 = vmatpush1.bf16.msra.mxu0 %v5587
    %7106 = vmatprep.subr.bf16.mxu0 0
    %7107 = vmatpush1.bf16.msra.mxu0 %v5558
    %7108 = vmatprep.subr.bf16.mxu0 0
    %7109 = vmatpush1.bf16.msra.mxu0 %v5555
    %7110 = vmatprep.subr.bf16.mxu0 0
    %7111 = vmatpush1.bf16.msra.mxu0 %v5552
    %7112 = vmatprep.subr.bf16.mxu0 0
    %7113 = vmatpush1.bf16.msra.mxu0 %v5549
    %7114 = vmatprep.subr.bf16.mxu0 0
    %7115 = vmatpush1.bf16.msra.mxu0 %v5546
    %7116 = vmatprep.subr.bf16.mxu0 0
    %7117 = vmatpush2.bf16.msra.mxu0 0
    %7118 = vmatprep.subr.bf16.mxu0 0
    %7119 = vmatpush2.bf16.msra.mxu0 0
    %7120 = vmatprep.subr.bf16.mxu0 0
    %7121 = vmatpush2.bf16.msra.mxu0 0
    %7122 = vmatprep.subr.bf16.mxu0 0
    %7123 = vmatpush2.bf16.msra.mxu0 0
    %7124 = vmatprep.subr.bf16.mxu0 0
    %7125 = vmatpush2.bf16.msra.mxu0 0
    %7126 = vmatprep.subr.bf16.mxu0 0
    %7127 = vmatpush2.bf16.msra.mxu0 0
    %7128 = vmatprep.subr.bf16.mxu0 0
    %7129 = vmatpush2.bf16.msra.mxu0 0
    %7130 = vmatprep.subr.bf16.mxu0 0
    %7131 = vmatpush2.bf16.msra.mxu0 0
    %7132 = vmatprep.mubr.bf16.mxu0 0
    %7133 = vmatmul.mubr.bf16.gmra.mxu0 %v6546
    %v7134 = vpop.f32.mrf.mxu0
    %v7135 = vadd.f32 0.0, %v7134
    %v7136 = vpop.f32.mrf.mxu0
    %v7137 = vpop.f32.mrf.mxu0
    %v7138 = vpop.f32.mrf.mxu0
    %7139 = vdwg.mxu0
    %v7140 = vadd.f32 %v7056, %v7094
    %v7141 = vadd.f32 %v7057, %v7096
    %v7142 = vadd.f32 %v7058, %v7135
    %v7144 = vsel %vm4983, %v3412, 0
    %7146 = vmatprep.subr.bf16.mxu0 0
    %7147 = vmatpush1.bf16.msra.mxu0 0
    %7148 = vmatprep.subr.bf16.mxu0 0
    %7149 = vmatpush1.bf16.msra.mxu0 0
    %7150 = vmatprep.subr.bf16.mxu0 %v5791
    %7151 = vmatpush1.bf16.msra.mxu0 %v5788
    %7152 = vmatprep.subr.bf16.mxu0 %v5764
    %7153 = vmatpush1.bf16.msra.mxu0 %v5763
    %7154 = vmatprep.subr.bf16.mxu0 %v5761
    %7155 = vmatpush1.bf16.msra.mxu0 %v5760
    %7156 = vmatprep.subr.bf16.mxu0 %v5758
    %7157 = vmatpush1.bf16.msra.mxu0 %v5757
    %7158 = vmatprep.subr.bf16.mxu0 %v5755
    %7159 = vmatpush1.bf16.msra.mxu0 %v5754
    %7160 = vmatprep.subr.bf16.mxu0 %v5752
    %7161 = vmatpush1.bf16.msra.mxu0 %v5751
    %7162 = vmatprep.subr.bf16.mxu0 0
    %7163 = vmatpush2.bf16.msra.mxu0 0
    %7164 = vmatprep.subr.bf16.mxu0 0
    %7165 = vmatpush2.bf16.msra.mxu0 0
    %7166 = vmatprep.subr.bf16.mxu0 0
    %7167 = vmatpush2.bf16.msra.mxu0 0
    %7168 = vmatprep.subr.bf16.mxu0 0
    %7169 = vmatpush2.bf16.msra.mxu0 0
    %7170 = vmatprep.subr.bf16.mxu0 0
    %7171 = vmatpush2.bf16.msra.mxu0 0
    %7172 = vmatprep.subr.bf16.mxu0 0
    %7173 = vmatpush2.bf16.msra.mxu0 0
    %7174 = vmatprep.subr.bf16.mxu0 0
    %7175 = vmatpush2.bf16.msra.mxu0 0
    %7176 = vmatprep.subr.bf16.mxu0 0
    %7177 = vmatpush2.bf16.msra.mxu0 0
    %7178 = vmatprep.mubr.bf16.mxu0 0
    %7179 = vmatmul.mubr.bf16.gmra.mxu0 %v7144
    %v7180 = vpop.f32.mrf.mxu0
    %v7181 = vadd.f32 0.0, %v7180
    %v7182 = vpop.f32.mrf.mxu0
    %v7183 = vadd.f32 0.0, %v7182
    %v7184 = vpop.f32.mrf.mxu0
    %v7185 = vpop.f32.mrf.mxu0
    %7186 = vdwg.mxu0
    %7187 = vmatprep.subr.bf16.mxu0 0
    %7188 = vmatpush1.bf16.msra.mxu0 0
    %7189 = vmatprep.subr.bf16.mxu0 0
    %7190 = vmatpush1.bf16.msra.mxu0 0
    %7191 = vmatprep.subr.bf16.mxu0 0
    %7192 = vmatpush1.bf16.msra.mxu0 %v5794
    %7193 = vmatprep.subr.bf16.mxu0 0
    %7194 = vmatpush1.bf16.msra.mxu0 %v5765
    %7195 = vmatprep.subr.bf16.mxu0 0
    %7196 = vmatpush1.bf16.msra.mxu0 %v5762
    %7197 = vmatprep.subr.bf16.mxu0 0
    %7198 = vmatpush1.bf16.msra.mxu0 %v5759
    %7199 = vmatprep.subr.bf16.mxu0 0
    %7200 = vmatpush1.bf16.msra.mxu0 %v5756
    %7201 = vmatprep.subr.bf16.mxu0 0
    %7202 = vmatpush1.bf16.msra.mxu0 %v5753
    %7203 = vmatprep.subr.bf16.mxu0 0
    %7204 = vmatpush2.bf16.msra.mxu0 0
    %7205 = vmatprep.subr.bf16.mxu0 0
    %7206 = vmatpush2.bf16.msra.mxu0 0
    %7207 = vmatprep.subr.bf16.mxu0 0
    %7208 = vmatpush2.bf16.msra.mxu0 0
    %7209 = vmatprep.subr.bf16.mxu0 0
    %7210 = vmatpush2.bf16.msra.mxu0 0
    %7211 = vmatprep.subr.bf16.mxu0 0
    %7212 = vmatpush2.bf16.msra.mxu0 0
    %7213 = vmatprep.subr.bf16.mxu0 0
    %7214 = vmatpush2.bf16.msra.mxu0 0
    %7215 = vmatprep.subr.bf16.mxu0 0
    %7216 = vmatpush2.bf16.msra.mxu0 0
    %7217 = vmatprep.subr.bf16.mxu0 0
    %7218 = vmatpush2.bf16.msra.mxu0 0
    %7219 = vmatprep.mubr.bf16.mxu0 0
    %7220 = vmatmul.mubr.bf16.gmra.mxu0 %v7144
    %v7221 = vpop.f32.mrf.mxu0
    %v7222 = vadd.f32 0.0, %v7221
    %v7223 = vpop.f32.mrf.mxu0
    %v7224 = vpop.f32.mrf.mxu0
    %v7225 = vpop.f32.mrf.mxu0
    %7226 = vdwg.mxu0
    %v7227 = vadd.f32 %v7140, %v7181
    %v7228 = vadd.f32 %v7141, %v7183
    %v7229 = vadd.f32 %v7142, %v7222
    %v7231 = vsel %vm4983, %v3693, 0
    %7233 = vmatprep.subr.bf16.mxu0 0
    %7234 = vmatpush1.bf16.msra.mxu0 0
    %7235 = vmatprep.subr.bf16.mxu0 0
    %7236 = vmatpush1.bf16.msra.mxu0 0
    %7237 = vmatprep.subr.bf16.mxu0 %v5998
    %7238 = vmatpush1.bf16.msra.mxu0 %v5995
    %7239 = vmatprep.subr.bf16.mxu0 %v5971
    %7240 = vmatpush1.bf16.msra.mxu0 %v5970
    %7241 = vmatprep.subr.bf16.mxu0 %v5968
    %7242 = vmatpush1.bf16.msra.mxu0 %v5967
    %7243 = vmatprep.subr.bf16.mxu0 %v5965
    %7244 = vmatpush1.bf16.msra.mxu0 %v5964
    %7245 = vmatprep.subr.bf16.mxu0 %v5962
    %7246 = vmatpush1.bf16.msra.mxu0 %v5961
    %7247 = vmatprep.subr.bf16.mxu0 %v5959
    %7248 = vmatpush1.bf16.msra.mxu0 %v5958
    %7249 = vmatprep.subr.bf16.mxu0 0
    %7250 = vmatpush2.bf16.msra.mxu0 0
    %7251 = vmatprep.subr.bf16.mxu0 0
    %7252 = vmatpush2.bf16.msra.mxu0 0
    %7253 = vmatprep.subr.bf16.mxu0 0
    %7254 = vmatpush2.bf16.msra.mxu0 0
    %7255 = vmatprep.subr.bf16.mxu0 0
    %7256 = vmatpush2.bf16.msra.mxu0 0
    %7257 = vmatprep.subr.bf16.mxu0 0
    %7258 = vmatpush2.bf16.msra.mxu0 0
    %7259 = vmatprep.subr.bf16.mxu0 0
    %7260 = vmatpush2.bf16.msra.mxu0 0
    %7261 = vmatprep.subr.bf16.mxu0 0
    %7262 = vmatpush2.bf16.msra.mxu0 0
    %7263 = vmatprep.subr.bf16.mxu0 0
    %7264 = vmatpush2.bf16.msra.mxu0 0
    %7265 = vmatprep.mubr.bf16.mxu0 0
    %7266 = vmatmul.mubr.bf16.gmra.mxu0 %v7231
    %v7267 = vpop.f32.mrf.mxu0
    %v7268 = vadd.f32 0.0, %v7267
    %v7269 = vpop.f32.mrf.mxu0
    %v7270 = vadd.f32 0.0, %v7269
    %v7271 = vpop.f32.mrf.mxu0
    %v7272 = vpop.f32.mrf.mxu0
    %7273 = vdwg.mxu0
    %7274 = vmatprep.subr.bf16.mxu0 0
    %7275 = vmatpush1.bf16.msra.mxu0 0
    %7276 = vmatprep.subr.bf16.mxu0 0
    %7277 = vmatpush1.bf16.msra.mxu0 0
    %7278 = vmatprep.subr.bf16.mxu0 0
    %7279 = vmatpush1.bf16.msra.mxu0 %v6001
    %7280 = vmatprep.subr.bf16.mxu0 0
    %7281 = vmatpush1.bf16.msra.mxu0 %v5972
    %7282 = vmatprep.subr.bf16.mxu0 0
    %7283 = vmatpush1.bf16.msra.mxu0 %v5969
    %7284 = vmatprep.subr.bf16.mxu0 0
    %7285 = vmatpush1.bf16.msra.mxu0 %v5966
    %7286 = vmatprep.subr.bf16.mxu0 0
    %7287 = vmatpush1.bf16.msra.mxu0 %v5963
    %7288 = vmatprep.subr.bf16.mxu0 0
    %7289 = vmatpush1.bf16.msra.mxu0 %v5960
    %7290 = vmatprep.subr.bf16.mxu0 0
    %7291 = vmatpush2.bf16.msra.mxu0 0
    %7292 = vmatprep.subr.bf16.mxu0 0
    %7293 = vmatpush2.bf16.msra.mxu0 0
    %7294 = vmatprep.subr.bf16.mxu0 0
    %7295 = vmatpush2.bf16.msra.mxu0 0
    %7296 = vmatprep.subr.bf16.mxu0 0
    %7297 = vmatpush2.bf16.msra.mxu0 0
    %7298 = vmatprep.subr.bf16.mxu0 0
    %7299 = vmatpush2.bf16.msra.mxu0 0
    %7300 = vmatprep.subr.bf16.mxu0 0
    %7301 = vmatpush2.bf16.msra.mxu0 0
    %7302 = vmatprep.subr.bf16.mxu0 0
    %7303 = vmatpush2.bf16.msra.mxu0 0
    %7304 = vmatprep.subr.bf16.mxu0 0
    %7305 = vmatpush2.bf16.msra.mxu0 0
    %7306 = vmatprep.mubr.bf16.mxu0 0
    %7307 = vmatmul.mubr.bf16.gmra.mxu0 %v7231
    %v7308 = vpop.f32.mrf.mxu0
    %v7309 = vadd.f32 0.0, %v7308
    %v7310 = vpop.f32.mrf.mxu0
    %v7311 = vpop.f32.mrf.mxu0
    %v7312 = vpop.f32.mrf.mxu0
    %7313 = vdwg.mxu0
    %v7314 = vadd.f32 %v7227, %v7268
    %v7315 = vadd.f32 %v7228, %v7270
    %v7316 = vadd.f32 %v7229, %v7309
    %7319 = vrot.lane.b32.xlu0 %v7314, 48
    %v7320 = vpop.permute.xlu0 %7319
    %7321 = vrot.lane.b32.xlu0 %v7315, 48
    %v7322 = vpop.permute.xlu0 %7321
    %v7323 = vsel %vm6093, %v7320, %v7322
    %v7325 = vmax.f32 %v7314, %v7323
    %7327 = vrot.lane.b32.xlu0 %v7316, 48
    %v7328 = vpop.permute.xlu0 %7327
    %v7329 = vsel %vm6093, %v7322, %v7328
    %v7331 = vmax.f32 %v7315, %v7329
    %7333 = vrot.lane.b32.xlu0 %v7331, 96
    %v7334 = vpop.permute.xlu0 %7333
    %v7336 = vmax.f32 %v7325, %v7334
    %v7337 = vadd.f32 %v7336, %v6113
    %v7338 = vmax.f32 %v7337, 0.0
    %v7339 = vpack.c.bf16 %v7338, %v7338
    %s7340 = scalar_lea.vmem %s5, 80
    %v7341 = vld [vmem:[%s7340] sm:$0xf]
    %v7342 = vld [vmem:[%s7340 + $0x4] sm:$0xf]
    %v7343 = vld [vmem:[%s7340 + $0x8] sm:$0xf]
    %v7344 = vld [vmem:[%s7340 + $0xc] sm:$0xf]
    %v7345 = vld [vmem:[%s7340 + $0x10] sm:$0xf]
    %v7346 = vld [vmem:[%s7340 + $0x14] sm:$0xf]
    %v7347 = vld [vmem:[%s7340 + $0x18] sm:$0xf]
    %v7348 = vld [vmem:[%s7340 + $0x1c] sm:$0xf]
    %v7349 = vld [vmem:[%s7340 + $0x20] sm:$0xf]
    %v7350 = vld [vmem:[%s7340 + $0x24] sm:$0xf]
    %v7361 = vunpack.c.l.b16 %v7341
    %v7362 = vunpack.c.l.b16 %v7342
    %v7363 = vunpack.c.l.b16 %v7343
    %v7364 = vunpack.c.l.b16 %v7344
    %v7365 = vunpack.c.l.b16 %v7345
    %v7366 = vunpack.c.l.b16 %v7346
    %v7367 = vunpack.c.l.b16 %v7347
    %v7368 = vunpack.c.l.b16 %v7348
    %v7369 = vunpack.c.l.b16 %v7349
    %v7370 = vunpack.c.l.b16 %v7350
    %v7371 = vpack.c.b16 %v7362, %v7361
    %v7372 = vpack.c.b16 %v7364, %v7363
    %v7373 = vpack.c.b16 %v7366, %v7365
    %v7374 = vpack.c.b16 %v7368, %v7367
    %v7375 = vpack.c.b16 %v7370, %v7369
    %v7382 = vsel %vm6696, %v7339, 0
    %7384 = vmatprep.subr.bf16.mxu0 0
    %7385 = vmatpush1.bf16.msra.mxu0 0
    %7386 = vmatprep.subr.bf16.mxu0 0
    %7387 = vmatpush1.bf16.msra.mxu0 0
    %7388 = vmatprep.subr.bf16.mxu0 0
    %7389 = vmatpush1.bf16.msra.mxu0 0
    %7390 = vmatprep.subr.bf16.mxu0 0
    %7391 = vmatpush1.bf16.msra.mxu0 %v7375
    %7392 = vmatprep.subr.bf16.mxu0 0
    %7393 = vmatpush1.bf16.msra.mxu0 %v7374
    %7394 = vmatprep.subr.bf16.mxu0 0
    %7395 = vmatpush1.bf16.msra.mxu0 %v7373
    %7396 = vmatprep.subr.bf16.mxu0 0
    %7397 = vmatpush1.bf16.msra.mxu0 %v7372
    %7398 = vmatprep.subr.bf16.mxu0 0
    %7399 = vmatpush1.bf16.msra.mxu0 %v7371
    %7400 = vmatprep.subr.bf16.mxu0 0
    %7401 = vmatpush2.bf16.msra.mxu0 0
    %7402 = vmatprep.subr.bf16.mxu0 0
    %7403 = vmatpush2.bf16.msra.mxu0 0
    %7404 = vmatprep.subr.bf16.mxu0 0
    %7405 = vmatpush2.bf16.msra.mxu0 0
    %7406 = vmatprep.subr.bf16.mxu0 0
    %7407 = vmatpush2.bf16.msra.mxu0 0
    %7408 = vmatprep.subr.bf16.mxu0 0
    %7409 = vmatpush2.bf16.msra.mxu0 0
    %7410 = vmatprep.subr.bf16.mxu0 0
    %7411 = vmatpush2.bf16.msra.mxu0 0
    %7412 = vmatprep.subr.bf16.mxu0 0
    %7413 = vmatpush2.bf16.msra.mxu0 0
    %7414 = vmatprep.subr.bf16.mxu0 0
    %7415 = vmatpush2.bf16.msra.mxu0 0
    %7416 = vmatprep.mubr.bf16.mxu0 0
    %7417 = vmatmul.mubr.bf16.gmra.mxu0 %v7382
    %v7418 = vpop.f32.mrf.mxu0
    %v7419 = vadd.f32 0.0, %v7418
    %v7420 = vpop.f32.mrf.mxu0
    %v7421 = vpop.f32.mrf.mxu0
    %v7422 = vpop.f32.mrf.mxu0
    %7423 = vdwg.mxu0
    %v7424 = vadd.f32 %v6808, %v7419
    %7425 = vmatprep.subr.bf16.mxu0 0
    %7426 = vmatpush1.bf16.msra.mxu0 0
    %7427 = vmatprep.subr.bf16.mxu0 0
    %7428 = vmatpush1.bf16.msra.mxu0 0
    %7429 = vmatprep.subr.bf16.mxu0 %v4992
    %7430 = vmatpush1.bf16.msra.mxu0 %v4989
    %7431 = vmatprep.subr.bf16.mxu0 %v4963
    %7432 = vmatpush1.bf16.msra.mxu0 %v4962
    %7433 = vmatprep.subr.bf16.mxu0 %v4960
    %7434 = vmatpush1.bf16.msra.mxu0 %v4959
    %7435 = vmatprep.subr.bf16.mxu0 %v4957
    %7436 = vmatpush1.bf16.msra.mxu0 %v4956
    %7437 = vmatprep.subr.bf16.mxu0 %v4954
    %7438 = vmatpush1.bf16.msra.mxu0 %v4953
    %7439 = vmatprep.subr.bf16.mxu0 %v4951
    %7440 = vmatpush1.bf16.msra.mxu0 %v4950
    %7441 = vmatprep.subr.bf16.mxu0 0
    %7442 = vmatpush2.bf16.msra.mxu0 0
    %7443 = vmatprep.subr.bf16.mxu0 0
    %7444 = vmatpush2.bf16.msra.mxu0 0
    %7445 = vmatprep.subr.bf16.mxu0 0
    %7446 = vmatpush2.bf16.msra.mxu0 0
    %7447 = vmatprep.subr.bf16.mxu0 0
    %7448 = vmatpush2.bf16.msra.mxu0 0
    %7449 = vmatprep.subr.bf16.mxu0 0
    %7450 = vmatpush2.bf16.msra.mxu0 0
    %7451 = vmatprep.subr.bf16.mxu0 0
    %7452 = vmatpush2.bf16.msra.mxu0 0
    %7453 = vmatprep.subr.bf16.mxu0 0
    %7454 = vmatpush2.bf16.msra.mxu0 0
    %7455 = vmatprep.subr.bf16.mxu0 0
    %7456 = vmatpush2.bf16.msra.mxu0 0
    %7457 = vmatprep.mubr.bf16.mxu0 0
    %7458 = vmatmul.mubr.bf16.gmra.mxu0 %v6546
    %v7459 = vpop.f32.mrf.mxu0
    %v7460 = vadd.f32 0.0, %v7459
    %v7461 = vpop.f32.mrf.mxu0
    %v7462 = vadd.f32 0.0, %v7461
    %v7463 = vpop.f32.mrf.mxu0
    %v7464 = vpop.f32.mrf.mxu0
    %7465 = vdwg.mxu0
    %7466 = vmatprep.subr.bf16.mxu0 0
    %7467 = vmatpush1.bf16.msra.mxu0 0
    %7468 = vmatprep.subr.bf16.mxu0 0
    %7469 = vmatpush1.bf16.msra.mxu0 0
    %7470 = vmatprep.subr.bf16.mxu0 0
    %7471 = vmatpush1.bf16.msra.mxu0 %v4995
    %7472 = vmatprep.subr.bf16.mxu0 0
    %7473 = vmatpush1.bf16.msra.mxu0 %v4964
    %7474 = vmatprep.subr.bf16.mxu0 0
    %7475 = vmatpush1.bf16.msra.mxu0 %v4961
    %7476 = vmatprep.subr.bf16.mxu0 0
    %7477 = vmatpush1.bf16.msra.mxu0 %v4958
    %7478 = vmatprep.subr.bf16.mxu0 0
    %7479 = vmatpush1.bf16.msra.mxu0 %v4955
    %7480 = vmatprep.subr.bf16.mxu0 0
    %7481 = vmatpush1.bf16.msra.mxu0 %v4952
    %7482 = vmatprep.subr.bf16.mxu0 0
    %7483 = vmatpush2.bf16.msra.mxu0 0
    %7484 = vmatprep.subr.bf16.mxu0 0
    %7485 = vmatpush2.bf16.msra.mxu0 0
    %7486 = vmatprep.subr.bf16.mxu0 0
    %7487 = vmatpush2.bf16.msra.mxu0 0
    %7488 = vmatprep.subr.bf16.mxu0 0
    %7489 = vmatpush2.bf16.msra.mxu0 0
    %7490 = vmatprep.subr.bf16.mxu0 0
    %7491 = vmatpush2.bf16.msra.mxu0 0
    %7492 = vmatprep.subr.bf16.mxu0 0
    %7493 = vmatpush2.bf16.msra.mxu0 0
    %7494 = vmatprep.subr.bf16.mxu0 0
    %7495 = vmatpush2.bf16.msra.mxu0 0
    %7496 = vmatprep.subr.bf16.mxu0 0
    %7497 = vmatpush2.bf16.msra.mxu0 0
    %7498 = vmatprep.mubr.bf16.mxu0 0
    %7499 = vmatmul.mubr.bf16.gmra.mxu0 %v6546
    %v7500 = vpop.f32.mrf.mxu0
    %v7501 = vadd.f32 0.0, %v7500
    %v7502 = vpop.f32.mrf.mxu0
    %v7503 = vpop.f32.mrf.mxu0
    %v7504 = vpop.f32.mrf.mxu0
    %7505 = vdwg.mxu0
    %7506 = vmatprep.subr.bf16.mxu0 0
    %7507 = vmatpush1.bf16.msra.mxu0 0
    %7508 = vmatprep.subr.bf16.mxu0 0
    %7509 = vmatpush1.bf16.msra.mxu0 0
    %7510 = vmatprep.subr.bf16.mxu0 %v5173
    %7511 = vmatpush1.bf16.msra.mxu0 %v5170
    %7512 = vmatprep.subr.bf16.mxu0 %v5146
    %7513 = vmatpush1.bf16.msra.mxu0 %v5145
    %7514 = vmatprep.subr.bf16.mxu0 %v5143
    %7515 = vmatpush1.bf16.msra.mxu0 %v5142
    %7516 = vmatprep.subr.bf16.mxu0 %v5140
    %7517 = vmatpush1.bf16.msra.mxu0 %v5139
    %7518 = vmatprep.subr.bf16.mxu0 %v5137
    %7519 = vmatpush1.bf16.msra.mxu0 %v5136
    %7520 = vmatprep.subr.bf16.mxu0 %v5134
    %7521 = vmatpush1.bf16.msra.mxu0 %v5133
    %7522 = vmatprep.subr.bf16.mxu0 0
    %7523 = vmatpush2.bf16.msra.mxu0 0
    %7524 = vmatprep.subr.bf16.mxu0 0
    %7525 = vmatpush2.bf16.msra.mxu0 0
    %7526 = vmatprep.subr.bf16.mxu0 0
    %7527 = vmatpush2.bf16.msra.mxu0 0
    %7528 = vmatprep.subr.bf16.mxu0 0
    %7529 = vmatpush2.bf16.msra.mxu0 0
    %7530 = vmatprep.subr.bf16.mxu0 0
    %7531 = vmatpush2.bf16.msra.mxu0 0
    %7532 = vmatprep.subr.bf16.mxu0 0
    %7533 = vmatpush2.bf16.msra.mxu0 0
    %7534 = vmatprep.subr.bf16.mxu0 0
    %7535 = vmatpush2.bf16.msra.mxu0 0
    %7536 = vmatprep.subr.bf16.mxu0 0
    %7537 = vmatpush2.bf16.msra.mxu0 0
    %7538 = vmatprep.mubr.bf16.mxu0 0
    %7539 = vmatmul.mubr.bf16.gmra.mxu0 %v6459
    %v7540 = vpop.f32.mrf.mxu0
    %v7541 = vadd.f32 %v7460, %v7540
    %v7542 = vpop.f32.mrf.mxu0
    %v7543 = vadd.f32 %v7462, %v7542
    %v7544 = vpop.f32.mrf.mxu0
    %v7545 = vpop.f32.mrf.mxu0
    %7546 = vdwg.mxu0
    %7547 = vmatprep.subr.bf16.mxu0 0
    %7548 = vmatpush1.bf16.msra.mxu0 0
    %7549 = vmatprep.subr.bf16.mxu0 0
    %7550 = vmatpush1.bf16.msra.mxu0 0
    %7551 = vmatprep.subr.bf16.mxu0 0
    %7552 = vmatpush1.bf16.msra.mxu0 %v5176
    %7553 = vmatprep.subr.bf16.mxu0 0
    %7554 = vmatpush1.bf16.msra.mxu0 %v5147
    %7555 = vmatprep.subr.bf16.mxu0 0
    %7556 = vmatpush1.bf16.msra.mxu0 %v5144
    %7557 = vmatprep.subr.bf16.mxu0 0
    %7558 = vmatpush1.bf16.msra.mxu0 %v5141
    %7559 = vmatprep.subr.bf16.mxu0 0
    %7560 = vmatpush1.bf16.msra.mxu0 %v5138
    %7561 = vmatprep.subr.bf16.mxu0 0
    %7562 = vmatpush1.bf16.msra.mxu0 %v5135
    %7563 = vmatprep.subr.bf16.mxu0 0
    %7564 = vmatpush2.bf16.msra.mxu0 0
    %7565 = vmatprep.subr.bf16.mxu0 0
    %7566 = vmatpush2.bf16.msra.mxu0 0
    %7567 = vmatprep.subr.bf16.mxu0 0
    %7568 = vmatpush2.bf16.msra.mxu0 0
    %7569 = vmatprep.subr.bf16.mxu0 0
    %7570 = vmatpush2.bf16.msra.mxu0 0
    %7571 = vmatprep.subr.bf16.mxu0 0
    %7572 = vmatpush2.bf16.msra.mxu0 0
    %7573 = vmatprep.subr.bf16.mxu0 0
    %7574 = vmatpush2.bf16.msra.mxu0 0
    %7575 = vmatprep.subr.bf16.mxu0 0
    %7576 = vmatpush2.bf16.msra.mxu0 0
    %7577 = vmatprep.subr.bf16.mxu0 0
    %7578 = vmatpush2.bf16.msra.mxu0 0
    %7579 = vmatprep.mubr.bf16.mxu0 0
    %7580 = vmatmul.mubr.bf16.gmra.mxu0 %v6459
    %v7581 = vpop.f32.mrf.mxu0
    %v7582 = vadd.f32 %v7501, %v7581
    %v7583 = vpop.f32.mrf.mxu0
    %v7584 = vpop.f32.mrf.mxu0
    %v7585 = vpop.f32.mrf.mxu0
    %7586 = vdwg.mxu0
    %7587 = vmatprep.subr.bf16.mxu0 0
    %7588 = vmatpush1.bf16.msra.mxu0 0
    %7589 = vmatprep.subr.bf16.mxu0 0
    %7590 = vmatpush1.bf16.msra.mxu0 0
    %7591 = vmatprep.subr.bf16.mxu0 %v5377
    %7592 = vmatpush1.bf16.msra.mxu0 %v5374
    %7593 = vmatprep.subr.bf16.mxu0 %v5350
    %7594 = vmatpush1.bf16.msra.mxu0 %v5349
    %7595 = vmatprep.subr.bf16.mxu0 %v5347
    %7596 = vmatpush1.bf16.msra.mxu0 %v5346
    %7597 = vmatprep.subr.bf16.mxu0 %v5344
    %7598 = vmatpush1.bf16.msra.mxu0 %v5343
    %7599 = vmatprep.subr.bf16.mxu0 %v5341
    %7600 = vmatpush1.bf16.msra.mxu0 %v5340
    %7601 = vmatprep.subr.bf16.mxu0 %v5338
    %7602 = vmatpush1.bf16.msra.mxu0 %v5337
    %7603 = vmatprep.subr.bf16.mxu0 0
    %7604 = vmatpush2.bf16.msra.mxu0 0
    %7605 = vmatprep.subr.bf16.mxu0 0
    %7606 = vmatpush2.bf16.msra.mxu0 0
    %7607 = vmatprep.subr.bf16.mxu0 0
    %7608 = vmatpush2.bf16.msra.mxu0 0
    %7609 = vmatprep.subr.bf16.mxu0 0
    %7610 = vmatpush2.bf16.msra.mxu0 0
    %7611 = vmatprep.subr.bf16.mxu0 0
    %7612 = vmatpush2.bf16.msra.mxu0 0
    %7613 = vmatprep.subr.bf16.mxu0 0
    %7614 = vmatpush2.bf16.msra.mxu0 0
    %7615 = vmatprep.subr.bf16.mxu0 0
    %7616 = vmatpush2.bf16.msra.mxu0 0
    %7617 = vmatprep.subr.bf16.mxu0 0
    %7618 = vmatpush2.bf16.msra.mxu0 0
    %7619 = vmatprep.mubr.bf16.mxu0 0
    %7620 = vmatmul.mubr.bf16.gmra.mxu0 %v7144
    %v7621 = vpop.f32.mrf.mxu0
    %v7622 = vadd.f32 0.0, %v7621
    %v7623 = vpop.f32.mrf.mxu0
    %v7624 = vadd.f32 0.0, %v7623
    %v7625 = vpop.f32.mrf.mxu0
    %v7626 = vpop.f32.mrf.mxu0
    %7627 = vdwg.mxu0
    %7628 = vmatprep.subr.bf16.mxu0 0
    %7629 = vmatpush1.bf16.msra.mxu0 0
    %7630 = vmatprep.subr.bf16.mxu0 0
    %7631 = vmatpush1.bf16.msra.mxu0 0
    %7632 = vmatprep.subr.bf16.mxu0 0
    %7633 = vmatpush1.bf16.msra.mxu0 %v5380
    %7634 = vmatprep.subr.bf16.mxu0 0
    %7635 = vmatpush1.bf16.msra.mxu0 %v5351
    %7636 = vmatprep.subr.bf16.mxu0 0
    %7637 = vmatpush1.bf16.msra.mxu0 %v5348
    %7638 = vmatprep.subr.bf16.mxu0 0
    %7639 = vmatpush1.bf16.msra.mxu0 %v5345
    %7640 = vmatprep.subr.bf16.mxu0 0
    %7641 = vmatpush1.bf16.msra.mxu0 %v5342
    %7642 = vmatprep.subr.bf16.mxu0 0
    %7643 = vmatpush1.bf16.msra.mxu0 %v5339
    %7644 = vmatprep.subr.bf16.mxu0 0
    %7645 = vmatpush2.bf16.msra.mxu0 0
    %7646 = vmatprep.subr.bf16.mxu0 0
    %7647 = vmatpush2.bf16.msra.mxu0 0
    %7648 = vmatprep.subr.bf16.mxu0 0
    %7649 = vmatpush2.bf16.msra.mxu0 0
    %7650 = vmatprep.subr.bf16.mxu0 0
    %7651 = vmatpush2.bf16.msra.mxu0 0
    %7652 = vmatprep.subr.bf16.mxu0 0
    %7653 = vmatpush2.bf16.msra.mxu0 0
    %7654 = vmatprep.subr.bf16.mxu0 0
    %7655 = vmatpush2.bf16.msra.mxu0 0
    %7656 = vmatprep.subr.bf16.mxu0 0
    %7657 = vmatpush2.bf16.msra.mxu0 0
    %7658 = vmatprep.subr.bf16.mxu0 0
    %7659 = vmatpush2.bf16.msra.mxu0 0
    %7660 = vmatprep.mubr.bf16.mxu0 0
    %7661 = vmatmul.mubr.bf16.gmra.mxu0 %v7144
    %v7662 = vpop.f32.mrf.mxu0
    %v7663 = vadd.f32 0.0, %v7662
    %v7664 = vpop.f32.mrf.mxu0
    %v7665 = vpop.f32.mrf.mxu0
    %v7666 = vpop.f32.mrf.mxu0
    %7667 = vdwg.mxu0
    %v7668 = vadd.f32 %v7541, %v7622
    %v7669 = vadd.f32 %v7543, %v7624
    %v7670 = vadd.f32 %v7582, %v7663
    %7671 = vmatprep.subr.bf16.mxu0 0
    %7672 = vmatpush1.bf16.msra.mxu0 0
    %7673 = vmatprep.subr.bf16.mxu0 0
    %7674 = vmatpush1.bf16.msra.mxu0 0
    %7675 = vmatprep.subr.bf16.mxu0 %v5584
    %7676 = vmatpush1.bf16.msra.mxu0 %v5581
    %7677 = vmatprep.subr.bf16.mxu0 %v5557
    %7678 = vmatpush1.bf16.msra.mxu0 %v5556
    %7679 = vmatprep.subr.bf16.mxu0 %v5554
    %7680 = vmatpush1.bf16.msra.mxu0 %v5553
    %7681 = vmatprep.subr.bf16.mxu0 %v5551
    %7682 = vmatpush1.bf16.msra.mxu0 %v5550
    %7683 = vmatprep.subr.bf16.mxu0 %v5548
    %7684 = vmatpush1.bf16.msra.mxu0 %v5547
    %7685 = vmatprep.subr.bf16.mxu0 %v5545
    %7686 = vmatpush1.bf16.msra.mxu0 %v5544
    %7687 = vmatprep.subr.bf16.mxu0 0
    %7688 = vmatpush2.bf16.msra.mxu0 0
    %7689 = vmatprep.subr.bf16.mxu0 0
    %7690 = vmatpush2.bf16.msra.mxu0 0
    %7691 = vmatprep.subr.bf16.mxu0 0
    %7692 = vmatpush2.bf16.msra.mxu0 0
    %7693 = vmatprep.subr.bf16.mxu0 0
    %7694 = vmatpush2.bf16.msra.mxu0 0
    %7695 = vmatprep.subr.bf16.mxu0 0
    %7696 = vmatpush2.bf16.msra.mxu0 0
    %7697 = vmatprep.subr.bf16.mxu0 0
    %7698 = vmatpush2.bf16.msra.mxu0 0
    %7699 = vmatprep.subr.bf16.mxu0 0
    %7700 = vmatpush2.bf16.msra.mxu0 0
    %7701 = vmatprep.subr.bf16.mxu0 0
    %7702 = vmatpush2.bf16.msra.mxu0 0
    %7703 = vmatprep.mubr.bf16.mxu0 0
    %7704 = vmatmul.mubr.bf16.gmra.mxu0 %v7231
    %v7705 = vpop.f32.mrf.mxu0
    %v7706 = vadd.f32 0.0, %v7705
    %v7707 = vpop.f32.mrf.mxu0
    %v7708 = vadd.f32 0.0, %v7707
    %v7709 = vpop.f32.mrf.mxu0
    %v7710 = vpop.f32.mrf.mxu0
    %7711 = vdwg.mxu0
    %7712 = vmatprep.subr.bf16.mxu0 0
    %7713 = vmatpush1.bf16.msra.mxu0 0
    %7714 = vmatprep.subr.bf16.mxu0 0
    %7715 = vmatpush1.bf16.msra.mxu0 0
    %7716 = vmatprep.subr.bf16.mxu0 0
    %7717 = vmatpush1.bf16.msra.mxu0 %v5587
    %7718 = vmatprep.subr.bf16.mxu0 0
    %7719 = vmatpush1.bf16.msra.mxu0 %v5558
    %7720 = vmatprep.subr.bf16.mxu0 0
    %7721 = vmatpush1.bf16.msra.mxu0 %v5555
    %7722 = vmatprep.subr.bf16.mxu0 0
    %7723 = vmatpush1.bf16.msra.mxu0 %v5552
    %7724 = vmatprep.subr.bf16.mxu0 0
    %7725 = vmatpush1.bf16.msra.mxu0 %v5549
    %7726 = vmatprep.subr.bf16.mxu0 0
    %7727 = vmatpush1.bf16.msra.mxu0 %v5546
    %7728 = vmatprep.subr.bf16.mxu0 0
    %7729 = vmatpush2.bf16.msra.mxu0 0
    %7730 = vmatprep.subr.bf16.mxu0 0
    %7731 = vmatpush2.bf16.msra.mxu0 0
    %7732 = vmatprep.subr.bf16.mxu0 0
    %7733 = vmatpush2.bf16.msra.mxu0 0
    %7734 = vmatprep.subr.bf16.mxu0 0
    %7735 = vmatpush2.bf16.msra.mxu0 0
    %7736 = vmatprep.subr.bf16.mxu0 0
    %7737 = vmatpush2.bf16.msra.mxu0 0
    %7738 = vmatprep.subr.bf16.mxu0 0
    %7739 = vmatpush2.bf16.msra.mxu0 0
    %7740 = vmatprep.subr.bf16.mxu0 0
    %7741 = vmatpush2.bf16.msra.mxu0 0
    %7742 = vmatprep.subr.bf16.mxu0 0
    %7743 = vmatpush2.bf16.msra.mxu0 0
    %7744 = vmatprep.mubr.bf16.mxu0 0
    %7745 = vmatmul.mubr.bf16.gmra.mxu0 %v7231
    %v7746 = vpop.f32.mrf.mxu0
    %v7747 = vadd.f32 0.0, %v7746
    %v7748 = vpop.f32.mrf.mxu0
    %v7749 = vpop.f32.mrf.mxu0
    %v7750 = vpop.f32.mrf.mxu0
    %7751 = vdwg.mxu0
    %v7752 = vadd.f32 %v7668, %v7706
    %v7753 = vadd.f32 %v7669, %v7708
    %v7754 = vadd.f32 %v7670, %v7747
    %v7756 = vsel %vm4983, %v3990, 0
    %7758 = vmatprep.subr.bf16.mxu0 0
    %7759 = vmatpush1.bf16.msra.mxu0 0
    %7760 = vmatprep.subr.bf16.mxu0 0
    %7761 = vmatpush1.bf16.msra.mxu0 0
    %7762 = vmatprep.subr.bf16.mxu0 %v5791
    %7763 = vmatpush1.bf16.msra.mxu0 %v5788
    %7764 = vmatprep.subr.bf16.mxu0 %v5764
    %7765 = vmatpush1.bf16.msra.mxu0 %v5763
    %7766 = vmatprep.subr.bf16.mxu0 %v5761
    %7767 = vmatpush1.bf16.msra.mxu0 %v5760
    %7768 = vmatprep.subr.bf16.mxu0 %v5758
    %7769 = vmatpush1.bf16.msra.mxu0 %v5757
    %7770 = vmatprep.subr.bf16.mxu0 %v5755
    %7771 = vmatpush1.bf16.msra.mxu0 %v5754
    %7772 = vmatprep.subr.bf16.mxu0 %v5752
    %7773 = vmatpush1.bf16.msra.mxu0 %v5751
    %7774 = vmatprep.subr.bf16.mxu0 0
    %7775 = vmatpush2.bf16.msra.mxu0 0
    %7776 = vmatprep.subr.bf16.mxu0 0
    %7777 = vmatpush2.bf16.msra.mxu0 0
    %7778 = vmatprep.subr.bf16.mxu0 0
    %7779 = vmatpush2.bf16.msra.mxu0 0
    %7780 = vmatprep.subr.bf16.mxu0 0
    %7781 = vmatpush2.bf16.msra.mxu0 0
    %7782 = vmatprep.subr.bf16.mxu0 0
    %7783 = vmatpush2.bf16.msra.mxu0 0
    %7784 = vmatprep.subr.bf16.mxu0 0
    %7785 = vmatpush2.bf16.msra.mxu0 0
    %7786 = vmatprep.subr.bf16.mxu0 0
    %7787 = vmatpush2.bf16.msra.mxu0 0
    %7788 = vmatprep.subr.bf16.mxu0 0
    %7789 = vmatpush2.bf16.msra.mxu0 0
    %7790 = vmatprep.mubr.bf16.mxu0 0
    %7791 = vmatmul.mubr.bf16.gmra.mxu0 %v7756
    %v7792 = vpop.f32.mrf.mxu0
    %v7793 = vadd.f32 0.0, %v7792
    %v7794 = vpop.f32.mrf.mxu0
    %v7795 = vadd.f32 0.0, %v7794
    %v7796 = vpop.f32.mrf.mxu0
    %v7797 = vpop.f32.mrf.mxu0
    %7798 = vdwg.mxu0
    %7799 = vmatprep.subr.bf16.mxu0 0
    %7800 = vmatpush1.bf16.msra.mxu0 0
    %7801 = vmatprep.subr.bf16.mxu0 0
    %7802 = vmatpush1.bf16.msra.mxu0 0
    %7803 = vmatprep.subr.bf16.mxu0 0
    %7804 = vmatpush1.bf16.msra.mxu0 %v5794
    %7805 = vmatprep.subr.bf16.mxu0 0
    %7806 = vmatpush1.bf16.msra.mxu0 %v5765
    %7807 = vmatprep.subr.bf16.mxu0 0
    %7808 = vmatpush1.bf16.msra.mxu0 %v5762
    %7809 = vmatprep.subr.bf16.mxu0 0
    %7810 = vmatpush1.bf16.msra.mxu0 %v5759
    %7811 = vmatprep.subr.bf16.mxu0 0
    %7812 = vmatpush1.bf16.msra.mxu0 %v5756
    %7813 = vmatprep.subr.bf16.mxu0 0
    %7814 = vmatpush1.bf16.msra.mxu0 %v5753
    %7815 = vmatprep.subr.bf16.mxu0 0
    %7816 = vmatpush2.bf16.msra.mxu0 0
    %7817 = vmatprep.subr.bf16.mxu0 0
    %7818 = vmatpush2.bf16.msra.mxu0 0
    %7819 = vmatprep.subr.bf16.mxu0 0
    %7820 = vmatpush2.bf16.msra.mxu0 0
    %7821 = vmatprep.subr.bf16.mxu0 0
    %7822 = vmatpush2.bf16.msra.mxu0 0
    %7823 = vmatprep.subr.bf16.mxu0 0
    %7824 = vmatpush2.bf16.msra.mxu0 0
    %7825 = vmatprep.subr.bf16.mxu0 0
    %7826 = vmatpush2.bf16.msra.mxu0 0
    %7827 = vmatprep.subr.bf16.mxu0 0
    %7828 = vmatpush2.bf16.msra.mxu0 0
    %7829 = vmatprep.subr.bf16.mxu0 0
    %7830 = vmatpush2.bf16.msra.mxu0 0
    %7831 = vmatprep.mubr.bf16.mxu0 0
    %7832 = vmatmul.mubr.bf16.gmra.mxu0 %v7756
    %v7833 = vpop.f32.mrf.mxu0
    %v7834 = vadd.f32 0.0, %v7833
    %v7835 = vpop.f32.mrf.mxu0
    %v7836 = vpop.f32.mrf.mxu0
    %v7837 = vpop.f32.mrf.mxu0
    %7838 = vdwg.mxu0
    %v7839 = vadd.f32 %v7752, %v7793
    %v7840 = vadd.f32 %v7753, %v7795
    %v7841 = vadd.f32 %v7754, %v7834
    %v7843 = vsel %vm4983, %v4271, 0
    %7845 = vmatprep.subr.bf16.mxu0 0
    %7846 = vmatpush1.bf16.msra.mxu0 0
    %7847 = vmatprep.subr.bf16.mxu0 0
    %7848 = vmatpush1.bf16.msra.mxu0 0
    %7849 = vmatprep.subr.bf16.mxu0 %v5998
    %7850 = vmatpush1.bf16.msra.mxu0 %v5995
    %7851 = vmatprep.subr.bf16.mxu0 %v5971
    %7852 = vmatpush1.bf16.msra.mxu0 %v5970
    %7853 = vmatprep.subr.bf16.mxu0 %v5968
    %7854 = vmatpush1.bf16.msra.mxu0 %v5967
    %7855 = vmatprep.subr.bf16.mxu0 %v5965
    %7856 = vmatpush1.bf16.msra.mxu0 %v5964
    %7857 = vmatprep.subr.bf16.mxu0 %v5962
    %7858 = vmatpush1.bf16.msra.mxu0 %v5961
    %7859 = vmatprep.subr.bf16.mxu0 %v5959
    %7860 = vmatpush1.bf16.msra.mxu0 %v5958
    %7861 = vmatprep.subr.bf16.mxu0 0
    %7862 = vmatpush2.bf16.msra.mxu0 0
    %7863 = vmatprep.subr.bf16.mxu0 0
    %7864 = vmatpush2.bf16.msra.mxu0 0
    %7865 = vmatprep.subr.bf16.mxu0 0
    %7866 = vmatpush2.bf16.msra.mxu0 0
    %7867 = vmatprep.subr.bf16.mxu0 0
    %7868 = vmatpush2.bf16.msra.mxu0 0
    %7869 = vmatprep.subr.bf16.mxu0 0
    %7870 = vmatpush2.bf16.msra.mxu0 0
    %7871 = vmatprep.subr.bf16.mxu0 0
    %7872 = vmatpush2.bf16.msra.mxu0 0
    %7873 = vmatprep.subr.bf16.mxu0 0
    %7874 = vmatpush2.bf16.msra.mxu0 0
    %7875 = vmatprep.subr.bf16.mxu0 0
    %7876 = vmatpush2.bf16.msra.mxu0 0
    %7877 = vmatprep.mubr.bf16.mxu0 0
    %7878 = vmatmul.mubr.bf16.gmra.mxu0 %v7843
    %v7879 = vpop.f32.mrf.mxu0
    %v7880 = vadd.f32 0.0, %v7879
    %v7881 = vpop.f32.mrf.mxu0
    %v7882 = vadd.f32 0.0, %v7881
    %v7883 = vpop.f32.mrf.mxu0
    %v7884 = vpop.f32.mrf.mxu0
    %7885 = vdwg.mxu0
    %7886 = vmatprep.subr.bf16.mxu0 0
    %7887 = vmatpush1.bf16.msra.mxu0 0
    %7888 = vmatprep.subr.bf16.mxu0 0
    %7889 = vmatpush1.bf16.msra.mxu0 0
    %7890 = vmatprep.subr.bf16.mxu0 0
    %7891 = vmatpush1.bf16.msra.mxu0 %v6001
    %7892 = vmatprep.subr.bf16.mxu0 0
    %7893 = vmatpush1.bf16.msra.mxu0 %v5972
    %7894 = vmatprep.subr.bf16.mxu0 0
    %7895 = vmatpush1.bf16.msra.mxu0 %v5969
    %7896 = vmatprep.subr.bf16.mxu0 0
    %7897 = vmatpush1.bf16.msra.mxu0 %v5966
    %7898 = vmatprep.subr.bf16.mxu0 0
    %7899 = vmatpush1.bf16.msra.mxu0 %v5963
    %7900 = vmatprep.subr.bf16.mxu0 0
    %7901 = vmatpush1.bf16.msra.mxu0 %v5960
    %7902 = vmatprep.subr.bf16.mxu0 0
    %7903 = vmatpush2.bf16.msra.mxu0 0
    %7904 = vmatprep.subr.bf16.mxu0 0
    %7905 = vmatpush2.bf16.msra.mxu0 0
    %7906 = vmatprep.subr.bf16.mxu0 0
    %7907 = vmatpush2.bf16.msra.mxu0 0
    %7908 = vmatprep.subr.bf16.mxu0 0
    %7909 = vmatpush2.bf16.msra.mxu0 0
    %7910 = vmatprep.subr.bf16.mxu0 0
    %7911 = vmatpush2.bf16.msra.mxu0 0
    %7912 = vmatprep.subr.bf16.mxu0 0
    %7913 = vmatpush2.bf16.msra.mxu0 0
    %7914 = vmatprep.subr.bf16.mxu0 0
    %7915 = vmatpush2.bf16.msra.mxu0 0
    %7916 = vmatprep.subr.bf16.mxu0 0
    %7917 = vmatpush2.bf16.msra.mxu0 0
    %7918 = vmatprep.mubr.bf16.mxu0 0
    %7919 = vmatmul.mubr.bf16.gmra.mxu0 %v7843
    %v7920 = vpop.f32.mrf.mxu0
    %v7921 = vadd.f32 0.0, %v7920
    %v7922 = vpop.f32.mrf.mxu0
    %v7923 = vpop.f32.mrf.mxu0
    %v7924 = vpop.f32.mrf.mxu0
    %7925 = vdwg.mxu0
    %v7926 = vadd.f32 %v7839, %v7880
    %v7927 = vadd.f32 %v7840, %v7882
    %v7928 = vadd.f32 %v7841, %v7921
    %7931 = vrot.lane.b32.xlu0 %v7926, 48
    %v7932 = vpop.permute.xlu0 %7931
    %7933 = vrot.lane.b32.xlu0 %v7927, 48
    %v7934 = vpop.permute.xlu0 %7933
    %v7935 = vsel %vm6093, %v7932, %v7934
    %v7937 = vmax.f32 %v7926, %v7935
    %7939 = vrot.lane.b32.xlu0 %v7928, 48
    %v7940 = vpop.permute.xlu0 %7939
    %v7941 = vsel %vm6093, %v7934, %v7940
    %v7943 = vmax.f32 %v7927, %v7941
    %7945 = vrot.lane.b32.xlu0 %v7943, 96
    %v7946 = vpop.permute.xlu0 %7945
    %v7948 = vmax.f32 %v7937, %v7946
    %v7949 = vadd.f32 %v7948, %v6113
    %v7950 = vmax.f32 %v7949, 0.0
    %v7951 = vpack.c.bf16 %v7950, %v7950
    %s7952 = scalar_lea.vmem %s5, 120
    %v7953 = vld [vmem:[%s7952] sm:$0xf]
    %v7954 = vld [vmem:[%s7952 + $0x4] sm:$0xf]
    %v7955 = vld [vmem:[%s7952 + $0x8] sm:$0xf]
    %v7956 = vld [vmem:[%s7952 + $0xc] sm:$0xf]
    %v7957 = vld [vmem:[%s7952 + $0x10] sm:$0xf]
    %v7958 = vld [vmem:[%s7952 + $0x14] sm:$0xf]
    %v7959 = vld [vmem:[%s7952 + $0x18] sm:$0xf]
    %v7960 = vld [vmem:[%s7952 + $0x1c] sm:$0xf]
    %v7961 = vld [vmem:[%s7952 + $0x20] sm:$0xf]
    %v7962 = vld [vmem:[%s7952 + $0x24] sm:$0xf]
    %v7973 = vunpack.c.l.b16 %v7953
    %v7974 = vunpack.c.l.b16 %v7954
    %v7975 = vunpack.c.l.b16 %v7955
    %v7976 = vunpack.c.l.b16 %v7956
    %v7977 = vunpack.c.l.b16 %v7957
    %v7978 = vunpack.c.l.b16 %v7958
    %v7979 = vunpack.c.l.b16 %v7959
    %v7980 = vunpack.c.l.b16 %v7960
    %v7981 = vunpack.c.l.b16 %v7961
    %v7982 = vunpack.c.l.b16 %v7962
    %v7983 = vpack.c.b16 %v7974, %v7973
    %v7984 = vpack.c.b16 %v7976, %v7975
    %v7985 = vpack.c.b16 %v7978, %v7977
    %v7986 = vpack.c.b16 %v7980, %v7979
    %v7987 = vpack.c.b16 %v7982, %v7981
    %v7994 = vsel %vm6696, %v7951, 0
    %7996 = vmatprep.subr.bf16.mxu0 0
    %7997 = vmatpush1.bf16.msra.mxu0 0
    %7998 = vmatprep.subr.bf16.mxu0 0
    %7999 = vmatpush1.bf16.msra.mxu0 0
    %8000 = vmatprep.subr.bf16.mxu0 0
    %8001 = vmatpush1.bf16.msra.mxu0 0
    %8002 = vmatprep.subr.bf16.mxu0 0
    %8003 = vmatpush1.bf16.msra.mxu0 %v7987
    %8004 = vmatprep.subr.bf16.mxu0 0
    %8005 = vmatpush1.bf16.msra.mxu0 %v7986
    %8006 = vmatprep.subr.bf16.mxu0 0
    %8007 = vmatpush1.bf16.msra.mxu0 %v7985
    %8008 = vmatprep.subr.bf16.mxu0 0
    %8009 = vmatpush1.bf16.msra.mxu0 %v7984
    %8010 = vmatprep.subr.bf16.mxu0 0
    %8011 = vmatpush1.bf16.msra.mxu0 %v7983
    %8012 = vmatprep.subr.bf16.mxu0 0
    %8013 = vmatpush2.bf16.msra.mxu0 0
    %8014 = vmatprep.subr.bf16.mxu0 0
    %8015 = vmatpush2.bf16.msra.mxu0 0
    %8016 = vmatprep.subr.bf16.mxu0 0
    %8017 = vmatpush2.bf16.msra.mxu0 0
    %8018 = vmatprep.subr.bf16.mxu0 0
    %8019 = vmatpush2.bf16.msra.mxu0 0
    %8020 = vmatprep.subr.bf16.mxu0 0
    %8021 = vmatpush2.bf16.msra.mxu0 0
    %8022 = vmatprep.subr.bf16.mxu0 0
    %8023 = vmatpush2.bf16.msra.mxu0 0
    %8024 = vmatprep.subr.bf16.mxu0 0
    %8025 = vmatpush2.bf16.msra.mxu0 0
    %8026 = vmatprep.subr.bf16.mxu0 0
    %8027 = vmatpush2.bf16.msra.mxu0 0
    %8028 = vmatprep.mubr.bf16.mxu0 0
    %8029 = vmatmul.mubr.bf16.gmra.mxu0 %v7994
    %v8030 = vpop.f32.mrf.mxu0
    %v8031 = vadd.f32 0.0, %v8030
    %v8032 = vpop.f32.mrf.mxu0
    %v8033 = vpop.f32.mrf.mxu0
    %v8034 = vpop.f32.mrf.mxu0
    %8035 = vdwg.mxu0
    %v8036 = vadd.f32 %v7424, %v8031
    %8037 = vmatprep.subr.bf16.mxu0 0
    %8038 = vmatpush1.bf16.msra.mxu0 0
    %8039 = vmatprep.subr.bf16.mxu0 0
    %8040 = vmatpush1.bf16.msra.mxu0 0
    %8041 = vmatprep.subr.bf16.mxu0 %v4992
    %8042 = vmatpush1.bf16.msra.mxu0 %v4989
    %8043 = vmatprep.subr.bf16.mxu0 %v4963
    %8044 = vmatpush1.bf16.msra.mxu0 %v4962
    %8045 = vmatprep.subr.bf16.mxu0 %v4960
    %8046 = vmatpush1.bf16.msra.mxu0 %v4959
    %8047 = vmatprep.subr.bf16.mxu0 %v4957
    %8048 = vmatpush1.bf16.msra.mxu0 %v4956
    %8049 = vmatprep.subr.bf16.mxu0 %v4954
    %8050 = vmatpush1.bf16.msra.mxu0 %v4953
    %8051 = vmatprep.subr.bf16.mxu0 %v4951
    %8052 = vmatpush1.bf16.msra.mxu0 %v4950
    %8053 = vmatprep.subr.bf16.mxu0 0
    %8054 = vmatpush2.bf16.msra.mxu0 0
    %8055 = vmatprep.subr.bf16.mxu0 0
    %8056 = vmatpush2.bf16.msra.mxu0 0
    %8057 = vmatprep.subr.bf16.mxu0 0
    %8058 = vmatpush2.bf16.msra.mxu0 0
    %8059 = vmatprep.subr.bf16.mxu0 0
    %8060 = vmatpush2.bf16.msra.mxu0 0
    %8061 = vmatprep.subr.bf16.mxu0 0
    %8062 = vmatpush2.bf16.msra.mxu0 0
    %8063 = vmatprep.subr.bf16.mxu0 0
    %8064 = vmatpush2.bf16.msra.mxu0 0
    %8065 = vmatprep.subr.bf16.mxu0 0
    %8066 = vmatpush2.bf16.msra.mxu0 0
    %8067 = vmatprep.subr.bf16.mxu0 0
    %8068 = vmatpush2.bf16.msra.mxu0 0
    %8069 = vmatprep.mubr.bf16.mxu0 0
    %8070 = vmatmul.mubr.bf16.gmra.mxu0 %v7231
    %v8071 = vpop.f32.mrf.mxu0
    %v8072 = vadd.f32 0.0, %v8071
    %v8073 = vpop.f32.mrf.mxu0
    %v8074 = vadd.f32 0.0, %v8073
    %v8075 = vpop.f32.mrf.mxu0
    %v8076 = vpop.f32.mrf.mxu0
    %8077 = vdwg.mxu0
    %8078 = vmatprep.subr.bf16.mxu0 0
    %8079 = vmatpush1.bf16.msra.mxu0 0
    %8080 = vmatprep.subr.bf16.mxu0 0
    %8081 = vmatpush1.bf16.msra.mxu0 0
    %8082 = vmatprep.subr.bf16.mxu0 0
    %8083 = vmatpush1.bf16.msra.mxu0 %v4995
    %8084 = vmatprep.subr.bf16.mxu0 0
    %8085 = vmatpush1.bf16.msra.mxu0 %v4964
    %8086 = vmatprep.subr.bf16.mxu0 0
    %8087 = vmatpush1.bf16.msra.mxu0 %v4961
    %8088 = vmatprep.subr.bf16.mxu0 0
    %8089 = vmatpush1.bf16.msra.mxu0 %v4958
    %8090 = vmatprep.subr.bf16.mxu0 0
    %8091 = vmatpush1.bf16.msra.mxu0 %v4955
    %8092 = vmatprep.subr.bf16.mxu0 0
    %8093 = vmatpush1.bf16.msra.mxu0 %v4952
    %8094 = vmatprep.subr.bf16.mxu0 0
    %8095 = vmatpush2.bf16.msra.mxu0 0
    %8096 = vmatprep.subr.bf16.mxu0 0
    %8097 = vmatpush2.bf16.msra.mxu0 0
    %8098 = vmatprep.subr.bf16.mxu0 0
    %8099 = vmatpush2.bf16.msra.mxu0 0
    %8100 = vmatprep.subr.bf16.mxu0 0
    %8101 = vmatpush2.bf16.msra.mxu0 0
    %8102 = vmatprep.subr.bf16.mxu0 0
    %8103 = vmatpush2.bf16.msra.mxu0 0
    %8104 = vmatprep.subr.bf16.mxu0 0
    %8105 = vmatpush2.bf16.msra.mxu0 0
    %8106 = vmatprep.subr.bf16.mxu0 0
    %8107 = vmatpush2.bf16.msra.mxu0 0
    %8108 = vmatprep.subr.bf16.mxu0 0
    %8109 = vmatpush2.bf16.msra.mxu0 0
    %8110 = vmatprep.mubr.bf16.mxu0 0
    %8111 = vmatmul.mubr.bf16.gmra.mxu0 %v7231
    %v8112 = vpop.f32.mrf.mxu0
    %v8113 = vadd.f32 0.0, %v8112
    %v8114 = vpop.f32.mrf.mxu0
    %v8115 = vpop.f32.mrf.mxu0
    %v8116 = vpop.f32.mrf.mxu0
    %8117 = vdwg.mxu0
    %8118 = vmatprep.subr.bf16.mxu0 0
    %8119 = vmatpush1.bf16.msra.mxu0 0
    %8120 = vmatprep.subr.bf16.mxu0 0
    %8121 = vmatpush1.bf16.msra.mxu0 0
    %8122 = vmatprep.subr.bf16.mxu0 %v5173
    %8123 = vmatpush1.bf16.msra.mxu0 %v5170
    %8124 = vmatprep.subr.bf16.mxu0 %v5146
    %8125 = vmatpush1.bf16.msra.mxu0 %v5145
    %8126 = vmatprep.subr.bf16.mxu0 %v5143
    %8127 = vmatpush1.bf16.msra.mxu0 %v5142
    %8128 = vmatprep.subr.bf16.mxu0 %v5140
    %8129 = vmatpush1.bf16.msra.mxu0 %v5139
    %8130 = vmatprep.subr.bf16.mxu0 %v5137
    %8131 = vmatpush1.bf16.msra.mxu0 %v5136
    %8132 = vmatprep.subr.bf16.mxu0 %v5134
    %8133 = vmatpush1.bf16.msra.mxu0 %v5133
    %8134 = vmatprep.subr.bf16.mxu0 0
    %8135 = vmatpush2.bf16.msra.mxu0 0
    %8136 = vmatprep.subr.bf16.mxu0 0
    %8137 = vmatpush2.bf16.msra.mxu0 0
    %8138 = vmatprep.subr.bf16.mxu0 0
    %8139 = vmatpush2.bf16.msra.mxu0 0
    %8140 = vmatprep.subr.bf16.mxu0 0
    %8141 = vmatpush2.bf16.msra.mxu0 0
    %8142 = vmatprep.subr.bf16.mxu0 0
    %8143 = vmatpush2.bf16.msra.mxu0 0
    %8144 = vmatprep.subr.bf16.mxu0 0
    %8145 = vmatpush2.bf16.msra.mxu0 0
    %8146 = vmatprep.subr.bf16.mxu0 0
    %8147 = vmatpush2.bf16.msra.mxu0 0
    %8148 = vmatprep.subr.bf16.mxu0 0
    %8149 = vmatpush2.bf16.msra.mxu0 0
    %8150 = vmatprep.mubr.bf16.mxu0 0
    %8151 = vmatmul.mubr.bf16.gmra.mxu0 %v7144
    %v8152 = vpop.f32.mrf.mxu0
    %v8153 = vadd.f32 %v8072, %v8152
    %v8154 = vpop.f32.mrf.mxu0
    %v8155 = vadd.f32 %v8074, %v8154
    %v8156 = vpop.f32.mrf.mxu0
    %v8157 = vpop.f32.mrf.mxu0
    %8158 = vdwg.mxu0
    %8159 = vmatprep.subr.bf16.mxu0 0
    %8160 = vmatpush1.bf16.msra.mxu0 0
    %8161 = vmatprep.subr.bf16.mxu0 0
    %8162 = vmatpush1.bf16.msra.mxu0 0
    %8163 = vmatprep.subr.bf16.mxu0 0
    %8164 = vmatpush1.bf16.msra.mxu0 %v5176
    %8165 = vmatprep.subr.bf16.mxu0 0
    %8166 = vmatpush1.bf16.msra.mxu0 %v5147
    %8167 = vmatprep.subr.bf16.mxu0 0
    %8168 = vmatpush1.bf16.msra.mxu0 %v5144
    %8169 = vmatprep.subr.bf16.mxu0 0
    %8170 = vmatpush1.bf16.msra.mxu0 %v5141
    %8171 = vmatprep.subr.bf16.mxu0 0
    %8172 = vmatpush1.bf16.msra.mxu0 %v5138
    %8173 = vmatprep.subr.bf16.mxu0 0
    %8174 = vmatpush1.bf16.msra.mxu0 %v5135
    %8175 = vmatprep.subr.bf16.mxu0 0
    %8176 = vmatpush2.bf16.msra.mxu0 0
    %8177 = vmatprep.subr.bf16.mxu0 0
    %8178 = vmatpush2.bf16.msra.mxu0 0
    %8179 = vmatprep.subr.bf16.mxu0 0
    %8180 = vmatpush2.bf16.msra.mxu0 0
    %8181 = vmatprep.subr.bf16.mxu0 0
    %8182 = vmatpush2.bf16.msra.mxu0 0
    %8183 = vmatprep.subr.bf16.mxu0 0
    %8184 = vmatpush2.bf16.msra.mxu0 0
    %8185 = vmatprep.subr.bf16.mxu0 0
    %8186 = vmatpush2.bf16.msra.mxu0 0
    %8187 = vmatprep.subr.bf16.mxu0 0
    %8188 = vmatpush2.bf16.msra.mxu0 0
    %8189 = vmatprep.subr.bf16.mxu0 0
    %8190 = vmatpush2.bf16.msra.mxu0 0
    %8191 = vmatprep.mubr.bf16.mxu0 0
    %8192 = vmatmul.mubr.bf16.gmra.mxu0 %v7144
    %v8193 = vpop.f32.mrf.mxu0
    %v8194 = vadd.f32 %v8113, %v8193
    %v8195 = vpop.f32.mrf.mxu0
    %v8196 = vpop.f32.mrf.mxu0
    %v8197 = vpop.f32.mrf.mxu0
    %8198 = vdwg.mxu0
    %8199 = vmatprep.subr.bf16.mxu0 0
    %8200 = vmatpush1.bf16.msra.mxu0 0
    %8201 = vmatprep.subr.bf16.mxu0 0
    %8202 = vmatpush1.bf16.msra.mxu0 0
    %8203 = vmatprep.subr.bf16.mxu0 %v5377
    %8204 = vmatpush1.bf16.msra.mxu0 %v5374
    %8205 = vmatprep.subr.bf16.mxu0 %v5350
    %8206 = vmatpush1.bf16.msra.mxu0 %v5349
    %8207 = vmatprep.subr.bf16.mxu0 %v5347
    %8208 = vmatpush1.bf16.msra.mxu0 %v5346
    %8209 = vmatprep.subr.bf16.mxu0 %v5344
    %8210 = vmatpush1.bf16.msra.mxu0 %v5343
    %8211 = vmatprep.subr.bf16.mxu0 %v5341
    %8212 = vmatpush1.bf16.msra.mxu0 %v5340
    %8213 = vmatprep.subr.bf16.mxu0 %v5338
    %8214 = vmatpush1.bf16.msra.mxu0 %v5337
    %8215 = vmatprep.subr.bf16.mxu0 0
    %8216 = vmatpush2.bf16.msra.mxu0 0
    %8217 = vmatprep.subr.bf16.mxu0 0
    %8218 = vmatpush2.bf16.msra.mxu0 0
    %8219 = vmatprep.subr.bf16.mxu0 0
    %8220 = vmatpush2.bf16.msra.mxu0 0
    %8221 = vmatprep.subr.bf16.mxu0 0
    %8222 = vmatpush2.bf16.msra.mxu0 0
    %8223 = vmatprep.subr.bf16.mxu0 0
    %8224 = vmatpush2.bf16.msra.mxu0 0
    %8225 = vmatprep.subr.bf16.mxu0 0
    %8226 = vmatpush2.bf16.msra.mxu0 0
    %8227 = vmatprep.subr.bf16.mxu0 0
    %8228 = vmatpush2.bf16.msra.mxu0 0
    %8229 = vmatprep.subr.bf16.mxu0 0
    %8230 = vmatpush2.bf16.msra.mxu0 0
    %8231 = vmatprep.mubr.bf16.mxu0 0
    %8232 = vmatmul.mubr.bf16.gmra.mxu0 %v7756
    %v8233 = vpop.f32.mrf.mxu0
    %v8234 = vadd.f32 0.0, %v8233
    %v8235 = vpop.f32.mrf.mxu0
    %v8236 = vadd.f32 0.0, %v8235
    %v8237 = vpop.f32.mrf.mxu0
    %v8238 = vpop.f32.mrf.mxu0
    %8239 = vdwg.mxu0
    %8240 = vmatprep.subr.bf16.mxu0 0
    %8241 = vmatpush1.bf16.msra.mxu0 0
    %8242 = vmatprep.subr.bf16.mxu0 0
    %8243 = vmatpush1.bf16.msra.mxu0 0
    %8244 = vmatprep.subr.bf16.mxu0 0
    %8245 = vmatpush1.bf16.msra.mxu0 %v5380
    %8246 = vmatprep.subr.bf16.mxu0 0
    %8247 = vmatpush1.bf16.msra.mxu0 %v5351
    %8248 = vmatprep.subr.bf16.mxu0 0
    %8249 = vmatpush1.bf16.msra.mxu0 %v5348
    %8250 = vmatprep.subr.bf16.mxu0 0
    %8251 = vmatpush1.bf16.msra.mxu0 %v5345
    %8252 = vmatprep.subr.bf16.mxu0 0
    %8253 = vmatpush1.bf16.msra.mxu0 %v5342
    %8254 = vmatprep.subr.bf16.mxu0 0
    %8255 = vmatpush1.bf16.msra.mxu0 %v5339
    %8256 = vmatprep.subr.bf16.mxu0 0
    %8257 = vmatpush2.bf16.msra.mxu0 0
    %8258 = vmatprep.subr.bf16.mxu0 0
    %8259 = vmatpush2.bf16.msra.mxu0 0
    %8260 = vmatprep.subr.bf16.mxu0 0
    %8261 = vmatpush2.bf16.msra.mxu0 0
    %8262 = vmatprep.subr.bf16.mxu0 0
    %8263 = vmatpush2.bf16.msra.mxu0 0
    %8264 = vmatprep.subr.bf16.mxu0 0
    %8265 = vmatpush2.bf16.msra.mxu0 0
    %8266 = vmatprep.subr.bf16.mxu0 0
    %8267 = vmatpush2.bf16.msra.mxu0 0
    %8268 = vmatprep.subr.bf16.mxu0 0
    %8269 = vmatpush2.bf16.msra.mxu0 0
    %8270 = vmatprep.subr.bf16.mxu0 0
    %8271 = vmatpush2.bf16.msra.mxu0 0
    %8272 = vmatprep.mubr.bf16.mxu0 0
    %8273 = vmatmul.mubr.bf16.gmra.mxu0 %v7756
    %v8274 = vpop.f32.mrf.mxu0
    %v8275 = vadd.f32 0.0, %v8274
    %v8276 = vpop.f32.mrf.mxu0
    %v8277 = vpop.f32.mrf.mxu0
    %v8278 = vpop.f32.mrf.mxu0
    %8279 = vdwg.mxu0
    %v8280 = vadd.f32 %v8153, %v8234
    %v8281 = vadd.f32 %v8155, %v8236
    %v8282 = vadd.f32 %v8194, %v8275
    %8283 = vmatprep.subr.bf16.mxu0 0
    %8284 = vmatpush1.bf16.msra.mxu0 0
    %8285 = vmatprep.subr.bf16.mxu0 0
    %8286 = vmatpush1.bf16.msra.mxu0 0
    %8287 = vmatprep.subr.bf16.mxu0 %v5584
    %8288 = vmatpush1.bf16.msra.mxu0 %v5581
    %8289 = vmatprep.subr.bf16.mxu0 %v5557
    %8290 = vmatpush1.bf16.msra.mxu0 %v5556
    %8291 = vmatprep.subr.bf16.mxu0 %v5554
    %8292 = vmatpush1.bf16.msra.mxu0 %v5553
    %8293 = vmatprep.subr.bf16.mxu0 %v5551
    %8294 = vmatpush1.bf16.msra.mxu0 %v5550
    %8295 = vmatprep.subr.bf16.mxu0 %v5548
    %8296 = vmatpush1.bf16.msra.mxu0 %v5547
    %8297 = vmatprep.subr.bf16.mxu0 %v5545
    %8298 = vmatpush1.bf16.msra.mxu0 %v5544
    %8299 = vmatprep.subr.bf16.mxu0 0
    %8300 = vmatpush2.bf16.msra.mxu0 0
    %8301 = vmatprep.subr.bf16.mxu0 0
    %8302 = vmatpush2.bf16.msra.mxu0 0
    %8303 = vmatprep.subr.bf16.mxu0 0
    %8304 = vmatpush2.bf16.msra.mxu0 0
    %8305 = vmatprep.subr.bf16.mxu0 0
    %8306 = vmatpush2.bf16.msra.mxu0 0
    %8307 = vmatprep.subr.bf16.mxu0 0
    %8308 = vmatpush2.bf16.msra.mxu0 0
    %8309 = vmatprep.subr.bf16.mxu0 0
    %8310 = vmatpush2.bf16.msra.mxu0 0
    %8311 = vmatprep.subr.bf16.mxu0 0
    %8312 = vmatpush2.bf16.msra.mxu0 0
    %8313 = vmatprep.subr.bf16.mxu0 0
    %8314 = vmatpush2.bf16.msra.mxu0 0
    %8315 = vmatprep.mubr.bf16.mxu0 0
    %8316 = vmatmul.mubr.bf16.gmra.mxu0 %v7843
    %v8317 = vpop.f32.mrf.mxu0
    %v8318 = vadd.f32 0.0, %v8317
    %v8319 = vpop.f32.mrf.mxu0
    %v8320 = vadd.f32 0.0, %v8319
    %v8321 = vpop.f32.mrf.mxu0
    %v8322 = vpop.f32.mrf.mxu0
    %8323 = vdwg.mxu0
    %8324 = vmatprep.subr.bf16.mxu0 0
    %8325 = vmatpush1.bf16.msra.mxu0 0
    %8326 = vmatprep.subr.bf16.mxu0 0
    %8327 = vmatpush1.bf16.msra.mxu0 0
    %8328 = vmatprep.subr.bf16.mxu0 0
    %8329 = vmatpush1.bf16.msra.mxu0 %v5587
    %8330 = vmatprep.subr.bf16.mxu0 0
    %8331 = vmatpush1.bf16.msra.mxu0 %v5558
    %8332 = vmatprep.subr.bf16.mxu0 0
    %8333 = vmatpush1.bf16.msra.mxu0 %v5555
    %8334 = vmatprep.subr.bf16.mxu0 0
    %8335 = vmatpush1.bf16.msra.mxu0 %v5552
    %8336 = vmatprep.subr.bf16.mxu0 0
    %8337 = vmatpush1.bf16.msra.mxu0 %v5549
    %8338 = vmatprep.subr.bf16.mxu0 0
    %8339 = vmatpush1.bf16.msra.mxu0 %v5546
    %8340 = vmatprep.subr.bf16.mxu0 0
    %8341 = vmatpush2.bf16.msra.mxu0 0
    %8342 = vmatprep.subr.bf16.mxu0 0
    %8343 = vmatpush2.bf16.msra.mxu0 0
    %8344 = vmatprep.subr.bf16.mxu0 0
    %8345 = vmatpush2.bf16.msra.mxu0 0
    %8346 = vmatprep.subr.bf16.mxu0 0
    %8347 = vmatpush2.bf16.msra.mxu0 0
    %8348 = vmatprep.subr.bf16.mxu0 0
    %8349 = vmatpush2.bf16.msra.mxu0 0
    %8350 = vmatprep.subr.bf16.mxu0 0
    %8351 = vmatpush2.bf16.msra.mxu0 0
    %8352 = vmatprep.subr.bf16.mxu0 0
    %8353 = vmatpush2.bf16.msra.mxu0 0
    %8354 = vmatprep.subr.bf16.mxu0 0
    %8355 = vmatpush2.bf16.msra.mxu0 0
    %8356 = vmatprep.mubr.bf16.mxu0 0
    %8357 = vmatmul.mubr.bf16.gmra.mxu0 %v7843
    %v8358 = vpop.f32.mrf.mxu0
    %v8359 = vadd.f32 0.0, %v8358
    %v8360 = vpop.f32.mrf.mxu0
    %v8361 = vpop.f32.mrf.mxu0
    %v8362 = vpop.f32.mrf.mxu0
    %8363 = vdwg.mxu0
    %v8364 = vadd.f32 %v8280, %v8318
    %v8365 = vadd.f32 %v8281, %v8320
    %v8366 = vadd.f32 %v8282, %v8359
    %v8368 = vsel %vm4983, %v4568, 0
    %8370 = vmatprep.subr.bf16.mxu0 0
    %8371 = vmatpush1.bf16.msra.mxu0 0
    %8372 = vmatprep.subr.bf16.mxu0 0
    %8373 = vmatpush1.bf16.msra.mxu0 0
    %8374 = vmatprep.subr.bf16.mxu0 %v5791
    %8375 = vmatpush1.bf16.msra.mxu0 %v5788
    %8376 = vmatprep.subr.bf16.mxu0 %v5764
    %8377 = vmatpush1.bf16.msra.mxu0 %v5763
    %8378 = vmatprep.subr.bf16.mxu0 %v5761
    %8379 = vmatpush1.bf16.msra.mxu0 %v5760
    %8380 = vmatprep.subr.bf16.mxu0 %v5758
    %8381 = vmatpush1.bf16.msra.mxu0 %v5757
    %8382 = vmatprep.subr.bf16.mxu0 %v5755
    %8383 = vmatpush1.bf16.msra.mxu0 %v5754
    %8384 = vmatprep.subr.bf16.mxu0 %v5752
    %8385 = vmatpush1.bf16.msra.mxu0 %v5751
    %8386 = vmatprep.subr.bf16.mxu0 0
    %8387 = vmatpush2.bf16.msra.mxu0 0
    %8388 = vmatprep.subr.bf16.mxu0 0
    %8389 = vmatpush2.bf16.msra.mxu0 0
    %8390 = vmatprep.subr.bf16.mxu0 0
    %8391 = vmatpush2.bf16.msra.mxu0 0
    %8392 = vmatprep.subr.bf16.mxu0 0
    %8393 = vmatpush2.bf16.msra.mxu0 0
    %8394 = vmatprep.subr.bf16.mxu0 0
    %8395 = vmatpush2.bf16.msra.mxu0 0
    %8396 = vmatprep.subr.bf16.mxu0 0
    %8397 = vmatpush2.bf16.msra.mxu0 0
    %8398 = vmatprep.subr.bf16.mxu0 0
    %8399 = vmatpush2.bf16.msra.mxu0 0
    %8400 = vmatprep.subr.bf16.mxu0 0
    %8401 = vmatpush2.bf16.msra.mxu0 0
    %8402 = vmatprep.mubr.bf16.mxu0 0
    %8403 = vmatmul.mubr.bf16.gmra.mxu0 %v8368
    %v8404 = vpop.f32.mrf.mxu0
    %v8405 = vadd.f32 0.0, %v8404
    %v8406 = vpop.f32.mrf.mxu0
    %v8407 = vadd.f32 0.0, %v8406
    %v8408 = vpop.f32.mrf.mxu0
    %v8409 = vpop.f32.mrf.mxu0
    %8410 = vdwg.mxu0
    %8411 = vmatprep.subr.bf16.mxu0 0
    %8412 = vmatpush1.bf16.msra.mxu0 0
    %8413 = vmatprep.subr.bf16.mxu0 0
    %8414 = vmatpush1.bf16.msra.mxu0 0
    %8415 = vmatprep.subr.bf16.mxu0 0
    %8416 = vmatpush1.bf16.msra.mxu0 %v5794
    %8417 = vmatprep.subr.bf16.mxu0 0
    %8418 = vmatpush1.bf16.msra.mxu0 %v5765
    %8419 = vmatprep.subr.bf16.mxu0 0
    %8420 = vmatpush1.bf16.msra.mxu0 %v5762
    %8421 = vmatprep.subr.bf16.mxu0 0
    %8422 = vmatpush1.bf16.msra.mxu0 %v5759
    %8423 = vmatprep.subr.bf16.mxu0 0
    %8424 = vmatpush1.bf16.msra.mxu0 %v5756
    %8425 = vmatprep.subr.bf16.mxu0 0
    %8426 = vmatpush1.bf16.msra.mxu0 %v5753
    %8427 = vmatprep.subr.bf16.mxu0 0
    %8428 = vmatpush2.bf16.msra.mxu0 0
    %8429 = vmatprep.subr.bf16.mxu0 0
    %8430 = vmatpush2.bf16.msra.mxu0 0
    %8431 = vmatprep.subr.bf16.mxu0 0
    %8432 = vmatpush2.bf16.msra.mxu0 0
    %8433 = vmatprep.subr.bf16.mxu0 0
    %8434 = vmatpush2.bf16.msra.mxu0 0
    %8435 = vmatprep.subr.bf16.mxu0 0
    %8436 = vmatpush2.bf16.msra.mxu0 0
    %8437 = vmatprep.subr.bf16.mxu0 0
    %8438 = vmatpush2.bf16.msra.mxu0 0
    %8439 = vmatprep.subr.bf16.mxu0 0
    %8440 = vmatpush2.bf16.msra.mxu0 0
    %8441 = vmatprep.subr.bf16.mxu0 0
    %8442 = vmatpush2.bf16.msra.mxu0 0
    %8443 = vmatprep.mubr.bf16.mxu0 0
    %8444 = vmatmul.mubr.bf16.gmra.mxu0 %v8368
    %v8445 = vpop.f32.mrf.mxu0
    %v8446 = vadd.f32 0.0, %v8445
    %v8447 = vpop.f32.mrf.mxu0
    %v8448 = vpop.f32.mrf.mxu0
    %v8449 = vpop.f32.mrf.mxu0
    %8450 = vdwg.mxu0
    %v8451 = vadd.f32 %v8364, %v8405
    %v8452 = vadd.f32 %v8365, %v8407
    %v8453 = vadd.f32 %v8366, %v8446
    %v8455 = vsel %vm4983, %v4849, 0
    %8457 = vmatprep.subr.bf16.mxu0 0
    %8458 = vmatpush1.bf16.msra.mxu0 0
    %8459 = vmatprep.subr.bf16.mxu0 0
    %8460 = vmatpush1.bf16.msra.mxu0 0
    %8461 = vmatprep.subr.bf16.mxu0 %v5998
    %8462 = vmatpush1.bf16.msra.mxu0 %v5995
    %8463 = vmatprep.subr.bf16.mxu0 %v5971
    %8464 = vmatpush1.bf16.msra.mxu0 %v5970
    %8465 = vmatprep.subr.bf16.mxu0 %v5968
    %8466 = vmatpush1.bf16.msra.mxu0 %v5967
    %8467 = vmatprep.subr.bf16.mxu0 %v5965
    %8468 = vmatpush1.bf16.msra.mxu0 %v5964
    %8469 = vmatprep.subr.bf16.mxu0 %v5962
    %8470 = vmatpush1.bf16.msra.mxu0 %v5961
    %8471 = vmatprep.subr.bf16.mxu0 %v5959
    %8472 = vmatpush1.bf16.msra.mxu0 %v5958
    %8473 = vmatprep.subr.bf16.mxu0 0
    %8474 = vmatpush2.bf16.msra.mxu0 0
    %8475 = vmatprep.subr.bf16.mxu0 0
    %8476 = vmatpush2.bf16.msra.mxu0 0
    %8477 = vmatprep.subr.bf16.mxu0 0
    %8478 = vmatpush2.bf16.msra.mxu0 0
    %8479 = vmatprep.subr.bf16.mxu0 0
    %8480 = vmatpush2.bf16.msra.mxu0 0
    %8481 = vmatprep.subr.bf16.mxu0 0
    %8482 = vmatpush2.bf16.msra.mxu0 0
    %8483 = vmatprep.subr.bf16.mxu0 0
    %8484 = vmatpush2.bf16.msra.mxu0 0
    %8485 = vmatprep.subr.bf16.mxu0 0
    %8486 = vmatpush2.bf16.msra.mxu0 0
    %8487 = vmatprep.subr.bf16.mxu0 0
    %8488 = vmatpush2.bf16.msra.mxu0 0
    %8489 = vmatprep.mubr.bf16.mxu0 0
    %8490 = vmatmul.mubr.bf16.gmra.mxu0 %v8455
    %v8491 = vpop.f32.mrf.mxu0
    %v8492 = vadd.f32 0.0, %v8491
    %v8493 = vpop.f32.mrf.mxu0
    %v8494 = vadd.f32 0.0, %v8493
    %v8495 = vpop.f32.mrf.mxu0
    %v8496 = vpop.f32.mrf.mxu0
    %8497 = vdwg.mxu0
    %8498 = vmatprep.subr.bf16.mxu0 0
    %8499 = vmatpush1.bf16.msra.mxu0 0
    %8500 = vmatprep.subr.bf16.mxu0 0
    %8501 = vmatpush1.bf16.msra.mxu0 0
    %8502 = vmatprep.subr.bf16.mxu0 0
    %8503 = vmatpush1.bf16.msra.mxu0 %v6001
    %8504 = vmatprep.subr.bf16.mxu0 0
    %8505 = vmatpush1.bf16.msra.mxu0 %v5972
    %8506 = vmatprep.subr.bf16.mxu0 0
    %8507 = vmatpush1.bf16.msra.mxu0 %v5969
    %8508 = vmatprep.subr.bf16.mxu0 0
    %8509 = vmatpush1.bf16.msra.mxu0 %v5966
    %8510 = vmatprep.subr.bf16.mxu0 0
    %8511 = vmatpush1.bf16.msra.mxu0 %v5963
    %8512 = vmatprep.subr.bf16.mxu0 0
    %8513 = vmatpush1.bf16.msra.mxu0 %v5960
    %8514 = vmatprep.subr.bf16.mxu0 0
    %8515 = vmatpush2.bf16.msra.mxu0 0
    %8516 = vmatprep.subr.bf16.mxu0 0
    %8517 = vmatpush2.bf16.msra.mxu0 0
    %8518 = vmatprep.subr.bf16.mxu0 0
    %8519 = vmatpush2.bf16.msra.mxu0 0
    %8520 = vmatprep.subr.bf16.mxu0 0
    %8521 = vmatpush2.bf16.msra.mxu0 0
    %8522 = vmatprep.subr.bf16.mxu0 0
    %8523 = vmatpush2.bf16.msra.mxu0 0
    %8524 = vmatprep.subr.bf16.mxu0 0
    %8525 = vmatpush2.bf16.msra.mxu0 0
    %8526 = vmatprep.subr.bf16.mxu0 0
    %8527 = vmatpush2.bf16.msra.mxu0 0
    %8528 = vmatprep.subr.bf16.mxu0 0
    %8529 = vmatpush2.bf16.msra.mxu0 0
    %8530 = vmatprep.mubr.bf16.mxu0 0
    %8531 = vmatmul.mubr.bf16.gmra.mxu0 %v8455
    %v8532 = vpop.f32.mrf.mxu0
    %v8533 = vadd.f32 0.0, %v8532
    %v8534 = vpop.f32.mrf.mxu0
    %v8535 = vpop.f32.mrf.mxu0
    %v8536 = vpop.f32.mrf.mxu0
    %8537 = vdwg.mxu0
    %v8538 = vadd.f32 %v8451, %v8492
    %v8539 = vadd.f32 %v8452, %v8494
    %v8540 = vadd.f32 %v8453, %v8533
    %8543 = vrot.lane.b32.xlu0 %v8538, 48
    %v8544 = vpop.permute.xlu0 %8543
    %8545 = vrot.lane.b32.xlu0 %v8539, 48
    %v8546 = vpop.permute.xlu0 %8545
    %v8547 = vsel %vm6093, %v8544, %v8546
    %v8549 = vmax.f32 %v8538, %v8547
    %8551 = vrot.lane.b32.xlu0 %v8540, 48
    %v8552 = vpop.permute.xlu0 %8551
    %v8553 = vsel %vm6093, %v8546, %v8552
    %v8555 = vmax.f32 %v8539, %v8553
    %8557 = vrot.lane.b32.xlu0 %v8555, 96
    %v8558 = vpop.permute.xlu0 %8557
    %v8560 = vmax.f32 %v8549, %v8558
    %v8561 = vadd.f32 %v8560, %v6113
    %v8562 = vmax.f32 %v8561, 0.0
    %v8563 = vpack.c.bf16 %v8562, %v8562
    %s8564 = scalar_lea.vmem %s5, 160
    %v8565 = vld [vmem:[%s8564] sm:$0xf]
    %v8566 = vld [vmem:[%s8564 + $0x4] sm:$0xf]
    %v8567 = vld [vmem:[%s8564 + $0x8] sm:$0xf]
    %v8568 = vld [vmem:[%s8564 + $0xc] sm:$0xf]
    %v8569 = vld [vmem:[%s8564 + $0x10] sm:$0xf]
    %v8570 = vld [vmem:[%s8564 + $0x14] sm:$0xf]
    %v8571 = vld [vmem:[%s8564 + $0x18] sm:$0xf]
    %v8572 = vld [vmem:[%s8564 + $0x1c] sm:$0xf]
    %v8573 = vld [vmem:[%s8564 + $0x20] sm:$0xf]
    %v8574 = vld [vmem:[%s8564 + $0x24] sm:$0xf]
    %v8585 = vunpack.c.l.b16 %v8565
    %v8586 = vunpack.c.l.b16 %v8566
    %v8587 = vunpack.c.l.b16 %v8567
    %v8588 = vunpack.c.l.b16 %v8568
    %v8589 = vunpack.c.l.b16 %v8569
    %v8590 = vunpack.c.l.b16 %v8570
    %v8591 = vunpack.c.l.b16 %v8571
    %v8592 = vunpack.c.l.b16 %v8572
    %v8593 = vunpack.c.l.b16 %v8573
    %v8594 = vunpack.c.l.b16 %v8574
    %v8595 = vpack.c.b16 %v8586, %v8585
    %v8596 = vpack.c.b16 %v8588, %v8587
    %v8597 = vpack.c.b16 %v8590, %v8589
    %v8598 = vpack.c.b16 %v8592, %v8591
    %v8599 = vpack.c.b16 %v8594, %v8593
    %v8606 = vsel %vm6696, %v8563, 0
    %8608 = vmatprep.subr.bf16.mxu0 0
    %8609 = vmatpush1.bf16.msra.mxu0 0
    %8610 = vmatprep.subr.bf16.mxu0 0
    %8611 = vmatpush1.bf16.msra.mxu0 0
    %8612 = vmatprep.subr.bf16.mxu0 0
    %8613 = vmatpush1.bf16.msra.mxu0 0
    %8614 = vmatprep.subr.bf16.mxu0 0
    %8615 = vmatpush1.bf16.msra.mxu0 %v8599
    %8616 = vmatprep.subr.bf16.mxu0 0
    %8617 = vmatpush1.bf16.msra.mxu0 %v8598
    %8618 = vmatprep.subr.bf16.mxu0 0
    %8619 = vmatpush1.bf16.msra.mxu0 %v8597
    %8620 = vmatprep.subr.bf16.mxu0 0
    %8621 = vmatpush1.bf16.msra.mxu0 %v8596
    %8622 = vmatprep.subr.bf16.mxu0 0
    %8623 = vmatpush1.bf16.msra.mxu0 %v8595
    %8624 = vmatprep.subr.bf16.mxu0 0
    %8625 = vmatpush2.bf16.msra.mxu0 0
    %8626 = vmatprep.subr.bf16.mxu0 0
    %8627 = vmatpush2.bf16.msra.mxu0 0
    %8628 = vmatprep.subr.bf16.mxu0 0
    %8629 = vmatpush2.bf16.msra.mxu0 0
    %8630 = vmatprep.subr.bf16.mxu0 0
    %8631 = vmatpush2.bf16.msra.mxu0 0
    %8632 = vmatprep.subr.bf16.mxu0 0
    %8633 = vmatpush2.bf16.msra.mxu0 0
    %8634 = vmatprep.subr.bf16.mxu0 0
    %8635 = vmatpush2.bf16.msra.mxu0 0
    %8636 = vmatprep.subr.bf16.mxu0 0
    %8637 = vmatpush2.bf16.msra.mxu0 0
    %8638 = vmatprep.subr.bf16.mxu0 0
    %8639 = vmatpush2.bf16.msra.mxu0 0
    %8640 = vmatprep.mubr.bf16.mxu0 0
    %8641 = vmatmul.mubr.bf16.gmra.mxu0 %v8606
    %v8642 = vpop.f32.mrf.mxu0
    %v8643 = vadd.f32 0.0, %v8642
    %v8644 = vpop.f32.mrf.mxu0
    %v8645 = vpop.f32.mrf.mxu0
    %v8646 = vpop.f32.mrf.mxu0
    %8647 = vdwg.mxu0
    %v8648 = vadd.f32 %v8036, %v8643
    %v8649 = vld [vmem:[%s6] sm:$0x1]
    %v8651 = vlaneseq
    %v8652 = vshrl.u32 %v8651, 7
    %v8653 = vsub.s32 0, %v8652
    %v8654 = vrot.slane %v8649, %v8653
    %v8656 = vadd.f32 %v8648, %v8654
    %v8657 = vmax.f32 %v8656, 0.0
    %v8658 = vpack.c.bf16 %v8657, %v8657
    %v8659 = vld [vmem:[%s7] sm:$0xf]
    %v8660 = vld [vmem:[%s7 + $0x4] sm:$0xf]
    %v8661 = vld [vmem:[%s7 + $0x8] sm:$0xf]
    %v8662 = vld [vmem:[%s7 + $0xc] sm:$0xf]
    %v8663 = vld [vmem:[%s7 + $0x10] sm:$0xf]
    %v8664 = vld [vmem:[%s7 + $0x14] sm:$0xf]
    %v8665 = vld [vmem:[%s7 + $0x18] sm:$0xf]
    %v8666 = vld [vmem:[%s7 + $0x1c] sm:$0xf]
    %v8667 = vld [vmem:[%s7 + $0x20] sm:$0xf]
    %v8668 = vld [vmem:[%s7 + $0x24] sm:$0xf]
    %v8669 = vld [vmem:[%s7 + $0x28] sm:$0xf]
    %v8670 = vld [vmem:[%s7 + $0x2c] sm:$0xf]
    %v8671 = vld [vmem:[%s7 + $0x30] sm:$0xf]
    %v8672 = vld [vmem:[%s7 + $0x34] sm:$0xf]
    %v8673 = vld [vmem:[%s7 + $0x38] sm:$0xf]
    %v8674 = vld [vmem:[%s7 + $0x3c] sm:$0xf]
    %v8675 = vld [vmem:[%s8] sm:$0x1]
    %v8677 = vlaneseq
    %v8678 = vshrl.u32 %v8677, 7
    %v8679 = vsub.s32 0, %v8678
    %v8680 = vrot.slane %v8675, %v8679
    %v8698 = vunpack.c.l.b16 %v8659
    %v8699 = vunpack.c.l.b16 %v8660
    %v8700 = vunpack.c.l.b16 %v8661
    %v8701 = vunpack.c.l.b16 %v8662
    %v8702 = vunpack.c.l.b16 %v8663
    %v8703 = vunpack.c.l.b16 %v8664
    %v8704 = vunpack.c.l.b16 %v8665
    %v8705 = vunpack.c.l.b16 %v8666
    %v8706 = vunpack.c.l.b16 %v8667
    %v8707 = vunpack.c.l.b16 %v8668
    %v8708 = vunpack.c.l.b16 %v8669
    %v8709 = vunpack.c.l.b16 %v8670
    %v8710 = vunpack.c.l.b16 %v8671
    %v8711 = vunpack.c.l.b16 %v8672
    %v8712 = vunpack.c.l.b16 %v8673
    %v8713 = vunpack.c.l.b16 %v8674
    %v8714 = vpack.c.b16 %v8699, %v8698
    %v8715 = vpack.c.b16 %v8701, %v8700
    %v8716 = vpack.c.b16 %v8703, %v8702
    %v8717 = vpack.c.b16 %v8705, %v8704
    %v8718 = vpack.c.b16 %v8707, %v8706
    %v8719 = vpack.c.b16 %v8709, %v8708
    %v8720 = vpack.c.b16 %v8711, %v8710
    %v8721 = vpack.c.b16 %v8713, %v8712
    %8730 = vmatprep.subr.bf16.mxu0 0
    %8731 = vmatpush1.bf16.msra.mxu0 %v8721
    %8732 = vmatprep.subr.bf16.mxu0 0
    %8733 = vmatpush1.bf16.msra.mxu0 %v8720
    %8734 = vmatprep.subr.bf16.mxu0 0
    %8735 = vmatpush1.bf16.msra.mxu0 %v8719
    %8736 = vmatprep.subr.bf16.mxu0 0
    %8737 = vmatpush1.bf16.msra.mxu0 %v8718
    %8738 = vmatprep.subr.bf16.mxu0 0
    %8739 = vmatpush1.bf16.msra.mxu0 %v8717
    %8740 = vmatprep.subr.bf16.mxu0 0
    %8741 = vmatpush1.bf16.msra.mxu0 %v8716
    %8742 = vmatprep.subr.bf16.mxu0 0
    %8743 = vmatpush1.bf16.msra.mxu0 %v8715
    %8744 = vmatprep.subr.bf16.mxu0 0
    %8745 = vmatpush1.bf16.msra.mxu0 %v8714
    %8746 = vmatprep.subr.bf16.mxu0 0
    %8747 = vmatpush2.bf16.msra.mxu0 0
    %8748 = vmatprep.subr.bf16.mxu0 0
    %8749 = vmatpush2.bf16.msra.mxu0 0
    %8750 = vmatprep.subr.bf16.mxu0 0
    %8751 = vmatpush2.bf16.msra.mxu0 0
    %8752 = vmatprep.subr.bf16.mxu0 0
    %8753 = vmatpush2.bf16.msra.mxu0 0
    %8754 = vmatprep.subr.bf16.mxu0 0
    %8755 = vmatpush2.bf16.msra.mxu0 0
    %8756 = vmatprep.subr.bf16.mxu0 0
    %8757 = vmatpush2.bf16.msra.mxu0 0
    %8758 = vmatprep.subr.bf16.mxu0 0
    %8759 = vmatpush2.bf16.msra.mxu0 0
    %8760 = vmatprep.subr.bf16.mxu0 0
    %8761 = vmatpush2.bf16.msra.mxu0 0
    %8762 = vmatprep.mubr.bf16.mxu0 0
    %8763 = vmatmul.mubr.bf16.gmra.mxu0 %v8658
    %v8764 = vpop.f32.mrf.mxu0
    %v8765 = vadd.f32 %v8680, %v8764
    %v8766 = vpop.f32.mrf.mxu0
    %v8767 = vpop.f32.mrf.mxu0
    %v8768 = vpop.f32.mrf.mxu0
    %8769 = vdwg.mxu0
    %v8770 = vmax.f32 %v8765, 0.0
    %v8771 = vpack.c.bf16 %v8770, %v8770
    %v8772 = vld [vmem:[%s9] sm:$0xf]
    %v8773 = vld [vmem:[%s9 + $0x4] sm:$0xf]
    %v8774 = vld [vmem:[%s9 + $0x8] sm:$0xf]
    %v8775 = vld [vmem:[%s9 + $0xc] sm:$0xf]
    %v8776 = vld [vmem:[%s9 + $0x10] sm:$0xf]
    %v8777 = vld [vmem:[%s9 + $0x14] sm:$0xf]
    %v8778 = vld [vmem:[%s9 + $0x18] sm:$0xf]
    %v8779 = vld [vmem:[%s9 + $0x1c] sm:$0xf]
    %v8780 = vld [vmem:[%s9 + $0x20] sm:$0xf]
    %v8781 = vld [vmem:[%s9 + $0x24] sm:$0xf]
    %v8782 = vld [vmem:[%s9 + $0x28] sm:$0xf]
    %v8783 = vld [vmem:[%s9 + $0x2c] sm:$0xf]
    %v8784 = vld [vmem:[%s9 + $0x30] sm:$0xf]
    %v8785 = vld [vmem:[%s9 + $0x34] sm:$0xf]
    %v8786 = vld [vmem:[%s9 + $0x38] sm:$0xf]
    %v8787 = vld [vmem:[%s9 + $0x3c] sm:$0xf]
    %v8788 = vld [vmem:[%s10] sm:$0x1]
    %v8790 = vlaneseq
    %v8791 = vshrl.u32 %v8790, 7
    %v8792 = vsub.s32 0, %v8791
    %v8793 = vrot.slane %v8788, %v8792
    %v8811 = vunpack.c.l.b16 %v8772
    %v8812 = vunpack.c.l.b16 %v8773
    %v8813 = vunpack.c.l.b16 %v8774
    %v8814 = vunpack.c.l.b16 %v8775
    %v8815 = vunpack.c.l.b16 %v8776
    %v8816 = vunpack.c.l.b16 %v8777
    %v8817 = vunpack.c.l.b16 %v8778
    %v8818 = vunpack.c.l.b16 %v8779
    %v8819 = vunpack.c.l.b16 %v8780
    %v8820 = vunpack.c.l.b16 %v8781
    %v8821 = vunpack.c.l.b16 %v8782
    %v8822 = vunpack.c.l.b16 %v8783
    %v8823 = vunpack.c.l.b16 %v8784
    %v8824 = vunpack.c.l.b16 %v8785
    %v8825 = vunpack.c.l.b16 %v8786
    %v8826 = vunpack.c.l.b16 %v8787
    %v8827 = vpack.c.b16 %v8812, %v8811
    %v8828 = vpack.c.b16 %v8814, %v8813
    %v8829 = vpack.c.b16 %v8816, %v8815
    %v8830 = vpack.c.b16 %v8818, %v8817
    %v8831 = vpack.c.b16 %v8820, %v8819
    %v8832 = vpack.c.b16 %v8822, %v8821
    %v8833 = vpack.c.b16 %v8824, %v8823
    %v8834 = vpack.c.b16 %v8826, %v8825
    %8843 = vmatprep.subr.bf16.mxu0 0
    %8844 = vmatpush1.bf16.msra.mxu0 %v8834
    %8845 = vmatprep.subr.bf16.mxu0 0
    %8846 = vmatpush1.bf16.msra.mxu0 %v8833
    %8847 = vmatprep.subr.bf16.mxu0 0
    %8848 = vmatpush1.bf16.msra.mxu0 %v8832
    %8849 = vmatprep.subr.bf16.mxu0 0
    %8850 = vmatpush1.bf16.msra.mxu0 %v8831
    %8851 = vmatprep.subr.bf16.mxu0 0
    %8852 = vmatpush1.bf16.msra.mxu0 %v8830
    %8853 = vmatprep.subr.bf16.mxu0 0
    %8854 = vmatpush1.bf16.msra.mxu0 %v8829
    %8855 = vmatprep.subr.bf16.mxu0 0
    %8856 = vmatpush1.bf16.msra.mxu0 %v8828
    %8857 = vmatprep.subr.bf16.mxu0 0
    %8858 = vmatpush1.bf16.msra.mxu0 %v8827
    %8859 = vmatprep.subr.bf16.mxu0 0
    %8860 = vmatpush2.bf16.msra.mxu0 0
    %8861 = vmatprep.subr.bf16.mxu0 0
    %8862 = vmatpush2.bf16.msra.mxu0 0
    %8863 = vmatprep.subr.bf16.mxu0 0
    %8864 = vmatpush2.bf16.msra.mxu0 0
    %8865 = vmatprep.subr.bf16.mxu0 0
    %8866 = vmatpush2.bf16.msra.mxu0 0
    %8867 = vmatprep.subr.bf16.mxu0 0
    %8868 = vmatpush2.bf16.msra.mxu0 0
    %8869 = vmatprep.subr.bf16.mxu0 0
    %8870 = vmatpush2.bf16.msra.mxu0 0
    %8871 = vmatprep.subr.bf16.mxu0 0
    %8872 = vmatpush2.bf16.msra.mxu0 0
    %8873 = vmatprep.subr.bf16.mxu0 0
    %8874 = vmatpush2.bf16.msra.mxu0 0
    %8875 = vmatprep.mubr.bf16.mxu0 0
    %8876 = vmatmul.mubr.bf16.gmra.mxu0 %v8771
    %v8877 = vpop.f32.mrf.mxu0
    %v8878 = vadd.f32 %v8793, %v8877
    %v8879 = vpop.f32.mrf.mxu0
    %v8880 = vpop.f32.mrf.mxu0
    %v8881 = vpop.f32.mrf.mxu0
    %8882 = vdwg.mxu0
    %v8883 = vsel %vm4987, %v8878, -inf
    %8884 = vmax.xlane.f32.xlu0 %v8883
    %v8885 = vpop.xlane.xlu0 %8884
    %v8886 = vsub.f32 %v8878, %v8885
    %v8887 = vmul.f32 %v8886, 1.442695
    %v8888 = vpow.pop %v8887
    %v8889 = vsel %vm4987, %v8888, 0.0
    %8890 = vadd.xlane.f32.xlu0 %v8889
    %v8891 = vpop.xlane.xlu0 %8890
    %v8892 = vlog2.pop %v8891
    %v8893 = vmul.f32 %v8892, 0.6931472
    %v8894 = vsub.f32 %v8886, %v8893
    %8895 = vst [vmem:[#allocation2] sm:$0x3] %v8894
    // Predicated region
    $region46: #{cnn_cifar_forward.1} parent=1 // pred_check
      _
    $region47: #{cnn_cifar_forward.1} parent=1 // pred_check_branch
      %8897 = sbr.rel (0) target = $region49
    $region48: #{cnn_cifar_forward.1} parent=1 // pred_region
      %s8899 = ssub.s32 32, 32
      %8900 = vsyncadd [#allocation3], %s8899
      %s8902 = sshll.u32 [#allocation2], 4
      %s8903 = int_to_ptr.vmem [resolvable:$true] %s8902
      %8905 = dma.vmem_to_hbm [thread:$0]  %s8903, 32, %s11, [#allocation3]
    $region49: #{cnn_cifar_forward.1} parent=1 // pred_fallthru
      _
    // Predicated region
    $region50: #{cnn_cifar_forward.1} parent=1 // pred_check
      _
    $region51: #{cnn_cifar_forward.1} parent=1 // pred_check_branch
      %8907 = sbr.rel (0) target = $region53
    $region52: #{cnn_cifar_forward.1} parent=1 // pred_region
      %8908 = dma.done [#allocation3], 32
    $region53: #{cnn_cifar_forward.1} parent=1 // pred_fallthru
      _
    %8909 = vsyncpa [#allocation3], 1

</llo_original>
